<compile_context>
chip_gen: v6e
topology: v6e:2x2x1
jax: 0.10.0
libtpu: 0.0.40
codegen_flags: <defaults>
</compile_context>

<pallas_src>
import jax
import jax.numpy as jnp
from jax import lax
from jax.experimental import pallas as pl
from jax.experimental.pallas import tpu as pltpu

EPS = 1e-5
C_IN = 256
HW = 64                 # 8 * 8
C_POL = 128
K_POL = HW * C_POL      # 8192
N_MOVES = HW * 73       # 4672
N_PAD = 4864            # 4672 padded up so each half (2432) is a multiple of 128
TN = N_PAD // 2         # 2432  -> 2 column blocks (v7x: one per TensorCore)
TK = 1024               # K tile for the weight stream (bf16: ~4.75 MiB/tile)


# ----------------------------- kernels ------------------------------------ #

def head_conv_kernel(x_ref, wp_ref, bp_ref, wv_ref, bv_ref, pmap_ref, vmap_ref):
    """Both 1x1 convs (BatchNorm pre-folded) + ReLU.  x_ref: (N*64, 256) f32."""
    x = x_ref[...]
    # policy head: conv(256->128)+BN+relu, emitted directly in bf16 for the FC
    p = jnp.dot(x, wp_ref[...], preferred_element_type=jnp.float32) + bp_ref[...]
    pmap_ref[...] = jnp.maximum(p, 0.0).astype(pmap_ref.dtype)
    # value head: conv(256->1)+BN+relu  (tiny; lane-sparse store is negligible)
    v = jnp.dot(x, wv_ref[...], preferred_element_type=jnp.float32) + bv_ref[...]
    vmap_ref[...] = jnp.maximum(v, 0.0)


def policy_fc_kernel(p_ref, w_ref, b_ref, out_ref, acc_ref):
    """fc(8192 -> 4864 padded) logits.  grid = (column_block j, K tile k).

    bf16 LHS/weight, f32 accumulation.  Column blocks are 'parallel' so a
    v7x megacore streams half the weight per TensorCore.
    """
    k = pl.program_id(1)

    @pl.when(k == 0)
    def _():
        acc_ref[...] = jnp.zeros_like(acc_ref)

    acc_ref[...] += jnp.dot(p_ref[...], w_ref[...],
                            preferred_element_type=jnp.float32)

    @pl.when(k == pl.num_programs(1) - 1)
    def _():
        out_ref[...] = acc_ref[...] + b_ref[...]   # padded cols get -1e30 bias


def tail_kernel(logits_ref, vflat_ref, w1_ref, b1_ref, w2_ref, b2_ref,
                probs_ref, v_ref):
    """Row softmax over the padded logits + the whole value-head FC chain."""
    logits = logits_ref[...]                                   # (N, 4864) f32
    m = jnp.max(logits, axis=-1, keepdims=True)
    e = jnp.exp(logits - m)                                    # padded cols -> 0
    s = jnp.sum(e, axis=-1, keepdims=True)
    probs_ref[...] = e * pl.reciprocal(s, approx=True)         # EUP slot, ~free

    v = vflat_ref[...]                                         # (N, 64)
    h = jnp.maximum(
        jnp.dot(v, w1_ref[...], preferred_element_type=jnp.float32) + b1_ref[...],
        0.0)
    v_ref[...] = jnp.tanh(
        jnp.dot(h, w2_ref[...], preferred_element_type=jnp.float32) + b2_ref[...])


# ----------------------------- wrapper ------------------------------------ #

def outblock_forward(x, prep):
    N = x.shape[0]
    x_hw = jnp.transpose(x.astype(jnp.float32), (0, 2, 3, 1)).reshape(N * HW, C_IN)

    vmem = pl.BlockSpec(memory_space=pltpu.MemorySpace.VMEM)

    # --- conv heads (whole problem fits in VMEM; single invocation) ---------
    pmap, vmap = pl.pallas_call(
        head_conv_kernel,
        out_shape=(jax.ShapeDtypeStruct((N * HW, C_POL), jnp.bfloat16),
                   jax.ShapeDtypeStruct((N * HW, 1), jnp.float32)),
        in_specs=[vmem] * 5,
        out_specs=(vmem, vmem),
    )(x_hw, prep["wp"], prep["bp"], prep["wv"], prep["bv"])

    # flatten order already folded into wfc rows -> both reshapes are free
    p_flat = pmap.reshape(N, K_POL)          # bf16 (N, 8192)
    v_flat = vmap.reshape(N, HW)             # f32  (N, 64)

    # --- big policy FC: stream bf16 weight, split columns across cores ------
    logits_pad = pl.pallas_call(
        policy_fc_kernel,
        out_shape=jax.ShapeDtypeStruct((N, N_PAD), jnp.float32),
        grid_spec=pltpu.PrefetchScalarGridSpec(
            num_scalar_prefetch=0,
            grid=(N_PAD // TN, K_POL // TK),                 # (2, 8)
            in_specs=[pl.BlockSpec((N, TK), lambda j, k: (0, k)),
                      pl.BlockSpec((TK, TN), lambda j, k: (k, j)),
                      pl.BlockSpec((1, TN), lambda j, k: (0, j))],
            out_specs=pl.BlockSpec((N, TN), lambda j, k: (0, j)),
            scratch_shapes=[pltpu.VMEM((N, TN), jnp.float32)]),
        compiler_params=pltpu.CompilerParams(
            dimension_semantics=("parallel", "arbitrary"),
            vmem_limit_bytes=32 * 1024 * 1024),
        cost_estimate=pl.CostEstimate(
            flops=2 * N * K_POL * N_PAD,
            transcendentals=0,
            bytes_accessed=K_POL * N_PAD * 2            # bf16 weight stream
                           + (N_PAD // TN) * N * K_POL * 2
                           + N * N_PAD * 4),
    )(p_flat, prep["wfc"], prep["bfc"])

    # --- epilogue: softmax over full row + value-head FCs (fused, tiny) -----
    probs_pad, v = pl.pallas_call(
        tail_kernel,
        out_shape=(jax.ShapeDtypeStruct((N, N_PAD), jnp.float32),
                   jax.ShapeDtypeStruct((N, 1), jnp.float32)),
        in_specs=[vmem] * 6,
        out_specs=(vmem, vmem),
    )(logits_pad, v_flat, prep["w1"], prep["b1"], prep["w2"], prep["b2"])

    return probs_pad[:, :N_MOVES], v


# ----------------------------- params -------------------------------------- #

def init_params(key):
    """Synthetic parameters in the original PyTorch layout."""
    ks = jax.random.split(key, 14)
    f32 = jnp.float32
    return {
        # conv 256->1 (1x1) weight stored as (Cin, Cout)
        "wc":  jax.random.normal(ks[0], (C_IN, 1), f32) * 0.05,
        "bc":  jax.random.normal(ks[1], (1, 1), f32) * 0.05,
        # conv1 256->128 (1x1)
        "wc1": jax.random.normal(ks[2], (C_IN, C_POL), f32) * 0.05,
        "bc1": jax.random.normal(ks[3], (1, C_POL), f32) * 0.05,
        # fc1 64->64, fc2 64->1 (stored as (in, out))
        "w1":  jax.random.normal(ks[4], (HW, 64), f32) * 0.05,
        "b1":  jax.random.normal(ks[5], (1, 64), f32) * 0.05,
        "w2":  jax.random.normal(ks[6], (64, 1), f32) * 0.05,
        "b2":  jax.random.normal(ks[7], (1, 1), f32) * 0.05,
        # fc 8192->4672 (stored (in, out); row index = PyTorch flatten c*64+hw)
        "wfc": jax.random.normal(ks[8], (K_POL, N_MOVES), f32) * 0.02,
        "bfc": jax.random.normal(ks[9], (1, N_MOVES), f32) * 0.02,
        # BatchNorm(1) params / running stats
        "g0":    jnp.ones((1, 1), f32),
        "beta0": jnp.zeros((1, 1), f32),
        "m0":    jax.random.normal(ks[10], (1, 1), f32) * 0.1,
        "var0":  jnp.abs(jax.random.normal(ks[11], (1, 1), f32)) + 0.5,
        # BatchNorm(128) params / running stats
        "g1":    jnp.ones((1, C_POL), f32),
        "beta1": jnp.zeros((1, C_POL), f32),
        "m1":    jax.random.normal(ks[12], (1, C_POL), f32) * 0.1,
        "var1":  jnp.abs(jax.random.normal(ks[13], (1, C_POL), f32)) + 0.5,
    }


def prepare_params(p):
    """One-time host-side weight prep: fold BN into the 1x1 convs, fold the
    PyTorch flatten permutation into the FC rows, pad + cast the FC weight to
    bf16, pad the FC bias with -1e30 so padded columns vanish in softmax."""
    f32 = jnp.float32
    # value head conv + BN(1)
    s0 = p["g0"] * lax.rsqrt(p["var0"] + EPS)
    wv = (p["wc"] * s0).astype(f32)                              # (256, 1)
    bv = ((p["bc"] - p["m0"]) * s0 + p["beta0"]).astype(f32)     # (1, 1)
    # policy head conv + BN(128)
    s1 = p["g1"] * lax.rsqrt(p["var1"] + EPS)
    wp = (p["wc1"] * s1).astype(f32)                             # (256, 128)
    bp = ((p["bc1"] - p["m1"]) * s1 + p["beta1"]).astype(f32)    # (1, 128)
    # permute FC rows from PyTorch flatten order (c*64+hw) to ours (hw*128+c)
    wfc = p["wfc"].reshape(C_POL, HW, N_MOVES).transpose(1, 0, 2).reshape(
        K_POL, N_MOVES)
    wfc_pad = jnp.zeros((K_POL, N_PAD), jnp.bfloat16)
    wfc_pad = wfc_pad.at[:, :N_MOVES].set(wfc.astype(jnp.bfloat16))
    bfc_pad = jnp.full((1, N_PAD), -1e30, f32)
    bfc_pad = bfc_pad.at[:, :N_MOVES].set(p["bfc"].astype(f32))
    return {
        "wp": wp, "bp": bp, "wv": wv, "bv": bv,
        "wfc": wfc_pad, "bfc": bfc_pad,
        "w1": p["w1"], "b1": p["b1"], "w2": p["w2"], "b2": p["b2"],
    }


if __name__ == "__main__":
    key = jax.random.PRNGKey(0)
    kx, kp = jax.random.split(key)
    N = 2
    x = jax.random.normal(kx, (N, C_IN, 8, 8), jnp.float32)
    params = init_params(kp)
    prep = jax.tree_util.tree_map(jnp.asarray, prepare_params(params))

    fwd = jax.jit(outblock_forward)
    probs, v = fwd(x, prep)
    jax.block_until_ready((probs, v))

    assert probs.shape == (N, N_MOVES)
    assert v.shape == (N, 1)
    assert bool(jnp.isfinite(probs).all()) and bool(jnp.isfinite(v).all())
    # softmax rows should sum to ~1 (approx reciprocal + bf16 matmul tolerance)
    assert abs(float(jnp.sum(probs[0])) - 1.0) < 5e-2
    print("KERNEL_OK")
</pallas_src>

<mosaic_0001>
module attributes {stable_mosaic.version = 11 : i64} {
  func.func @head_conv_kernel(%arg0: memref<128x256xf32, #tpu.memory_space<vmem>>, %arg1: memref<256x128xf32, #tpu.memory_space<vmem>>, %arg2: memref<1x128xf32, #tpu.memory_space<vmem>>, %arg3: memref<256x1xf32, #tpu.memory_space<vmem>>, %arg4: memref<1x1xf32, #tpu.memory_space<vmem>>, %arg5: memref<128x128xbf16, #tpu.memory_space<vmem>>, %arg6: memref<128x1xf32, #tpu.memory_space<vmem>>) attributes {dimension_semantics = [], scalar_prefetch = 0 : i64, scratch_operands = 0 : i64, tpu.core_type = #tpu.core_type<tc>} {
    %c0 = arith.constant 0 : index
    %c0_0 = arith.constant 0 : index
    %0 = vector.load %arg0[%c0, %c0_0] : memref<128x256xf32, #tpu.memory_space<vmem>>, vector<128x256xf32>
    %c0_1 = arith.constant 0 : index
    %c0_2 = arith.constant 0 : index
    %1 = vector.load %arg1[%c0_1, %c0_2] : memref<256x128xf32, #tpu.memory_space<vmem>>, vector<256x128xf32>
    %cst = arith.constant dense<0.000000e+00> : vector<128x128xf32>
    %2 = tpu.matmul %0, %1, %cst {dimension_numbers = #tpu.dot_dimension_numbers<[1], [0], [0], [1], [0, 0, 1, 1], [], []>} : vector<128x256xf32>, vector<256x128xf32>, vector<128x128xf32> -> vector<128x128xf32>
    %c0_3 = arith.constant 0 : index
    %c0_4 = arith.constant 0 : index
    %3 = vector.load %arg2[%c0_3, %c0_4] : memref<1x128xf32, #tpu.memory_space<vmem>>, vector<1x128xf32>
    %4 = vector.broadcast %3 : vector<1x128xf32> to vector<128x128xf32>
    %5 = arith.addf %2, %4 : vector<128x128xf32>
    %cst_5 = arith.constant 0.000000e+00 : f32
    %6 = vector.broadcast %cst_5 : f32 to vector<128x128xf32>
    %7 = arith.maximumf %5, %6 : vector<128x128xf32>
    %8 = arith.truncf %7 : vector<128x128xf32> to vector<128x128xbf16>
    %c0_6 = arith.constant 0 : index
    %c0_7 = arith.constant 0 : index
    %9 = vector.load %arg5[%c0_6, %c0_7] : memref<128x128xbf16, #tpu.memory_space<vmem>>, vector<128x128xbf16>
    tpu.vector_store %arg5[%c0_6, %c0_7], %8 {strides = array<i32>} : memref<128x128xbf16, #tpu.memory_space<vmem>>, vector<128x128xbf16>,
    %c0_8 = arith.constant 0 : index
    %c0_9 = arith.constant 0 : index
    %10 = vector.load %arg3[%c0_8, %c0_9] : memref<256x1xf32, #tpu.memory_space<vmem>>, vector<256x1xf32>
    %cst_10 = arith.constant dense<0.000000e+00> : vector<128x1xf32>
    %11 = tpu.matmul %0, %10, %cst_10 {dimension_numbers = #tpu.dot_dimension_numbers<[1], [0], [0], [1], [0, 0, 1, 1], [], []>} : vector<128x256xf32>, vector<256x1xf32>, vector<128x1xf32> -> vector<128x1xf32>
    %c0_11 = arith.constant 0 : index
    %c0_12 = arith.constant 0 : index
    %12 = vector.load %arg4[%c0_11, %c0_12] : memref<1x1xf32, #tpu.memory_space<vmem>>, vector<1x1xf32>
    %13 = vector.broadcast %12 : vector<1x1xf32> to vector<128x1xf32>
    %14 = arith.addf %11, %13 : vector<128x1xf32>
    %cst_13 = arith.constant 0.000000e+00 : f32
    %15 = vector.broadcast %cst_13 : f32 to vector<128x1xf32>
    %16 = arith.maximumf %14, %15 : vector<128x1xf32>
    %c0_14 = arith.constant 0 : index
    %c0_15 = arith.constant 0 : index
    %17 = vector.load %arg6[%c0_14, %c0_15] : memref<128x1xf32, #tpu.memory_space<vmem>>, vector<128x1xf32>
    tpu.vector_store %arg6[%c0_14, %c0_15], %16 {strides = array<i32>} : memref<128x1xf32, #tpu.memory_space<vmem>>, vector<128x1xf32>,
    return
  }
}

module attributes {stable_mosaic.version = 11 : i64} {
  func.func @policy_fc_kernel(%arg0: i32, %arg1: i32, %arg2: memref<2x1024xbf16, #tpu.memory_space<vmem>>, %arg3: memref<1024x2432xbf16, #tpu.memory_space<vmem>>, %arg4: memref<1x2432xf32, #tpu.memory_space<vmem>>, %arg5: memref<2x2432xf32, #tpu.memory_space<vmem>>, %arg6: memref<2x2432xf32, #tpu.memory_space<vmem>>) attributes {dimension_semantics = [#tpu.dimension_semantics<parallel>, #tpu.dimension_semantics<arbitrary>], iteration_bounds = array<i64: 2, 8>, scalar_prefetch = 0 : i64, scratch_operands = 1 : i64, tpu.core_type = #tpu.core_type<tc>, window_params = [{transform_indices = @transform_0, window_bounds = array<i64: 2, 1024>}, {transform_indices = @transform_1, window_bounds = array<i64: 1024, 2432>}, {transform_indices = @transform_2, window_bounds = array<i64: 1, 2432>}, {transform_indices = @transform_3, window_bounds = array<i64: 2, 2432>}]} {
    %c0_i32 = arith.constant 0 : i32
    %0 = arith.cmpi eq, %arg1, %c0_i32 : i32
    %1 = arith.extui %0 : i1 to i32
    %c0_i32_0 = arith.constant 0 : i32
    %2 = arith.cmpi ne, %1, %c0_i32_0 : i32
    scf.if %2 {
      %cst_9 = arith.constant 0.000000e+00 : f32
      %12 = vector.broadcast %cst_9 : f32 to vector<2x2432xf32>
      %c0_10 = arith.constant 0 : index
      %c0_11 = arith.constant 0 : index
      %13 = vector.load %arg6[%c0_10, %c0_11] : memref<2x2432xf32, #tpu.memory_space<vmem>>, vector<2x2432xf32>
      tpu.vector_store %arg6[%c0_10, %c0_11], %12 {strides = array<i32>} : memref<2x2432xf32, #tpu.memory_space<vmem>>, vector<2x2432xf32>,
    } else {
    }
    %c0 = arith.constant 0 : index
    %c0_1 = arith.constant 0 : index
    %3 = vector.load %arg6[%c0, %c0_1] : memref<2x2432xf32, #tpu.memory_space<vmem>>, vector<2x2432xf32>
    %c0_2 = arith.constant 0 : index
    %c0_3 = arith.constant 0 : index
    %4 = vector.load %arg2[%c0_2, %c0_3] : memref<2x1024xbf16, #tpu.memory_space<vmem>>, vector<2x1024xbf16>
    %c0_4 = arith.constant 0 : index
    %c0_5 = arith.constant 0 : index
    %5 = vector.load %arg3[%c0_4, %c0_5] : memref<1024x2432xbf16, #tpu.memory_space<vmem>>, vector<1024x2432xbf16>
    %cst = arith.constant dense<0.000000e+00> : vector<2x2432xf32>
    %6 = tpu.matmul %4, %5, %cst {dimension_numbers = #tpu.dot_dimension_numbers<[1], [0], [0], [1], [0, 0, 1, 1], [], []>} : vector<2x1024xbf16>, vector<1024x2432xbf16>, vector<2x2432xf32> -> vector<2x2432xf32>
    %7 = arith.addf %3, %6 : vector<2x2432xf32>
    %c0_6 = arith.constant 0 : index
    %c0_7 = arith.constant 0 : index
    %8 = vector.load %arg6[%c0_6, %c0_7] : memref<2x2432xf32, #tpu.memory_space<vmem>>, vector<2x2432xf32>
    tpu.vector_store %arg6[%c0_6, %c0_7], %7 {strides = array<i32>} : memref<2x2432xf32, #tpu.memory_space<vmem>>, vector<2x2432xf32>,
    %c7_i32 = arith.constant 7 : i32
    %9 = arith.cmpi eq, %arg1, %c7_i32 : i32
    %10 = arith.extui %9 : i1 to i32
    %c0_i32_8 = arith.constant 0 : i32
    %11 = arith.cmpi ne, %10, %c0_i32_8 : i32
    scf.if %11 {
      %c0_9 = arith.constant 0 : index
      %c0_10 = arith.constant 0 : index
      %12 = vector.load %arg6[%c0_9, %c0_10] : memref<2x2432xf32, #tpu.memory_space<vmem>>, vector<2x2432xf32>
      %c0_11 = arith.constant 0 : index
      %c0_12 = arith.constant 0 : index
      %13 = vector.load %arg4[%c0_11, %c0_12] : memref<1x2432xf32, #tpu.memory_space<vmem>>, vector<1x2432xf32>
      %14 = vector.broadcast %13 : vector<1x2432xf32> to vector<2x2432xf32>
      %15 = arith.addf %12, %14 : vector<2x2432xf32>
      %c0_13 = arith.constant 0 : index
      %c0_14 = arith.constant 0 : index
      %16 = vector.load %arg5[%c0_13, %c0_14] : memref<2x2432xf32, #tpu.memory_space<vmem>>, vector<2x2432xf32>
      tpu.vector_store %arg5[%c0_13, %c0_14], %15 {strides = array<i32>} : memref<2x2432xf32, #tpu.memory_space<vmem>>, vector<2x2432xf32>,
    } else {
    }
    return
  }
  func.func @transform_0(%arg0: i32, %arg1: i32) -> (i32, i32) {
    %c0_i32 = arith.constant 0 : i32
    %c0_i32_0 = arith.constant 0 : i32
    return %c0_i32, %arg1 : i32, i32
  }
  func.func @transform_1(%arg0: i32, %arg1: i32) -> (i32, i32) {
    %c0_i32 = arith.constant 0 : i32
    return %arg1, %arg0 : i32, i32
  }
  func.func @transform_2(%arg0: i32, %arg1: i32) -> (i32, i32) {
    %c0_i32 = arith.constant 0 : i32
    %c0_i32_0 = arith.constant 0 : i32
    return %c0_i32, %arg0 : i32, i32
  }
  func.func @transform_3(%arg0: i32, %arg1: i32) -> (i32, i32) {
    %c0_i32 = arith.constant 0 : i32
    %c0_i32_0 = arith.constant 0 : i32
    return %c0_i32, %arg0 : i32, i32
  }
}

module attributes {stable_mosaic.version = 11 : i64} {
  func.func @tail_kernel(%arg0: memref<2x4864xf32, #tpu.memory_space<vmem>>, %arg1: memref<2x64xf32, #tpu.memory_space<vmem>>, %arg2: memref<64x64xf32, #tpu.memory_space<vmem>>, %arg3: memref<1x64xf32, #tpu.memory_space<vmem>>, %arg4: memref<64x1xf32, #tpu.memory_space<vmem>>, %arg5: memref<1x1xf32, #tpu.memory_space<vmem>>, %arg6: memref<2x4864xf32, #tpu.memory_space<vmem>>, %arg7: memref<2x1xf32, #tpu.memory_space<vmem>>) attributes {dimension_semantics = [], scalar_prefetch = 0 : i64, scratch_operands = 0 : i64, tpu.core_type = #tpu.core_type<tc>} {
    %c0 = arith.constant 0 : index
    %c0_0 = arith.constant 0 : index
    %0 = vector.load %arg0[%c0, %c0_0] : memref<2x4864xf32, #tpu.memory_space<vmem>>, vector<2x4864xf32>
    %cst = arith.constant dense<0xFF800000> : vector<2xf32>
    %1 = vector.multi_reduction <maximumf>, %0, %cst [1] : vector<2x4864xf32> to vector<2xf32>
    %2 = vector.shape_cast %1 : vector<2xf32> to vector<2x1xf32>
    %3 = vector.broadcast %2 : vector<2x1xf32> to vector<2x4864xf32>
    %4 = arith.subf %0, %3 : vector<2x4864xf32>
    %5 = math.exp %4 : vector<2x4864xf32>
    %cst_1 = arith.constant dense<0.000000e+00> : vector<2xf32>
    %6 = vector.multi_reduction <add>, %5, %cst_1 [1] : vector<2x4864xf32> to vector<2xf32>
    %7 = vector.shape_cast %6 : vector<2xf32> to vector<2x1xf32>
    %8 = tpu.reciprocal %7 {approx = true} : vector<2x1xf32> -> vector<2x1xf32>
    %9 = vector.broadcast %8 : vector<2x1xf32> to vector<2x4864xf32>
    %10 = arith.mulf %5, %9 : vector<2x4864xf32>
    %c0_2 = arith.constant 0 : index
    %c0_3 = arith.constant 0 : index
    %11 = vector.load %arg6[%c0_2, %c0_3] : memref<2x4864xf32, #tpu.memory_space<vmem>>, vector<2x4864xf32>
    tpu.vector_store %arg6[%c0_2, %c0_3], %10 {strides = array<i32>} : memref<2x4864xf32, #tpu.memory_space<vmem>>, vector<2x4864xf32>,
    %c0_4 = arith.constant 0 : index
    %c0_5 = arith.constant 0 : index
    %12 = vector.load %arg1[%c0_4, %c0_5] : memref<2x64xf32, #tpu.memory_space<vmem>>, vector<2x64xf32>
    %c0_6 = arith.constant 0 : index
    %c0_7 = arith.constant 0 : index
    %13 = vector.load %arg2[%c0_6, %c0_7] : memref<64x64xf32, #tpu.memory_space<vmem>>, vector<64x64xf32>
    %cst_8 = arith.constant dense<0.000000e+00> : vector<2x64xf32>
    %14 = tpu.matmul %12, %13, %cst_8 {dimension_numbers = #tpu.dot_dimension_numbers<[1], [0], [0], [1], [0, 0, 1, 1], [], []>} : vector<2x64xf32>, vector<64x64xf32>, vector<2x64xf32> -> vector<2x64xf32>
    %c0_9 = arith.constant 0 : index
    %c0_10 = arith.constant 0 : index
    %15 = vector.load %arg3[%c0_9, %c0_10] : memref<1x64xf32, #tpu.memory_space<vmem>>, vector<1x64xf32>
    %16 = vector.broadcast %15 : vector<1x64xf32> to vector<2x64xf32>
    %17 = arith.addf %14, %16 : vector<2x64xf32>
    %cst_11 = arith.constant 0.000000e+00 : f32
    %18 = vector.broadcast %cst_11 : f32 to vector<2x64xf32>
    %19 = arith.maximumf %17, %18 : vector<2x64xf32>
    %c0_12 = arith.constant 0 : index
    %c0_13 = arith.constant 0 : index
    %20 = vector.load %arg4[%c0_12, %c0_13] : memref<64x1xf32, #tpu.memory_space<vmem>>, vector<64x1xf32>
    %cst_14 = arith.constant dense<0.000000e+00> : vector<2x1xf32>
    %21 = tpu.matmul %19, %20, %cst_14 {dimension_numbers = #tpu.dot_dimension_numbers<[1], [0], [0], [1], [0, 0, 1, 1], [], []>} : vector<2x64xf32>, vector<64x1xf32>, vector<2x1xf32> -> vector<2x1xf32>
    %c0_15 = arith.constant 0 : index
    %c0_16 = arith.constant 0 : index
    %22 = vector.load %arg5[%c0_15, %c0_16] : memref<1x1xf32, #tpu.memory_space<vmem>>, vector<1x1xf32>
    %23 = vector.broadcast %22 : vector<1x1xf32> to vector<2x1xf32>
    %24 = arith.addf %21, %23 : vector<2x1xf32>
    %25 = math.tanh %24 : vector<2x1xf32>
    %c0_17 = arith.constant 0 : index
    %c0_18 = arith.constant 0 : index
    %26 = vector.load %arg7[%c0_17, %c0_18] : memref<2x1xf32, #tpu.memory_space<vmem>>, vector<2x1xf32>
    tpu.vector_store %arg7[%c0_17, %c0_18], %25 {strides = array<i32>} : memref<2x1xf32, #tpu.memory_space<vmem>>, vector<2x1xf32>,
    return
  }
}

</mosaic_0001>

<llo_original>
// kernel: outblock_forward.3
$region0: #{outblock_forward.3}
  #allocation0 [shape = 'u32[]', space=smem, size = 0x4, offset = 0x4, fixed_abs, tag = 'smem constant byte address 0x4 - core index']
  #allocation1 [shape = 'u32[144,128]{1,0:T(1,128)}', space=vmem, size = 0x12000, scoped, tag = 'internal scratch']
  #allocation2 [shape = 'f32[1,1]{1,0:T(1,128)S(1)}', space=vmem, size = 0x200, scoped, tag = 'scoped memory for outblock_forward.3']
  %s0 = inlined_call_operand.hbm [shape: f32[128,256], index: 0, kind: input, shape index: {}]
  %s1 = inlined_call_operand.hbm [shape: f32[256,128], index: 1, kind: input, shape index: {}]
  %s2 = inlined_call_operand.hbm [shape: f32[1,128], index: 2, kind: input, shape index: {}]
  %s3 = inlined_call_operand.vmem [shape: f32[256,1], index: 3, kind: input, shape index: {}]
  %s4 = inlined_call_operand.<no memory space> [shape: f32[1,1], index: 4, kind: input, shape index: {}]
  %s5 = inlined_call_operand.vmem [shape: bf16[128,128], index: 5, kind: output, shape index: {0}]
  %s6 = inlined_call_operand.vmem [shape: f32[128,1], index: 6, kind: output, shape index: {1}]
  %7 = xla_tuple %s5, %s6
  %s8 = sld [smem:[#allocation0]]
  $region50: #{outblock_forward.3} parent=0
    _
  %s10 = ssub.s32 1, %s8
  %s11 = scalar_select 0, %s10, %s8
  %v12 = vstv %s4
  %13 = vst [vmem:[#allocation2] sm:$0x1] %v12
  $region1: #{outblock_forward.3} parent=0
    #allocation3 [shape = 'u8[131072]{0}', space=vmem, size = 0x20000, scoped, tag = 'input window, operand 0, single buffered']
    #allocation4 [shape = 's32[1]{0}', space=sflag, size = 0x4, scoped, tag = 'scoped memory for outblock_forward.3']
    #allocation5 [shape = 'u8[131072]{0}', space=vmem, size = 0x20000, scoped, tag = 'input window, operand 1, single buffered']
    #allocation6 [shape = 's32[1]{0}', space=sflag, size = 0x4, scoped, tag = 'scoped memory for outblock_forward.3']
    #allocation7 [shape = 'u8[512]{0}', space=vmem, size = 0x400, scoped, tag = 'input window, operand 2, single buffered']
    %14 = vsyncpa [#allocation4], 0
    %15 = vsyncpa [#allocation6], 0
    // Predicated region
    $region2: #{outblock_forward.3} parent=1 // pred_check
      _
    $region3: #{outblock_forward.3} parent=1 // pred_check_branch
      %17 = sbr.rel (0) target = $region5
    $region4: #{outblock_forward.3} parent=1 // pred_region
      %s19 = ssub.s32 4096, 4096
      %20 = vsyncadd [#allocation4], %s19
      %s21 = sshll.u32 [#allocation3], 4
      %s22 = int_to_ptr.vmem [resolvable:$true] %s21
      %27 = dma.hbm_to_vmem [thread:$0]  %s0, 4096, %s22, [#allocation4], 256, 256, 16
    $region5: #{outblock_forward.3} parent=1 // pred_fallthru
      _
    // Predicated region
    $region6: #{outblock_forward.3} parent=1 // pred_check
      _
    $region7: #{outblock_forward.3} parent=1 // pred_check_branch
      %29 = sbr.rel (0) target = $region9
    $region8: #{outblock_forward.3} parent=1 // pred_region
      %s31 = ssub.s32 4096, 4096
      %32 = vsyncadd [#allocation6], %s31
      %s33 = sshll.u32 [#allocation5], 4
      %s34 = int_to_ptr.vmem [resolvable:$true] %s33
      %39 = dma.hbm_to_vmem [thread:$0]  %s1, 4096, %s34, [#allocation6], 128, 128, 8
    $region9: #{outblock_forward.3} parent=1 // pred_fallthru
      _
    // Predicated region
    $region10: #{outblock_forward.3} parent=1 // pred_check
      _
    $region11: #{outblock_forward.3} parent=1 // pred_check_branch
      %41 = sbr.rel (0) target = $region13
    $region12: #{outblock_forward.3} parent=1 // pred_region
      %s43 = ssub.s32 16, 16
      %44 = vsyncadd [#allocation6], %s43
      %s46 = sshll.u32 [#allocation7], 4
      %s47 = int_to_ptr.vmem [resolvable:$true] %s46
      %49 = dma.hbm_to_vmem [thread:$0]  %s2, 16, %s47, [#allocation6]
    $region13: #{outblock_forward.3} parent=1 // pred_fallthru
      _
    // Predicated region
    $region14: #{outblock_forward.3} parent=1 // pred_check
      _
    $region15: #{outblock_forward.3} parent=1 // pred_check_branch
      %51 = sbr.rel (0) target = $region17
    $region16: #{outblock_forward.3} parent=1 // pred_region
      _
    $region17: #{outblock_forward.3} parent=1 // pred_fallthru
      _
    // Predicated region
    $region18: #{outblock_forward.3} parent=1 // pred_check
      _
    $region19: #{outblock_forward.3} parent=1 // pred_check_branch
      %53 = sbr.rel (0) target = $region21
    $region20: #{outblock_forward.3} parent=1 // pred_region
      _
    $region21: #{outblock_forward.3} parent=1 // pred_fallthru
      _
    // Predicated region
    $region22: #{outblock_forward.3} parent=1 // pred_check
      _
    $region23: #{outblock_forward.3} parent=1 // pred_check_branch
      %55 = sbr.rel (0) target = $region25
    $region24: #{outblock_forward.3} parent=1 // pred_region
      %56 = dma.done [#allocation4], 4096
    $region25: #{outblock_forward.3} parent=1 // pred_fallthru
      _
    // Predicated region
    $region26: #{outblock_forward.3} parent=1 // pred_check
      _
    $region27: #{outblock_forward.3} parent=1 // pred_check_branch
      %58 = sbr.rel (0) target = $region29
    $region28: #{outblock_forward.3} parent=1 // pred_region
      %59 = dma.done [#allocation6], 4096
    $region29: #{outblock_forward.3} parent=1 // pred_fallthru
      _
    // Predicated region
    $region30: #{outblock_forward.3} parent=1 // pred_check
      _
    $region31: #{outblock_forward.3} parent=1 // pred_check_branch
      %61 = sbr.rel (0) target = $region33
    $region32: #{outblock_forward.3} parent=1 // pred_region
      %62 = dma.done [#allocation6], 16
    $region33: #{outblock_forward.3} parent=1 // pred_fallthru
      _
    %v63 = vld [vmem:[#allocation3] sm:$0xff]
    %v64 = vld [vmem:[#allocation3 + $0x8] sm:$0xff]
    %v65 = vld [vmem:[#allocation3 + $0x10] sm:$0xff]
    %v66 = vld [vmem:[#allocation3 + $0x18] sm:$0xff]
    %v67 = vld [vmem:[#allocation3 + $0x20] sm:$0xff]
    %v68 = vld [vmem:[#allocation3 + $0x28] sm:$0xff]
    %v69 = vld [vmem:[#allocation3 + $0x30] sm:$0xff]
    %v70 = vld [vmem:[#allocation3 + $0x38] sm:$0xff]
    %v71 = vld [vmem:[#allocation3 + $0x40] sm:$0xff]
    %v72 = vld [vmem:[#allocation3 + $0x48] sm:$0xff]
    %v73 = vld [vmem:[#allocation3 + $0x50] sm:$0xff]
    %v74 = vld [vmem:[#allocation3 + $0x58] sm:$0xff]
    %v75 = vld [vmem:[#allocation3 + $0x60] sm:$0xff]
    %v76 = vld [vmem:[#allocation3 + $0x68] sm:$0xff]
    %v77 = vld [vmem:[#allocation3 + $0x70] sm:$0xff]
    %v78 = vld [vmem:[#allocation3 + $0x78] sm:$0xff]
    %v79 = vld [vmem:[#allocation3 + $0x80] sm:$0xff]
    %v80 = vld [vmem:[#allocation3 + $0x88] sm:$0xff]
    %v81 = vld [vmem:[#allocation3 + $0x90] sm:$0xff]
    %v82 = vld [vmem:[#allocation3 + $0x98] sm:$0xff]
    %v83 = vld [vmem:[#allocation3 + $0xa0] sm:$0xff]
    %v84 = vld [vmem:[#allocation3 + $0xa8] sm:$0xff]
    %v85 = vld [vmem:[#allocation3 + $0xb0] sm:$0xff]
    %v86 = vld [vmem:[#allocation3 + $0xb8] sm:$0xff]
    %v87 = vld [vmem:[#allocation3 + $0xc0] sm:$0xff]
    %v88 = vld [vmem:[#allocation3 + $0xc8] sm:$0xff]
    %v89 = vld [vmem:[#allocation3 + $0xd0] sm:$0xff]
    %v90 = vld [vmem:[#allocation3 + $0xd8] sm:$0xff]
    %v91 = vld [vmem:[#allocation3 + $0xe0] sm:$0xff]
    %v92 = vld [vmem:[#allocation3 + $0xe8] sm:$0xff]
    %v93 = vld [vmem:[#allocation3 + $0xf0] sm:$0xff]
    %v94 = vld [vmem:[#allocation3 + $0xf8] sm:$0xff]
    %v95 = vld [vmem:[#allocation5] sm:$0xff]
    %v96 = vld [vmem:[#allocation5 + $0x8] sm:$0xff]
    %v97 = vld [vmem:[#allocation5 + $0x10] sm:$0xff]
    %v98 = vld [vmem:[#allocation5 + $0x18] sm:$0xff]
    %v99 = vld [vmem:[#allocation5 + $0x20] sm:$0xff]
    %v100 = vld [vmem:[#allocation5 + $0x28] sm:$0xff]
    %v101 = vld [vmem:[#allocation5 + $0x30] sm:$0xff]
    %v102 = vld [vmem:[#allocation5 + $0x38] sm:$0xff]
    %v103 = vld [vmem:[#allocation5 + $0x40] sm:$0xff]
    %v104 = vld [vmem:[#allocation5 + $0x48] sm:$0xff]
    %v105 = vld [vmem:[#allocation5 + $0x50] sm:$0xff]
    %v106 = vld [vmem:[#allocation5 + $0x58] sm:$0xff]
    %v107 = vld [vmem:[#allocation5 + $0x60] sm:$0xff]
    %v108 = vld [vmem:[#allocation5 + $0x68] sm:$0xff]
    %v109 = vld [vmem:[#allocation5 + $0x70] sm:$0xff]
    %v110 = vld [vmem:[#allocation5 + $0x78] sm:$0xff]
    %v111 = vld [vmem:[#allocation5 + $0x80] sm:$0xff]
    %v112 = vld [vmem:[#allocation5 + $0x88] sm:$0xff]
    %v113 = vld [vmem:[#allocation5 + $0x90] sm:$0xff]
    %v114 = vld [vmem:[#allocation5 + $0x98] sm:$0xff]
    %v115 = vld [vmem:[#allocation5 + $0xa0] sm:$0xff]
    %v116 = vld [vmem:[#allocation5 + $0xa8] sm:$0xff]
    %v117 = vld [vmem:[#allocation5 + $0xb0] sm:$0xff]
    %v118 = vld [vmem:[#allocation5 + $0xb8] sm:$0xff]
    %v119 = vld [vmem:[#allocation5 + $0xc0] sm:$0xff]
    %v120 = vld [vmem:[#allocation5 + $0xc8] sm:$0xff]
    %v121 = vld [vmem:[#allocation5 + $0xd0] sm:$0xff]
    %v122 = vld [vmem:[#allocation5 + $0xd8] sm:$0xff]
    %v123 = vld [vmem:[#allocation5 + $0xe0] sm:$0xff]
    %v124 = vld [vmem:[#allocation5 + $0xe8] sm:$0xff]
    %v125 = vld [vmem:[#allocation5 + $0xf0] sm:$0xff]
    %v126 = vld [vmem:[#allocation5 + $0xf8] sm:$0xff]
    %v127 = vld [vmem:[#allocation7] sm:$0x1]
    %v129 = vlaneseq
    %v130 = vshrl.u32 %v129, 7
    %v131 = vsub.s32 0, %v130
    %v132 = vrot.slane %v127, %v131
    %134 = vmatprep.subr.mxu0 0.0
    %135 = vmatpush1.msra.mxu0 %v110
    %136 = vmatprep.subr.mxu0 0.0
    %137 = vmatpush1.msra.mxu0 %v109
    %138 = vmatprep.subr.mxu0 0.0
    %139 = vmatpush1.msra.mxu0 %v108
    %140 = vmatprep.subr.mxu0 0.0
    %141 = vmatpush1.msra.mxu0 %v107
    %142 = vmatprep.subr.mxu0 0.0
    %143 = vmatpush1.msra.mxu0 %v106
    %144 = vmatprep.subr.mxu0 0.0
    %145 = vmatpush1.msra.mxu0 %v105
    %146 = vmatprep.subr.mxu0 0.0
    %147 = vmatpush1.msra.mxu0 %v104
    %148 = vmatprep.subr.mxu0 0.0
    %149 = vmatpush1.msra.mxu0 %v103
    %150 = vmatprep.subr.mxu0 0.0
    %151 = vmatpush1.msra.mxu0 %v102
    %152 = vmatprep.subr.mxu0 0.0
    %153 = vmatpush1.msra.mxu0 %v101
    %154 = vmatprep.subr.mxu0 0.0
    %155 = vmatpush1.msra.mxu0 %v100
    %156 = vmatprep.subr.mxu0 0.0
    %157 = vmatpush1.msra.mxu0 %v99
    %158 = vmatprep.subr.mxu0 0.0
    %159 = vmatpush1.msra.mxu0 %v98
    %160 = vmatprep.subr.mxu0 0.0
    %161 = vmatpush1.msra.mxu0 %v97
    %162 = vmatprep.subr.mxu0 0.0
    %163 = vmatpush1.msra.mxu0 %v96
    %164 = vmatprep.subr.mxu0 0.0
    %165 = vmatpush1.msra.mxu0 %v95
    %166 = vmatprep.subr.mxu0 0.0
    %167 = vmatpush2.msra.mxu0 %v126
    %168 = vmatprep.subr.mxu0 0.0
    %169 = vmatpush2.msra.mxu0 %v125
    %170 = vmatprep.subr.mxu0 0.0
    %171 = vmatpush2.msra.mxu0 %v124
    %172 = vmatprep.subr.mxu0 0.0
    %173 = vmatpush2.msra.mxu0 %v123
    %174 = vmatprep.subr.mxu0 0.0
    %175 = vmatpush2.msra.mxu0 %v122
    %176 = vmatprep.subr.mxu0 0.0
    %177 = vmatpush2.msra.mxu0 %v121
    %178 = vmatprep.subr.mxu0 0.0
    %179 = vmatpush2.msra.mxu0 %v120
    %180 = vmatprep.subr.mxu0 0.0
    %181 = vmatpush2.msra.mxu0 %v119
    %182 = vmatprep.subr.mxu0 0.0
    %183 = vmatpush2.msra.mxu0 %v118
    %184 = vmatprep.subr.mxu0 0.0
    %185 = vmatpush2.msra.mxu0 %v117
    %186 = vmatprep.subr.mxu0 0.0
    %187 = vmatpush2.msra.mxu0 %v116
    %188 = vmatprep.subr.mxu0 0.0
    %189 = vmatpush2.msra.mxu0 %v115
    %190 = vmatprep.subr.mxu0 0.0
    %191 = vmatpush2.msra.mxu0 %v114
    %192 = vmatprep.subr.mxu0 0.0
    %193 = vmatpush2.msra.mxu0 %v113
    %194 = vmatprep.subr.mxu0 0.0
    %195 = vmatpush2.msra.mxu0 %v112
    %196 = vmatprep.subr.mxu0 0.0
    %197 = vmatpush2.msra.mxu0 %v111
    %198 = vmatprep.mubr.f32.mxu0 %v64
    %199 = vmatmul.mubr.f32.gmra.mxu0 %v63
    %v200 = vpop.f32.mrf.mxu0
    %v201 = vadd.f32 %v132, %v200
    %v202 = vpop.f32.mrf.mxu0
    %203 = vmatprep.mubr.f32.mxu0 %v66
    %204 = vmatmul.mubr.f32.gmra.mxu0 %v65
    %v205 = vpop.f32.mrf.mxu0
    %v206 = vadd.f32 %v132, %v205
    %v207 = vpop.f32.mrf.mxu0
    %208 = vmatprep.mubr.f32.mxu0 %v68
    %209 = vmatmul.mubr.f32.gmra.mxu0 %v67
    %v210 = vpop.f32.mrf.mxu0
    %v211 = vadd.f32 %v132, %v210
    %v212 = vpop.f32.mrf.mxu0
    %213 = vmatprep.mubr.f32.mxu0 %v70
    %214 = vmatmul.mubr.f32.gmra.mxu0 %v69
    %v215 = vpop.f32.mrf.mxu0
    %v216 = vadd.f32 %v132, %v215
    %v217 = vpop.f32.mrf.mxu0
    %218 = vmatprep.mubr.f32.mxu0 %v72
    %219 = vmatmul.mubr.f32.gmra.mxu0 %v71
    %v220 = vpop.f32.mrf.mxu0
    %v221 = vadd.f32 %v132, %v220
    %v222 = vpop.f32.mrf.mxu0
    %223 = vmatprep.mubr.f32.mxu0 %v74
    %224 = vmatmul.mubr.f32.gmra.mxu0 %v73
    %v225 = vpop.f32.mrf.mxu0
    %v226 = vadd.f32 %v132, %v225
    %v227 = vpop.f32.mrf.mxu0
    %228 = vmatprep.mubr.f32.mxu0 %v76
    %229 = vmatmul.mubr.f32.gmra.mxu0 %v75
    %v230 = vpop.f32.mrf.mxu0
    %v231 = vadd.f32 %v132, %v230
    %v232 = vpop.f32.mrf.mxu0
    %233 = vmatprep.mubr.f32.mxu0 %v78
    %234 = vmatmul.mubr.f32.gmra.mxu0 %v77
    %v235 = vpop.f32.mrf.mxu0
    %v236 = vadd.f32 %v132, %v235
    %v237 = vpop.f32.mrf.mxu0
    %238 = vmatprep.mubr.f32.mxu0 %v80
    %239 = vmatmul.mubr.f32.gmra.mxu0 %v79
    %v240 = vpop.f32.mrf.mxu0
    %v241 = vadd.f32 %v132, %v240
    %v242 = vpop.f32.mrf.mxu0
    %243 = vmatprep.mubr.f32.mxu0 %v82
    %244 = vmatmul.mubr.f32.gmra.mxu0 %v81
    %v245 = vpop.f32.mrf.mxu0
    %v246 = vadd.f32 %v132, %v245
    %v247 = vpop.f32.mrf.mxu0
    %248 = vmatprep.mubr.f32.mxu0 %v84
    %249 = vmatmul.mubr.f32.gmra.mxu0 %v83
    %v250 = vpop.f32.mrf.mxu0
    %v251 = vadd.f32 %v132, %v250
    %v252 = vpop.f32.mrf.mxu0
    %253 = vmatprep.mubr.f32.mxu0 %v86
    %254 = vmatmul.mubr.f32.gmra.mxu0 %v85
    %v255 = vpop.f32.mrf.mxu0
    %v256 = vadd.f32 %v132, %v255
    %v257 = vpop.f32.mrf.mxu0
    %258 = vmatprep.mubr.f32.mxu0 %v88
    %259 = vmatmul.mubr.f32.gmra.mxu0 %v87
    %v260 = vpop.f32.mrf.mxu0
    %v261 = vadd.f32 %v132, %v260
    %v262 = vpop.f32.mrf.mxu0
    %263 = vmatprep.mubr.f32.mxu0 %v90
    %264 = vmatmul.mubr.f32.gmra.mxu0 %v89
    %v265 = vpop.f32.mrf.mxu0
    %v266 = vadd.f32 %v132, %v265
    %v267 = vpop.f32.mrf.mxu0
    %268 = vmatprep.mubr.f32.mxu0 %v92
    %269 = vmatmul.mubr.f32.gmra.mxu0 %v91
    %v270 = vpop.f32.mrf.mxu0
    %v271 = vadd.f32 %v132, %v270
    %v272 = vpop.f32.mrf.mxu0
    %273 = vmatprep.mubr.f32.mxu0 %v94
    %274 = vmatmul.mubr.f32.gmra.mxu0 %v93
    %v275 = vpop.f32.mrf.mxu0
    %v276 = vadd.f32 %v132, %v275
    %v277 = vpop.f32.mrf.mxu0
    %278 = vdwg.mxu0
    %v279 = vmax.f32 %v201, 0.0
    %v280 = vmax.f32 %v206, 0.0
    %v281 = vmax.f32 %v211, 0.0
    %v282 = vmax.f32 %v216, 0.0
    %v283 = vmax.f32 %v221, 0.0
    %v284 = vmax.f32 %v226, 0.0
    %v285 = vmax.f32 %v231, 0.0
    %v286 = vmax.f32 %v236, 0.0
    %v287 = vmax.f32 %v241, 0.0
    %v288 = vmax.f32 %v246, 0.0
    %v289 = vmax.f32 %v251, 0.0
    %v290 = vmax.f32 %v256, 0.0
    %v291 = vmax.f32 %v261, 0.0
    %v292 = vmax.f32 %v266, 0.0
    %v293 = vmax.f32 %v271, 0.0
    %v294 = vmax.f32 %v276, 0.0
    %v295 = vpack.c.bf16 %v280, %v279
    %v296 = vpack.c.bf16 %v282, %v281
    %v297 = vpack.c.bf16 %v284, %v283
    %v298 = vpack.c.bf16 %v286, %v285
    %v299 = vpack.c.bf16 %v288, %v287
    %v300 = vpack.c.bf16 %v290, %v289
    %v301 = vpack.c.bf16 %v292, %v291
    %v302 = vpack.c.bf16 %v294, %v293
    %v311 = vunpack.c.l.b16 %v295
    %v312 = vunpack.c.h.b16 %v295
    %v313 = vunpack.c.l.b16 %v296
    %v314 = vunpack.c.h.b16 %v296
    %v315 = vunpack.c.l.b16 %v297
    %v316 = vunpack.c.h.b16 %v297
    %v317 = vunpack.c.l.b16 %v298
    %v318 = vunpack.c.h.b16 %v298
    %v319 = vunpack.c.l.b16 %v299
    %v320 = vunpack.c.h.b16 %v299
    %v321 = vunpack.c.l.b16 %v300
    %v322 = vunpack.c.h.b16 %v300
    %v323 = vunpack.c.l.b16 %v301
    %v324 = vunpack.c.h.b16 %v301
    %v325 = vunpack.c.l.b16 %v302
    %v326 = vunpack.c.h.b16 %v302
    %v327 = vpack.c.b16 %v311, %v311
    %v328 = vpack.c.b16 %v312, %v312
    %v329 = vpack.c.b16 %v313, %v313
    %v330 = vpack.c.b16 %v314, %v314
    %v331 = vpack.c.b16 %v315, %v315
    %v332 = vpack.c.b16 %v316, %v316
    %v333 = vpack.c.b16 %v317, %v317
    %v334 = vpack.c.b16 %v318, %v318
    %v335 = vpack.c.b16 %v319, %v319
    %v336 = vpack.c.b16 %v320, %v320
    %v337 = vpack.c.b16 %v321, %v321
    %v338 = vpack.c.b16 %v322, %v322
    %v339 = vpack.c.b16 %v323, %v323
    %v340 = vpack.c.b16 %v324, %v324
    %v341 = vpack.c.b16 %v325, %v325
    %v342 = vpack.c.b16 %v326, %v326
    %359 = vst [vmem:[%s5] sm:$0xf] %v327
    %360 = vst [vmem:[%s5 + $0x4] sm:$0xf] %v328
    %361 = vst [vmem:[%s5 + $0x8] sm:$0xf] %v329
    %362 = vst [vmem:[%s5 + $0xc] sm:$0xf] %v330
    %363 = vst [vmem:[%s5 + $0x10] sm:$0xf] %v331
    %364 = vst [vmem:[%s5 + $0x14] sm:$0xf] %v332
    %365 = vst [vmem:[%s5 + $0x18] sm:$0xf] %v333
    %366 = vst [vmem:[%s5 + $0x1c] sm:$0xf] %v334
    %367 = vst [vmem:[%s5 + $0x20] sm:$0xf] %v335
    %368 = vst [vmem:[%s5 + $0x24] sm:$0xf] %v336
    %369 = vst [vmem:[%s5 + $0x28] sm:$0xf] %v337
    %370 = vst [vmem:[%s5 + $0x2c] sm:$0xf] %v338
    %371 = vst [vmem:[%s5 + $0x30] sm:$0xf] %v339
    %372 = vst [vmem:[%s5 + $0x34] sm:$0xf] %v340
    %373 = vst [vmem:[%s5 + $0x38] sm:$0xf] %v341
    %374 = vst [vmem:[%s5 + $0x3c] sm:$0xf] %v342
    %v375 = vld [vmem:[%s3] sm:$0xff]
    %v376 = vld [vmem:[%s3 + $0x8] sm:$0xff]
    %v377 = vld [vmem:[%s3 + $0x10] sm:$0xff]
    %v378 = vld [vmem:[%s3 + $0x18] sm:$0xff]
    %v379 = vld [vmem:[%s3 + $0x20] sm:$0xff]
    %v380 = vld [vmem:[%s3 + $0x28] sm:$0xff]
    %v381 = vld [vmem:[%s3 + $0x30] sm:$0xff]
    %v382 = vld [vmem:[%s3 + $0x38] sm:$0xff]
    %v383 = vld [vmem:[%s3 + $0x40] sm:$0xff]
    %v384 = vld [vmem:[%s3 + $0x48] sm:$0xff]
    %v385 = vld [vmem:[%s3 + $0x50] sm:$0xff]
    %v386 = vld [vmem:[%s3 + $0x58] sm:$0xff]
    %v387 = vld [vmem:[%s3 + $0x60] sm:$0xff]
    %v388 = vld [vmem:[%s3 + $0x68] sm:$0xff]
    %v389 = vld [vmem:[%s3 + $0x70] sm:$0xff]
    %v390 = vld [vmem:[%s3 + $0x78] sm:$0xff]
    %v391 = vld [vmem:[%s3 + $0x80] sm:$0xff]
    %v392 = vld [vmem:[%s3 + $0x88] sm:$0xff]
    %v393 = vld [vmem:[%s3 + $0x90] sm:$0xff]
    %v394 = vld [vmem:[%s3 + $0x98] sm:$0xff]
    %v395 = vld [vmem:[%s3 + $0xa0] sm:$0xff]
    %v396 = vld [vmem:[%s3 + $0xa8] sm:$0xff]
    %v397 = vld [vmem:[%s3 + $0xb0] sm:$0xff]
    %v398 = vld [vmem:[%s3 + $0xb8] sm:$0xff]
    %v399 = vld [vmem:[%s3 + $0xc0] sm:$0xff]
    %v400 = vld [vmem:[%s3 + $0xc8] sm:$0xff]
    %v401 = vld [vmem:[%s3 + $0xd0] sm:$0xff]
    %v402 = vld [vmem:[%s3 + $0xd8] sm:$0xff]
    %v403 = vld [vmem:[%s3 + $0xe0] sm:$0xff]
    %v404 = vld [vmem:[%s3 + $0xe8] sm:$0xff]
    %v405 = vld [vmem:[%s3 + $0xf0] sm:$0xff]
    %v406 = vld [vmem:[%s3 + $0xf8] sm:$0xff]
    %v407 = vld [vmem:[#allocation2] sm:$0x1]
    %v409 = vlaneseq
    %v410 = vshrl.u32 %v409, 7
    %v411 = vsub.s32 0, %v410
    %v412 = vrot.slane %v407, %v411
    %414 = vmatprep.subr.mxu0 0.0
    %415 = vmatpush1.msra.mxu0 %v390
    %416 = vmatprep.subr.mxu0 0.0
    %417 = vmatpush1.msra.mxu0 %v389
    %418 = vmatprep.subr.mxu0 0.0
    %419 = vmatpush1.msra.mxu0 %v388
    %420 = vmatprep.subr.mxu0 0.0
    %421 = vmatpush1.msra.mxu0 %v387
    %422 = vmatprep.subr.mxu0 0.0
    %423 = vmatpush1.msra.mxu0 %v386
    %424 = vmatprep.subr.mxu0 0.0
    %425 = vmatpush1.msra.mxu0 %v385
    %426 = vmatprep.subr.mxu0 0.0
    %427 = vmatpush1.msra.mxu0 %v384
    %428 = vmatprep.subr.mxu0 0.0
    %429 = vmatpush1.msra.mxu0 %v383
    %430 = vmatprep.subr.mxu0 0.0
    %431 = vmatpush1.msra.mxu0 %v382
    %432 = vmatprep.subr.mxu0 0.0
    %433 = vmatpush1.msra.mxu0 %v381
    %434 = vmatprep.subr.mxu0 0.0
    %435 = vmatpush1.msra.mxu0 %v380
    %436 = vmatprep.subr.mxu0 0.0
    %437 = vmatpush1.msra.mxu0 %v379
    %438 = vmatprep.subr.mxu0 0.0
    %439 = vmatpush1.msra.mxu0 %v378
    %440 = vmatprep.subr.mxu0 0.0
    %441 = vmatpush1.msra.mxu0 %v377
    %442 = vmatprep.subr.mxu0 0.0
    %443 = vmatpush1.msra.mxu0 %v376
    %444 = vmatprep.subr.mxu0 0.0
    %445 = vmatpush1.msra.mxu0 %v375
    %446 = vmatprep.subr.mxu0 0.0
    %447 = vmatpush2.msra.mxu0 %v406
    %448 = vmatprep.subr.mxu0 0.0
    %449 = vmatpush2.msra.mxu0 %v405
    %450 = vmatprep.subr.mxu0 0.0
    %451 = vmatpush2.msra.mxu0 %v404
    %452 = vmatprep.subr.mxu0 0.0
    %453 = vmatpush2.msra.mxu0 %v403
    %454 = vmatprep.subr.mxu0 0.0
    %455 = vmatpush2.msra.mxu0 %v402
    %456 = vmatprep.subr.mxu0 0.0
    %457 = vmatpush2.msra.mxu0 %v401
    %458 = vmatprep.subr.mxu0 0.0
    %459 = vmatpush2.msra.mxu0 %v400
    %460 = vmatprep.subr.mxu0 0.0
    %461 = vmatpush2.msra.mxu0 %v399
    %462 = vmatprep.subr.mxu0 0.0
    %463 = vmatpush2.msra.mxu0 %v398
    %464 = vmatprep.subr.mxu0 0.0
    %465 = vmatpush2.msra.mxu0 %v397
    %466 = vmatprep.subr.mxu0 0.0
    %467 = vmatpush2.msra.mxu0 %v396
    %468 = vmatprep.subr.mxu0 0.0
    %469 = vmatpush2.msra.mxu0 %v395
    %470 = vmatprep.subr.mxu0 0.0
    %471 = vmatpush2.msra.mxu0 %v394
    %472 = vmatprep.subr.mxu0 0.0
    %473 = vmatpush2.msra.mxu0 %v393
    %474 = vmatprep.subr.mxu0 0.0
    %475 = vmatpush2.msra.mxu0 %v392
    %476 = vmatprep.subr.mxu0 0.0
    %477 = vmatpush2.msra.mxu0 %v391
    %478 = vmatprep.mubr.f32.mxu0 %v64
    %479 = vmatmul.mubr.f32.gmra.mxu0 %v63
    %v480 = vpop.f32.mrf.mxu0
    %v481 = vadd.f32 %v412, %v480
    %v482 = vpop.f32.mrf.mxu0
    %483 = vmatprep.mubr.f32.mxu0 %v66
    %484 = vmatmul.mubr.f32.gmra.mxu0 %v65
    %v485 = vpop.f32.mrf.mxu0
    %v486 = vadd.f32 %v412, %v485
    %v487 = vpop.f32.mrf.mxu0
    %488 = vmatprep.mubr.f32.mxu0 %v68
    %489 = vmatmul.mubr.f32.gmra.mxu0 %v67
    %v490 = vpop.f32.mrf.mxu0
    %v491 = vadd.f32 %v412, %v490
    %v492 = vpop.f32.mrf.mxu0
    %493 = vmatprep.mubr.f32.mxu0 %v70
    %494 = vmatmul.mubr.f32.gmra.mxu0 %v69
    %v495 = vpop.f32.mrf.mxu0
    %v496 = vadd.f32 %v412, %v495
    %v497 = vpop.f32.mrf.mxu0
    %498 = vmatprep.mubr.f32.mxu0 %v72
    %499 = vmatmul.mubr.f32.gmra.mxu0 %v71
    %v500 = vpop.f32.mrf.mxu0
    %v501 = vadd.f32 %v412, %v500
    %v502 = vpop.f32.mrf.mxu0
    %503 = vmatprep.mubr.f32.mxu0 %v74
    %504 = vmatmul.mubr.f32.gmra.mxu0 %v73
    %v505 = vpop.f32.mrf.mxu0
    %v506 = vadd.f32 %v412, %v505
    %v507 = vpop.f32.mrf.mxu0
    %508 = vmatprep.mubr.f32.mxu0 %v76
    %509 = vmatmul.mubr.f32.gmra.mxu0 %v75
    %v510 = vpop.f32.mrf.mxu0
    %v511 = vadd.f32 %v412, %v510
    %v512 = vpop.f32.mrf.mxu0
    %513 = vmatprep.mubr.f32.mxu0 %v78
    %514 = vmatmul.mubr.f32.gmra.mxu0 %v77
    %v515 = vpop.f32.mrf.mxu0
    %v516 = vadd.f32 %v412, %v515
    %v517 = vpop.f32.mrf.mxu0
    %518 = vmatprep.mubr.f32.mxu0 %v80
    %519 = vmatmul.mubr.f32.gmra.mxu0 %v79
    %v520 = vpop.f32.mrf.mxu0
    %v521 = vadd.f32 %v412, %v520
    %v522 = vpop.f32.mrf.mxu0
    %523 = vmatprep.mubr.f32.mxu0 %v82
    %524 = vmatmul.mubr.f32.gmra.mxu0 %v81
    %v525 = vpop.f32.mrf.mxu0
    %v526 = vadd.f32 %v412, %v525
    %v527 = vpop.f32.mrf.mxu0
    %528 = vmatprep.mubr.f32.mxu0 %v84
    %529 = vmatmul.mubr.f32.gmra.mxu0 %v83
    %v530 = vpop.f32.mrf.mxu0
    %v531 = vadd.f32 %v412, %v530
    %v532 = vpop.f32.mrf.mxu0
    %533 = vmatprep.mubr.f32.mxu0 %v86
    %534 = vmatmul.mubr.f32.gmra.mxu0 %v85
    %v535 = vpop.f32.mrf.mxu0
    %v536 = vadd.f32 %v412, %v535
    %v537 = vpop.f32.mrf.mxu0
    %538 = vmatprep.mubr.f32.mxu0 %v88
    %539 = vmatmul.mubr.f32.gmra.mxu0 %v87
    %v540 = vpop.f32.mrf.mxu0
    %v541 = vadd.f32 %v412, %v540
    %v542 = vpop.f32.mrf.mxu0
    %543 = vmatprep.mubr.f32.mxu0 %v90
    %544 = vmatmul.mubr.f32.gmra.mxu0 %v89
    %v545 = vpop.f32.mrf.mxu0
    %v546 = vadd.f32 %v412, %v545
    %v547 = vpop.f32.mrf.mxu0
    %548 = vmatprep.mubr.f32.mxu0 %v92
    %549 = vmatmul.mubr.f32.gmra.mxu0 %v91
    %v550 = vpop.f32.mrf.mxu0
    %v551 = vadd.f32 %v412, %v550
    %v552 = vpop.f32.mrf.mxu0
    %553 = vmatprep.mubr.f32.mxu0 %v94
    %554 = vmatmul.mubr.f32.gmra.mxu0 %v93
    %v555 = vpop.f32.mrf.mxu0
    %v556 = vadd.f32 %v412, %v555
    %v557 = vpop.f32.mrf.mxu0
    %558 = vdwg.mxu0
    %v559 = vmax.f32 %v481, 0.0
    %v560 = vmax.f32 %v486, 0.0
    %v561 = vmax.f32 %v491, 0.0
    %v562 = vmax.f32 %v496, 0.0
    %v563 = vmax.f32 %v501, 0.0
    %v564 = vmax.f32 %v506, 0.0
    %v565 = vmax.f32 %v511, 0.0
    %v566 = vmax.f32 %v516, 0.0
    %v567 = vmax.f32 %v521, 0.0
    %v568 = vmax.f32 %v526, 0.0
    %v569 = vmax.f32 %v531, 0.0
    %v570 = vmax.f32 %v536, 0.0
    %v571 = vmax.f32 %v541, 0.0
    %v572 = vmax.f32 %v546, 0.0
    %v573 = vmax.f32 %v551, 0.0
    %v574 = vmax.f32 %v556, 0.0
    %vm575 = vcmask 7168
    %576 = vst.msk [vmem:[%s6] sm:$0xff] %vm575, %v559
    %577 = vst.msk [vmem:[%s6 + $0x8] sm:$0xff] %vm575, %v560
    %578 = vst.msk [vmem:[%s6 + $0x10] sm:$0xff] %vm575, %v561
    %579 = vst.msk [vmem:[%s6 + $0x18] sm:$0xff] %vm575, %v562
    %580 = vst.msk [vmem:[%s6 + $0x20] sm:$0xff] %vm575, %v563
    %581 = vst.msk [vmem:[%s6 + $0x28] sm:$0xff] %vm575, %v564
    %582 = vst.msk [vmem:[%s6 + $0x30] sm:$0xff] %vm575, %v565
    %583 = vst.msk [vmem:[%s6 + $0x38] sm:$0xff] %vm575, %v566
    %584 = vst.msk [vmem:[%s6 + $0x40] sm:$0xff] %vm575, %v567
    %585 = vst.msk [vmem:[%s6 + $0x48] sm:$0xff] %vm575, %v568
    %586 = vst.msk [vmem:[%s6 + $0x50] sm:$0xff] %vm575, %v569
    %587 = vst.msk [vmem:[%s6 + $0x58] sm:$0xff] %vm575, %v570
    %588 = vst.msk [vmem:[%s6 + $0x60] sm:$0xff] %vm575, %v571
    %589 = vst.msk [vmem:[%s6 + $0x68] sm:$0xff] %vm575, %v572
    %590 = vst.msk [vmem:[%s6 + $0x70] sm:$0xff] %vm575, %v573
    %591 = vst.msk [vmem:[%s6 + $0x78] sm:$0xff] %vm575, %v574
    // Predicated region
    $region34: #{outblock_forward.3} parent=1 // pred_check
      _
    $region35: #{outblock_forward.3} parent=1 // pred_check_branch
      %593 = sbr.rel (0) target = $region37
    $region36: #{outblock_forward.3} parent=1 // pred_region
      _
    $region37: #{outblock_forward.3} parent=1 // pred_fallthru
      _
    // Predicated region
    $region38: #{outblock_forward.3} parent=1 // pred_check
      _
    $region39: #{outblock_forward.3} parent=1 // pred_check_branch
      %595 = sbr.rel (0) target = $region41
    $region40: #{outblock_forward.3} parent=1 // pred_region
      _
    $region41: #{outblock_forward.3} parent=1 // pred_fallthru
      _
    // Predicated region
    $region42: #{outblock_forward.3} parent=1 // pred_check
      _
    $region43: #{outblock_forward.3} parent=1 // pred_check_branch
      %597 = sbr.rel (0) target = $region45
    $region44: #{outblock_forward.3} parent=1 // pred_region
      _
    $region45: #{outblock_forward.3} parent=1 // pred_fallthru
      _
    // Predicated region
    $region46: #{outblock_forward.3} parent=1 // pred_check
      _
    $region47: #{outblock_forward.3} parent=1 // pred_check_branch
      %599 = sbr.rel (0) target = $region49
    $region48: #{outblock_forward.3} parent=1 // pred_region
      _
    $region49: #{outblock_forward.3} parent=1 // pred_fallthru
      _
    %600 = vsyncpa [#allocation4], 1
    %601 = vsyncpa [#allocation6], 1

// kernel: outblock_forward.5
$region0: #{outblock_forward.5}
  #allocation0 [shape = 'u32[]', space=smem, size = 0x4, offset = 0x4, fixed_abs, tag = 'smem constant byte address 0x4 - core index']
  #allocation1 [shape = 'u32[144,128]{1,0:T(1,128)}', space=vmem, size = 0x12000, scoped, tag = 'internal scratch']
  #allocation2 [shape = 'f32[1,1]{1,0:T(1,128)S(1)}', space=vmem, size = 0x200, scoped, tag = 'scoped memory for outblock_forward.5']
  %s0 = inlined_call_operand.vmem [shape: f32[2,4864], index: 0, kind: input, shape index: {}]
  %s1 = inlined_call_operand.vmem [shape: f32[2,64], index: 1, kind: input, shape index: {}]
  %s2 = inlined_call_operand.vmem [shape: f32[64,64], index: 2, kind: input, shape index: {}]
  %s3 = inlined_call_operand.vmem [shape: f32[1,64], index: 3, kind: input, shape index: {}]
  %s4 = inlined_call_operand.vmem [shape: f32[64,1], index: 4, kind: input, shape index: {}]
  %s5 = inlined_call_operand.<no memory space> [shape: f32[1,1], index: 5, kind: input, shape index: {}]
  %s6 = inlined_call_operand.vmem [shape: f32[2,4864], index: 6, kind: output, shape index: {0}]
  %s7 = inlined_call_operand.vmem [shape: f32[2,1], index: 7, kind: output, shape index: {1}]
  %8 = xla_tuple %s6, %s7
  %s9 = sld [smem:[#allocation0]]
  $region42: #{outblock_forward.5} parent=0
    _
  %s11 = ssub.s32 1, %s9
  %s12 = scalar_select 0, %s11, %s9
  %v13 = vstv %s5
  %14 = vst [vmem:[#allocation2] sm:$0x1] %v13
  // Predicated region
  $region2: #{outblock_forward.5} parent=0 // pred_check
    _
  $region3: #{outblock_forward.5} parent=0 // pred_check_branch
    %16 = sbr.rel (0) target = $region5
  $region4: #{outblock_forward.5} parent=0 // pred_region
    _
  $region5: #{outblock_forward.5} parent=0 // pred_fallthru
    _
  // Predicated region
  $region6: #{outblock_forward.5} parent=0 // pred_check
    _
  $region7: #{outblock_forward.5} parent=0 // pred_check_branch
    %18 = sbr.rel (0) target = $region9
  $region8: #{outblock_forward.5} parent=0 // pred_region
    _
  $region9: #{outblock_forward.5} parent=0 // pred_fallthru
    _
  // Predicated region
  $region10: #{outblock_forward.5} parent=0 // pred_check
    _
  $region11: #{outblock_forward.5} parent=0 // pred_check_branch
    %20 = sbr.rel (0) target = $region13
  $region12: #{outblock_forward.5} parent=0 // pred_region
    _
  $region13: #{outblock_forward.5} parent=0 // pred_fallthru
    _
  // Predicated region
  $region14: #{outblock_forward.5} parent=0 // pred_check
    _
  $region15: #{outblock_forward.5} parent=0 // pred_check_branch
    %22 = sbr.rel (0) target = $region17
  $region16: #{outblock_forward.5} parent=0 // pred_region
    _
  $region17: #{outblock_forward.5} parent=0 // pred_fallthru
    _
  // Predicated region
  $region18: #{outblock_forward.5} parent=0 // pred_check
    _
  $region19: #{outblock_forward.5} parent=0 // pred_check_branch
    %24 = sbr.rel (0) target = $region21
  $region20: #{outblock_forward.5} parent=0 // pred_region
    _
  $region21: #{outblock_forward.5} parent=0 // pred_fallthru
    _
  // Predicated region
  $region22: #{outblock_forward.5} parent=0 // pred_check
    _
  $region23: #{outblock_forward.5} parent=0 // pred_check_branch
    %26 = sbr.rel (0) target = $region25
  $region24: #{outblock_forward.5} parent=0 // pred_region
    _
  $region25: #{outblock_forward.5} parent=0 // pred_fallthru
    _
  %v27 = vld [vmem:[%s0] sm:$0xff]
  %v28 = vld [vmem:[%s0 + $0x8] sm:$0xff]
  %v29 = vld [vmem:[%s0 + $0x10] sm:$0xff]
  %v30 = vld [vmem:[%s0 + $0x18] sm:$0xff]
  %v31 = vld [vmem:[%s0 + $0x20] sm:$0xff]
  %v32 = vld [vmem:[%s0 + $0x28] sm:$0xff]
  %v33 = vld [vmem:[%s0 + $0x30] sm:$0xff]
  %v34 = vld [vmem:[%s0 + $0x38] sm:$0xff]
  %v35 = vld [vmem:[%s0 + $0x40] sm:$0xff]
  %v36 = vld [vmem:[%s0 + $0x48] sm:$0xf]
  %v47 = vcombine.high %v27, %v27
  %v49 = vunpack.c.l.s4 1983009808
  %v50 = vunpack.c.0.s8 %v49
  %v51 = vlaneseq
  %v52 = vshrl.u32 %v51, 7
  %v53 = vsub.s32 %v50, %v52
  %v54 = vrot.slane %v27, %v53
  %v56 = vunpack.c.l.s4 1983009808
  %v57 = vunpack.c.0.s8 %v56
  %v58 = vlaneseq
  %v59 = vshrl.u32 %v58, 7
  %v60 = vsub.s32 %v57, %v59
  %v61 = vrot.slane %v47, %v60
  %v62 = vcombine.high %v54, %v54
  %v63 = vcombine.high %v61, %v61
  %v64 = vcombine.high %v28, %v28
  %v66 = vunpack.c.l.s4 1983009808
  %v67 = vunpack.c.0.s8 %v66
  %v68 = vlaneseq
  %v69 = vshrl.u32 %v68, 7
  %v70 = vsub.s32 %v67, %v69
  %v71 = vrot.slane %v28, %v70
  %v73 = vunpack.c.l.s4 1983009808
  %v74 = vunpack.c.0.s8 %v73
  %v75 = vlaneseq
  %v76 = vshrl.u32 %v75, 7
  %v77 = vsub.s32 %v74, %v76
  %v78 = vrot.slane %v64, %v77
  %v79 = vcombine.high %v71, %v71
  %v80 = vcombine.high %v78, %v78
  %v81 = vcombine.high %v29, %v29
  %v83 = vunpack.c.l.s4 1983009808
  %v84 = vunpack.c.0.s8 %v83
  %v85 = vlaneseq
  %v86 = vshrl.u32 %v85, 7
  %v87 = vsub.s32 %v84, %v86
  %v88 = vrot.slane %v29, %v87
  %v90 = vunpack.c.l.s4 1983009808
  %v91 = vunpack.c.0.s8 %v90
  %v92 = vlaneseq
  %v93 = vshrl.u32 %v92, 7
  %v94 = vsub.s32 %v91, %v93
  %v95 = vrot.slane %v81, %v94
  %v96 = vcombine.high %v88, %v88
  %v97 = vcombine.high %v95, %v95
  %v98 = vcombine.high %v30, %v30
  %v100 = vunpack.c.l.s4 1983009808
  %v101 = vunpack.c.0.s8 %v100
  %v102 = vlaneseq
  %v103 = vshrl.u32 %v102, 7
  %v104 = vsub.s32 %v101, %v103
  %v105 = vrot.slane %v30, %v104
  %v107 = vunpack.c.l.s4 1983009808
  %v108 = vunpack.c.0.s8 %v107
  %v109 = vlaneseq
  %v110 = vshrl.u32 %v109, 7
  %v111 = vsub.s32 %v108, %v110
  %v112 = vrot.slane %v98, %v111
  %v113 = vcombine.high %v105, %v105
  %v114 = vcombine.high %v112, %v112
  %v115 = vcombine.high %v31, %v31
  %v117 = vunpack.c.l.s4 1983009808
  %v118 = vunpack.c.0.s8 %v117
  %v119 = vlaneseq
  %v120 = vshrl.u32 %v119, 7
  %v121 = vsub.s32 %v118, %v120
  %v122 = vrot.slane %v31, %v121
  %v124 = vunpack.c.l.s4 1983009808
  %v125 = vunpack.c.0.s8 %v124
  %v126 = vlaneseq
  %v127 = vshrl.u32 %v126, 7
  %v128 = vsub.s32 %v125, %v127
  %v129 = vrot.slane %v115, %v128
  %v130 = vcombine.high %v122, %v122
  %v131 = vcombine.high %v129, %v129
  %v132 = vcombine.high %v32, %v32
  %v134 = vunpack.c.l.s4 1983009808
  %v135 = vunpack.c.0.s8 %v134
  %v136 = vlaneseq
  %v137 = vshrl.u32 %v136, 7
  %v138 = vsub.s32 %v135, %v137
  %v139 = vrot.slane %v32, %v138
  %v141 = vunpack.c.l.s4 1983009808
  %v142 = vunpack.c.0.s8 %v141
  %v143 = vlaneseq
  %v144 = vshrl.u32 %v143, 7
  %v145 = vsub.s32 %v142, %v144
  %v146 = vrot.slane %v132, %v145
  %v147 = vcombine.high %v139, %v139
  %v148 = vcombine.high %v146, %v146
  %v149 = vcombine.high %v33, %v33
  %v151 = vunpack.c.l.s4 1983009808
  %v152 = vunpack.c.0.s8 %v151
  %v153 = vlaneseq
  %v154 = vshrl.u32 %v153, 7
  %v155 = vsub.s32 %v152, %v154
  %v156 = vrot.slane %v33, %v155
  %v158 = vunpack.c.l.s4 1983009808
  %v159 = vunpack.c.0.s8 %v158
  %v160 = vlaneseq
  %v161 = vshrl.u32 %v160, 7
  %v162 = vsub.s32 %v159, %v161
  %v163 = vrot.slane %v149, %v162
  %v164 = vcombine.high %v156, %v156
  %v165 = vcombine.high %v163, %v163
  %v166 = vcombine.high %v34, %v34
  %v168 = vunpack.c.l.s4 1983009808
  %v169 = vunpack.c.0.s8 %v168
  %v170 = vlaneseq
  %v171 = vshrl.u32 %v170, 7
  %v172 = vsub.s32 %v169, %v171
  %v173 = vrot.slane %v34, %v172
  %v175 = vunpack.c.l.s4 1983009808
  %v176 = vunpack.c.0.s8 %v175
  %v177 = vlaneseq
  %v178 = vshrl.u32 %v177, 7
  %v179 = vsub.s32 %v176, %v178
  %v180 = vrot.slane %v166, %v179
  %v181 = vcombine.high %v173, %v173
  %v182 = vcombine.high %v180, %v180
  %v183 = vcombine.high %v35, %v35
  %v185 = vunpack.c.l.s4 1983009808
  %v186 = vunpack.c.0.s8 %v185
  %v187 = vlaneseq
  %v188 = vshrl.u32 %v187, 7
  %v189 = vsub.s32 %v186, %v188
  %v190 = vrot.slane %v35, %v189
  %v192 = vunpack.c.l.s4 1983009808
  %v193 = vunpack.c.0.s8 %v192
  %v194 = vlaneseq
  %v195 = vshrl.u32 %v194, 7
  %v196 = vsub.s32 %v193, %v195
  %v197 = vrot.slane %v183, %v196
  %v198 = vcombine.high %v190, %v190
  %v199 = vcombine.high %v197, %v197
  %v201 = vunpack.c.l.s4 1983009808
  %v202 = vunpack.c.0.s8 %v201
  %v203 = vlaneseq
  %v204 = vshrl.u32 %v203, 7
  %v205 = vsub.s32 %v202, %v204
  %v206 = vrot.slane %v36, %v205
  %v207 = vcombine.high %v206, %v206
  %vm246 = vcmask 1041408
  %v247 = vsel %vm246, %v54, -inf
  %v248 = vsel %vm246, %v62, -inf
  %v249 = vsel %vm246, %v61, -inf
  %v250 = vsel %vm246, %v63, -inf
  %v251 = vsel %vm246, %v71, -inf
  %v252 = vmax.f32 %v247, %v251
  %v253 = vsel %vm246, %v79, -inf
  %v254 = vmax.f32 %v248, %v253
  %v255 = vsel %vm246, %v78, -inf
  %v256 = vmax.f32 %v249, %v255
  %v257 = vsel %vm246, %v80, -inf
  %v258 = vmax.f32 %v250, %v257
  %v259 = vsel %vm246, %v88, -inf
  %v260 = vmax.f32 %v252, %v259
  %v261 = vsel %vm246, %v96, -inf
  %v262 = vmax.f32 %v254, %v261
  %v263 = vsel %vm246, %v95, -inf
  %v264 = vmax.f32 %v256, %v263
  %v265 = vsel %vm246, %v97, -inf
  %v266 = vmax.f32 %v258, %v265
  %v267 = vsel %vm246, %v105, -inf
  %v268 = vmax.f32 %v260, %v267
  %v269 = vsel %vm246, %v113, -inf
  %v270 = vmax.f32 %v262, %v269
  %v271 = vsel %vm246, %v112, -inf
  %v272 = vmax.f32 %v264, %v271
  %v273 = vsel %vm246, %v114, -inf
  %v274 = vmax.f32 %v266, %v273
  %v275 = vsel %vm246, %v122, -inf
  %v276 = vmax.f32 %v268, %v275
  %v277 = vsel %vm246, %v130, -inf
  %v278 = vmax.f32 %v270, %v277
  %v279 = vsel %vm246, %v129, -inf
  %v280 = vmax.f32 %v272, %v279
  %v281 = vsel %vm246, %v131, -inf
  %v282 = vmax.f32 %v274, %v281
  %v283 = vsel %vm246, %v139, -inf
  %v284 = vmax.f32 %v276, %v283
  %v285 = vsel %vm246, %v147, -inf
  %v286 = vmax.f32 %v278, %v285
  %v287 = vsel %vm246, %v146, -inf
  %v288 = vmax.f32 %v280, %v287
  %v289 = vsel %vm246, %v148, -inf
  %v290 = vmax.f32 %v282, %v289
  %v291 = vsel %vm246, %v156, -inf
  %v292 = vmax.f32 %v284, %v291
  %v293 = vsel %vm246, %v164, -inf
  %v294 = vmax.f32 %v286, %v293
  %v295 = vsel %vm246, %v163, -inf
  %v296 = vmax.f32 %v288, %v295
  %v297 = vsel %vm246, %v165, -inf
  %v298 = vmax.f32 %v290, %v297
  %v299 = vsel %vm246, %v173, -inf
  %v300 = vmax.f32 %v292, %v299
  %v301 = vsel %vm246, %v181, -inf
  %v302 = vmax.f32 %v294, %v301
  %v303 = vsel %vm246, %v180, -inf
  %v304 = vmax.f32 %v296, %v303
  %v305 = vsel %vm246, %v182, -inf
  %v306 = vmax.f32 %v298, %v305
  %v307 = vsel %vm246, %v190, -inf
  %v308 = vmax.f32 %v300, %v307
  %v309 = vsel %vm246, %v198, -inf
  %v310 = vmax.f32 %v302, %v309
  %v311 = vsel %vm246, %v197, -inf
  %v312 = vmax.f32 %v304, %v311
  %v313 = vsel %vm246, %v199, -inf
  %v314 = vmax.f32 %v306, %v313
  %v315 = vsel %vm246, %v206, -inf
  %v316 = vmax.f32 %v308, %v315
  %v317 = vsel %vm246, %v207, -inf
  %v318 = vmax.f32 %v310, %v317
  %v319 = vmax.f32 %v316, %v318
  %v320 = vmax.f32 %v312, %v314
  %v321 = vmax.f32 %v319, %v320
  %322 = vmax.xlane.f32.xlu0 %v321
  %v323 = vpop.xlane.xlu0 %322
  %v326 = vunpack.c.l.s4 269488144
  %v327 = vunpack.c.0.s8 %v326
  %v328 = vlaneseq
  %v329 = vshrl.u32 %v328, 7
  %v330 = vsub.s32 %v327, %v329
  %v331 = vrot.slane %v323, %v330
  %v333 = vsub.f32 %v27, %v331
  %v334 = vsub.f32 %v28, %v331
  %v335 = vsub.f32 %v29, %v331
  %v336 = vsub.f32 %v30, %v331
  %v337 = vsub.f32 %v31, %v331
  %v338 = vsub.f32 %v32, %v331
  %v339 = vsub.f32 %v33, %v331
  %v340 = vsub.f32 %v34, %v331
  %v341 = vsub.f32 %v35, %v331
  %v342 = vsub.f32 %v36, %v331
  %v343 = vmul.f32 %v333, 1.442695
  %v344 = vpow.pop %v343
  %v345 = vmul.f32 %v334, 1.442695
  %v346 = vpow.pop %v345
  %v347 = vmul.f32 %v335, 1.442695
  %v348 = vpow.pop %v347
  %v349 = vmul.f32 %v336, 1.442695
  %v350 = vpow.pop %v349
  %v351 = vmul.f32 %v337, 1.442695
  %v352 = vpow.pop %v351
  %v353 = vmul.f32 %v338, 1.442695
  %v354 = vpow.pop %v353
  %v355 = vmul.f32 %v339, 1.442695
  %v356 = vpow.pop %v355
  %v357 = vmul.f32 %v340, 1.442695
  %v358 = vpow.pop %v357
  %v359 = vmul.f32 %v341, 1.442695
  %v360 = vpow.pop %v359
  %v361 = vmul.f32 %v342, 1.442695
  %v362 = vpow.pop %v361
  %v373 = vcombine.high %v344, %v344
  %v375 = vunpack.c.l.s4 1983009808
  %v376 = vunpack.c.0.s8 %v375
  %v377 = vlaneseq
  %v378 = vshrl.u32 %v377, 7
  %v379 = vsub.s32 %v376, %v378
  %v380 = vrot.slane %v344, %v379
  %v382 = vunpack.c.l.s4 1983009808
  %v383 = vunpack.c.0.s8 %v382
  %v384 = vlaneseq
  %v385 = vshrl.u32 %v384, 7
  %v386 = vsub.s32 %v383, %v385
  %v387 = vrot.slane %v373, %v386
  %v388 = vcombine.high %v380, %v380
  %v389 = vcombine.high %v387, %v387
  %v390 = vcombine.high %v346, %v346
  %v392 = vunpack.c.l.s4 1983009808
  %v393 = vunpack.c.0.s8 %v392
  %v394 = vlaneseq
  %v395 = vshrl.u32 %v394, 7
  %v396 = vsub.s32 %v393, %v395
  %v397 = vrot.slane %v346, %v396
  %v399 = vunpack.c.l.s4 1983009808
  %v400 = vunpack.c.0.s8 %v399
  %v401 = vlaneseq
  %v402 = vshrl.u32 %v401, 7
  %v403 = vsub.s32 %v400, %v402
  %v404 = vrot.slane %v390, %v403
  %v405 = vcombine.high %v397, %v397
  %v406 = vcombine.high %v404, %v404
  %v407 = vcombine.high %v348, %v348
  %v409 = vunpack.c.l.s4 1983009808
  %v410 = vunpack.c.0.s8 %v409
  %v411 = vlaneseq
  %v412 = vshrl.u32 %v411, 7
  %v413 = vsub.s32 %v410, %v412
  %v414 = vrot.slane %v348, %v413
  %v416 = vunpack.c.l.s4 1983009808
  %v417 = vunpack.c.0.s8 %v416
  %v418 = vlaneseq
  %v419 = vshrl.u32 %v418, 7
  %v420 = vsub.s32 %v417, %v419
  %v421 = vrot.slane %v407, %v420
  %v422 = vcombine.high %v414, %v414
  %v423 = vcombine.high %v421, %v421
  %v424 = vcombine.high %v350, %v350
  %v426 = vunpack.c.l.s4 1983009808
  %v427 = vunpack.c.0.s8 %v426
  %v428 = vlaneseq
  %v429 = vshrl.u32 %v428, 7
  %v430 = vsub.s32 %v427, %v429
  %v431 = vrot.slane %v350, %v430
  %v433 = vunpack.c.l.s4 1983009808
  %v434 = vunpack.c.0.s8 %v433
  %v435 = vlaneseq
  %v436 = vshrl.u32 %v435, 7
  %v437 = vsub.s32 %v434, %v436
  %v438 = vrot.slane %v424, %v437
  %v439 = vcombine.high %v431, %v431
  %v440 = vcombine.high %v438, %v438
  %v441 = vcombine.high %v352, %v352
  %v443 = vunpack.c.l.s4 1983009808
  %v444 = vunpack.c.0.s8 %v443
  %v445 = vlaneseq
  %v446 = vshrl.u32 %v445, 7
  %v447 = vsub.s32 %v444, %v446
  %v448 = vrot.slane %v352, %v447
  %v450 = vunpack.c.l.s4 1983009808
  %v451 = vunpack.c.0.s8 %v450
  %v452 = vlaneseq
  %v453 = vshrl.u32 %v452, 7
  %v454 = vsub.s32 %v451, %v453
  %v455 = vrot.slane %v441, %v454
  %v456 = vcombine.high %v448, %v448
  %v457 = vcombine.high %v455, %v455
  %v458 = vcombine.high %v354, %v354
  %v460 = vunpack.c.l.s4 1983009808
  %v461 = vunpack.c.0.s8 %v460
  %v462 = vlaneseq
  %v463 = vshrl.u32 %v462, 7
  %v464 = vsub.s32 %v461, %v463
  %v465 = vrot.slane %v354, %v464
  %v467 = vunpack.c.l.s4 1983009808
  %v468 = vunpack.c.0.s8 %v467
  %v469 = vlaneseq
  %v470 = vshrl.u32 %v469, 7
  %v471 = vsub.s32 %v468, %v470
  %v472 = vrot.slane %v458, %v471
  %v473 = vcombine.high %v465, %v465
  %v474 = vcombine.high %v472, %v472
  %v475 = vcombine.high %v356, %v356
  %v477 = vunpack.c.l.s4 1983009808
  %v478 = vunpack.c.0.s8 %v477
  %v479 = vlaneseq
  %v480 = vshrl.u32 %v479, 7
  %v481 = vsub.s32 %v478, %v480
  %v482 = vrot.slane %v356, %v481
  %v484 = vunpack.c.l.s4 1983009808
  %v485 = vunpack.c.0.s8 %v484
  %v486 = vlaneseq
  %v487 = vshrl.u32 %v486, 7
  %v488 = vsub.s32 %v485, %v487
  %v489 = vrot.slane %v475, %v488
  %v490 = vcombine.high %v482, %v482
  %v491 = vcombine.high %v489, %v489
  %v492 = vcombine.high %v358, %v358
  %v494 = vunpack.c.l.s4 1983009808
  %v495 = vunpack.c.0.s8 %v494
  %v496 = vlaneseq
  %v497 = vshrl.u32 %v496, 7
  %v498 = vsub.s32 %v495, %v497
  %v499 = vrot.slane %v358, %v498
  %v501 = vunpack.c.l.s4 1983009808
  %v502 = vunpack.c.0.s8 %v501
  %v503 = vlaneseq
  %v504 = vshrl.u32 %v503, 7
  %v505 = vsub.s32 %v502, %v504
  %v506 = vrot.slane %v492, %v505
  %v507 = vcombine.high %v499, %v499
  %v508 = vcombine.high %v506, %v506
  %v509 = vcombine.high %v360, %v360
  %v511 = vunpack.c.l.s4 1983009808
  %v512 = vunpack.c.0.s8 %v511
  %v513 = vlaneseq
  %v514 = vshrl.u32 %v513, 7
  %v515 = vsub.s32 %v512, %v514
  %v516 = vrot.slane %v360, %v515
  %v518 = vunpack.c.l.s4 1983009808
  %v519 = vunpack.c.0.s8 %v518
  %v520 = vlaneseq
  %v521 = vshrl.u32 %v520, 7
  %v522 = vsub.s32 %v519, %v521
  %v523 = vrot.slane %v509, %v522
  %v524 = vcombine.high %v516, %v516
  %v525 = vcombine.high %v523, %v523
  %v527 = vunpack.c.l.s4 1983009808
  %v528 = vunpack.c.0.s8 %v527
  %v529 = vlaneseq
  %v530 = vshrl.u32 %v529, 7
  %v531 = vsub.s32 %v528, %v530
  %v532 = vrot.slane %v362, %v531
  %v533 = vcombine.high %v532, %v532
  %v572 = vsel %vm246, %v380, 0.0
  %v573 = vsel %vm246, %v388, 0.0
  %v574 = vadd.f32 %v572, %v573
  %v575 = vsel %vm246, %v387, 0.0
  %v576 = vadd.f32 %v574, %v575
  %v577 = vsel %vm246, %v389, 0.0
  %v578 = vadd.f32 %v576, %v577
  %v579 = vsel %vm246, %v397, 0.0
  %v580 = vadd.f32 %v578, %v579
  %v581 = vsel %vm246, %v405, 0.0
  %v582 = vadd.f32 %v580, %v581
  %v583 = vsel %vm246, %v404, 0.0
  %v584 = vadd.f32 %v582, %v583
  %v585 = vsel %vm246, %v406, 0.0
  %v586 = vadd.f32 %v584, %v585
  %v587 = vsel %vm246, %v414, 0.0
  %v588 = vadd.f32 %v586, %v587
  %v589 = vsel %vm246, %v422, 0.0
  %v590 = vadd.f32 %v588, %v589
  %v591 = vsel %vm246, %v421, 0.0
  %v592 = vadd.f32 %v590, %v591
  %v593 = vsel %vm246, %v423, 0.0
  %v594 = vadd.f32 %v592, %v593
  %v595 = vsel %vm246, %v431, 0.0
  %v596 = vadd.f32 %v594, %v595
  %v597 = vsel %vm246, %v439, 0.0
  %v598 = vadd.f32 %v596, %v597
  %v599 = vsel %vm246, %v438, 0.0
  %v600 = vadd.f32 %v598, %v599
  %v601 = vsel %vm246, %v440, 0.0
  %v602 = vadd.f32 %v600, %v601
  %v603 = vsel %vm246, %v448, 0.0
  %v604 = vadd.f32 %v602, %v603
  %v605 = vsel %vm246, %v456, 0.0
  %v606 = vadd.f32 %v604, %v605
  %v607 = vsel %vm246, %v455, 0.0
  %v608 = vadd.f32 %v606, %v607
  %v609 = vsel %vm246, %v457, 0.0
  %v610 = vadd.f32 %v608, %v609
  %v611 = vsel %vm246, %v465, 0.0
  %v612 = vadd.f32 %v610, %v611
  %v613 = vsel %vm246, %v473, 0.0
  %v614 = vadd.f32 %v612, %v613
  %v615 = vsel %vm246, %v472, 0.0
  %v616 = vadd.f32 %v614, %v615
  %v617 = vsel %vm246, %v474, 0.0
  %v618 = vadd.f32 %v616, %v617
  %v619 = vsel %vm246, %v482, 0.0
  %v620 = vadd.f32 %v618, %v619
  %v621 = vsel %vm246, %v490, 0.0
  %v622 = vadd.f32 %v620, %v621
  %v623 = vsel %vm246, %v489, 0.0
  %v624 = vadd.f32 %v622, %v623
  %v625 = vsel %vm246, %v491, 0.0
  %v626 = vadd.f32 %v624, %v625
  %v627 = vsel %vm246, %v499, 0.0
  %v628 = vadd.f32 %v626, %v627
  %v629 = vsel %vm246, %v507, 0.0
  %v630 = vadd.f32 %v628, %v629
  %v631 = vsel %vm246, %v506, 0.0
  %v632 = vadd.f32 %v630, %v631
  %v633 = vsel %vm246, %v508, 0.0
  %v634 = vadd.f32 %v632, %v633
  %v635 = vsel %vm246, %v516, 0.0
  %v636 = vadd.f32 %v634, %v635
  %v637 = vsel %vm246, %v524, 0.0
  %v638 = vadd.f32 %v636, %v637
  %v639 = vsel %vm246, %v523, 0.0
  %v640 = vadd.f32 %v638, %v639
  %v641 = vsel %vm246, %v525, 0.0
  %v642 = vadd.f32 %v640, %v641
  %v643 = vsel %vm246, %v532, 0.0
  %v644 = vadd.f32 %v642, %v643
  %v645 = vsel %vm246, %v533, 0.0
  %v646 = vadd.f32 %v644, %v645
  %647 = vadd.xlane.f32.xlu0 %v646
  %v648 = vpop.xlane.xlu0 %647
  %v649 = vrcp.pop %v648
  %v652 = vunpack.c.l.s4 269488144
  %v653 = vunpack.c.0.s8 %v652
  %v654 = vlaneseq
  %v655 = vshrl.u32 %v654, 7
  %v656 = vsub.s32 %v653, %v655
  %v657 = vrot.slane %v649, %v656
  %v659 = vmul.f32 %v344, %v657
  %v660 = vmul.f32 %v346, %v657
  %v661 = vmul.f32 %v348, %v657
  %v662 = vmul.f32 %v350, %v657
  %v663 = vmul.f32 %v352, %v657
  %v664 = vmul.f32 %v354, %v657
  %v665 = vmul.f32 %v356, %v657
  %v666 = vmul.f32 %v358, %v657
  %v667 = vmul.f32 %v360, %v657
  %v668 = vmul.f32 %v362, %v657
  %669 = vst [vmem:[%s6] sm:$0xff] %v659
  %670 = vst [vmem:[%s6 + $0x8] sm:$0xff] %v660
  %671 = vst [vmem:[%s6 + $0x10] sm:$0xff] %v661
  %672 = vst [vmem:[%s6 + $0x18] sm:$0xff] %v662
  %673 = vst [vmem:[%s6 + $0x20] sm:$0xff] %v663
  %674 = vst [vmem:[%s6 + $0x28] sm:$0xff] %v664
  %675 = vst [vmem:[%s6 + $0x30] sm:$0xff] %v665
  %676 = vst [vmem:[%s6 + $0x38] sm:$0xff] %v666
  %677 = vst [vmem:[%s6 + $0x40] sm:$0xff] %v667
  %678 = vst [vmem:[%s6 + $0x48] sm:$0xf] %v668
  %v679 = vld [vmem:[%s1] sm:$0x3]
  %v680 = vld [vmem:[%s2] sm:$0xff]
  %v681 = vld [vmem:[%s2 + $0x8] sm:$0xff]
  %v682 = vld [vmem:[%s2 + $0x10] sm:$0xff]
  %v683 = vld [vmem:[%s2 + $0x18] sm:$0xff]
  %v684 = vld [vmem:[%s2 + $0x20] sm:$0xff]
  %v685 = vld [vmem:[%s2 + $0x28] sm:$0xff]
  %v686 = vld [vmem:[%s2 + $0x30] sm:$0xff]
  %v687 = vld [vmem:[%s2 + $0x38] sm:$0xff]
  %v688 = vld [vmem:[%s3] sm:$0x1]
  %v690 = vlaneseq
  %v691 = vshrl.u32 %v690, 7
  %v692 = vsub.s32 0, %v691
  %v693 = vrot.slane %v688, %v692
  %vm695 = vcmask 523264
  %v697 = vsel %vm695, %v679, 0
  %699 = vmatprep.subr.mxu0 0.0
  %700 = vmatpush1.msra.mxu0 0.0
  %701 = vmatprep.subr.mxu0 0.0
  %702 = vmatpush1.msra.mxu0 0.0
  %703 = vmatprep.subr.mxu0 0.0
  %704 = vmatpush1.msra.mxu0 0.0
  %705 = vmatprep.subr.mxu0 0.0
  %706 = vmatpush1.msra.mxu0 0.0
  %707 = vmatprep.subr.mxu0 0.0
  %708 = vmatpush1.msra.mxu0 0.0
  %709 = vmatprep.subr.mxu0 0.0
  %710 = vmatpush1.msra.mxu0 0.0
  %711 = vmatprep.subr.mxu0 0.0
  %712 = vmatpush1.msra.mxu0 0.0
  %713 = vmatprep.subr.mxu0 0.0
  %714 = vmatpush1.msra.mxu0 0.0
  %715 = vmatprep.subr.mxu0 0.0
  %716 = vmatpush1.msra.mxu0 %v687
  %717 = vmatprep.subr.mxu0 0.0
  %718 = vmatpush1.msra.mxu0 %v686
  %719 = vmatprep.subr.mxu0 0.0
  %720 = vmatpush1.msra.mxu0 %v685
  %721 = vmatprep.subr.mxu0 0.0
  %722 = vmatpush1.msra.mxu0 %v684
  %723 = vmatprep.subr.mxu0 0.0
  %724 = vmatpush1.msra.mxu0 %v683
  %725 = vmatprep.subr.mxu0 0.0
  %726 = vmatpush1.msra.mxu0 %v682
  %727 = vmatprep.subr.mxu0 0.0
  %728 = vmatpush1.msra.mxu0 %v681
  %729 = vmatprep.subr.mxu0 0.0
  %730 = vmatpush1.msra.mxu0 %v680
  %731 = vmatprep.subr.mxu0 0.0
  %732 = vmatpush2.msra.mxu0 0.0
  %733 = vmatprep.subr.mxu0 0.0
  %734 = vmatpush2.msra.mxu0 0.0
  %735 = vmatprep.subr.mxu0 0.0
  %736 = vmatpush2.msra.mxu0 0.0
  %737 = vmatprep.subr.mxu0 0.0
  %738 = vmatpush2.msra.mxu0 0.0
  %739 = vmatprep.subr.mxu0 0.0
  %740 = vmatpush2.msra.mxu0 0.0
  %741 = vmatprep.subr.mxu0 0.0
  %742 = vmatpush2.msra.mxu0 0.0
  %743 = vmatprep.subr.mxu0 0.0
  %744 = vmatpush2.msra.mxu0 0.0
  %745 = vmatprep.subr.mxu0 0.0
  %746 = vmatpush2.msra.mxu0 0.0
  %747 = vmatprep.subr.mxu0 0.0
  %748 = vmatpush2.msra.mxu0 0.0
  %749 = vmatprep.subr.mxu0 0.0
  %750 = vmatpush2.msra.mxu0 0.0
  %751 = vmatprep.subr.mxu0 0.0
  %752 = vmatpush2.msra.mxu0 0.0
  %753 = vmatprep.subr.mxu0 0.0
  %754 = vmatpush2.msra.mxu0 0.0
  %755 = vmatprep.subr.mxu0 0.0
  %756 = vmatpush2.msra.mxu0 0.0
  %757 = vmatprep.subr.mxu0 0.0
  %758 = vmatpush2.msra.mxu0 0.0
  %759 = vmatprep.subr.mxu0 0.0
  %760 = vmatpush2.msra.mxu0 0.0
  %761 = vmatprep.subr.mxu0 0.0
  %762 = vmatpush2.msra.mxu0 0.0
  %763 = vmatprep.mubr.f32.mxu0 0.0
  %764 = vmatmul.mubr.f32.gmra.mxu0 %v697
  %v765 = vpop.f32.mrf.mxu0
  %v766 = vadd.f32 %v693, %v765
  %v767 = vpop.f32.mrf.mxu0
  %768 = vdwg.mxu0
  %v769 = vmax.f32 %v766, 0.0
  %v770 = vld [vmem:[%s4] sm:$0xff]
  %v771 = vld [vmem:[%s4 + $0x8] sm:$0xff]
  %v772 = vld [vmem:[%s4 + $0x10] sm:$0xff]
  %v773 = vld [vmem:[%s4 + $0x18] sm:$0xff]
  %v774 = vld [vmem:[%s4 + $0x20] sm:$0xff]
  %v775 = vld [vmem:[%s4 + $0x28] sm:$0xff]
  %v776 = vld [vmem:[%s4 + $0x30] sm:$0xff]
  %v777 = vld [vmem:[%s4 + $0x38] sm:$0xff]
  %v778 = vld [vmem:[#allocation2] sm:$0x1]
  %v780 = vlaneseq
  %v781 = vshrl.u32 %v780, 7
  %v782 = vsub.s32 0, %v781
  %v783 = vrot.slane %v778, %v782
  %v786 = vsel %vm695, %v769, 0
  %788 = vmatprep.subr.mxu0 0.0
  %789 = vmatpush1.msra.mxu0 0.0
  %790 = vmatprep.subr.mxu0 0.0
  %791 = vmatpush1.msra.mxu0 0.0
  %792 = vmatprep.subr.mxu0 0.0
  %793 = vmatpush1.msra.mxu0 0.0
  %794 = vmatprep.subr.mxu0 0.0
  %795 = vmatpush1.msra.mxu0 0.0
  %796 = vmatprep.subr.mxu0 0.0
  %797 = vmatpush1.msra.mxu0 0.0
  %798 = vmatprep.subr.mxu0 0.0
  %799 = vmatpush1.msra.mxu0 0.0
  %800 = vmatprep.subr.mxu0 0.0
  %801 = vmatpush1.msra.mxu0 0.0
  %802 = vmatprep.subr.mxu0 0.0
  %803 = vmatpush1.msra.mxu0 0.0
  %804 = vmatprep.subr.mxu0 0.0
  %805 = vmatpush1.msra.mxu0 %v777
  %806 = vmatprep.subr.mxu0 0.0
  %807 = vmatpush1.msra.mxu0 %v776
  %808 = vmatprep.subr.mxu0 0.0
  %809 = vmatpush1.msra.mxu0 %v775
  %810 = vmatprep.subr.mxu0 0.0
  %811 = vmatpush1.msra.mxu0 %v774
  %812 = vmatprep.subr.mxu0 0.0
  %813 = vmatpush1.msra.mxu0 %v773
  %814 = vmatprep.subr.mxu0 0.0
  %815 = vmatpush1.msra.mxu0 %v772
  %816 = vmatprep.subr.mxu0 0.0
  %817 = vmatpush1.msra.mxu0 %v771
  %818 = vmatprep.subr.mxu0 0.0
  %819 = vmatpush1.msra.mxu0 %v770
  %820 = vmatprep.subr.mxu0 0.0
  %821 = vmatpush2.msra.mxu0 0.0
  %822 = vmatprep.subr.mxu0 0.0
  %823 = vmatpush2.msra.mxu0 0.0
  %824 = vmatprep.subr.mxu0 0.0
  %825 = vmatpush2.msra.mxu0 0.0
  %826 = vmatprep.subr.mxu0 0.0
  %827 = vmatpush2.msra.mxu0 0.0
  %828 = vmatprep.subr.mxu0 0.0
  %829 = vmatpush2.msra.mxu0 0.0
  %830 = vmatprep.subr.mxu0 0.0
  %831 = vmatpush2.msra.mxu0 0.0
  %832 = vmatprep.subr.mxu0 0.0
  %833 = vmatpush2.msra.mxu0 0.0
  %834 = vmatprep.subr.mxu0 0.0
  %835 = vmatpush2.msra.mxu0 0.0
  %836 = vmatprep.subr.mxu0 0.0
  %837 = vmatpush2.msra.mxu0 0.0
  %838 = vmatprep.subr.mxu0 0.0
  %839 = vmatpush2.msra.mxu0 0.0
  %840 = vmatprep.subr.mxu0 0.0
  %841 = vmatpush2.msra.mxu0 0.0
  %842 = vmatprep.subr.mxu0 0.0
  %843 = vmatpush2.msra.mxu0 0.0
  %844 = vmatprep.subr.mxu0 0.0
  %845 = vmatpush2.msra.mxu0 0.0
  %846 = vmatprep.subr.mxu0 0.0
  %847 = vmatpush2.msra.mxu0 0.0
  %848 = vmatprep.subr.mxu0 0.0
  %849 = vmatpush2.msra.mxu0 0.0
  %850 = vmatprep.subr.mxu0 0.0
  %851 = vmatpush2.msra.mxu0 0.0
  %852 = vmatprep.mubr.f32.mxu0 0.0
  %853 = vmatmul.mubr.f32.gmra.mxu0 %v786
  %v854 = vpop.f32.mrf.mxu0
  %v855 = vadd.f32 %v783, %v854
  %v856 = vpop.f32.mrf.mxu0
  %857 = vdwg.mxu0
  %v858 = vtanh.pop %v855
  %vm859 = vcmask 1024
  %860 = vst.msk [vmem:[%s7] sm:$0x3] %vm859, %v858
  // Predicated region
  $region26: #{outblock_forward.5} parent=0 // pred_check
    _
  $region27: #{outblock_forward.5} parent=0 // pred_check_branch
    %862 = sbr.rel (0) target = $region29
  $region28: #{outblock_forward.5} parent=0 // pred_region
    _
  $region29: #{outblock_forward.5} parent=0 // pred_fallthru
    _
  // Predicated region
  $region30: #{outblock_forward.5} parent=0 // pred_check
    _
  $region31: #{outblock_forward.5} parent=0 // pred_check_branch
    %864 = sbr.rel (0) target = $region33
  $region32: #{outblock_forward.5} parent=0 // pred_region
    _
  $region33: #{outblock_forward.5} parent=0 // pred_fallthru
    _
  // Predicated region
  $region34: #{outblock_forward.5} parent=0 // pred_check
    _
  $region35: #{outblock_forward.5} parent=0 // pred_check_branch
    %866 = sbr.rel (0) target = $region37
  $region36: #{outblock_forward.5} parent=0 // pred_region
    _
  $region37: #{outblock_forward.5} parent=0 // pred_fallthru
    _
  // Predicated region
  $region38: #{outblock_forward.5} parent=0 // pred_check
    _
  $region39: #{outblock_forward.5} parent=0 // pred_check_branch
    %868 = sbr.rel (0) target = $region41
  $region40: #{outblock_forward.5} parent=0 // pred_region
    _
  $region41: #{outblock_forward.5} parent=0 // pred_fallthru
    _

// kernel: outblock_forward.4
$region0: #{outblock_forward.4}
  #allocation0 [shape = 'u32[]', space=smem, size = 0x4, offset = 0x4, fixed_abs, tag = 'smem constant byte address 0x4 - core index']
  #allocation1 [shape = 'u32[144,128]{1,0:T(1,128)}', space=vmem, size = 0x12000, scoped, tag = 'internal scratch']
  #allocation2 [shape = 'f32[2,2432]{1,0:T(2,128)}', space=vmem, size = 0x4c00, scoped, tag = 'scratch operand']
  %s0 = inlined_call_operand.vmem [shape: bf16[2,8192], index: 0, kind: input, shape index: {}]
  %s1 = inlined_call_operand.hbm [shape: bf16[8192,4864], index: 1, kind: input, shape index: {}]
  %s2 = inlined_call_operand.hbm [shape: f32[1,4864], index: 2, kind: input, shape index: {}]
  %s3 = inlined_call_operand.vmem [shape: f32[2,4864], index: 3, kind: output, shape index: {}]
  %s4 = sld [smem:[#allocation0]]
  $region61: #{outblock_forward.4} parent=0
    _
  %s6 = ssub.s32 1, %s4
  %s7 = scalar_select 0, %s6, %s4
  $region1: #{outblock_forward.4} parent=0
    #allocation3 [shape = 'u8[9961472]{0}', space=vmem, size = 0x980000, scoped, tag = 'input window, operand 1']
    #allocation4 [shape = 's32[2]{0}', space=sflag, size = 0x8, scoped, tag = 'scoped memory for outblock_forward.4']
    #allocation5 [shape = 'u8[19456]{0}', space=vmem, size = 0x4c00, scoped, tag = 'input window, operand 2']
    #allocation6 [shape = 's32[2]{0}', space=sflag, size = 0x8, scoped, tag = 'scoped memory for outblock_forward.4']
    %8 = vsyncpa [#allocation4], 0
    %s9 = scalar_lea.sflag [#allocation4], 1
    %10 = vsyncpa %s9, 0
    %11 = vsyncpa [#allocation6], 0
    %s12 = scalar_lea.sflag [#allocation6], 1
    %13 = vsyncpa %s12, 0
    loop: start=0, step=1, limit=18
    $region2: #{outblock_forward.4} parent=1 // loop_pre_header
      _
    $region3: #{outblock_forward.4} parent=1 // loop_header
      %s15 = sphi 0, %s19
      %p16 = scmp.ge.s32.totalorder %s15, 18
      %s22 = sphi 0, %s34
      %s23 = sphi 0, %s30
      %s24 = sphi 0, %s22
      %s25 = sphi 0, %s23
      %s26 = sphi 0, %s24
      %s27 = sphi 0, %s25
      %s37 = sphi 0, %s39
      %s40 = sphi 0, %s37
      %s41 = sphi 0, %s40
      %s57 = sphi 0, %s41
      %s65 = sphi 0, %s67
      %s68 = sphi 0, %s65
      %s69 = sphi 0, %s68
      %s85 = sphi 0, %s69
      %s91 = sphi 0, %s93
      %s94 = sphi 0, %s91
      %s95 = sphi 0, %s94
      %s111 = sphi 0, %s95
      %s117 = sphi 0, %s119
      %s120 = sphi 0, %s117
      %s121 = sphi 0, %s120
      %s137 = sphi 0, %s121
    $region4: #{outblock_forward.4} parent=1 // loop_header_branch
      %18 = sbr.rel (%p16) target = $region8
    $region5: #{outblock_forward.4} parent=1 // loop_body
      %s20 = ssub.s32 %s15, 1
      %s21 = ssub.s32 %s15, 2
      %s28 = sadd.s32 1, %s23
      %p29 = scmp.ge.s32.totalorder %s28, 8
      %s30 = scalar_select %p29, 0, %s28
      %s31 = sadd.s32 1, %s22
      %s32 = scalar_select %p29, %s31, %s22
      %p33 = scmp.ge.s32.totalorder %s32, 2
      %s34 = scalar_select %p33, 0, %s32
      %s35 = ssub.s32 %s23, %s30
      %p36 = scmp.eq.s32.totalorder %s35, 0
      %s38 = sadd.s32 %s37, 1
      %s39 = scalar_select %p36, %s37, %s38
      %p42 = pneg %p36
      %p43 = scmp.eq.s32.totalorder %s15, 15
      %p44 = por %p42, %p43
      %p45 = scmp.ne.s32.totalorder %s37, %s40
      %p46 = scmp.eq.s32.totalorder %s15, 0
      %p47 = por %p45, %p46
      %p48 = scmp.ne.s32.totalorder %s37, %s40
      %p49 = scmp.eq.s32.totalorder %s20, 15
      %p50 = por %p48, %p49
      %p51 = scmp.ne.s32.totalorder %s40, %s41
      %p52 = scmp.eq.s32.totalorder %s20, 0
      %p53 = por %p51, %p52
      %p54 = scmp.ne.s32.totalorder %s40, %s41
      %p55 = scmp.eq.s32.totalorder %s21, 15
      %p56 = por %p54, %p55
      %p58 = scmp.ne.s32.totalorder %s41, %s57
      %p59 = scmp.eq.s32.totalorder %s21, 0
      %p60 = por %p58, %p59
      %s61 = ssub.s32 %s23, %s30
      %s62 = ssub.s32 %s22, %s34
      %s63 = sor.u32 %s61, %s62
      %p64 = scmp.eq.s32.totalorder %s63, 0
      %s66 = sadd.s32 %s65, 1
      %s67 = scalar_select %p64, %s65, %s66
      %p70 = pneg %p64
      %p71 = scmp.eq.s32.totalorder %s15, 15
      %p72 = por %p70, %p71
      %p73 = scmp.ne.s32.totalorder %s65, %s68
      %p74 = scmp.eq.s32.totalorder %s15, 0
      %p75 = por %p73, %p74
      %p76 = scmp.ne.s32.totalorder %s65, %s68
      %p77 = scmp.eq.s32.totalorder %s20, 15
      %p78 = por %p76, %p77
      %p79 = scmp.ne.s32.totalorder %s68, %s69
      %p80 = scmp.eq.s32.totalorder %s20, 0
      %p81 = por %p79, %p80
      %p82 = scmp.ne.s32.totalorder %s68, %s69
      %p83 = scmp.eq.s32.totalorder %s21, 15
      %p84 = por %p82, %p83
      %p86 = scmp.ne.s32.totalorder %s69, %s85
      %p87 = scmp.eq.s32.totalorder %s21, 0
      %p88 = por %p86, %p87
      %s89 = ssub.s32 %s22, %s34
      %p90 = scmp.eq.s32.totalorder %s89, 0
      %s92 = sadd.s32 %s91, 1
      %s93 = scalar_select %p90, %s91, %s92
      %p96 = pneg %p90
      %p97 = scmp.eq.s32.totalorder %s15, 15
      %p98 = por %p96, %p97
      %p99 = scmp.ne.s32.totalorder %s91, %s94
      %p100 = scmp.eq.s32.totalorder %s15, 0
      %p101 = por %p99, %p100
      %p102 = scmp.ne.s32.totalorder %s91, %s94
      %p103 = scmp.eq.s32.totalorder %s20, 15
      %p104 = por %p102, %p103
      %p105 = scmp.ne.s32.totalorder %s94, %s95
      %p106 = scmp.eq.s32.totalorder %s20, 0
      %p107 = por %p105, %p106
      %p108 = scmp.ne.s32.totalorder %s94, %s95
      %p109 = scmp.eq.s32.totalorder %s21, 15
      %p110 = por %p108, %p109
      %p112 = scmp.ne.s32.totalorder %s95, %s111
      %p113 = scmp.eq.s32.totalorder %s21, 0
      %p114 = por %p112, %p113
      %s115 = ssub.s32 %s22, %s34
      %p116 = scmp.eq.s32.totalorder %s115, 0
      %s118 = sadd.s32 %s117, 1
      %s119 = scalar_select %p116, %s117, %s118
      %p122 = pneg %p116
      %p123 = scmp.eq.s32.totalorder %s15, 15
      %p124 = por %p122, %p123
      %p125 = scmp.ne.s32.totalorder %s117, %s120
      %p126 = scmp.eq.s32.totalorder %s15, 0
      %p127 = por %p125, %p126
      %p128 = scmp.ne.s32.totalorder %s117, %s120
      %p129 = scmp.eq.s32.totalorder %s20, 15
      %p130 = por %p128, %p129
      %p131 = scmp.ne.s32.totalorder %s120, %s121
      %p132 = scmp.eq.s32.totalorder %s20, 0
      %p133 = por %p131, %p132
      %p134 = scmp.ne.s32.totalorder %s120, %s121
      %p135 = scmp.eq.s32.totalorder %s21, 15
      %p136 = por %p134, %p135
      %p138 = scmp.ne.s32.totalorder %s121, %s137
      %p139 = scmp.eq.s32.totalorder %s21, 0
      %p140 = por %p138, %p139
      %p141 = scmp.le.s32.totalorder 1, %s15
      %p142 = scmp.lt.s32.totalorder %s15, 17
      %p143 = pnand %p141, %p142
      %p144 = pneg %p143
      // Predicated region
      $region9: #{outblock_forward.4} parent=5 // pred_check
        _
      $region10: #{outblock_forward.4} parent=5 // pred_check_branch
        %146 = sbr.rel (%p143) target = $region12
      $region11: #{outblock_forward.4} parent=5 // pred_region
        %s147 = ssub.s32 %s15, 1
      $region12: #{outblock_forward.4} parent=5 // pred_fallthru
        _
      %p148 = scmp.lt.s32.totalorder %s15, 16
      // Predicated region
      $region13: #{outblock_forward.4} parent=5 // pred_check
        %p149 = pneg %p148
      $region14: #{outblock_forward.4} parent=5 // pred_check_branch
        %151 = sbr.rel (%p149) target = $region16
      $region15: #{outblock_forward.4} parent=5 // pred_region
        // Predicated region
        $region17: #{outblock_forward.4} parent=15 // pred_check
          %p152 = pneg %p47
        $region18: #{outblock_forward.4} parent=15 // pred_check_branch
          %154 = sbr.rel (%p152) target = $region20
        $region19: #{outblock_forward.4} parent=15 // pred_region
          %s155 = smul.u32 8, %s23
          %p156 = scmp.lt.s32.totalorder %s155, 63
          %s157 = scalar_select %p156, %s155, 63
          %s158 = scalar_lea.vmem %s0, %s157
          %s159 = smul.u32 8, %s23
        $region20: #{outblock_forward.4} parent=15 // pred_fallthru
          _
        // Predicated region
        $region21: #{outblock_forward.4} parent=15 // pred_check
          %p160 = pneg %p75
        $region22: #{outblock_forward.4} parent=15 // pred_check_branch
          %162 = sbr.rel (%p160) target = $region24
        $region23: #{outblock_forward.4} parent=15 // pred_region
          %s163 = sand.u32 %s65, 1
          %s164 = scalar_lea.sflag [#allocation4], %s163
          %s165 = sand.u32 %s65, 1
          %s166 = smul.addr %s165, 9728
          %s167 = scalar_lea.vmem [#allocation3], %s166
          %s168 = smul.u32 128, %s23
          %s169 = smul.u32 19, %s22
          %s171 = ssub.s32 155648, 155648
          %172 = vsyncadd %s164, %s171
          %s173 = smul.addr %s168, 38
          %s174 = sadd.s32 %s169, %s173
          %s175 = smul.addr %s174, 64
          %s176 = scalar_lea.hbm %s1, %s175
          %s177 = sshll.u32 %s167, 4
          %s178 = int_to_ptr.vmem [resolvable:$true] %s177
          %183 = dma.hbm_to_vmem [thread:$0]  %s176, 155648, %s178, %s164, 2432, 1216, 76
        $region24: #{outblock_forward.4} parent=15 // pred_fallthru
          _
        // Predicated region
        $region25: #{outblock_forward.4} parent=15 // pred_check
          %p184 = pneg %p101
        $region26: #{outblock_forward.4} parent=15 // pred_check_branch
          %186 = sbr.rel (%p184) target = $region28
        $region27: #{outblock_forward.4} parent=15 // pred_region
          %s187 = sand.u32 %s91, 1
          %s188 = scalar_lea.sflag [#allocation6], %s187
          %s189 = sand.u32 %s91, 1
          %s190 = smul.addr %s189, 19
          %s191 = scalar_lea.vmem [#allocation5], %s190
          %s192 = smul.u32 19, %s22
          %s194 = ssub.s32 304, 304
          %195 = vsyncadd %s188, %s194
          %s196 = smul.addr %s192, 16
          %s197 = scalar_lea.hbm %s2, %s196
          %s199 = sshll.u32 %s191, 4
          %s200 = int_to_ptr.vmem [resolvable:$true] %s199
          %202 = dma.hbm_to_vmem [thread:$0]  %s197, 304, %s200, %s188
        $region28: #{outblock_forward.4} parent=15 // pred_fallthru
          _
      $region16: #{outblock_forward.4} parent=5 // pred_fallthru
        _
      %p203 = scmp.le.s32.totalorder 1, %s15
      %p204 = scmp.lt.s32.totalorder %s15, 17
      %p205 = pnand %p203, %p204
      %p206 = pneg %p205
      // Predicated region
      $region29: #{outblock_forward.4} parent=5 // pred_check
        _
      $region30: #{outblock_forward.4} parent=5 // pred_check_branch
        %208 = sbr.rel (%p205) target = $region32
      $region31: #{outblock_forward.4} parent=5 // pred_region
        %s209 = ssub.s32 %s15, 1
        %s210 = sand.u32 %s68, 1
        %s211 = scalar_lea.sflag [#allocation4], %s210
        %s212 = sand.u32 %s68, 1
        %s213 = smul.addr %s212, 9728
        %s214 = scalar_lea.vmem [#allocation3], %s213
        // Predicated region
        $region33: #{outblock_forward.4} parent=31 // pred_check
          %p215 = pneg %p81
        $region34: #{outblock_forward.4} parent=31 // pred_check_branch
          %217 = sbr.rel (%p215) target = $region36
        $region35: #{outblock_forward.4} parent=31 // pred_region
          %218 = dma.done %s211, 155648
        $region36: #{outblock_forward.4} parent=31 // pred_fallthru
          _
        %s219 = sand.u32 %s94, 1
        %s220 = scalar_lea.sflag [#allocation6], %s219
        %s221 = sand.u32 %s94, 1
        %s222 = smul.addr %s221, 19
        %s223 = scalar_lea.vmem [#allocation5], %s222
        // Predicated region
        $region37: #{outblock_forward.4} parent=31 // pred_check
          %p224 = pneg %p107
        $region38: #{outblock_forward.4} parent=31 // pred_check_branch
          %226 = sbr.rel (%p224) target = $region40
        $region39: #{outblock_forward.4} parent=31 // pred_region
          %227 = dma.done %s220, 304
        $region40: #{outblock_forward.4} parent=31 // pred_fallthru
          _
        %s228 = smul.u32 8, %s25
        %p229 = scmp.lt.s32.totalorder %s228, 63
        %s230 = scalar_select %p229, %s228, 63
        %s231 = scalar_lea.vmem %s0, %s230
        %p232 = pneg %p53
        %p233 = pneg %p50
        %s234 = sand.u32 %s68, 1
        %s235 = scalar_lea.sflag [#allocation4], %s234
        %s236 = sand.u32 %s68, 1
        %s237 = smul.addr %s236, 9728
        %s238 = scalar_lea.vmem [#allocation3], %s237
        %p239 = pneg %p81
        %p240 = pneg %p78
        %s241 = sand.u32 %s94, 1
        %s242 = scalar_lea.sflag [#allocation6], %s241
        %s243 = sand.u32 %s94, 1
        %s244 = smul.addr %s243, 19
        %s245 = scalar_lea.vmem [#allocation5], %s244
        %p246 = pneg %p107
        %p247 = pneg %p104
        %p248 = pneg %p133
        %p249 = pneg %p130
        %s250 = smul.u32 19, %s24
        %p251 = scmp.lt.s32.totalorder %s250, 37
        %s252 = scalar_select %p251, %s250, 37
        %s253 = smul.addr %s252, 2
        %s254 = scalar_lea.vmem %s3, %s253
        %s255 = smul.u32 8, %s25
        %p256 = scmp.lt.s32.totalorder %s255, 63
        %s257 = scalar_select %p256, %s255, 63
        %s258 = scalar_lea.vmem %s0, %s257
        %s259 = smul.u32 8, %s25
        %s260 = smul.u32 128, %s25
        %s261 = smul.u32 19, %s24
        %s262 = smul.u32 19, %s24
        %s263 = smul.u32 19, %s24
        %p264 = scmp.lt.s32.totalorder %s263, 37
        %s265 = scalar_select %p264, %s263, 37
        %s266 = smul.addr %s265, 2
        %s267 = scalar_lea.vmem %s3, %s266
        %s268 = smul.u32 19, %s24
        %p270 = scmp.eq.s32.totalorder %s25, 0
        // Predicated region
        $region41: #{outblock_forward.4} parent=31 // pred_check
          %p271 = pneg %p270
        $region42: #{outblock_forward.4} parent=31 // pred_check_branch
          %273 = sbr.rel (%p271) target = $region44
        $region43: #{outblock_forward.4} parent=31 // pred_region
          %274 = vst [vmem:[#allocation2] sm:$0xff] 0.0
          %275 = vst [vmem:[#allocation2 + $0x8] sm:$0xff] 0.0
          %276 = vst [vmem:[#allocation2 + $0x10] sm:$0xff] 0.0
          %277 = vst [vmem:[#allocation2 + $0x18] sm:$0xff] 0.0
          %278 = vst [vmem:[#allocation2 + $0x20] sm:$0x3f] 0.0
        $region44: #{outblock_forward.4} parent=31 // pred_fallthru
          _
        %v279 = vld [vmem:[#allocation2] sm:$0xff]
        %v280 = vld [vmem:[#allocation2 + $0x8] sm:$0xff]
        %v281 = vld [vmem:[#allocation2 + $0x10] sm:$0xff]
        %v282 = vld [vmem:[#allocation2 + $0x18] sm:$0xff]
        %v283 = vld [vmem:[#allocation2 + $0x20] sm:$0x3f]
        %v284 = vld [vmem:[%s258] sm:$0xff]
        %v285 = vld [vmem:[%s214] sm:$0xff]
        %v286 = vld [vmem:[%s214 + $0x8] sm:$0xff]
        %v287 = vld [vmem:[%s214 + $0x10] sm:$0xff]
        %v288 = vld [vmem:[%s214 + $0x18] sm:$0xff]
        %v289 = vld [vmem:[%s214 + $0x20] sm:$0xff]
        %v290 = vld [vmem:[%s214 + $0x28] sm:$0xff]
        %v291 = vld [vmem:[%s214 + $0x30] sm:$0xff]
        %v292 = vld [vmem:[%s214 + $0x38] sm:$0xff]
        %v293 = vld [vmem:[%s214 + $0x40] sm:$0xff]
        %v294 = vld [vmem:[%s214 + $0x48] sm:$0xf]
        %v295 = vld [vmem:[%s214 + $0x4c] sm:$0xff]
        %v296 = vld [vmem:[%s214 + $0x54] sm:$0xff]
        %v297 = vld [vmem:[%s214 + $0x5c] sm:$0xff]
        %v298 = vld [vmem:[%s214 + $0x64] sm:$0xff]
        %v299 = vld [vmem:[%s214 + $0x6c] sm:$0xff]
        %v300 = vld [vmem:[%s214 + $0x74] sm:$0xff]
        %v301 = vld [vmem:[%s214 + $0x7c] sm:$0xff]
        %v302 = vld [vmem:[%s214 + $0x84] sm:$0xff]
        %v303 = vld [vmem:[%s214 + $0x8c] sm:$0xff]
        %v304 = vld [vmem:[%s214 + $0x94] sm:$0xf]
        %v305 = vld [vmem:[%s214 + $0x98] sm:$0xff]
        %v306 = vld [vmem:[%s214 + $0xa0] sm:$0xff]
        %v307 = vld [vmem:[%s214 + $0xa8] sm:$0xff]
        %v308 = vld [vmem:[%s214 + $0xb0] sm:$0xff]
        %v309 = vld [vmem:[%s214 + $0xb8] sm:$0xff]
        %v310 = vld [vmem:[%s214 + $0xc0] sm:$0xff]
        %v311 = vld [vmem:[%s214 + $0xc8] sm:$0xff]
        %v312 = vld [vmem:[%s214 + $0xd0] sm:$0xff]
        %v313 = vld [vmem:[%s214 + $0xd8] sm:$0xff]
        %v314 = vld [vmem:[%s214 + $0xe0] sm:$0xf]
        %v315 = vld [vmem:[%s214 + $0xe4] sm:$0xff]
        %v316 = vld [vmem:[%s214 + $0xec] sm:$0xff]
        %v317 = vld [vmem:[%s214 + $0xf4] sm:$0xff]
        %v318 = vld [vmem:[%s214 + $0xfc] sm:$0xff]
        %v319 = vld [vmem:[%s214 + $0x104] sm:$0xff]
        %v320 = vld [vmem:[%s214 + $0x10c] sm:$0xff]
        %v321 = vld [vmem:[%s214 + $0x114] sm:$0xff]
        %v322 = vld [vmem:[%s214 + $0x11c] sm:$0xff]
        %v323 = vld [vmem:[%s214 + $0x124] sm:$0xff]
        %v324 = vld [vmem:[%s214 + $0x12c] sm:$0xf]
        %v325 = vld [vmem:[%s214 + $0x130] sm:$0xff]
        %v326 = vld [vmem:[%s214 + $0x138] sm:$0xff]
        %v327 = vld [vmem:[%s214 + $0x140] sm:$0xff]
        %v328 = vld [vmem:[%s214 + $0x148] sm:$0xff]
        %v329 = vld [vmem:[%s214 + $0x150] sm:$0xff]
        %v330 = vld [vmem:[%s214 + $0x158] sm:$0xff]
        %v331 = vld [vmem:[%s214 + $0x160] sm:$0xff]
        %v332 = vld [vmem:[%s214 + $0x168] sm:$0xff]
        %v333 = vld [vmem:[%s214 + $0x170] sm:$0xff]
        %v334 = vld [vmem:[%s214 + $0x178] sm:$0xf]
        %v335 = vld [vmem:[%s214 + $0x17c] sm:$0xff]
        %v336 = vld [vmem:[%s214 + $0x184] sm:$0xff]
        %v337 = vld [vmem:[%s214 + $0x18c] sm:$0xff]
        %v338 = vld [vmem:[%s214 + $0x194] sm:$0xff]
        %v339 = vld [vmem:[%s214 + $0x19c] sm:$0xff]
        %v340 = vld [vmem:[%s214 + $0x1a4] sm:$0xff]
        %v341 = vld [vmem:[%s214 + $0x1ac] sm:$0xff]
        %v342 = vld [vmem:[%s214 + $0x1b4] sm:$0xff]
        %v343 = vld [vmem:[%s214 + $0x1bc] sm:$0xff]
        %v344 = vld [vmem:[%s214 + $0x1c4] sm:$0xf]
        %v345 = vld [vmem:[%s214 + $0x1c8] sm:$0xff]
        %v346 = vld [vmem:[%s214 + $0x1d0] sm:$0xff]
        %v347 = vld [vmem:[%s214 + $0x1d8] sm:$0xff]
        %v348 = vld [vmem:[%s214 + $0x1e0] sm:$0xff]
        %v349 = vld [vmem:[%s214 + $0x1e8] sm:$0xff]
        %v350 = vld [vmem:[%s214 + $0x1f0] sm:$0xff]
        %v351 = vld [vmem:[%s214 + $0x1f8] sm:$0xff]
        %v352 = vld [vmem:[%s214 + $0x200] sm:$0xff]
        %v353 = vld [vmem:[%s214 + $0x208] sm:$0xff]
        %v354 = vld [vmem:[%s214 + $0x210] sm:$0xf]
        %v355 = vld [vmem:[%s214 + $0x214] sm:$0xff]
        %v356 = vld [vmem:[%s214 + $0x21c] sm:$0xff]
        %v357 = vld [vmem:[%s214 + $0x224] sm:$0xff]
        %v358 = vld [vmem:[%s214 + $0x22c] sm:$0xff]
        %v359 = vld [vmem:[%s214 + $0x234] sm:$0xff]
        %v360 = vld [vmem:[%s214 + $0x23c] sm:$0xff]
        %v361 = vld [vmem:[%s214 + $0x244] sm:$0xff]
        %v362 = vld [vmem:[%s214 + $0x24c] sm:$0xff]
        %v363 = vld [vmem:[%s214 + $0x254] sm:$0xff]
        %v364 = vld [vmem:[%s214 + $0x25c] sm:$0xf]
        %v365 = vld [vmem:[%s214 + $0x260] sm:$0xff]
        %v366 = vld [vmem:[%s214 + $0x268] sm:$0xff]
        %v367 = vld [vmem:[%s214 + $0x270] sm:$0xff]
        %v368 = vld [vmem:[%s214 + $0x278] sm:$0xff]
        %v369 = vld [vmem:[%s214 + $0x280] sm:$0xff]
        %v370 = vld [vmem:[%s214 + $0x288] sm:$0xff]
        %v371 = vld [vmem:[%s214 + $0x290] sm:$0xff]
        %v372 = vld [vmem:[%s214 + $0x298] sm:$0xff]
        %v373 = vld [vmem:[%s214 + $0x2a0] sm:$0xff]
        %v374 = vld [vmem:[%s214 + $0x2a8] sm:$0xf]
        %v375 = vld [vmem:[%s214 + $0x2ac] sm:$0xff]
        %v376 = vld [vmem:[%s214 + $0x2b4] sm:$0xff]
        %v377 = vld [vmem:[%s214 + $0x2bc] sm:$0xff]
        %v378 = vld [vmem:[%s214 + $0x2c4] sm:$0xff]
        %v379 = vld [vmem:[%s214 + $0x2cc] sm:$0xff]
        %v380 = vld [vmem:[%s214 + $0x2d4] sm:$0xff]
        %v381 = vld [vmem:[%s214 + $0x2dc] sm:$0xff]
        %v382 = vld [vmem:[%s214 + $0x2e4] sm:$0xff]
        %v383 = vld [vmem:[%s214 + $0x2ec] sm:$0xff]
        %v384 = vld [vmem:[%s214 + $0x2f4] sm:$0xf]
        %v385 = vld [vmem:[%s214 + $0x2f8] sm:$0xff]
        %v386 = vld [vmem:[%s214 + $0x300] sm:$0xff]
        %v387 = vld [vmem:[%s214 + $0x308] sm:$0xff]
        %v388 = vld [vmem:[%s214 + $0x310] sm:$0xff]
        %v389 = vld [vmem:[%s214 + $0x318] sm:$0xff]
        %v390 = vld [vmem:[%s214 + $0x320] sm:$0xff]
        %v391 = vld [vmem:[%s214 + $0x328] sm:$0xff]
        %v392 = vld [vmem:[%s214 + $0x330] sm:$0xff]
        %v393 = vld [vmem:[%s214 + $0x338] sm:$0xff]
        %v394 = vld [vmem:[%s214 + $0x340] sm:$0xf]
        %v395 = vld [vmem:[%s214 + $0x344] sm:$0xff]
        %v396 = vld [vmem:[%s214 + $0x34c] sm:$0xff]
        %v397 = vld [vmem:[%s214 + $0x354] sm:$0xff]
        %v398 = vld [vmem:[%s214 + $0x35c] sm:$0xff]
        %v399 = vld [vmem:[%s214 + $0x364] sm:$0xff]
        %v400 = vld [vmem:[%s214 + $0x36c] sm:$0xff]
        %v401 = vld [vmem:[%s214 + $0x374] sm:$0xff]
        %v402 = vld [vmem:[%s214 + $0x37c] sm:$0xff]
        %v403 = vld [vmem:[%s214 + $0x384] sm:$0xff]
        %v404 = vld [vmem:[%s214 + $0x38c] sm:$0xf]
        %v405 = vld [vmem:[%s214 + $0x390] sm:$0xff]
        %v406 = vld [vmem:[%s214 + $0x398] sm:$0xff]
        %v407 = vld [vmem:[%s214 + $0x3a0] sm:$0xff]
        %v408 = vld [vmem:[%s214 + $0x3a8] sm:$0xff]
        %v409 = vld [vmem:[%s214 + $0x3b0] sm:$0xff]
        %v410 = vld [vmem:[%s214 + $0x3b8] sm:$0xff]
        %v411 = vld [vmem:[%s214 + $0x3c0] sm:$0xff]
        %v412 = vld [vmem:[%s214 + $0x3c8] sm:$0xff]
        %v413 = vld [vmem:[%s214 + $0x3d0] sm:$0xff]
        %v414 = vld [vmem:[%s214 + $0x3d8] sm:$0xf]
        %v415 = vld [vmem:[%s214 + $0x3dc] sm:$0xff]
        %v416 = vld [vmem:[%s214 + $0x3e4] sm:$0xff]
        %v417 = vld [vmem:[%s214 + $0x3ec] sm:$0xff]
        %v418 = vld [vmem:[%s214 + $0x3f4] sm:$0xff]
        %v419 = vld [vmem:[%s214 + $0x3fc] sm:$0xff]
        %v420 = vld [vmem:[%s214 + $0x404] sm:$0xff]
        %v421 = vld [vmem:[%s214 + $0x40c] sm:$0xff]
        %v422 = vld [vmem:[%s214 + $0x414] sm:$0xff]
        %v423 = vld [vmem:[%s214 + $0x41c] sm:$0xff]
        %v424 = vld [vmem:[%s214 + $0x424] sm:$0xf]
        %v425 = vld [vmem:[%s214 + $0x428] sm:$0xff]
        %v426 = vld [vmem:[%s214 + $0x430] sm:$0xff]
        %v427 = vld [vmem:[%s214 + $0x438] sm:$0xff]
        %v428 = vld [vmem:[%s214 + $0x440] sm:$0xff]
        %v429 = vld [vmem:[%s214 + $0x448] sm:$0xff]
        %v430 = vld [vmem:[%s214 + $0x450] sm:$0xff]
        %v431 = vld [vmem:[%s214 + $0x458] sm:$0xff]
        %v432 = vld [vmem:[%s214 + $0x460] sm:$0xff]
        %v433 = vld [vmem:[%s214 + $0x468] sm:$0xff]
        %v434 = vld [vmem:[%s214 + $0x470] sm:$0xf]
        %v435 = vld [vmem:[%s214 + $0x474] sm:$0xff]
        %v436 = vld [vmem:[%s214 + $0x47c] sm:$0xff]
        %v437 = vld [vmem:[%s214 + $0x484] sm:$0xff]
        %v438 = vld [vmem:[%s214 + $0x48c] sm:$0xff]
        %v439 = vld [vmem:[%s214 + $0x494] sm:$0xff]
        %v440 = vld [vmem:[%s214 + $0x49c] sm:$0xff]
        %v441 = vld [vmem:[%s214 + $0x4a4] sm:$0xff]
        %v442 = vld [vmem:[%s214 + $0x4ac] sm:$0xff]
        %v443 = vld [vmem:[%s214 + $0x4b4] sm:$0xff]
        %v444 = vld [vmem:[%s214 + $0x4bc] sm:$0xf]
        %v445 = vld [vmem:[%s214 + $0x4c0] sm:$0xff]
        %v446 = vld [vmem:[%s214 + $0x4c8] sm:$0xff]
        %v447 = vld [vmem:[%s214 + $0x4d0] sm:$0xff]
        %v448 = vld [vmem:[%s214 + $0x4d8] sm:$0xff]
        %v449 = vld [vmem:[%s214 + $0x4e0] sm:$0xff]
        %v450 = vld [vmem:[%s214 + $0x4e8] sm:$0xff]
        %v451 = vld [vmem:[%s214 + $0x4f0] sm:$0xff]
        %v452 = vld [vmem:[%s214 + $0x4f8] sm:$0xff]
        %v453 = vld [vmem:[%s214 + $0x500] sm:$0xff]
        %v454 = vld [vmem:[%s214 + $0x508] sm:$0xf]
        %v455 = vld [vmem:[%s214 + $0x50c] sm:$0xff]
        %v456 = vld [vmem:[%s214 + $0x514] sm:$0xff]
        %v457 = vld [vmem:[%s214 + $0x51c] sm:$0xff]
        %v458 = vld [vmem:[%s214 + $0x524] sm:$0xff]
        %v459 = vld [vmem:[%s214 + $0x52c] sm:$0xff]
        %v460 = vld [vmem:[%s214 + $0x534] sm:$0xff]
        %v461 = vld [vmem:[%s214 + $0x53c] sm:$0xff]
        %v462 = vld [vmem:[%s214 + $0x544] sm:$0xff]
        %v463 = vld [vmem:[%s214 + $0x54c] sm:$0xff]
        %v464 = vld [vmem:[%s214 + $0x554] sm:$0xf]
        %v465 = vld [vmem:[%s214 + $0x558] sm:$0xff]
        %v466 = vld [vmem:[%s214 + $0x560] sm:$0xff]
        %v467 = vld [vmem:[%s214 + $0x568] sm:$0xff]
        %v468 = vld [vmem:[%s214 + $0x570] sm:$0xff]
        %v469 = vld [vmem:[%s214 + $0x578] sm:$0xff]
        %v470 = vld [vmem:[%s214 + $0x580] sm:$0xff]
        %v471 = vld [vmem:[%s214 + $0x588] sm:$0xff]
        %v472 = vld [vmem:[%s214 + $0x590] sm:$0xff]
        %v473 = vld [vmem:[%s214 + $0x598] sm:$0xff]
        %v474 = vld [vmem:[%s214 + $0x5a0] sm:$0xf]
        %v475 = vld [vmem:[%s214 + $0x5a4] sm:$0xff]
        %v476 = vld [vmem:[%s214 + $0x5ac] sm:$0xff]
        %v477 = vld [vmem:[%s214 + $0x5b4] sm:$0xff]
        %v478 = vld [vmem:[%s214 + $0x5bc] sm:$0xff]
        %v479 = vld [vmem:[%s214 + $0x5c4] sm:$0xff]
        %v480 = vld [vmem:[%s214 + $0x5cc] sm:$0xff]
        %v481 = vld [vmem:[%s214 + $0x5d4] sm:$0xff]
        %v482 = vld [vmem:[%s214 + $0x5dc] sm:$0xff]
        %v483 = vld [vmem:[%s214 + $0x5e4] sm:$0xff]
        %v484 = vld [vmem:[%s214 + $0x5ec] sm:$0xf]
        %v485 = vld [vmem:[%s214 + $0x5f0] sm:$0xff]
        %v486 = vld [vmem:[%s214 + $0x5f8] sm:$0xff]
        %v487 = vld [vmem:[%s214 + $0x600] sm:$0xff]
        %v488 = vld [vmem:[%s214 + $0x608] sm:$0xff]
        %v489 = vld [vmem:[%s214 + $0x610] sm:$0xff]
        %v490 = vld [vmem:[%s214 + $0x618] sm:$0xff]
        %v491 = vld [vmem:[%s214 + $0x620] sm:$0xff]
        %v492 = vld [vmem:[%s214 + $0x628] sm:$0xff]
        %v493 = vld [vmem:[%s214 + $0x630] sm:$0xff]
        %v494 = vld [vmem:[%s214 + $0x638] sm:$0xf]
        %v495 = vld [vmem:[%s214 + $0x63c] sm:$0xff]
        %v496 = vld [vmem:[%s214 + $0x644] sm:$0xff]
        %v497 = vld [vmem:[%s214 + $0x64c] sm:$0xff]
        %v498 = vld [vmem:[%s214 + $0x654] sm:$0xff]
        %v499 = vld [vmem:[%s214 + $0x65c] sm:$0xff]
        %v500 = vld [vmem:[%s214 + $0x664] sm:$0xff]
        %v501 = vld [vmem:[%s214 + $0x66c] sm:$0xff]
        %v502 = vld [vmem:[%s214 + $0x674] sm:$0xff]
        %v503 = vld [vmem:[%s214 + $0x67c] sm:$0xff]
        %v504 = vld [vmem:[%s214 + $0x684] sm:$0xf]
        %v505 = vld [vmem:[%s214 + $0x688] sm:$0xff]
        %v506 = vld [vmem:[%s214 + $0x690] sm:$0xff]
        %v507 = vld [vmem:[%s214 + $0x698] sm:$0xff]
        %v508 = vld [vmem:[%s214 + $0x6a0] sm:$0xff]
        %v509 = vld [vmem:[%s214 + $0x6a8] sm:$0xff]
        %v510 = vld [vmem:[%s214 + $0x6b0] sm:$0xff]
        %v511 = vld [vmem:[%s214 + $0x6b8] sm:$0xff]
        %v512 = vld [vmem:[%s214 + $0x6c0] sm:$0xff]
        %v513 = vld [vmem:[%s214 + $0x6c8] sm:$0xff]
        %v514 = vld [vmem:[%s214 + $0x6d0] sm:$0xf]
        %v515 = vld [vmem:[%s214 + $0x6d4] sm:$0xff]
        %v516 = vld [vmem:[%s214 + $0x6dc] sm:$0xff]
        %v517 = vld [vmem:[%s214 + $0x6e4] sm:$0xff]
        %v518 = vld [vmem:[%s214 + $0x6ec] sm:$0xff]
        %v519 = vld [vmem:[%s214 + $0x6f4] sm:$0xff]
        %v520 = vld [vmem:[%s214 + $0x6fc] sm:$0xff]
        %v521 = vld [vmem:[%s214 + $0x704] sm:$0xff]
        %v522 = vld [vmem:[%s214 + $0x70c] sm:$0xff]
        %v523 = vld [vmem:[%s214 + $0x714] sm:$0xff]
        %v524 = vld [vmem:[%s214 + $0x71c] sm:$0xf]
        %v525 = vld [vmem:[%s214 + $0x720] sm:$0xff]
        %v526 = vld [vmem:[%s214 + $0x728] sm:$0xff]
        %v527 = vld [vmem:[%s214 + $0x730] sm:$0xff]
        %v528 = vld [vmem:[%s214 + $0x738] sm:$0xff]
        %v529 = vld [vmem:[%s214 + $0x740] sm:$0xff]
        %v530 = vld [vmem:[%s214 + $0x748] sm:$0xff]
        %v531 = vld [vmem:[%s214 + $0x750] sm:$0xff]
        %v532 = vld [vmem:[%s214 + $0x758] sm:$0xff]
        %v533 = vld [vmem:[%s214 + $0x760] sm:$0xff]
        %v534 = vld [vmem:[%s214 + $0x768] sm:$0xf]
        %v535 = vld [vmem:[%s214 + $0x76c] sm:$0xff]
        %v536 = vld [vmem:[%s214 + $0x774] sm:$0xff]
        %v537 = vld [vmem:[%s214 + $0x77c] sm:$0xff]
        %v538 = vld [vmem:[%s214 + $0x784] sm:$0xff]
        %v539 = vld [vmem:[%s214 + $0x78c] sm:$0xff]
        %v540 = vld [vmem:[%s214 + $0x794] sm:$0xff]
        %v541 = vld [vmem:[%s214 + $0x79c] sm:$0xff]
        %v542 = vld [vmem:[%s214 + $0x7a4] sm:$0xff]
        %v543 = vld [vmem:[%s214 + $0x7ac] sm:$0xff]
        %v544 = vld [vmem:[%s214 + $0x7b4] sm:$0xf]
        %v545 = vld [vmem:[%s214 + $0x7b8] sm:$0xff]
        %v546 = vld [vmem:[%s214 + $0x7c0] sm:$0xff]
        %v547 = vld [vmem:[%s214 + $0x7c8] sm:$0xff]
        %v548 = vld [vmem:[%s214 + $0x7d0] sm:$0xff]
        %v549 = vld [vmem:[%s214 + $0x7d8] sm:$0xff]
        %v550 = vld [vmem:[%s214 + $0x7e0] sm:$0xff]
        %v551 = vld [vmem:[%s214 + $0x7e8] sm:$0xff]
        %v552 = vld [vmem:[%s214 + $0x7f0] sm:$0xff]
        %v553 = vld [vmem:[%s214 + $0x7f8] sm:$0xff]
        %v554 = vld [vmem:[%s214 + $0x800] sm:$0xf]
        %v555 = vld [vmem:[%s214 + $0x804] sm:$0xff]
        %v556 = vld [vmem:[%s214 + $0x80c] sm:$0xff]
        %v557 = vld [vmem:[%s214 + $0x814] sm:$0xff]
        %v558 = vld [vmem:[%s214 + $0x81c] sm:$0xff]
        %v559 = vld [vmem:[%s214 + $0x824] sm:$0xff]
        %v560 = vld [vmem:[%s214 + $0x82c] sm:$0xff]
        %v561 = vld [vmem:[%s214 + $0x834] sm:$0xff]
        %v562 = vld [vmem:[%s214 + $0x83c] sm:$0xff]
        %v563 = vld [vmem:[%s214 + $0x844] sm:$0xff]
        %v564 = vld [vmem:[%s214 + $0x84c] sm:$0xf]
        %v565 = vld [vmem:[%s214 + $0x850] sm:$0xff]
        %v566 = vld [vmem:[%s214 + $0x858] sm:$0xff]
        %v567 = vld [vmem:[%s214 + $0x860] sm:$0xff]
        %v568 = vld [vmem:[%s214 + $0x868] sm:$0xff]
        %v569 = vld [vmem:[%s214 + $0x870] sm:$0xff]
        %v570 = vld [vmem:[%s214 + $0x878] sm:$0xff]
        %v571 = vld [vmem:[%s214 + $0x880] sm:$0xff]
        %v572 = vld [vmem:[%s214 + $0x888] sm:$0xff]
        %v573 = vld [vmem:[%s214 + $0x890] sm:$0xff]
        %v574 = vld [vmem:[%s214 + $0x898] sm:$0xf]
        %v575 = vld [vmem:[%s214 + $0x89c] sm:$0xff]
        %v576 = vld [vmem:[%s214 + $0x8a4] sm:$0xff]
        %v577 = vld [vmem:[%s214 + $0x8ac] sm:$0xff]
        %v578 = vld [vmem:[%s214 + $0x8b4] sm:$0xff]
        %v579 = vld [vmem:[%s214 + $0x8bc] sm:$0xff]
        %v580 = vld [vmem:[%s214 + $0x8c4] sm:$0xff]
        %v581 = vld [vmem:[%s214 + $0x8cc] sm:$0xff]
        %v582 = vld [vmem:[%s214 + $0x8d4] sm:$0xff]
        %v583 = vld [vmem:[%s214 + $0x8dc] sm:$0xff]
        %v584 = vld [vmem:[%s214 + $0x8e4] sm:$0xf]
        %v585 = vld [vmem:[%s214 + $0x8e8] sm:$0xff]
        %v586 = vld [vmem:[%s214 + $0x8f0] sm:$0xff]
        %v587 = vld [vmem:[%s214 + $0x8f8] sm:$0xff]
        %v588 = vld [vmem:[%s214 + $0x900] sm:$0xff]
        %v589 = vld [vmem:[%s214 + $0x908] sm:$0xff]
        %v590 = vld [vmem:[%s214 + $0x910] sm:$0xff]
        %v591 = vld [vmem:[%s214 + $0x918] sm:$0xff]
        %v592 = vld [vmem:[%s214 + $0x920] sm:$0xff]
        %v593 = vld [vmem:[%s214 + $0x928] sm:$0xff]
        %v594 = vld [vmem:[%s214 + $0x930] sm:$0xf]
        %v595 = vld [vmem:[%s214 + $0x934] sm:$0xff]
        %v596 = vld [vmem:[%s214 + $0x93c] sm:$0xff]
        %v597 = vld [vmem:[%s214 + $0x944] sm:$0xff]
        %v598 = vld [vmem:[%s214 + $0x94c] sm:$0xff]
        %v599 = vld [vmem:[%s214 + $0x954] sm:$0xff]
        %v600 = vld [vmem:[%s214 + $0x95c] sm:$0xff]
        %v601 = vld [vmem:[%s214 + $0x964] sm:$0xff]
        %v602 = vld [vmem:[%s214 + $0x96c] sm:$0xff]
        %v603 = vld [vmem:[%s214 + $0x974] sm:$0xff]
        %v604 = vld [vmem:[%s214 + $0x97c] sm:$0xf]
        %v605 = vld [vmem:[%s214 + $0x980] sm:$0xff]
        %v606 = vld [vmem:[%s214 + $0x988] sm:$0xff]
        %v607 = vld [vmem:[%s214 + $0x990] sm:$0xff]
        %v608 = vld [vmem:[%s214 + $0x998] sm:$0xff]
        %v609 = vld [vmem:[%s214 + $0x9a0] sm:$0xff]
        %v610 = vld [vmem:[%s214 + $0x9a8] sm:$0xff]
        %v611 = vld [vmem:[%s214 + $0x9b0] sm:$0xff]
        %v612 = vld [vmem:[%s214 + $0x9b8] sm:$0xff]
        %v613 = vld [vmem:[%s214 + $0x9c0] sm:$0xff]
        %v614 = vld [vmem:[%s214 + $0x9c8] sm:$0xf]
        %v615 = vld [vmem:[%s214 + $0x9cc] sm:$0xff]
        %v616 = vld [vmem:[%s214 + $0x9d4] sm:$0xff]
        %v617 = vld [vmem:[%s214 + $0x9dc] sm:$0xff]
        %v618 = vld [vmem:[%s214 + $0x9e4] sm:$0xff]
        %v619 = vld [vmem:[%s214 + $0x9ec] sm:$0xff]
        %v620 = vld [vmem:[%s214 + $0x9f4] sm:$0xff]
        %v621 = vld [vmem:[%s214 + $0x9fc] sm:$0xff]
        %v622 = vld [vmem:[%s214 + $0xa04] sm:$0xff]
        %v623 = vld [vmem:[%s214 + $0xa0c] sm:$0xff]
        %v624 = vld [vmem:[%s214 + $0xa14] sm:$0xf]
        %v625 = vld [vmem:[%s214 + $0xa18] sm:$0xff]
        %v626 = vld [vmem:[%s214 + $0xa20] sm:$0xff]
        %v627 = vld [vmem:[%s214 + $0xa28] sm:$0xff]
        %v628 = vld [vmem:[%s214 + $0xa30] sm:$0xff]
        %v629 = vld [vmem:[%s214 + $0xa38] sm:$0xff]
        %v630 = vld [vmem:[%s214 + $0xa40] sm:$0xff]
        %v631 = vld [vmem:[%s214 + $0xa48] sm:$0xff]
        %v632 = vld [vmem:[%s214 + $0xa50] sm:$0xff]
        %v633 = vld [vmem:[%s214 + $0xa58] sm:$0xff]
        %v634 = vld [vmem:[%s214 + $0xa60] sm:$0xf]
        %v635 = vld [vmem:[%s214 + $0xa64] sm:$0xff]
        %v636 = vld [vmem:[%s214 + $0xa6c] sm:$0xff]
        %v637 = vld [vmem:[%s214 + $0xa74] sm:$0xff]
        %v638 = vld [vmem:[%s214 + $0xa7c] sm:$0xff]
        %v639 = vld [vmem:[%s214 + $0xa84] sm:$0xff]
        %v640 = vld [vmem:[%s214 + $0xa8c] sm:$0xff]
        %v641 = vld [vmem:[%s214 + $0xa94] sm:$0xff]
        %v642 = vld [vmem:[%s214 + $0xa9c] sm:$0xff]
        %v643 = vld [vmem:[%s214 + $0xaa4] sm:$0xff]
        %v644 = vld [vmem:[%s214 + $0xaac] sm:$0xf]
        %v645 = vld [vmem:[%s214 + $0xab0] sm:$0xff]
        %v646 = vld [vmem:[%s214 + $0xab8] sm:$0xff]
        %v647 = vld [vmem:[%s214 + $0xac0] sm:$0xff]
        %v648 = vld [vmem:[%s214 + $0xac8] sm:$0xff]
        %v649 = vld [vmem:[%s214 + $0xad0] sm:$0xff]
        %v650 = vld [vmem:[%s214 + $0xad8] sm:$0xff]
        %v651 = vld [vmem:[%s214 + $0xae0] sm:$0xff]
        %v652 = vld [vmem:[%s214 + $0xae8] sm:$0xff]
        %v653 = vld [vmem:[%s214 + $0xaf0] sm:$0xff]
        %v654 = vld [vmem:[%s214 + $0xaf8] sm:$0xf]
        %v655 = vld [vmem:[%s214 + $0xafc] sm:$0xff]
        %v656 = vld [vmem:[%s214 + $0xb04] sm:$0xff]
        %v657 = vld [vmem:[%s214 + $0xb0c] sm:$0xff]
        %v658 = vld [vmem:[%s214 + $0xb14] sm:$0xff]
        %v659 = vld [vmem:[%s214 + $0xb1c] sm:$0xff]
        %v660 = vld [vmem:[%s214 + $0xb24] sm:$0xff]
        %v661 = vld [vmem:[%s214 + $0xb2c] sm:$0xff]
        %v662 = vld [vmem:[%s214 + $0xb34] sm:$0xff]
        %v663 = vld [vmem:[%s214 + $0xb3c] sm:$0xff]
        %v664 = vld [vmem:[%s214 + $0xb44] sm:$0xf]
        %v665 = vld [vmem:[%s214 + $0xb48] sm:$0xff]
        %v666 = vld [vmem:[%s214 + $0xb50] sm:$0xff]
        %v667 = vld [vmem:[%s214 + $0xb58] sm:$0xff]
        %v668 = vld [vmem:[%s214 + $0xb60] sm:$0xff]
        %v669 = vld [vmem:[%s214 + $0xb68] sm:$0xff]
        %v670 = vld [vmem:[%s214 + $0xb70] sm:$0xff]
        %v671 = vld [vmem:[%s214 + $0xb78] sm:$0xff]
        %v672 = vld [vmem:[%s214 + $0xb80] sm:$0xff]
        %v673 = vld [vmem:[%s214 + $0xb88] sm:$0xff]
        %v674 = vld [vmem:[%s214 + $0xb90] sm:$0xf]
        %v675 = vld [vmem:[%s214 + $0xb94] sm:$0xff]
        %v676 = vld [vmem:[%s214 + $0xb9c] sm:$0xff]
        %v677 = vld [vmem:[%s214 + $0xba4] sm:$0xff]
        %v678 = vld [vmem:[%s214 + $0xbac] sm:$0xff]
        %v679 = vld [vmem:[%s214 + $0xbb4] sm:$0xff]
        %v680 = vld [vmem:[%s214 + $0xbbc] sm:$0xff]
        %v681 = vld [vmem:[%s214 + $0xbc4] sm:$0xff]
        %v682 = vld [vmem:[%s214 + $0xbcc] sm:$0xff]
        %v683 = vld [vmem:[%s214 + $0xbd4] sm:$0xff]
        %v684 = vld [vmem:[%s214 + $0xbdc] sm:$0xf]
        %v685 = vld [vmem:[%s214 + $0xbe0] sm:$0xff]
        %v686 = vld [vmem:[%s214 + $0xbe8] sm:$0xff]
        %v687 = vld [vmem:[%s214 + $0xbf0] sm:$0xff]
        %v688 = vld [vmem:[%s214 + $0xbf8] sm:$0xff]
        %v689 = vld [vmem:[%s214 + $0xc00] sm:$0xff]
        %v690 = vld [vmem:[%s214 + $0xc08] sm:$0xff]
        %v691 = vld [vmem:[%s214 + $0xc10] sm:$0xff]
        %v692 = vld [vmem:[%s214 + $0xc18] sm:$0xff]
        %v693 = vld [vmem:[%s214 + $0xc20] sm:$0xff]
        %v694 = vld [vmem:[%s214 + $0xc28] sm:$0xf]
        %v695 = vld [vmem:[%s214 + $0xc2c] sm:$0xff]
        %v696 = vld [vmem:[%s214 + $0xc34] sm:$0xff]
        %v697 = vld [vmem:[%s214 + $0xc3c] sm:$0xff]
        %v698 = vld [vmem:[%s214 + $0xc44] sm:$0xff]
        %v699 = vld [vmem:[%s214 + $0xc4c] sm:$0xff]
        %v700 = vld [vmem:[%s214 + $0xc54] sm:$0xff]
        %v701 = vld [vmem:[%s214 + $0xc5c] sm:$0xff]
        %v702 = vld [vmem:[%s214 + $0xc64] sm:$0xff]
        %v703 = vld [vmem:[%s214 + $0xc6c] sm:$0xff]
        %v704 = vld [vmem:[%s214 + $0xc74] sm:$0xf]
        %v705 = vld [vmem:[%s214 + $0xc78] sm:$0xff]
        %v706 = vld [vmem:[%s214 + $0xc80] sm:$0xff]
        %v707 = vld [vmem:[%s214 + $0xc88] sm:$0xff]
        %v708 = vld [vmem:[%s214 + $0xc90] sm:$0xff]
        %v709 = vld [vmem:[%s214 + $0xc98] sm:$0xff]
        %v710 = vld [vmem:[%s214 + $0xca0] sm:$0xff]
        %v711 = vld [vmem:[%s214 + $0xca8] sm:$0xff]
        %v712 = vld [vmem:[%s214 + $0xcb0] sm:$0xff]
        %v713 = vld [vmem:[%s214 + $0xcb8] sm:$0xff]
        %v714 = vld [vmem:[%s214 + $0xcc0] sm:$0xf]
        %v715 = vld [vmem:[%s214 + $0xcc4] sm:$0xff]
        %v716 = vld [vmem:[%s214 + $0xccc] sm:$0xff]
        %v717 = vld [vmem:[%s214 + $0xcd4] sm:$0xff]
        %v718 = vld [vmem:[%s214 + $0xcdc] sm:$0xff]
        %v719 = vld [vmem:[%s214 + $0xce4] sm:$0xff]
        %v720 = vld [vmem:[%s214 + $0xcec] sm:$0xff]
        %v721 = vld [vmem:[%s214 + $0xcf4] sm:$0xff]
        %v722 = vld [vmem:[%s214 + $0xcfc] sm:$0xff]
        %v723 = vld [vmem:[%s214 + $0xd04] sm:$0xff]
        %v724 = vld [vmem:[%s214 + $0xd0c] sm:$0xf]
        %v725 = vld [vmem:[%s214 + $0xd10] sm:$0xff]
        %v726 = vld [vmem:[%s214 + $0xd18] sm:$0xff]
        %v727 = vld [vmem:[%s214 + $0xd20] sm:$0xff]
        %v728 = vld [vmem:[%s214 + $0xd28] sm:$0xff]
        %v729 = vld [vmem:[%s214 + $0xd30] sm:$0xff]
        %v730 = vld [vmem:[%s214 + $0xd38] sm:$0xff]
        %v731 = vld [vmem:[%s214 + $0xd40] sm:$0xff]
        %v732 = vld [vmem:[%s214 + $0xd48] sm:$0xff]
        %v733 = vld [vmem:[%s214 + $0xd50] sm:$0xff]
        %v734 = vld [vmem:[%s214 + $0xd58] sm:$0xf]
        %v735 = vld [vmem:[%s214 + $0xd5c] sm:$0xff]
        %v736 = vld [vmem:[%s214 + $0xd64] sm:$0xff]
        %v737 = vld [vmem:[%s214 + $0xd6c] sm:$0xff]
        %v738 = vld [vmem:[%s214 + $0xd74] sm:$0xff]
        %v739 = vld [vmem:[%s214 + $0xd7c] sm:$0xff]
        %v740 = vld [vmem:[%s214 + $0xd84] sm:$0xff]
        %v741 = vld [vmem:[%s214 + $0xd8c] sm:$0xff]
        %v742 = vld [vmem:[%s214 + $0xd94] sm:$0xff]
        %v743 = vld [vmem:[%s214 + $0xd9c] sm:$0xff]
        %v744 = vld [vmem:[%s214 + $0xda4] sm:$0xf]
        %v745 = vld [vmem:[%s214 + $0xda8] sm:$0xff]
        %v746 = vld [vmem:[%s214 + $0xdb0] sm:$0xff]
        %v747 = vld [vmem:[%s214 + $0xdb8] sm:$0xff]
        %v748 = vld [vmem:[%s214 + $0xdc0] sm:$0xff]
        %v749 = vld [vmem:[%s214 + $0xdc8] sm:$0xff]
        %v750 = vld [vmem:[%s214 + $0xdd0] sm:$0xff]
        %v751 = vld [vmem:[%s214 + $0xdd8] sm:$0xff]
        %v752 = vld [vmem:[%s214 + $0xde0] sm:$0xff]
        %v753 = vld [vmem:[%s214 + $0xde8] sm:$0xff]
        %v754 = vld [vmem:[%s214 + $0xdf0] sm:$0xf]
        %v755 = vld [vmem:[%s214 + $0xdf4] sm:$0xff]
        %v756 = vld [vmem:[%s214 + $0xdfc] sm:$0xff]
        %v757 = vld [vmem:[%s214 + $0xe04] sm:$0xff]
        %v758 = vld [vmem:[%s214 + $0xe0c] sm:$0xff]
        %v759 = vld [vmem:[%s214 + $0xe14] sm:$0xff]
        %v760 = vld [vmem:[%s214 + $0xe1c] sm:$0xff]
        %v761 = vld [vmem:[%s214 + $0xe24] sm:$0xff]
        %v762 = vld [vmem:[%s214 + $0xe2c] sm:$0xff]
        %v763 = vld [vmem:[%s214 + $0xe34] sm:$0xff]
        %v764 = vld [vmem:[%s214 + $0xe3c] sm:$0xf]
        %v765 = vld [vmem:[%s214 + $0xe40] sm:$0xff]
        %v766 = vld [vmem:[%s214 + $0xe48] sm:$0xff]
        %v767 = vld [vmem:[%s214 + $0xe50] sm:$0xff]
        %v768 = vld [vmem:[%s214 + $0xe58] sm:$0xff]
        %v769 = vld [vmem:[%s214 + $0xe60] sm:$0xff]
        %v770 = vld [vmem:[%s214 + $0xe68] sm:$0xff]
        %v771 = vld [vmem:[%s214 + $0xe70] sm:$0xff]
        %v772 = vld [vmem:[%s214 + $0xe78] sm:$0xff]
        %v773 = vld [vmem:[%s214 + $0xe80] sm:$0xff]
        %v774 = vld [vmem:[%s214 + $0xe88] sm:$0xf]
        %v775 = vld [vmem:[%s214 + $0xe8c] sm:$0xff]
        %v776 = vld [vmem:[%s214 + $0xe94] sm:$0xff]
        %v777 = vld [vmem:[%s214 + $0xe9c] sm:$0xff]
        %v778 = vld [vmem:[%s214 + $0xea4] sm:$0xff]
        %v779 = vld [vmem:[%s214 + $0xeac] sm:$0xff]
        %v780 = vld [vmem:[%s214 + $0xeb4] sm:$0xff]
        %v781 = vld [vmem:[%s214 + $0xebc] sm:$0xff]
        %v782 = vld [vmem:[%s214 + $0xec4] sm:$0xff]
        %v783 = vld [vmem:[%s214 + $0xecc] sm:$0xff]
        %v784 = vld [vmem:[%s214 + $0xed4] sm:$0xf]
        %v785 = vld [vmem:[%s214 + $0xed8] sm:$0xff]
        %v786 = vld [vmem:[%s214 + $0xee0] sm:$0xff]
        %v787 = vld [vmem:[%s214 + $0xee8] sm:$0xff]
        %v788 = vld [vmem:[%s214 + $0xef0] sm:$0xff]
        %v789 = vld [vmem:[%s214 + $0xef8] sm:$0xff]
        %v790 = vld [vmem:[%s214 + $0xf00] sm:$0xff]
        %v791 = vld [vmem:[%s214 + $0xf08] sm:$0xff]
        %v792 = vld [vmem:[%s214 + $0xf10] sm:$0xff]
        %v793 = vld [vmem:[%s214 + $0xf18] sm:$0xff]
        %v794 = vld [vmem:[%s214 + $0xf20] sm:$0xf]
        %v795 = vld [vmem:[%s214 + $0xf24] sm:$0xff]
        %v796 = vld [vmem:[%s214 + $0xf2c] sm:$0xff]
        %v797 = vld [vmem:[%s214 + $0xf34] sm:$0xff]
        %v798 = vld [vmem:[%s214 + $0xf3c] sm:$0xff]
        %v799 = vld [vmem:[%s214 + $0xf44] sm:$0xff]
        %v800 = vld [vmem:[%s214 + $0xf4c] sm:$0xff]
        %v801 = vld [vmem:[%s214 + $0xf54] sm:$0xff]
        %v802 = vld [vmem:[%s214 + $0xf5c] sm:$0xff]
        %v803 = vld [vmem:[%s214 + $0xf64] sm:$0xff]
        %v804 = vld [vmem:[%s214 + $0xf6c] sm:$0xf]
        %v805 = vld [vmem:[%s214 + $0xf70] sm:$0xff]
        %v806 = vld [vmem:[%s214 + $0xf78] sm:$0xff]
        %v807 = vld [vmem:[%s214 + $0xf80] sm:$0xff]
        %v808 = vld [vmem:[%s214 + $0xf88] sm:$0xff]
        %v809 = vld [vmem:[%s214 + $0xf90] sm:$0xff]
        %v810 = vld [vmem:[%s214 + $0xf98] sm:$0xff]
        %v811 = vld [vmem:[%s214 + $0xfa0] sm:$0xff]
        %v812 = vld [vmem:[%s214 + $0xfa8] sm:$0xff]
        %v813 = vld [vmem:[%s214 + $0xfb0] sm:$0xff]
        %v814 = vld [vmem:[%s214 + $0xfb8] sm:$0xf]
        %v815 = vld [vmem:[%s214 + $0xfbc] sm:$0xff]
        %v816 = vld [vmem:[%s214 + $0xfc4] sm:$0xff]
        %v817 = vld [vmem:[%s214 + $0xfcc] sm:$0xff]
        %v818 = vld [vmem:[%s214 + $0xfd4] sm:$0xff]
        %v819 = vld [vmem:[%s214 + $0xfdc] sm:$0xff]
        %v820 = vld [vmem:[%s214 + $0xfe4] sm:$0xff]
        %v821 = vld [vmem:[%s214 + $0xfec] sm:$0xff]
        %v822 = vld [vmem:[%s214 + $0xff4] sm:$0xff]
        %v823 = vld [vmem:[%s214 + $0xffc] sm:$0xff]
        %v824 = vld [vmem:[%s214 + $0x1004] sm:$0xf]
        %v825 = vld [vmem:[%s214 + $0x1008] sm:$0xff]
        %v826 = vld [vmem:[%s214 + $0x1010] sm:$0xff]
        %v827 = vld [vmem:[%s214 + $0x1018] sm:$0xff]
        %v828 = vld [vmem:[%s214 + $0x1020] sm:$0xff]
        %v829 = vld [vmem:[%s214 + $0x1028] sm:$0xff]
        %v830 = vld [vmem:[%s214 + $0x1030] sm:$0xff]
        %v831 = vld [vmem:[%s214 + $0x1038] sm:$0xff]
        %v832 = vld [vmem:[%s214 + $0x1040] sm:$0xff]
        %v833 = vld [vmem:[%s214 + $0x1048] sm:$0xff]
        %v834 = vld [vmem:[%s214 + $0x1050] sm:$0xf]
        %v835 = vld [vmem:[%s214 + $0x1054] sm:$0xff]
        %v836 = vld [vmem:[%s214 + $0x105c] sm:$0xff]
        %v837 = vld [vmem:[%s214 + $0x1064] sm:$0xff]
        %v838 = vld [vmem:[%s214 + $0x106c] sm:$0xff]
        %v839 = vld [vmem:[%s214 + $0x1074] sm:$0xff]
        %v840 = vld [vmem:[%s214 + $0x107c] sm:$0xff]
        %v841 = vld [vmem:[%s214 + $0x1084] sm:$0xff]
        %v842 = vld [vmem:[%s214 + $0x108c] sm:$0xff]
        %v843 = vld [vmem:[%s214 + $0x1094] sm:$0xff]
        %v844 = vld [vmem:[%s214 + $0x109c] sm:$0xf]
        %v845 = vld [vmem:[%s214 + $0x10a0] sm:$0xff]
        %v846 = vld [vmem:[%s214 + $0x10a8] sm:$0xff]
        %v847 = vld [vmem:[%s214 + $0x10b0] sm:$0xff]
        %v848 = vld [vmem:[%s214 + $0x10b8] sm:$0xff]
        %v849 = vld [vmem:[%s214 + $0x10c0] sm:$0xff]
        %v850 = vld [vmem:[%s214 + $0x10c8] sm:$0xff]
        %v851 = vld [vmem:[%s214 + $0x10d0] sm:$0xff]
        %v852 = vld [vmem:[%s214 + $0x10d8] sm:$0xff]
        %v853 = vld [vmem:[%s214 + $0x10e0] sm:$0xff]
        %v854 = vld [vmem:[%s214 + $0x10e8] sm:$0xf]
        %v855 = vld [vmem:[%s214 + $0x10ec] sm:$0xff]
        %v856 = vld [vmem:[%s214 + $0x10f4] sm:$0xff]
        %v857 = vld [vmem:[%s214 + $0x10fc] sm:$0xff]
        %v858 = vld [vmem:[%s214 + $0x1104] sm:$0xff]
        %v859 = vld [vmem:[%s214 + $0x110c] sm:$0xff]
        %v860 = vld [vmem:[%s214 + $0x1114] sm:$0xff]
        %v861 = vld [vmem:[%s214 + $0x111c] sm:$0xff]
        %v862 = vld [vmem:[%s214 + $0x1124] sm:$0xff]
        %v863 = vld [vmem:[%s214 + $0x112c] sm:$0xff]
        %v864 = vld [vmem:[%s214 + $0x1134] sm:$0xf]
        %v865 = vld [vmem:[%s214 + $0x1138] sm:$0xff]
        %v866 = vld [vmem:[%s214 + $0x1140] sm:$0xff]
        %v867 = vld [vmem:[%s214 + $0x1148] sm:$0xff]
        %v868 = vld [vmem:[%s214 + $0x1150] sm:$0xff]
        %v869 = vld [vmem:[%s214 + $0x1158] sm:$0xff]
        %v870 = vld [vmem:[%s214 + $0x1160] sm:$0xff]
        %v871 = vld [vmem:[%s214 + $0x1168] sm:$0xff]
        %v872 = vld [vmem:[%s214 + $0x1170] sm:$0xff]
        %v873 = vld [vmem:[%s214 + $0x1178] sm:$0xff]
        %v874 = vld [vmem:[%s214 + $0x1180] sm:$0xf]
        %v875 = vld [vmem:[%s214 + $0x1184] sm:$0xff]
        %v876 = vld [vmem:[%s214 + $0x118c] sm:$0xff]
        %v877 = vld [vmem:[%s214 + $0x1194] sm:$0xff]
        %v878 = vld [vmem:[%s214 + $0x119c] sm:$0xff]
        %v879 = vld [vmem:[%s214 + $0x11a4] sm:$0xff]
        %v880 = vld [vmem:[%s214 + $0x11ac] sm:$0xff]
        %v881 = vld [vmem:[%s214 + $0x11b4] sm:$0xff]
        %v882 = vld [vmem:[%s214 + $0x11bc] sm:$0xff]
        %v883 = vld [vmem:[%s214 + $0x11c4] sm:$0xff]
        %v884 = vld [vmem:[%s214 + $0x11cc] sm:$0xf]
        %v885 = vld [vmem:[%s214 + $0x11d0] sm:$0xff]
        %v886 = vld [vmem:[%s214 + $0x11d8] sm:$0xff]
        %v887 = vld [vmem:[%s214 + $0x11e0] sm:$0xff]
        %v888 = vld [vmem:[%s214 + $0x11e8] sm:$0xff]
        %v889 = vld [vmem:[%s214 + $0x11f0] sm:$0xff]
        %v890 = vld [vmem:[%s214 + $0x11f8] sm:$0xff]
        %v891 = vld [vmem:[%s214 + $0x1200] sm:$0xff]
        %v892 = vld [vmem:[%s214 + $0x1208] sm:$0xff]
        %v893 = vld [vmem:[%s214 + $0x1210] sm:$0xff]
        %v894 = vld [vmem:[%s214 + $0x1218] sm:$0xf]
        %v895 = vld [vmem:[%s214 + $0x121c] sm:$0xff]
        %v896 = vld [vmem:[%s214 + $0x1224] sm:$0xff]
        %v897 = vld [vmem:[%s214 + $0x122c] sm:$0xff]
        %v898 = vld [vmem:[%s214 + $0x1234] sm:$0xff]
        %v899 = vld [vmem:[%s214 + $0x123c] sm:$0xff]
        %v900 = vld [vmem:[%s214 + $0x1244] sm:$0xff]
        %v901 = vld [vmem:[%s214 + $0x124c] sm:$0xff]
        %v902 = vld [vmem:[%s214 + $0x1254] sm:$0xff]
        %v903 = vld [vmem:[%s214 + $0x125c] sm:$0xff]
        %v904 = vld [vmem:[%s214 + $0x1264] sm:$0xf]
        %v905 = vld [vmem:[%s214 + $0x1268] sm:$0xff]
        %v906 = vld [vmem:[%s214 + $0x1270] sm:$0xff]
        %v907 = vld [vmem:[%s214 + $0x1278] sm:$0xff]
        %v908 = vld [vmem:[%s214 + $0x1280] sm:$0xff]
        %v909 = vld [vmem:[%s214 + $0x1288] sm:$0xff]
        %v910 = vld [vmem:[%s214 + $0x1290] sm:$0xff]
        %v911 = vld [vmem:[%s214 + $0x1298] sm:$0xff]
        %v912 = vld [vmem:[%s214 + $0x12a0] sm:$0xff]
        %v913 = vld [vmem:[%s214 + $0x12a8] sm:$0xff]
        %v914 = vld [vmem:[%s214 + $0x12b0] sm:$0xf]
        %v915 = vld [vmem:[%s214 + $0x12b4] sm:$0xff]
        %v916 = vld [vmem:[%s214 + $0x12bc] sm:$0xff]
        %v917 = vld [vmem:[%s214 + $0x12c4] sm:$0xff]
        %v918 = vld [vmem:[%s214 + $0x12cc] sm:$0xff]
        %v919 = vld [vmem:[%s214 + $0x12d4] sm:$0xff]
        %v920 = vld [vmem:[%s214 + $0x12dc] sm:$0xff]
        %v921 = vld [vmem:[%s214 + $0x12e4] sm:$0xff]
        %v922 = vld [vmem:[%s214 + $0x12ec] sm:$0xff]
        %v923 = vld [vmem:[%s214 + $0x12f4] sm:$0xff]
        %v924 = vld [vmem:[%s214 + $0x12fc] sm:$0xf]
        %v925 = vld [vmem:[%s214 + $0x1300] sm:$0xff]
        %v926 = vld [vmem:[%s214 + $0x1308] sm:$0xff]
        %v927 = vld [vmem:[%s214 + $0x1310] sm:$0xff]
        %v928 = vld [vmem:[%s214 + $0x1318] sm:$0xff]
        %v929 = vld [vmem:[%s214 + $0x1320] sm:$0xff]
        %v930 = vld [vmem:[%s214 + $0x1328] sm:$0xff]
        %v931 = vld [vmem:[%s214 + $0x1330] sm:$0xff]
        %v932 = vld [vmem:[%s214 + $0x1338] sm:$0xff]
        %v933 = vld [vmem:[%s214 + $0x1340] sm:$0xff]
        %v934 = vld [vmem:[%s214 + $0x1348] sm:$0xf]
        %v935 = vld [vmem:[%s214 + $0x134c] sm:$0xff]
        %v936 = vld [vmem:[%s214 + $0x1354] sm:$0xff]
        %v937 = vld [vmem:[%s214 + $0x135c] sm:$0xff]
        %v938 = vld [vmem:[%s214 + $0x1364] sm:$0xff]
        %v939 = vld [vmem:[%s214 + $0x136c] sm:$0xff]
        %v940 = vld [vmem:[%s214 + $0x1374] sm:$0xff]
        %v941 = vld [vmem:[%s214 + $0x137c] sm:$0xff]
        %v942 = vld [vmem:[%s214 + $0x1384] sm:$0xff]
        %v943 = vld [vmem:[%s214 + $0x138c] sm:$0xff]
        %v944 = vld [vmem:[%s214 + $0x1394] sm:$0xf]
        %v945 = vld [vmem:[%s214 + $0x1398] sm:$0xff]
        %v946 = vld [vmem:[%s214 + $0x13a0] sm:$0xff]
        %v947 = vld [vmem:[%s214 + $0x13a8] sm:$0xff]
        %v948 = vld [vmem:[%s214 + $0x13b0] sm:$0xff]
        %v949 = vld [vmem:[%s214 + $0x13b8] sm:$0xff]
        %v950 = vld [vmem:[%s214 + $0x13c0] sm:$0xff]
        %v951 = vld [vmem:[%s214 + $0x13c8] sm:$0xff]
        %v952 = vld [vmem:[%s214 + $0x13d0] sm:$0xff]
        %v953 = vld [vmem:[%s214 + $0x13d8] sm:$0xff]
        %v954 = vld [vmem:[%s214 + $0x13e0] sm:$0xf]
        %v955 = vld [vmem:[%s214 + $0x13e4] sm:$0xff]
        %v956 = vld [vmem:[%s214 + $0x13ec] sm:$0xff]
        %v957 = vld [vmem:[%s214 + $0x13f4] sm:$0xff]
        %v958 = vld [vmem:[%s214 + $0x13fc] sm:$0xff]
        %v959 = vld [vmem:[%s214 + $0x1404] sm:$0xff]
        %v960 = vld [vmem:[%s214 + $0x140c] sm:$0xff]
        %v961 = vld [vmem:[%s214 + $0x1414] sm:$0xff]
        %v962 = vld [vmem:[%s214 + $0x141c] sm:$0xff]
        %v963 = vld [vmem:[%s214 + $0x1424] sm:$0xff]
        %v964 = vld [vmem:[%s214 + $0x142c] sm:$0xf]
        %v965 = vld [vmem:[%s214 + $0x1430] sm:$0xff]
        %v966 = vld [vmem:[%s214 + $0x1438] sm:$0xff]
        %v967 = vld [vmem:[%s214 + $0x1440] sm:$0xff]
        %v968 = vld [vmem:[%s214 + $0x1448] sm:$0xff]
        %v969 = vld [vmem:[%s214 + $0x1450] sm:$0xff]
        %v970 = vld [vmem:[%s214 + $0x1458] sm:$0xff]
        %v971 = vld [vmem:[%s214 + $0x1460] sm:$0xff]
        %v972 = vld [vmem:[%s214 + $0x1468] sm:$0xff]
        %v973 = vld [vmem:[%s214 + $0x1470] sm:$0xff]
        %v974 = vld [vmem:[%s214 + $0x1478] sm:$0xf]
        %v975 = vld [vmem:[%s214 + $0x147c] sm:$0xff]
        %v976 = vld [vmem:[%s214 + $0x1484] sm:$0xff]
        %v977 = vld [vmem:[%s214 + $0x148c] sm:$0xff]
        %v978 = vld [vmem:[%s214 + $0x1494] sm:$0xff]
        %v979 = vld [vmem:[%s214 + $0x149c] sm:$0xff]
        %v980 = vld [vmem:[%s214 + $0x14a4] sm:$0xff]
        %v981 = vld [vmem:[%s214 + $0x14ac] sm:$0xff]
        %v982 = vld [vmem:[%s214 + $0x14b4] sm:$0xff]
        %v983 = vld [vmem:[%s214 + $0x14bc] sm:$0xff]
        %v984 = vld [vmem:[%s214 + $0x14c4] sm:$0xf]
        %v985 = vld [vmem:[%s214 + $0x14c8] sm:$0xff]
        %v986 = vld [vmem:[%s214 + $0x14d0] sm:$0xff]
        %v987 = vld [vmem:[%s214 + $0x14d8] sm:$0xff]
        %v988 = vld [vmem:[%s214 + $0x14e0] sm:$0xff]
        %v989 = vld [vmem:[%s214 + $0x14e8] sm:$0xff]
        %v990 = vld [vmem:[%s214 + $0x14f0] sm:$0xff]
        %v991 = vld [vmem:[%s214 + $0x14f8] sm:$0xff]
        %v992 = vld [vmem:[%s214 + $0x1500] sm:$0xff]
        %v993 = vld [vmem:[%s214 + $0x1508] sm:$0xff]
        %v994 = vld [vmem:[%s214 + $0x1510] sm:$0xf]
        %v995 = vld [vmem:[%s214 + $0x1514] sm:$0xff]
        %v996 = vld [vmem:[%s214 + $0x151c] sm:$0xff]
        %v997 = vld [vmem:[%s214 + $0x1524] sm:$0xff]
        %v998 = vld [vmem:[%s214 + $0x152c] sm:$0xff]
        %v999 = vld [vmem:[%s214 + $0x1534] sm:$0xff]
        %v1000 = vld [vmem:[%s214 + $0x153c] sm:$0xff]
        %v1001 = vld [vmem:[%s214 + $0x1544] sm:$0xff]
        %v1002 = vld [vmem:[%s214 + $0x154c] sm:$0xff]
        %v1003 = vld [vmem:[%s214 + $0x1554] sm:$0xff]
        %v1004 = vld [vmem:[%s214 + $0x155c] sm:$0xf]
        %v1005 = vld [vmem:[%s214 + $0x1560] sm:$0xff]
        %v1006 = vld [vmem:[%s214 + $0x1568] sm:$0xff]
        %v1007 = vld [vmem:[%s214 + $0x1570] sm:$0xff]
        %v1008 = vld [vmem:[%s214 + $0x1578] sm:$0xff]
        %v1009 = vld [vmem:[%s214 + $0x1580] sm:$0xff]
        %v1010 = vld [vmem:[%s214 + $0x1588] sm:$0xff]
        %v1011 = vld [vmem:[%s214 + $0x1590] sm:$0xff]
        %v1012 = vld [vmem:[%s214 + $0x1598] sm:$0xff]
        %v1013 = vld [vmem:[%s214 + $0x15a0] sm:$0xff]
        %v1014 = vld [vmem:[%s214 + $0x15a8] sm:$0xf]
        %v1015 = vld [vmem:[%s214 + $0x15ac] sm:$0xff]
        %v1016 = vld [vmem:[%s214 + $0x15b4] sm:$0xff]
        %v1017 = vld [vmem:[%s214 + $0x15bc] sm:$0xff]
        %v1018 = vld [vmem:[%s214 + $0x15c4] sm:$0xff]
        %v1019 = vld [vmem:[%s214 + $0x15cc] sm:$0xff]
        %v1020 = vld [vmem:[%s214 + $0x15d4] sm:$0xff]
        %v1021 = vld [vmem:[%s214 + $0x15dc] sm:$0xff]
        %v1022 = vld [vmem:[%s214 + $0x15e4] sm:$0xff]
        %v1023 = vld [vmem:[%s214 + $0x15ec] sm:$0xff]
        %v1024 = vld [vmem:[%s214 + $0x15f4] sm:$0xf]
        %v1025 = vld [vmem:[%s214 + $0x15f8] sm:$0xff]
        %v1026 = vld [vmem:[%s214 + $0x1600] sm:$0xff]
        %v1027 = vld [vmem:[%s214 + $0x1608] sm:$0xff]
        %v1028 = vld [vmem:[%s214 + $0x1610] sm:$0xff]
        %v1029 = vld [vmem:[%s214 + $0x1618] sm:$0xff]
        %v1030 = vld [vmem:[%s214 + $0x1620] sm:$0xff]
        %v1031 = vld [vmem:[%s214 + $0x1628] sm:$0xff]
        %v1032 = vld [vmem:[%s214 + $0x1630] sm:$0xff]
        %v1033 = vld [vmem:[%s214 + $0x1638] sm:$0xff]
        %v1034 = vld [vmem:[%s214 + $0x1640] sm:$0xf]
        %v1035 = vld [vmem:[%s214 + $0x1644] sm:$0xff]
        %v1036 = vld [vmem:[%s214 + $0x164c] sm:$0xff]
        %v1037 = vld [vmem:[%s214 + $0x1654] sm:$0xff]
        %v1038 = vld [vmem:[%s214 + $0x165c] sm:$0xff]
        %v1039 = vld [vmem:[%s214 + $0x1664] sm:$0xff]
        %v1040 = vld [vmem:[%s214 + $0x166c] sm:$0xff]
        %v1041 = vld [vmem:[%s214 + $0x1674] sm:$0xff]
        %v1042 = vld [vmem:[%s214 + $0x167c] sm:$0xff]
        %v1043 = vld [vmem:[%s214 + $0x1684] sm:$0xff]
        %v1044 = vld [vmem:[%s214 + $0x168c] sm:$0xf]
        %v1045 = vld [vmem:[%s214 + $0x1690] sm:$0xff]
        %v1046 = vld [vmem:[%s214 + $0x1698] sm:$0xff]
        %v1047 = vld [vmem:[%s214 + $0x16a0] sm:$0xff]
        %v1048 = vld [vmem:[%s214 + $0x16a8] sm:$0xff]
        %v1049 = vld [vmem:[%s214 + $0x16b0] sm:$0xff]
        %v1050 = vld [vmem:[%s214 + $0x16b8] sm:$0xff]
        %v1051 = vld [vmem:[%s214 + $0x16c0] sm:$0xff]
        %v1052 = vld [vmem:[%s214 + $0x16c8] sm:$0xff]
        %v1053 = vld [vmem:[%s214 + $0x16d0] sm:$0xff]
        %v1054 = vld [vmem:[%s214 + $0x16d8] sm:$0xf]
        %v1055 = vld [vmem:[%s214 + $0x16dc] sm:$0xff]
        %v1056 = vld [vmem:[%s214 + $0x16e4] sm:$0xff]
        %v1057 = vld [vmem:[%s214 + $0x16ec] sm:$0xff]
        %v1058 = vld [vmem:[%s214 + $0x16f4] sm:$0xff]
        %v1059 = vld [vmem:[%s214 + $0x16fc] sm:$0xff]
        %v1060 = vld [vmem:[%s214 + $0x1704] sm:$0xff]
        %v1061 = vld [vmem:[%s214 + $0x170c] sm:$0xff]
        %v1062 = vld [vmem:[%s214 + $0x1714] sm:$0xff]
        %v1063 = vld [vmem:[%s214 + $0x171c] sm:$0xff]
        %v1064 = vld [vmem:[%s214 + $0x1724] sm:$0xf]
        %v1065 = vld [vmem:[%s214 + $0x1728] sm:$0xff]
        %v1066 = vld [vmem:[%s214 + $0x1730] sm:$0xff]
        %v1067 = vld [vmem:[%s214 + $0x1738] sm:$0xff]
        %v1068 = vld [vmem:[%s214 + $0x1740] sm:$0xff]
        %v1069 = vld [vmem:[%s214 + $0x1748] sm:$0xff]
        %v1070 = vld [vmem:[%s214 + $0x1750] sm:$0xff]
        %v1071 = vld [vmem:[%s214 + $0x1758] sm:$0xff]
        %v1072 = vld [vmem:[%s214 + $0x1760] sm:$0xff]
        %v1073 = vld [vmem:[%s214 + $0x1768] sm:$0xff]
        %v1074 = vld [vmem:[%s214 + $0x1770] sm:$0xf]
        %v1075 = vld [vmem:[%s214 + $0x1774] sm:$0xff]
        %v1076 = vld [vmem:[%s214 + $0x177c] sm:$0xff]
        %v1077 = vld [vmem:[%s214 + $0x1784] sm:$0xff]
        %v1078 = vld [vmem:[%s214 + $0x178c] sm:$0xff]
        %v1079 = vld [vmem:[%s214 + $0x1794] sm:$0xff]
        %v1080 = vld [vmem:[%s214 + $0x179c] sm:$0xff]
        %v1081 = vld [vmem:[%s214 + $0x17a4] sm:$0xff]
        %v1082 = vld [vmem:[%s214 + $0x17ac] sm:$0xff]
        %v1083 = vld [vmem:[%s214 + $0x17b4] sm:$0xff]
        %v1084 = vld [vmem:[%s214 + $0x17bc] sm:$0xf]
        %v1085 = vld [vmem:[%s214 + $0x17c0] sm:$0xff]
        %v1086 = vld [vmem:[%s214 + $0x17c8] sm:$0xff]
        %v1087 = vld [vmem:[%s214 + $0x17d0] sm:$0xff]
        %v1088 = vld [vmem:[%s214 + $0x17d8] sm:$0xff]
        %v1089 = vld [vmem:[%s214 + $0x17e0] sm:$0xff]
        %v1090 = vld [vmem:[%s214 + $0x17e8] sm:$0xff]
        %v1091 = vld [vmem:[%s214 + $0x17f0] sm:$0xff]
        %v1092 = vld [vmem:[%s214 + $0x17f8] sm:$0xff]
        %v1093 = vld [vmem:[%s214 + $0x1800] sm:$0xff]
        %v1094 = vld [vmem:[%s214 + $0x1808] sm:$0xf]
        %v1095 = vld [vmem:[%s214 + $0x180c] sm:$0xff]
        %v1096 = vld [vmem:[%s214 + $0x1814] sm:$0xff]
        %v1097 = vld [vmem:[%s214 + $0x181c] sm:$0xff]
        %v1098 = vld [vmem:[%s214 + $0x1824] sm:$0xff]
        %v1099 = vld [vmem:[%s214 + $0x182c] sm:$0xff]
        %v1100 = vld [vmem:[%s214 + $0x1834] sm:$0xff]
        %v1101 = vld [vmem:[%s214 + $0x183c] sm:$0xff]
        %v1102 = vld [vmem:[%s214 + $0x1844] sm:$0xff]
        %v1103 = vld [vmem:[%s214 + $0x184c] sm:$0xff]
        %v1104 = vld [vmem:[%s214 + $0x1854] sm:$0xf]
        %v1105 = vld [vmem:[%s214 + $0x1858] sm:$0xff]
        %v1106 = vld [vmem:[%s214 + $0x1860] sm:$0xff]
        %v1107 = vld [vmem:[%s214 + $0x1868] sm:$0xff]
        %v1108 = vld [vmem:[%s214 + $0x1870] sm:$0xff]
        %v1109 = vld [vmem:[%s214 + $0x1878] sm:$0xff]
        %v1110 = vld [vmem:[%s214 + $0x1880] sm:$0xff]
        %v1111 = vld [vmem:[%s214 + $0x1888] sm:$0xff]
        %v1112 = vld [vmem:[%s214 + $0x1890] sm:$0xff]
        %v1113 = vld [vmem:[%s214 + $0x1898] sm:$0xff]
        %v1114 = vld [vmem:[%s214 + $0x18a0] sm:$0xf]
        %v1115 = vld [vmem:[%s214 + $0x18a4] sm:$0xff]
        %v1116 = vld [vmem:[%s214 + $0x18ac] sm:$0xff]
        %v1117 = vld [vmem:[%s214 + $0x18b4] sm:$0xff]
        %v1118 = vld [vmem:[%s214 + $0x18bc] sm:$0xff]
        %v1119 = vld [vmem:[%s214 + $0x18c4] sm:$0xff]
        %v1120 = vld [vmem:[%s214 + $0x18cc] sm:$0xff]
        %v1121 = vld [vmem:[%s214 + $0x18d4] sm:$0xff]
        %v1122 = vld [vmem:[%s214 + $0x18dc] sm:$0xff]
        %v1123 = vld [vmem:[%s214 + $0x18e4] sm:$0xff]
        %v1124 = vld [vmem:[%s214 + $0x18ec] sm:$0xf]
        %v1125 = vld [vmem:[%s214 + $0x18f0] sm:$0xff]
        %v1126 = vld [vmem:[%s214 + $0x18f8] sm:$0xff]
        %v1127 = vld [vmem:[%s214 + $0x1900] sm:$0xff]
        %v1128 = vld [vmem:[%s214 + $0x1908] sm:$0xff]
        %v1129 = vld [vmem:[%s214 + $0x1910] sm:$0xff]
        %v1130 = vld [vmem:[%s214 + $0x1918] sm:$0xff]
        %v1131 = vld [vmem:[%s214 + $0x1920] sm:$0xff]
        %v1132 = vld [vmem:[%s214 + $0x1928] sm:$0xff]
        %v1133 = vld [vmem:[%s214 + $0x1930] sm:$0xff]
        %v1134 = vld [vmem:[%s214 + $0x1938] sm:$0xf]
        %v1135 = vld [vmem:[%s214 + $0x193c] sm:$0xff]
        %v1136 = vld [vmem:[%s214 + $0x1944] sm:$0xff]
        %v1137 = vld [vmem:[%s214 + $0x194c] sm:$0xff]
        %v1138 = vld [vmem:[%s214 + $0x1954] sm:$0xff]
        %v1139 = vld [vmem:[%s214 + $0x195c] sm:$0xff]
        %v1140 = vld [vmem:[%s214 + $0x1964] sm:$0xff]
        %v1141 = vld [vmem:[%s214 + $0x196c] sm:$0xff]
        %v1142 = vld [vmem:[%s214 + $0x1974] sm:$0xff]
        %v1143 = vld [vmem:[%s214 + $0x197c] sm:$0xff]
        %v1144 = vld [vmem:[%s214 + $0x1984] sm:$0xf]
        %v1145 = vld [vmem:[%s214 + $0x1988] sm:$0xff]
        %v1146 = vld [vmem:[%s214 + $0x1990] sm:$0xff]
        %v1147 = vld [vmem:[%s214 + $0x1998] sm:$0xff]
        %v1148 = vld [vmem:[%s214 + $0x19a0] sm:$0xff]
        %v1149 = vld [vmem:[%s214 + $0x19a8] sm:$0xff]
        %v1150 = vld [vmem:[%s214 + $0x19b0] sm:$0xff]
        %v1151 = vld [vmem:[%s214 + $0x19b8] sm:$0xff]
        %v1152 = vld [vmem:[%s214 + $0x19c0] sm:$0xff]
        %v1153 = vld [vmem:[%s214 + $0x19c8] sm:$0xff]
        %v1154 = vld [vmem:[%s214 + $0x19d0] sm:$0xf]
        %v1155 = vld [vmem:[%s214 + $0x19d4] sm:$0xff]
        %v1156 = vld [vmem:[%s214 + $0x19dc] sm:$0xff]
        %v1157 = vld [vmem:[%s214 + $0x19e4] sm:$0xff]
        %v1158 = vld [vmem:[%s214 + $0x19ec] sm:$0xff]
        %v1159 = vld [vmem:[%s214 + $0x19f4] sm:$0xff]
        %v1160 = vld [vmem:[%s214 + $0x19fc] sm:$0xff]
        %v1161 = vld [vmem:[%s214 + $0x1a04] sm:$0xff]
        %v1162 = vld [vmem:[%s214 + $0x1a0c] sm:$0xff]
        %v1163 = vld [vmem:[%s214 + $0x1a14] sm:$0xff]
        %v1164 = vld [vmem:[%s214 + $0x1a1c] sm:$0xf]
        %v1165 = vld [vmem:[%s214 + $0x1a20] sm:$0xff]
        %v1166 = vld [vmem:[%s214 + $0x1a28] sm:$0xff]
        %v1167 = vld [vmem:[%s214 + $0x1a30] sm:$0xff]
        %v1168 = vld [vmem:[%s214 + $0x1a38] sm:$0xff]
        %v1169 = vld [vmem:[%s214 + $0x1a40] sm:$0xff]
        %v1170 = vld [vmem:[%s214 + $0x1a48] sm:$0xff]
        %v1171 = vld [vmem:[%s214 + $0x1a50] sm:$0xff]
        %v1172 = vld [vmem:[%s214 + $0x1a58] sm:$0xff]
        %v1173 = vld [vmem:[%s214 + $0x1a60] sm:$0xff]
        %v1174 = vld [vmem:[%s214 + $0x1a68] sm:$0xf]
        %v1175 = vld [vmem:[%s214 + $0x1a6c] sm:$0xff]
        %v1176 = vld [vmem:[%s214 + $0x1a74] sm:$0xff]
        %v1177 = vld [vmem:[%s214 + $0x1a7c] sm:$0xff]
        %v1178 = vld [vmem:[%s214 + $0x1a84] sm:$0xff]
        %v1179 = vld [vmem:[%s214 + $0x1a8c] sm:$0xff]
        %v1180 = vld [vmem:[%s214 + $0x1a94] sm:$0xff]
        %v1181 = vld [vmem:[%s214 + $0x1a9c] sm:$0xff]
        %v1182 = vld [vmem:[%s214 + $0x1aa4] sm:$0xff]
        %v1183 = vld [vmem:[%s214 + $0x1aac] sm:$0xff]
        %v1184 = vld [vmem:[%s214 + $0x1ab4] sm:$0xf]
        %v1185 = vld [vmem:[%s214 + $0x1ab8] sm:$0xff]
        %v1186 = vld [vmem:[%s214 + $0x1ac0] sm:$0xff]
        %v1187 = vld [vmem:[%s214 + $0x1ac8] sm:$0xff]
        %v1188 = vld [vmem:[%s214 + $0x1ad0] sm:$0xff]
        %v1189 = vld [vmem:[%s214 + $0x1ad8] sm:$0xff]
        %v1190 = vld [vmem:[%s214 + $0x1ae0] sm:$0xff]
        %v1191 = vld [vmem:[%s214 + $0x1ae8] sm:$0xff]
        %v1192 = vld [vmem:[%s214 + $0x1af0] sm:$0xff]
        %v1193 = vld [vmem:[%s214 + $0x1af8] sm:$0xff]
        %v1194 = vld [vmem:[%s214 + $0x1b00] sm:$0xf]
        %v1195 = vld [vmem:[%s214 + $0x1b04] sm:$0xff]
        %v1196 = vld [vmem:[%s214 + $0x1b0c] sm:$0xff]
        %v1197 = vld [vmem:[%s214 + $0x1b14] sm:$0xff]
        %v1198 = vld [vmem:[%s214 + $0x1b1c] sm:$0xff]
        %v1199 = vld [vmem:[%s214 + $0x1b24] sm:$0xff]
        %v1200 = vld [vmem:[%s214 + $0x1b2c] sm:$0xff]
        %v1201 = vld [vmem:[%s214 + $0x1b34] sm:$0xff]
        %v1202 = vld [vmem:[%s214 + $0x1b3c] sm:$0xff]
        %v1203 = vld [vmem:[%s214 + $0x1b44] sm:$0xff]
        %v1204 = vld [vmem:[%s214 + $0x1b4c] sm:$0xf]
        %v1205 = vld [vmem:[%s214 + $0x1b50] sm:$0xff]
        %v1206 = vld [vmem:[%s214 + $0x1b58] sm:$0xff]
        %v1207 = vld [vmem:[%s214 + $0x1b60] sm:$0xff]
        %v1208 = vld [vmem:[%s214 + $0x1b68] sm:$0xff]
        %v1209 = vld [vmem:[%s214 + $0x1b70] sm:$0xff]
        %v1210 = vld [vmem:[%s214 + $0x1b78] sm:$0xff]
        %v1211 = vld [vmem:[%s214 + $0x1b80] sm:$0xff]
        %v1212 = vld [vmem:[%s214 + $0x1b88] sm:$0xff]
        %v1213 = vld [vmem:[%s214 + $0x1b90] sm:$0xff]
        %v1214 = vld [vmem:[%s214 + $0x1b98] sm:$0xf]
        %v1215 = vld [vmem:[%s214 + $0x1b9c] sm:$0xff]
        %v1216 = vld [vmem:[%s214 + $0x1ba4] sm:$0xff]
        %v1217 = vld [vmem:[%s214 + $0x1bac] sm:$0xff]
        %v1218 = vld [vmem:[%s214 + $0x1bb4] sm:$0xff]
        %v1219 = vld [vmem:[%s214 + $0x1bbc] sm:$0xff]
        %v1220 = vld [vmem:[%s214 + $0x1bc4] sm:$0xff]
        %v1221 = vld [vmem:[%s214 + $0x1bcc] sm:$0xff]
        %v1222 = vld [vmem:[%s214 + $0x1bd4] sm:$0xff]
        %v1223 = vld [vmem:[%s214 + $0x1bdc] sm:$0xff]
        %v1224 = vld [vmem:[%s214 + $0x1be4] sm:$0xf]
        %v1225 = vld [vmem:[%s214 + $0x1be8] sm:$0xff]
        %v1226 = vld [vmem:[%s214 + $0x1bf0] sm:$0xff]
        %v1227 = vld [vmem:[%s214 + $0x1bf8] sm:$0xff]
        %v1228 = vld [vmem:[%s214 + $0x1c00] sm:$0xff]
        %v1229 = vld [vmem:[%s214 + $0x1c08] sm:$0xff]
        %v1230 = vld [vmem:[%s214 + $0x1c10] sm:$0xff]
        %v1231 = vld [vmem:[%s214 + $0x1c18] sm:$0xff]
        %v1232 = vld [vmem:[%s214 + $0x1c20] sm:$0xff]
        %v1233 = vld [vmem:[%s214 + $0x1c28] sm:$0xff]
        %v1234 = vld [vmem:[%s214 + $0x1c30] sm:$0xf]
        %v1235 = vld [vmem:[%s214 + $0x1c34] sm:$0xff]
        %v1236 = vld [vmem:[%s214 + $0x1c3c] sm:$0xff]
        %v1237 = vld [vmem:[%s214 + $0x1c44] sm:$0xff]
        %v1238 = vld [vmem:[%s214 + $0x1c4c] sm:$0xff]
        %v1239 = vld [vmem:[%s214 + $0x1c54] sm:$0xff]
        %v1240 = vld [vmem:[%s214 + $0x1c5c] sm:$0xff]
        %v1241 = vld [vmem:[%s214 + $0x1c64] sm:$0xff]
        %v1242 = vld [vmem:[%s214 + $0x1c6c] sm:$0xff]
        %v1243 = vld [vmem:[%s214 + $0x1c74] sm:$0xff]
        %v1244 = vld [vmem:[%s214 + $0x1c7c] sm:$0xf]
        %v1245 = vld [vmem:[%s214 + $0x1c80] sm:$0xff]
        %v1246 = vld [vmem:[%s214 + $0x1c88] sm:$0xff]
        %v1247 = vld [vmem:[%s214 + $0x1c90] sm:$0xff]
        %v1248 = vld [vmem:[%s214 + $0x1c98] sm:$0xff]
        %v1249 = vld [vmem:[%s214 + $0x1ca0] sm:$0xff]
        %v1250 = vld [vmem:[%s214 + $0x1ca8] sm:$0xff]
        %v1251 = vld [vmem:[%s214 + $0x1cb0] sm:$0xff]
        %v1252 = vld [vmem:[%s214 + $0x1cb8] sm:$0xff]
        %v1253 = vld [vmem:[%s214 + $0x1cc0] sm:$0xff]
        %v1254 = vld [vmem:[%s214 + $0x1cc8] sm:$0xf]
        %v1255 = vld [vmem:[%s214 + $0x1ccc] sm:$0xff]
        %v1256 = vld [vmem:[%s214 + $0x1cd4] sm:$0xff]
        %v1257 = vld [vmem:[%s214 + $0x1cdc] sm:$0xff]
        %v1258 = vld [vmem:[%s214 + $0x1ce4] sm:$0xff]
        %v1259 = vld [vmem:[%s214 + $0x1cec] sm:$0xff]
        %v1260 = vld [vmem:[%s214 + $0x1cf4] sm:$0xff]
        %v1261 = vld [vmem:[%s214 + $0x1cfc] sm:$0xff]
        %v1262 = vld [vmem:[%s214 + $0x1d04] sm:$0xff]
        %v1263 = vld [vmem:[%s214 + $0x1d0c] sm:$0xff]
        %v1264 = vld [vmem:[%s214 + $0x1d14] sm:$0xf]
        %v1265 = vld [vmem:[%s214 + $0x1d18] sm:$0xff]
        %v1266 = vld [vmem:[%s214 + $0x1d20] sm:$0xff]
        %v1267 = vld [vmem:[%s214 + $0x1d28] sm:$0xff]
        %v1268 = vld [vmem:[%s214 + $0x1d30] sm:$0xff]
        %v1269 = vld [vmem:[%s214 + $0x1d38] sm:$0xff]
        %v1270 = vld [vmem:[%s214 + $0x1d40] sm:$0xff]
        %v1271 = vld [vmem:[%s214 + $0x1d48] sm:$0xff]
        %v1272 = vld [vmem:[%s214 + $0x1d50] sm:$0xff]
        %v1273 = vld [vmem:[%s214 + $0x1d58] sm:$0xff]
        %v1274 = vld [vmem:[%s214 + $0x1d60] sm:$0xf]
        %v1275 = vld [vmem:[%s214 + $0x1d64] sm:$0xff]
        %v1276 = vld [vmem:[%s214 + $0x1d6c] sm:$0xff]
        %v1277 = vld [vmem:[%s214 + $0x1d74] sm:$0xff]
        %v1278 = vld [vmem:[%s214 + $0x1d7c] sm:$0xff]
        %v1279 = vld [vmem:[%s214 + $0x1d84] sm:$0xff]
        %v1280 = vld [vmem:[%s214 + $0x1d8c] sm:$0xff]
        %v1281 = vld [vmem:[%s214 + $0x1d94] sm:$0xff]
        %v1282 = vld [vmem:[%s214 + $0x1d9c] sm:$0xff]
        %v1283 = vld [vmem:[%s214 + $0x1da4] sm:$0xff]
        %v1284 = vld [vmem:[%s214 + $0x1dac] sm:$0xf]
        %v1285 = vld [vmem:[%s214 + $0x1db0] sm:$0xff]
        %v1286 = vld [vmem:[%s214 + $0x1db8] sm:$0xff]
        %v1287 = vld [vmem:[%s214 + $0x1dc0] sm:$0xff]
        %v1288 = vld [vmem:[%s214 + $0x1dc8] sm:$0xff]
        %v1289 = vld [vmem:[%s214 + $0x1dd0] sm:$0xff]
        %v1290 = vld [vmem:[%s214 + $0x1dd8] sm:$0xff]
        %v1291 = vld [vmem:[%s214 + $0x1de0] sm:$0xff]
        %v1292 = vld [vmem:[%s214 + $0x1de8] sm:$0xff]
        %v1293 = vld [vmem:[%s214 + $0x1df0] sm:$0xff]
        %v1294 = vld [vmem:[%s214 + $0x1df8] sm:$0xf]
        %v1295 = vld [vmem:[%s214 + $0x1dfc] sm:$0xff]
        %v1296 = vld [vmem:[%s214 + $0x1e04] sm:$0xff]
        %v1297 = vld [vmem:[%s214 + $0x1e0c] sm:$0xff]
        %v1298 = vld [vmem:[%s214 + $0x1e14] sm:$0xff]
        %v1299 = vld [vmem:[%s214 + $0x1e1c] sm:$0xff]
        %v1300 = vld [vmem:[%s214 + $0x1e24] sm:$0xff]
        %v1301 = vld [vmem:[%s214 + $0x1e2c] sm:$0xff]
        %v1302 = vld [vmem:[%s214 + $0x1e34] sm:$0xff]
        %v1303 = vld [vmem:[%s214 + $0x1e3c] sm:$0xff]
        %v1304 = vld [vmem:[%s214 + $0x1e44] sm:$0xf]
        %v1305 = vld [vmem:[%s214 + $0x1e48] sm:$0xff]
        %v1306 = vld [vmem:[%s214 + $0x1e50] sm:$0xff]
        %v1307 = vld [vmem:[%s214 + $0x1e58] sm:$0xff]
        %v1308 = vld [vmem:[%s214 + $0x1e60] sm:$0xff]
        %v1309 = vld [vmem:[%s214 + $0x1e68] sm:$0xff]
        %v1310 = vld [vmem:[%s214 + $0x1e70] sm:$0xff]
        %v1311 = vld [vmem:[%s214 + $0x1e78] sm:$0xff]
        %v1312 = vld [vmem:[%s214 + $0x1e80] sm:$0xff]
        %v1313 = vld [vmem:[%s214 + $0x1e88] sm:$0xff]
        %v1314 = vld [vmem:[%s214 + $0x1e90] sm:$0xf]
        %v1315 = vld [vmem:[%s214 + $0x1e94] sm:$0xff]
        %v1316 = vld [vmem:[%s214 + $0x1e9c] sm:$0xff]
        %v1317 = vld [vmem:[%s214 + $0x1ea4] sm:$0xff]
        %v1318 = vld [vmem:[%s214 + $0x1eac] sm:$0xff]
        %v1319 = vld [vmem:[%s214 + $0x1eb4] sm:$0xff]
        %v1320 = vld [vmem:[%s214 + $0x1ebc] sm:$0xff]
        %v1321 = vld [vmem:[%s214 + $0x1ec4] sm:$0xff]
        %v1322 = vld [vmem:[%s214 + $0x1ecc] sm:$0xff]
        %v1323 = vld [vmem:[%s214 + $0x1ed4] sm:$0xff]
        %v1324 = vld [vmem:[%s214 + $0x1edc] sm:$0xf]
        %v1325 = vld [vmem:[%s214 + $0x1ee0] sm:$0xff]
        %v1326 = vld [vmem:[%s214 + $0x1ee8] sm:$0xff]
        %v1327 = vld [vmem:[%s214 + $0x1ef0] sm:$0xff]
        %v1328 = vld [vmem:[%s214 + $0x1ef8] sm:$0xff]
        %v1329 = vld [vmem:[%s214 + $0x1f00] sm:$0xff]
        %v1330 = vld [vmem:[%s214 + $0x1f08] sm:$0xff]
        %v1331 = vld [vmem:[%s214 + $0x1f10] sm:$0xff]
        %v1332 = vld [vmem:[%s214 + $0x1f18] sm:$0xff]
        %v1333 = vld [vmem:[%s214 + $0x1f20] sm:$0xff]
        %v1334 = vld [vmem:[%s214 + $0x1f28] sm:$0xf]
        %v1335 = vld [vmem:[%s214 + $0x1f2c] sm:$0xff]
        %v1336 = vld [vmem:[%s214 + $0x1f34] sm:$0xff]
        %v1337 = vld [vmem:[%s214 + $0x1f3c] sm:$0xff]
        %v1338 = vld [vmem:[%s214 + $0x1f44] sm:$0xff]
        %v1339 = vld [vmem:[%s214 + $0x1f4c] sm:$0xff]
        %v1340 = vld [vmem:[%s214 + $0x1f54] sm:$0xff]
        %v1341 = vld [vmem:[%s214 + $0x1f5c] sm:$0xff]
        %v1342 = vld [vmem:[%s214 + $0x1f64] sm:$0xff]
        %v1343 = vld [vmem:[%s214 + $0x1f6c] sm:$0xff]
        %v1344 = vld [vmem:[%s214 + $0x1f74] sm:$0xf]
        %v1345 = vld [vmem:[%s214 + $0x1f78] sm:$0xff]
        %v1346 = vld [vmem:[%s214 + $0x1f80] sm:$0xff]
        %v1347 = vld [vmem:[%s214 + $0x1f88] sm:$0xff]
        %v1348 = vld [vmem:[%s214 + $0x1f90] sm:$0xff]
        %v1349 = vld [vmem:[%s214 + $0x1f98] sm:$0xff]
        %v1350 = vld [vmem:[%s214 + $0x1fa0] sm:$0xff]
        %v1351 = vld [vmem:[%s214 + $0x1fa8] sm:$0xff]
        %v1352 = vld [vmem:[%s214 + $0x1fb0] sm:$0xff]
        %v1353 = vld [vmem:[%s214 + $0x1fb8] sm:$0xff]
        %v1354 = vld [vmem:[%s214 + $0x1fc0] sm:$0xf]
        %v1355 = vld [vmem:[%s214 + $0x1fc4] sm:$0xff]
        %v1356 = vld [vmem:[%s214 + $0x1fcc] sm:$0xff]
        %v1357 = vld [vmem:[%s214 + $0x1fd4] sm:$0xff]
        %v1358 = vld [vmem:[%s214 + $0x1fdc] sm:$0xff]
        %v1359 = vld [vmem:[%s214 + $0x1fe4] sm:$0xff]
        %v1360 = vld [vmem:[%s214 + $0x1fec] sm:$0xff]
        %v1361 = vld [vmem:[%s214 + $0x1ff4] sm:$0xff]
        %v1362 = vld [vmem:[%s214 + $0x1ffc] sm:$0xff]
        %v1363 = vld [vmem:[%s214 + $0x2004] sm:$0xff]
        %v1364 = vld [vmem:[%s214 + $0x200c] sm:$0xf]
        %v1365 = vld [vmem:[%s214 + $0x2010] sm:$0xff]
        %v1366 = vld [vmem:[%s214 + $0x2018] sm:$0xff]
        %v1367 = vld [vmem:[%s214 + $0x2020] sm:$0xff]
        %v1368 = vld [vmem:[%s214 + $0x2028] sm:$0xff]
        %v1369 = vld [vmem:[%s214 + $0x2030] sm:$0xff]
        %v1370 = vld [vmem:[%s214 + $0x2038] sm:$0xff]
        %v1371 = vld [vmem:[%s214 + $0x2040] sm:$0xff]
        %v1372 = vld [vmem:[%s214 + $0x2048] sm:$0xff]
        %v1373 = vld [vmem:[%s214 + $0x2050] sm:$0xff]
        %v1374 = vld [vmem:[%s214 + $0x2058] sm:$0xf]
        %v1375 = vld [vmem:[%s214 + $0x205c] sm:$0xff]
        %v1376 = vld [vmem:[%s214 + $0x2064] sm:$0xff]
        %v1377 = vld [vmem:[%s214 + $0x206c] sm:$0xff]
        %v1378 = vld [vmem:[%s214 + $0x2074] sm:$0xff]
        %v1379 = vld [vmem:[%s214 + $0x207c] sm:$0xff]
        %v1380 = vld [vmem:[%s214 + $0x2084] sm:$0xff]
        %v1381 = vld [vmem:[%s214 + $0x208c] sm:$0xff]
        %v1382 = vld [vmem:[%s214 + $0x2094] sm:$0xff]
        %v1383 = vld [vmem:[%s214 + $0x209c] sm:$0xff]
        %v1384 = vld [vmem:[%s214 + $0x20a4] sm:$0xf]
        %v1385 = vld [vmem:[%s214 + $0x20a8] sm:$0xff]
        %v1386 = vld [vmem:[%s214 + $0x20b0] sm:$0xff]
        %v1387 = vld [vmem:[%s214 + $0x20b8] sm:$0xff]
        %v1388 = vld [vmem:[%s214 + $0x20c0] sm:$0xff]
        %v1389 = vld [vmem:[%s214 + $0x20c8] sm:$0xff]
        %v1390 = vld [vmem:[%s214 + $0x20d0] sm:$0xff]
        %v1391 = vld [vmem:[%s214 + $0x20d8] sm:$0xff]
        %v1392 = vld [vmem:[%s214 + $0x20e0] sm:$0xff]
        %v1393 = vld [vmem:[%s214 + $0x20e8] sm:$0xff]
        %v1394 = vld [vmem:[%s214 + $0x20f0] sm:$0xf]
        %v1395 = vld [vmem:[%s214 + $0x20f4] sm:$0xff]
        %v1396 = vld [vmem:[%s214 + $0x20fc] sm:$0xff]
        %v1397 = vld [vmem:[%s214 + $0x2104] sm:$0xff]
        %v1398 = vld [vmem:[%s214 + $0x210c] sm:$0xff]
        %v1399 = vld [vmem:[%s214 + $0x2114] sm:$0xff]
        %v1400 = vld [vmem:[%s214 + $0x211c] sm:$0xff]
        %v1401 = vld [vmem:[%s214 + $0x2124] sm:$0xff]
        %v1402 = vld [vmem:[%s214 + $0x212c] sm:$0xff]
        %v1403 = vld [vmem:[%s214 + $0x2134] sm:$0xff]
        %v1404 = vld [vmem:[%s214 + $0x213c] sm:$0xf]
        %v1405 = vld [vmem:[%s214 + $0x2140] sm:$0xff]
        %v1406 = vld [vmem:[%s214 + $0x2148] sm:$0xff]
        %v1407 = vld [vmem:[%s214 + $0x2150] sm:$0xff]
        %v1408 = vld [vmem:[%s214 + $0x2158] sm:$0xff]
        %v1409 = vld [vmem:[%s214 + $0x2160] sm:$0xff]
        %v1410 = vld [vmem:[%s214 + $0x2168] sm:$0xff]
        %v1411 = vld [vmem:[%s214 + $0x2170] sm:$0xff]
        %v1412 = vld [vmem:[%s214 + $0x2178] sm:$0xff]
        %v1413 = vld [vmem:[%s214 + $0x2180] sm:$0xff]
        %v1414 = vld [vmem:[%s214 + $0x2188] sm:$0xf]
        %v1415 = vld [vmem:[%s214 + $0x218c] sm:$0xff]
        %v1416 = vld [vmem:[%s214 + $0x2194] sm:$0xff]
        %v1417 = vld [vmem:[%s214 + $0x219c] sm:$0xff]
        %v1418 = vld [vmem:[%s214 + $0x21a4] sm:$0xff]
        %v1419 = vld [vmem:[%s214 + $0x21ac] sm:$0xff]
        %v1420 = vld [vmem:[%s214 + $0x21b4] sm:$0xff]
        %v1421 = vld [vmem:[%s214 + $0x21bc] sm:$0xff]
        %v1422 = vld [vmem:[%s214 + $0x21c4] sm:$0xff]
        %v1423 = vld [vmem:[%s214 + $0x21cc] sm:$0xff]
        %v1424 = vld [vmem:[%s214 + $0x21d4] sm:$0xf]
        %v1425 = vld [vmem:[%s214 + $0x21d8] sm:$0xff]
        %v1426 = vld [vmem:[%s214 + $0x21e0] sm:$0xff]
        %v1427 = vld [vmem:[%s214 + $0x21e8] sm:$0xff]
        %v1428 = vld [vmem:[%s214 + $0x21f0] sm:$0xff]
        %v1429 = vld [vmem:[%s214 + $0x21f8] sm:$0xff]
        %v1430 = vld [vmem:[%s214 + $0x2200] sm:$0xff]
        %v1431 = vld [vmem:[%s214 + $0x2208] sm:$0xff]
        %v1432 = vld [vmem:[%s214 + $0x2210] sm:$0xff]
        %v1433 = vld [vmem:[%s214 + $0x2218] sm:$0xff]
        %v1434 = vld [vmem:[%s214 + $0x2220] sm:$0xf]
        %v1435 = vld [vmem:[%s214 + $0x2224] sm:$0xff]
        %v1436 = vld [vmem:[%s214 + $0x222c] sm:$0xff]
        %v1437 = vld [vmem:[%s214 + $0x2234] sm:$0xff]
        %v1438 = vld [vmem:[%s214 + $0x223c] sm:$0xff]
        %v1439 = vld [vmem:[%s214 + $0x2244] sm:$0xff]
        %v1440 = vld [vmem:[%s214 + $0x224c] sm:$0xff]
        %v1441 = vld [vmem:[%s214 + $0x2254] sm:$0xff]
        %v1442 = vld [vmem:[%s214 + $0x225c] sm:$0xff]
        %v1443 = vld [vmem:[%s214 + $0x2264] sm:$0xff]
        %v1444 = vld [vmem:[%s214 + $0x226c] sm:$0xf]
        %v1445 = vld [vmem:[%s214 + $0x2270] sm:$0xff]
        %v1446 = vld [vmem:[%s214 + $0x2278] sm:$0xff]
        %v1447 = vld [vmem:[%s214 + $0x2280] sm:$0xff]
        %v1448 = vld [vmem:[%s214 + $0x2288] sm:$0xff]
        %v1449 = vld [vmem:[%s214 + $0x2290] sm:$0xff]
        %v1450 = vld [vmem:[%s214 + $0x2298] sm:$0xff]
        %v1451 = vld [vmem:[%s214 + $0x22a0] sm:$0xff]
        %v1452 = vld [vmem:[%s214 + $0x22a8] sm:$0xff]
        %v1453 = vld [vmem:[%s214 + $0x22b0] sm:$0xff]
        %v1454 = vld [vmem:[%s214 + $0x22b8] sm:$0xf]
        %v1455 = vld [vmem:[%s214 + $0x22bc] sm:$0xff]
        %v1456 = vld [vmem:[%s214 + $0x22c4] sm:$0xff]
        %v1457 = vld [vmem:[%s214 + $0x22cc] sm:$0xff]
        %v1458 = vld [vmem:[%s214 + $0x22d4] sm:$0xff]
        %v1459 = vld [vmem:[%s214 + $0x22dc] sm:$0xff]
        %v1460 = vld [vmem:[%s214 + $0x22e4] sm:$0xff]
        %v1461 = vld [vmem:[%s214 + $0x22ec] sm:$0xff]
        %v1462 = vld [vmem:[%s214 + $0x22f4] sm:$0xff]
        %v1463 = vld [vmem:[%s214 + $0x22fc] sm:$0xff]
        %v1464 = vld [vmem:[%s214 + $0x2304] sm:$0xf]
        %v1465 = vld [vmem:[%s214 + $0x2308] sm:$0xff]
        %v1466 = vld [vmem:[%s214 + $0x2310] sm:$0xff]
        %v1467 = vld [vmem:[%s214 + $0x2318] sm:$0xff]
        %v1468 = vld [vmem:[%s214 + $0x2320] sm:$0xff]
        %v1469 = vld [vmem:[%s214 + $0x2328] sm:$0xff]
        %v1470 = vld [vmem:[%s214 + $0x2330] sm:$0xff]
        %v1471 = vld [vmem:[%s214 + $0x2338] sm:$0xff]
        %v1472 = vld [vmem:[%s214 + $0x2340] sm:$0xff]
        %v1473 = vld [vmem:[%s214 + $0x2348] sm:$0xff]
        %v1474 = vld [vmem:[%s214 + $0x2350] sm:$0xf]
        %v1475 = vld [vmem:[%s214 + $0x2354] sm:$0xff]
        %v1476 = vld [vmem:[%s214 + $0x235c] sm:$0xff]
        %v1477 = vld [vmem:[%s214 + $0x2364] sm:$0xff]
        %v1478 = vld [vmem:[%s214 + $0x236c] sm:$0xff]
        %v1479 = vld [vmem:[%s214 + $0x2374] sm:$0xff]
        %v1480 = vld [vmem:[%s214 + $0x237c] sm:$0xff]
        %v1481 = vld [vmem:[%s214 + $0x2384] sm:$0xff]
        %v1482 = vld [vmem:[%s214 + $0x238c] sm:$0xff]
        %v1483 = vld [vmem:[%s214 + $0x2394] sm:$0xff]
        %v1484 = vld [vmem:[%s214 + $0x239c] sm:$0xf]
        %v1485 = vld [vmem:[%s214 + $0x23a0] sm:$0xff]
        %v1486 = vld [vmem:[%s214 + $0x23a8] sm:$0xff]
        %v1487 = vld [vmem:[%s214 + $0x23b0] sm:$0xff]
        %v1488 = vld [vmem:[%s214 + $0x23b8] sm:$0xff]
        %v1489 = vld [vmem:[%s214 + $0x23c0] sm:$0xff]
        %v1490 = vld [vmem:[%s214 + $0x23c8] sm:$0xff]
        %v1491 = vld [vmem:[%s214 + $0x23d0] sm:$0xff]
        %v1492 = vld [vmem:[%s214 + $0x23d8] sm:$0xff]
        %v1493 = vld [vmem:[%s214 + $0x23e0] sm:$0xff]
        %v1494 = vld [vmem:[%s214 + $0x23e8] sm:$0xf]
        %v1495 = vld [vmem:[%s214 + $0x23ec] sm:$0xff]
        %v1496 = vld [vmem:[%s214 + $0x23f4] sm:$0xff]
        %v1497 = vld [vmem:[%s214 + $0x23fc] sm:$0xff]
        %v1498 = vld [vmem:[%s214 + $0x2404] sm:$0xff]
        %v1499 = vld [vmem:[%s214 + $0x240c] sm:$0xff]
        %v1500 = vld [vmem:[%s214 + $0x2414] sm:$0xff]
        %v1501 = vld [vmem:[%s214 + $0x241c] sm:$0xff]
        %v1502 = vld [vmem:[%s214 + $0x2424] sm:$0xff]
        %v1503 = vld [vmem:[%s214 + $0x242c] sm:$0xff]
        %v1504 = vld [vmem:[%s214 + $0x2434] sm:$0xf]
        %v1505 = vld [vmem:[%s214 + $0x2438] sm:$0xff]
        %v1506 = vld [vmem:[%s214 + $0x2440] sm:$0xff]
        %v1507 = vld [vmem:[%s214 + $0x2448] sm:$0xff]
        %v1508 = vld [vmem:[%s214 + $0x2450] sm:$0xff]
        %v1509 = vld [vmem:[%s214 + $0x2458] sm:$0xff]
        %v1510 = vld [vmem:[%s214 + $0x2460] sm:$0xff]
        %v1511 = vld [vmem:[%s214 + $0x2468] sm:$0xff]
        %v1512 = vld [vmem:[%s214 + $0x2470] sm:$0xff]
        %v1513 = vld [vmem:[%s214 + $0x2478] sm:$0xff]
        %v1514 = vld [vmem:[%s214 + $0x2480] sm:$0xf]
        %v1515 = vld [vmem:[%s214 + $0x2484] sm:$0xff]
        %v1516 = vld [vmem:[%s214 + $0x248c] sm:$0xff]
        %v1517 = vld [vmem:[%s214 + $0x2494] sm:$0xff]
        %v1518 = vld [vmem:[%s214 + $0x249c] sm:$0xff]
        %v1519 = vld [vmem:[%s214 + $0x24a4] sm:$0xff]
        %v1520 = vld [vmem:[%s214 + $0x24ac] sm:$0xff]
        %v1521 = vld [vmem:[%s214 + $0x24b4] sm:$0xff]
        %v1522 = vld [vmem:[%s214 + $0x24bc] sm:$0xff]
        %v1523 = vld [vmem:[%s214 + $0x24c4] sm:$0xff]
        %v1524 = vld [vmem:[%s214 + $0x24cc] sm:$0xf]
        %v1525 = vld [vmem:[%s214 + $0x24d0] sm:$0xff]
        %v1526 = vld [vmem:[%s214 + $0x24d8] sm:$0xff]
        %v1527 = vld [vmem:[%s214 + $0x24e0] sm:$0xff]
        %v1528 = vld [vmem:[%s214 + $0x24e8] sm:$0xff]
        %v1529 = vld [vmem:[%s214 + $0x24f0] sm:$0xff]
        %v1530 = vld [vmem:[%s214 + $0x24f8] sm:$0xff]
        %v1531 = vld [vmem:[%s214 + $0x2500] sm:$0xff]
        %v1532 = vld [vmem:[%s214 + $0x2508] sm:$0xff]
        %v1533 = vld [vmem:[%s214 + $0x2510] sm:$0xff]
        %v1534 = vld [vmem:[%s214 + $0x2518] sm:$0xf]
        %v1535 = vld [vmem:[%s214 + $0x251c] sm:$0xff]
        %v1536 = vld [vmem:[%s214 + $0x2524] sm:$0xff]
        %v1537 = vld [vmem:[%s214 + $0x252c] sm:$0xff]
        %v1538 = vld [vmem:[%s214 + $0x2534] sm:$0xff]
        %v1539 = vld [vmem:[%s214 + $0x253c] sm:$0xff]
        %v1540 = vld [vmem:[%s214 + $0x2544] sm:$0xff]
        %v1541 = vld [vmem:[%s214 + $0x254c] sm:$0xff]
        %v1542 = vld [vmem:[%s214 + $0x2554] sm:$0xff]
        %v1543 = vld [vmem:[%s214 + $0x255c] sm:$0xff]
        %v1544 = vld [vmem:[%s214 + $0x2564] sm:$0xf]
        %v1545 = vld [vmem:[%s214 + $0x2568] sm:$0xff]
        %v1546 = vld [vmem:[%s214 + $0x2570] sm:$0xff]
        %v1547 = vld [vmem:[%s214 + $0x2578] sm:$0xff]
        %v1548 = vld [vmem:[%s214 + $0x2580] sm:$0xff]
        %v1549 = vld [vmem:[%s214 + $0x2588] sm:$0xff]
        %v1550 = vld [vmem:[%s214 + $0x2590] sm:$0xff]
        %v1551 = vld [vmem:[%s214 + $0x2598] sm:$0xff]
        %v1552 = vld [vmem:[%s214 + $0x25a0] sm:$0xff]
        %v1553 = vld [vmem:[%s214 + $0x25a8] sm:$0xff]
        %v1554 = vld [vmem:[%s214 + $0x25b0] sm:$0xf]
        %v1555 = vld [vmem:[%s214 + $0x25b4] sm:$0xff]
        %v1556 = vld [vmem:[%s214 + $0x25bc] sm:$0xff]
        %v1557 = vld [vmem:[%s214 + $0x25c4] sm:$0xff]
        %v1558 = vld [vmem:[%s214 + $0x25cc] sm:$0xff]
        %v1559 = vld [vmem:[%s214 + $0x25d4] sm:$0xff]
        %v1560 = vld [vmem:[%s214 + $0x25dc] sm:$0xff]
        %v1561 = vld [vmem:[%s214 + $0x25e4] sm:$0xff]
        %v1562 = vld [vmem:[%s214 + $0x25ec] sm:$0xff]
        %v1563 = vld [vmem:[%s214 + $0x25f4] sm:$0xff]
        %v1564 = vld [vmem:[%s214 + $0x25fc] sm:$0xf]
        %v1566 = vcombine.high %v284, %v284
        %v1568 = vunpack.c.l.s4 1966171168
        %v1569 = vunpack.c.0.s8 %v1568
        %v1570 = vlaneseq
        %v1571 = vshrl.u32 %v1570, 7
        %v1572 = vsub.s32 %v1569, %v1571
        %v1573 = vrot.slane %v284, %v1572
        %v1575 = vunpack.c.l.s4 1966171168
        %v1576 = vunpack.c.0.s8 %v1575
        %v1577 = vlaneseq
        %v1578 = vshrl.u32 %v1577, 7
        %v1579 = vsub.s32 %v1576, %v1578
        %v1580 = vrot.slane %v1566, %v1579
        %v1581 = vcombine.high %v1573, %v1573
        %v1582 = vcombine.high %v1580, %v1580
        %v1584 = vunpack.c.l.s4 1966171168
        %v1585 = vunpack.c.0.s8 %v1584
        %v1586 = vlaneseq
        %v1587 = vshrl.u32 %v1586, 7
        %v1588 = vsub.s32 %v1585, %v1587
        %v1589 = vrot.slane %v1573, %v1588
        %v1591 = vunpack.c.l.s4 1966171168
        %v1592 = vunpack.c.0.s8 %v1591
        %v1593 = vlaneseq
        %v1594 = vshrl.u32 %v1593, 7
        %v1595 = vsub.s32 %v1592, %v1594
        %v1596 = vrot.slane %v1580, %v1595
        %v1598 = vunpack.c.l.s4 1966171168
        %v1599 = vunpack.c.0.s8 %v1598
        %v1600 = vlaneseq
        %v1601 = vshrl.u32 %v1600, 7
        %v1602 = vsub.s32 %v1599, %v1601
        %v1603 = vrot.slane %v1581, %v1602
        %v1605 = vunpack.c.l.s4 1966171168
        %v1606 = vunpack.c.0.s8 %v1605
        %v1607 = vlaneseq
        %v1608 = vshrl.u32 %v1607, 7
        %v1609 = vsub.s32 %v1606, %v1608
        %v1610 = vrot.slane %v1582, %v1609
        %v1611 = vcombine.high %v1589, %v1589
        %v1612 = vcombine.high %v1596, %v1596
        %v1613 = vcombine.high %v1603, %v1603
        %v1614 = vcombine.high %v1610, %v1610
        %v2903 = vunpack.c.l.b16 %v285
        %v2904 = vunpack.c.h.b16 %v285
        %v2905 = vunpack.c.l.b16 %v286
        %v2906 = vunpack.c.h.b16 %v286
        %v2907 = vunpack.c.l.b16 %v287
        %v2908 = vunpack.c.h.b16 %v287
        %v2909 = vunpack.c.l.b16 %v288
        %v2910 = vunpack.c.h.b16 %v288
        %v2911 = vunpack.c.l.b16 %v289
        %v2912 = vunpack.c.h.b16 %v289
        %v2913 = vunpack.c.l.b16 %v290
        %v2914 = vunpack.c.h.b16 %v290
        %v2915 = vunpack.c.l.b16 %v291
        %v2916 = vunpack.c.h.b16 %v291
        %v2917 = vunpack.c.l.b16 %v292
        %v2918 = vunpack.c.h.b16 %v292
        %v2919 = vunpack.c.l.b16 %v293
        %v2920 = vunpack.c.h.b16 %v293
        %v2921 = vunpack.c.l.b16 %v294
        %v2922 = vunpack.c.l.b16 %v295
        %v2923 = vunpack.c.h.b16 %v295
        %v2924 = vunpack.c.l.b16 %v296
        %v2925 = vunpack.c.h.b16 %v296
        %v2926 = vunpack.c.l.b16 %v297
        %v2927 = vunpack.c.h.b16 %v297
        %v2928 = vunpack.c.l.b16 %v298
        %v2929 = vunpack.c.h.b16 %v298
        %v2930 = vunpack.c.l.b16 %v299
        %v2931 = vunpack.c.h.b16 %v299
        %v2932 = vunpack.c.l.b16 %v300
        %v2933 = vunpack.c.h.b16 %v300
        %v2934 = vunpack.c.l.b16 %v301
        %v2935 = vunpack.c.h.b16 %v301
        %v2936 = vunpack.c.l.b16 %v302
        %v2937 = vunpack.c.h.b16 %v302
        %v2938 = vunpack.c.l.b16 %v303
        %v2939 = vunpack.c.h.b16 %v303
        %v2940 = vunpack.c.l.b16 %v304
        %v2941 = vunpack.c.l.b16 %v305
        %v2942 = vunpack.c.h.b16 %v305
        %v2943 = vunpack.c.l.b16 %v306
        %v2944 = vunpack.c.h.b16 %v306
        %v2945 = vunpack.c.l.b16 %v307
        %v2946 = vunpack.c.h.b16 %v307
        %v2947 = vunpack.c.l.b16 %v308
        %v2948 = vunpack.c.h.b16 %v308
        %v2949 = vunpack.c.l.b16 %v309
        %v2950 = vunpack.c.h.b16 %v309
        %v2951 = vunpack.c.l.b16 %v310
        %v2952 = vunpack.c.h.b16 %v310
        %v2953 = vunpack.c.l.b16 %v311
        %v2954 = vunpack.c.h.b16 %v311
        %v2955 = vunpack.c.l.b16 %v312
        %v2956 = vunpack.c.h.b16 %v312
        %v2957 = vunpack.c.l.b16 %v313
        %v2958 = vunpack.c.h.b16 %v313
        %v2959 = vunpack.c.l.b16 %v314
        %v2960 = vunpack.c.l.b16 %v315
        %v2961 = vunpack.c.h.b16 %v315
        %v2962 = vunpack.c.l.b16 %v316
        %v2963 = vunpack.c.h.b16 %v316
        %v2964 = vunpack.c.l.b16 %v317
        %v2965 = vunpack.c.h.b16 %v317
        %v2966 = vunpack.c.l.b16 %v318
        %v2967 = vunpack.c.h.b16 %v318
        %v2968 = vunpack.c.l.b16 %v319
        %v2969 = vunpack.c.h.b16 %v319
        %v2970 = vunpack.c.l.b16 %v320
        %v2971 = vunpack.c.h.b16 %v320
        %v2972 = vunpack.c.l.b16 %v321
        %v2973 = vunpack.c.h.b16 %v321
        %v2974 = vunpack.c.l.b16 %v322
        %v2975 = vunpack.c.h.b16 %v322
        %v2976 = vunpack.c.l.b16 %v323
        %v2977 = vunpack.c.h.b16 %v323
        %v2978 = vunpack.c.l.b16 %v324
        %v2979 = vunpack.c.l.b16 %v325
        %v2980 = vunpack.c.h.b16 %v325
        %v2981 = vunpack.c.l.b16 %v326
        %v2982 = vunpack.c.h.b16 %v326
        %v2983 = vunpack.c.l.b16 %v327
        %v2984 = vunpack.c.h.b16 %v327
        %v2985 = vunpack.c.l.b16 %v328
        %v2986 = vunpack.c.h.b16 %v328
        %v2987 = vunpack.c.l.b16 %v329
        %v2988 = vunpack.c.h.b16 %v329
        %v2989 = vunpack.c.l.b16 %v330
        %v2990 = vunpack.c.h.b16 %v330
        %v2991 = vunpack.c.l.b16 %v331
        %v2992 = vunpack.c.h.b16 %v331
        %v2993 = vunpack.c.l.b16 %v332
        %v2994 = vunpack.c.h.b16 %v332
        %v2995 = vunpack.c.l.b16 %v333
        %v2996 = vunpack.c.h.b16 %v333
        %v2997 = vunpack.c.l.b16 %v334
        %v2998 = vunpack.c.l.b16 %v335
        %v2999 = vunpack.c.h.b16 %v335
        %v3000 = vunpack.c.l.b16 %v336
        %v3001 = vunpack.c.h.b16 %v336
        %v3002 = vunpack.c.l.b16 %v337
        %v3003 = vunpack.c.h.b16 %v337
        %v3004 = vunpack.c.l.b16 %v338
        %v3005 = vunpack.c.h.b16 %v338
        %v3006 = vunpack.c.l.b16 %v339
        %v3007 = vunpack.c.h.b16 %v339
        %v3008 = vunpack.c.l.b16 %v340
        %v3009 = vunpack.c.h.b16 %v340
        %v3010 = vunpack.c.l.b16 %v341
        %v3011 = vunpack.c.h.b16 %v341
        %v3012 = vunpack.c.l.b16 %v342
        %v3013 = vunpack.c.h.b16 %v342
        %v3014 = vunpack.c.l.b16 %v343
        %v3015 = vunpack.c.h.b16 %v343
        %v3016 = vunpack.c.l.b16 %v344
        %v3017 = vunpack.c.l.b16 %v345
        %v3018 = vunpack.c.h.b16 %v345
        %v3019 = vunpack.c.l.b16 %v346
        %v3020 = vunpack.c.h.b16 %v346
        %v3021 = vunpack.c.l.b16 %v347
        %v3022 = vunpack.c.h.b16 %v347
        %v3023 = vunpack.c.l.b16 %v348
        %v3024 = vunpack.c.h.b16 %v348
        %v3025 = vunpack.c.l.b16 %v349
        %v3026 = vunpack.c.h.b16 %v349
        %v3027 = vunpack.c.l.b16 %v350
        %v3028 = vunpack.c.h.b16 %v350
        %v3029 = vunpack.c.l.b16 %v351
        %v3030 = vunpack.c.h.b16 %v351
        %v3031 = vunpack.c.l.b16 %v352
        %v3032 = vunpack.c.h.b16 %v352
        %v3033 = vunpack.c.l.b16 %v353
        %v3034 = vunpack.c.h.b16 %v353
        %v3035 = vunpack.c.l.b16 %v354
        %v3036 = vunpack.c.l.b16 %v355
        %v3037 = vunpack.c.h.b16 %v355
        %v3038 = vunpack.c.l.b16 %v356
        %v3039 = vunpack.c.h.b16 %v356
        %v3040 = vunpack.c.l.b16 %v357
        %v3041 = vunpack.c.h.b16 %v357
        %v3042 = vunpack.c.l.b16 %v358
        %v3043 = vunpack.c.h.b16 %v358
        %v3044 = vunpack.c.l.b16 %v359
        %v3045 = vunpack.c.h.b16 %v359
        %v3046 = vunpack.c.l.b16 %v360
        %v3047 = vunpack.c.h.b16 %v360
        %v3048 = vunpack.c.l.b16 %v361
        %v3049 = vunpack.c.h.b16 %v361
        %v3050 = vunpack.c.l.b16 %v362
        %v3051 = vunpack.c.h.b16 %v362
        %v3052 = vunpack.c.l.b16 %v363
        %v3053 = vunpack.c.h.b16 %v363
        %v3054 = vunpack.c.l.b16 %v364
        %v3055 = vunpack.c.l.b16 %v365
        %v3056 = vunpack.c.h.b16 %v365
        %v3057 = vunpack.c.l.b16 %v366
        %v3058 = vunpack.c.h.b16 %v366
        %v3059 = vunpack.c.l.b16 %v367
        %v3060 = vunpack.c.h.b16 %v367
        %v3061 = vunpack.c.l.b16 %v368
        %v3062 = vunpack.c.h.b16 %v368
        %v3063 = vunpack.c.l.b16 %v369
        %v3064 = vunpack.c.h.b16 %v369
        %v3065 = vunpack.c.l.b16 %v370
        %v3066 = vunpack.c.h.b16 %v370
        %v3067 = vunpack.c.l.b16 %v371
        %v3068 = vunpack.c.h.b16 %v371
        %v3069 = vunpack.c.l.b16 %v372
        %v3070 = vunpack.c.h.b16 %v372
        %v3071 = vunpack.c.l.b16 %v373
        %v3072 = vunpack.c.h.b16 %v373
        %v3073 = vunpack.c.l.b16 %v374
        %v3074 = vunpack.c.l.b16 %v375
        %v3075 = vunpack.c.h.b16 %v375
        %v3076 = vunpack.c.l.b16 %v376
        %v3077 = vunpack.c.h.b16 %v376
        %v3078 = vunpack.c.l.b16 %v377
        %v3079 = vunpack.c.h.b16 %v377
        %v3080 = vunpack.c.l.b16 %v378
        %v3081 = vunpack.c.h.b16 %v378
        %v3082 = vunpack.c.l.b16 %v379
        %v3083 = vunpack.c.h.b16 %v379
        %v3084 = vunpack.c.l.b16 %v380
        %v3085 = vunpack.c.h.b16 %v380
        %v3086 = vunpack.c.l.b16 %v381
        %v3087 = vunpack.c.h.b16 %v381
        %v3088 = vunpack.c.l.b16 %v382
        %v3089 = vunpack.c.h.b16 %v382
        %v3090 = vunpack.c.l.b16 %v383
        %v3091 = vunpack.c.h.b16 %v383
        %v3092 = vunpack.c.l.b16 %v384
        %v3093 = vunpack.c.l.b16 %v385
        %v3094 = vunpack.c.h.b16 %v385
        %v3095 = vunpack.c.l.b16 %v386
        %v3096 = vunpack.c.h.b16 %v386
        %v3097 = vunpack.c.l.b16 %v387
        %v3098 = vunpack.c.h.b16 %v387
        %v3099 = vunpack.c.l.b16 %v388
        %v3100 = vunpack.c.h.b16 %v388
        %v3101 = vunpack.c.l.b16 %v389
        %v3102 = vunpack.c.h.b16 %v389
        %v3103 = vunpack.c.l.b16 %v390
        %v3104 = vunpack.c.h.b16 %v390
        %v3105 = vunpack.c.l.b16 %v391
        %v3106 = vunpack.c.h.b16 %v391
        %v3107 = vunpack.c.l.b16 %v392
        %v3108 = vunpack.c.h.b16 %v392
        %v3109 = vunpack.c.l.b16 %v393
        %v3110 = vunpack.c.h.b16 %v393
        %v3111 = vunpack.c.l.b16 %v394
        %v3112 = vunpack.c.l.b16 %v395
        %v3113 = vunpack.c.h.b16 %v395
        %v3114 = vunpack.c.l.b16 %v396
        %v3115 = vunpack.c.h.b16 %v396
        %v3116 = vunpack.c.l.b16 %v397
        %v3117 = vunpack.c.h.b16 %v397
        %v3118 = vunpack.c.l.b16 %v398
        %v3119 = vunpack.c.h.b16 %v398
        %v3120 = vunpack.c.l.b16 %v399
        %v3121 = vunpack.c.h.b16 %v399
        %v3122 = vunpack.c.l.b16 %v400
        %v3123 = vunpack.c.h.b16 %v400
        %v3124 = vunpack.c.l.b16 %v401
        %v3125 = vunpack.c.h.b16 %v401
        %v3126 = vunpack.c.l.b16 %v402
        %v3127 = vunpack.c.h.b16 %v402
        %v3128 = vunpack.c.l.b16 %v403
        %v3129 = vunpack.c.h.b16 %v403
        %v3130 = vunpack.c.l.b16 %v404
        %v3131 = vunpack.c.l.b16 %v405
        %v3132 = vunpack.c.h.b16 %v405
        %v3133 = vunpack.c.l.b16 %v406
        %v3134 = vunpack.c.h.b16 %v406
        %v3135 = vunpack.c.l.b16 %v407
        %v3136 = vunpack.c.h.b16 %v407
        %v3137 = vunpack.c.l.b16 %v408
        %v3138 = vunpack.c.h.b16 %v408
        %v3139 = vunpack.c.l.b16 %v409
        %v3140 = vunpack.c.h.b16 %v409
        %v3141 = vunpack.c.l.b16 %v410
        %v3142 = vunpack.c.h.b16 %v410
        %v3143 = vunpack.c.l.b16 %v411
        %v3144 = vunpack.c.h.b16 %v411
        %v3145 = vunpack.c.l.b16 %v412
        %v3146 = vunpack.c.h.b16 %v412
        %v3147 = vunpack.c.l.b16 %v413
        %v3148 = vunpack.c.h.b16 %v413
        %v3149 = vunpack.c.l.b16 %v414
        %v3150 = vunpack.c.l.b16 %v415
        %v3151 = vunpack.c.h.b16 %v415
        %v3152 = vunpack.c.l.b16 %v416
        %v3153 = vunpack.c.h.b16 %v416
        %v3154 = vunpack.c.l.b16 %v417
        %v3155 = vunpack.c.h.b16 %v417
        %v3156 = vunpack.c.l.b16 %v418
        %v3157 = vunpack.c.h.b16 %v418
        %v3158 = vunpack.c.l.b16 %v419
        %v3159 = vunpack.c.h.b16 %v419
        %v3160 = vunpack.c.l.b16 %v420
        %v3161 = vunpack.c.h.b16 %v420
        %v3162 = vunpack.c.l.b16 %v421
        %v3163 = vunpack.c.h.b16 %v421
        %v3164 = vunpack.c.l.b16 %v422
        %v3165 = vunpack.c.h.b16 %v422
        %v3166 = vunpack.c.l.b16 %v423
        %v3167 = vunpack.c.h.b16 %v423
        %v3168 = vunpack.c.l.b16 %v424
        %v3169 = vunpack.c.l.b16 %v425
        %v3170 = vunpack.c.h.b16 %v425
        %v3171 = vunpack.c.l.b16 %v426
        %v3172 = vunpack.c.h.b16 %v426
        %v3173 = vunpack.c.l.b16 %v427
        %v3174 = vunpack.c.h.b16 %v427
        %v3175 = vunpack.c.l.b16 %v428
        %v3176 = vunpack.c.h.b16 %v428
        %v3177 = vunpack.c.l.b16 %v429
        %v3178 = vunpack.c.h.b16 %v429
        %v3179 = vunpack.c.l.b16 %v430
        %v3180 = vunpack.c.h.b16 %v430
        %v3181 = vunpack.c.l.b16 %v431
        %v3182 = vunpack.c.h.b16 %v431
        %v3183 = vunpack.c.l.b16 %v432
        %v3184 = vunpack.c.h.b16 %v432
        %v3185 = vunpack.c.l.b16 %v433
        %v3186 = vunpack.c.h.b16 %v433
        %v3187 = vunpack.c.l.b16 %v434
        %v3188 = vunpack.c.l.b16 %v435
        %v3189 = vunpack.c.h.b16 %v435
        %v3190 = vunpack.c.l.b16 %v436
        %v3191 = vunpack.c.h.b16 %v436
        %v3192 = vunpack.c.l.b16 %v437
        %v3193 = vunpack.c.h.b16 %v437
        %v3194 = vunpack.c.l.b16 %v438
        %v3195 = vunpack.c.h.b16 %v438
        %v3196 = vunpack.c.l.b16 %v439
        %v3197 = vunpack.c.h.b16 %v439
        %v3198 = vunpack.c.l.b16 %v440
        %v3199 = vunpack.c.h.b16 %v440
        %v3200 = vunpack.c.l.b16 %v441
        %v3201 = vunpack.c.h.b16 %v441
        %v3202 = vunpack.c.l.b16 %v442
        %v3203 = vunpack.c.h.b16 %v442
        %v3204 = vunpack.c.l.b16 %v443
        %v3205 = vunpack.c.h.b16 %v443
        %v3206 = vunpack.c.l.b16 %v444
        %v3207 = vunpack.c.l.b16 %v445
        %v3208 = vunpack.c.h.b16 %v445
        %v3209 = vunpack.c.l.b16 %v446
        %v3210 = vunpack.c.h.b16 %v446
        %v3211 = vunpack.c.l.b16 %v447
        %v3212 = vunpack.c.h.b16 %v447
        %v3213 = vunpack.c.l.b16 %v448
        %v3214 = vunpack.c.h.b16 %v448
        %v3215 = vunpack.c.l.b16 %v449
        %v3216 = vunpack.c.h.b16 %v449
        %v3217 = vunpack.c.l.b16 %v450
        %v3218 = vunpack.c.h.b16 %v450
        %v3219 = vunpack.c.l.b16 %v451
        %v3220 = vunpack.c.h.b16 %v451
        %v3221 = vunpack.c.l.b16 %v452
        %v3222 = vunpack.c.h.b16 %v452
        %v3223 = vunpack.c.l.b16 %v453
        %v3224 = vunpack.c.h.b16 %v453
        %v3225 = vunpack.c.l.b16 %v454
        %v3226 = vunpack.c.l.b16 %v455
        %v3227 = vunpack.c.h.b16 %v455
        %v3228 = vunpack.c.l.b16 %v456
        %v3229 = vunpack.c.h.b16 %v456
        %v3230 = vunpack.c.l.b16 %v457
        %v3231 = vunpack.c.h.b16 %v457
        %v3232 = vunpack.c.l.b16 %v458
        %v3233 = vunpack.c.h.b16 %v458
        %v3234 = vunpack.c.l.b16 %v459
        %v3235 = vunpack.c.h.b16 %v459
        %v3236 = vunpack.c.l.b16 %v460
        %v3237 = vunpack.c.h.b16 %v460
        %v3238 = vunpack.c.l.b16 %v461
        %v3239 = vunpack.c.h.b16 %v461
        %v3240 = vunpack.c.l.b16 %v462
        %v3241 = vunpack.c.h.b16 %v462
        %v3242 = vunpack.c.l.b16 %v463
        %v3243 = vunpack.c.h.b16 %v463
        %v3244 = vunpack.c.l.b16 %v464
        %v3245 = vunpack.c.l.b16 %v465
        %v3246 = vunpack.c.h.b16 %v465
        %v3247 = vunpack.c.l.b16 %v466
        %v3248 = vunpack.c.h.b16 %v466
        %v3249 = vunpack.c.l.b16 %v467
        %v3250 = vunpack.c.h.b16 %v467
        %v3251 = vunpack.c.l.b16 %v468
        %v3252 = vunpack.c.h.b16 %v468
        %v3253 = vunpack.c.l.b16 %v469
        %v3254 = vunpack.c.h.b16 %v469
        %v3255 = vunpack.c.l.b16 %v470
        %v3256 = vunpack.c.h.b16 %v470
        %v3257 = vunpack.c.l.b16 %v471
        %v3258 = vunpack.c.h.b16 %v471
        %v3259 = vunpack.c.l.b16 %v472
        %v3260 = vunpack.c.h.b16 %v472
        %v3261 = vunpack.c.l.b16 %v473
        %v3262 = vunpack.c.h.b16 %v473
        %v3263 = vunpack.c.l.b16 %v474
        %v3264 = vunpack.c.l.b16 %v475
        %v3265 = vunpack.c.h.b16 %v475
        %v3266 = vunpack.c.l.b16 %v476
        %v3267 = vunpack.c.h.b16 %v476
        %v3268 = vunpack.c.l.b16 %v477
        %v3269 = vunpack.c.h.b16 %v477
        %v3270 = vunpack.c.l.b16 %v478
        %v3271 = vunpack.c.h.b16 %v478
        %v3272 = vunpack.c.l.b16 %v479
        %v3273 = vunpack.c.h.b16 %v479
        %v3274 = vunpack.c.l.b16 %v480
        %v3275 = vunpack.c.h.b16 %v480
        %v3276 = vunpack.c.l.b16 %v481
        %v3277 = vunpack.c.h.b16 %v481
        %v3278 = vunpack.c.l.b16 %v482
        %v3279 = vunpack.c.h.b16 %v482
        %v3280 = vunpack.c.l.b16 %v483
        %v3281 = vunpack.c.h.b16 %v483
        %v3282 = vunpack.c.l.b16 %v484
        %v3283 = vunpack.c.l.b16 %v485
        %v3284 = vunpack.c.h.b16 %v485
        %v3285 = vunpack.c.l.b16 %v486
        %v3286 = vunpack.c.h.b16 %v486
        %v3287 = vunpack.c.l.b16 %v487
        %v3288 = vunpack.c.h.b16 %v487
        %v3289 = vunpack.c.l.b16 %v488
        %v3290 = vunpack.c.h.b16 %v488
        %v3291 = vunpack.c.l.b16 %v489
        %v3292 = vunpack.c.h.b16 %v489
        %v3293 = vunpack.c.l.b16 %v490
        %v3294 = vunpack.c.h.b16 %v490
        %v3295 = vunpack.c.l.b16 %v491
        %v3296 = vunpack.c.h.b16 %v491
        %v3297 = vunpack.c.l.b16 %v492
        %v3298 = vunpack.c.h.b16 %v492
        %v3299 = vunpack.c.l.b16 %v493
        %v3300 = vunpack.c.h.b16 %v493
        %v3301 = vunpack.c.l.b16 %v494
        %v3302 = vunpack.c.l.b16 %v495
        %v3303 = vunpack.c.h.b16 %v495
        %v3304 = vunpack.c.l.b16 %v496
        %v3305 = vunpack.c.h.b16 %v496
        %v3306 = vunpack.c.l.b16 %v497
        %v3307 = vunpack.c.h.b16 %v497
        %v3308 = vunpack.c.l.b16 %v498
        %v3309 = vunpack.c.h.b16 %v498
        %v3310 = vunpack.c.l.b16 %v499
        %v3311 = vunpack.c.h.b16 %v499
        %v3312 = vunpack.c.l.b16 %v500
        %v3313 = vunpack.c.h.b16 %v500
        %v3314 = vunpack.c.l.b16 %v501
        %v3315 = vunpack.c.h.b16 %v501
        %v3316 = vunpack.c.l.b16 %v502
        %v3317 = vunpack.c.h.b16 %v502
        %v3318 = vunpack.c.l.b16 %v503
        %v3319 = vunpack.c.h.b16 %v503
        %v3320 = vunpack.c.l.b16 %v504
        %v3321 = vunpack.c.l.b16 %v505
        %v3322 = vunpack.c.h.b16 %v505
        %v3323 = vunpack.c.l.b16 %v506
        %v3324 = vunpack.c.h.b16 %v506
        %v3325 = vunpack.c.l.b16 %v507
        %v3326 = vunpack.c.h.b16 %v507
        %v3327 = vunpack.c.l.b16 %v508
        %v3328 = vunpack.c.h.b16 %v508
        %v3329 = vunpack.c.l.b16 %v509
        %v3330 = vunpack.c.h.b16 %v509
        %v3331 = vunpack.c.l.b16 %v510
        %v3332 = vunpack.c.h.b16 %v510
        %v3333 = vunpack.c.l.b16 %v511
        %v3334 = vunpack.c.h.b16 %v511
        %v3335 = vunpack.c.l.b16 %v512
        %v3336 = vunpack.c.h.b16 %v512
        %v3337 = vunpack.c.l.b16 %v513
        %v3338 = vunpack.c.h.b16 %v513
        %v3339 = vunpack.c.l.b16 %v514
        %v3340 = vunpack.c.l.b16 %v515
        %v3341 = vunpack.c.h.b16 %v515
        %v3342 = vunpack.c.l.b16 %v516
        %v3343 = vunpack.c.h.b16 %v516
        %v3344 = vunpack.c.l.b16 %v517
        %v3345 = vunpack.c.h.b16 %v517
        %v3346 = vunpack.c.l.b16 %v518
        %v3347 = vunpack.c.h.b16 %v518
        %v3348 = vunpack.c.l.b16 %v519
        %v3349 = vunpack.c.h.b16 %v519
        %v3350 = vunpack.c.l.b16 %v520
        %v3351 = vunpack.c.h.b16 %v520
        %v3352 = vunpack.c.l.b16 %v521
        %v3353 = vunpack.c.h.b16 %v521
        %v3354 = vunpack.c.l.b16 %v522
        %v3355 = vunpack.c.h.b16 %v522
        %v3356 = vunpack.c.l.b16 %v523
        %v3357 = vunpack.c.h.b16 %v523
        %v3358 = vunpack.c.l.b16 %v524
        %v3359 = vunpack.c.l.b16 %v525
        %v3360 = vunpack.c.h.b16 %v525
        %v3361 = vunpack.c.l.b16 %v526
        %v3362 = vunpack.c.h.b16 %v526
        %v3363 = vunpack.c.l.b16 %v527
        %v3364 = vunpack.c.h.b16 %v527
        %v3365 = vunpack.c.l.b16 %v528
        %v3366 = vunpack.c.h.b16 %v528
        %v3367 = vunpack.c.l.b16 %v529
        %v3368 = vunpack.c.h.b16 %v529
        %v3369 = vunpack.c.l.b16 %v530
        %v3370 = vunpack.c.h.b16 %v530
        %v3371 = vunpack.c.l.b16 %v531
        %v3372 = vunpack.c.h.b16 %v531
        %v3373 = vunpack.c.l.b16 %v532
        %v3374 = vunpack.c.h.b16 %v532
        %v3375 = vunpack.c.l.b16 %v533
        %v3376 = vunpack.c.h.b16 %v533
        %v3377 = vunpack.c.l.b16 %v534
        %v3378 = vunpack.c.l.b16 %v535
        %v3379 = vunpack.c.h.b16 %v535
        %v3380 = vunpack.c.l.b16 %v536
        %v3381 = vunpack.c.h.b16 %v536
        %v3382 = vunpack.c.l.b16 %v537
        %v3383 = vunpack.c.h.b16 %v537
        %v3384 = vunpack.c.l.b16 %v538
        %v3385 = vunpack.c.h.b16 %v538
        %v3386 = vunpack.c.l.b16 %v539
        %v3387 = vunpack.c.h.b16 %v539
        %v3388 = vunpack.c.l.b16 %v540
        %v3389 = vunpack.c.h.b16 %v540
        %v3390 = vunpack.c.l.b16 %v541
        %v3391 = vunpack.c.h.b16 %v541
        %v3392 = vunpack.c.l.b16 %v542
        %v3393 = vunpack.c.h.b16 %v542
        %v3394 = vunpack.c.l.b16 %v543
        %v3395 = vunpack.c.h.b16 %v543
        %v3396 = vunpack.c.l.b16 %v544
        %v3397 = vunpack.c.l.b16 %v545
        %v3398 = vunpack.c.h.b16 %v545
        %v3399 = vunpack.c.l.b16 %v546
        %v3400 = vunpack.c.h.b16 %v546
        %v3401 = vunpack.c.l.b16 %v547
        %v3402 = vunpack.c.h.b16 %v547
        %v3403 = vunpack.c.l.b16 %v548
        %v3404 = vunpack.c.h.b16 %v548
        %v3405 = vunpack.c.l.b16 %v549
        %v3406 = vunpack.c.h.b16 %v549
        %v3407 = vunpack.c.l.b16 %v550
        %v3408 = vunpack.c.h.b16 %v550
        %v3409 = vunpack.c.l.b16 %v551
        %v3410 = vunpack.c.h.b16 %v551
        %v3411 = vunpack.c.l.b16 %v552
        %v3412 = vunpack.c.h.b16 %v552
        %v3413 = vunpack.c.l.b16 %v553
        %v3414 = vunpack.c.h.b16 %v553
        %v3415 = vunpack.c.l.b16 %v554
        %v3416 = vunpack.c.l.b16 %v555
        %v3417 = vunpack.c.h.b16 %v555
        %v3418 = vunpack.c.l.b16 %v556
        %v3419 = vunpack.c.h.b16 %v556
        %v3420 = vunpack.c.l.b16 %v557
        %v3421 = vunpack.c.h.b16 %v557
        %v3422 = vunpack.c.l.b16 %v558
        %v3423 = vunpack.c.h.b16 %v558
        %v3424 = vunpack.c.l.b16 %v559
        %v3425 = vunpack.c.h.b16 %v559
        %v3426 = vunpack.c.l.b16 %v560
        %v3427 = vunpack.c.h.b16 %v560
        %v3428 = vunpack.c.l.b16 %v561
        %v3429 = vunpack.c.h.b16 %v561
        %v3430 = vunpack.c.l.b16 %v562
        %v3431 = vunpack.c.h.b16 %v562
        %v3432 = vunpack.c.l.b16 %v563
        %v3433 = vunpack.c.h.b16 %v563
        %v3434 = vunpack.c.l.b16 %v564
        %v3435 = vunpack.c.l.b16 %v565
        %v3436 = vunpack.c.h.b16 %v565
        %v3437 = vunpack.c.l.b16 %v566
        %v3438 = vunpack.c.h.b16 %v566
        %v3439 = vunpack.c.l.b16 %v567
        %v3440 = vunpack.c.h.b16 %v567
        %v3441 = vunpack.c.l.b16 %v568
        %v3442 = vunpack.c.h.b16 %v568
        %v3443 = vunpack.c.l.b16 %v569
        %v3444 = vunpack.c.h.b16 %v569
        %v3445 = vunpack.c.l.b16 %v570
        %v3446 = vunpack.c.h.b16 %v570
        %v3447 = vunpack.c.l.b16 %v571
        %v3448 = vunpack.c.h.b16 %v571
        %v3449 = vunpack.c.l.b16 %v572
        %v3450 = vunpack.c.h.b16 %v572
        %v3451 = vunpack.c.l.b16 %v573
        %v3452 = vunpack.c.h.b16 %v573
        %v3453 = vunpack.c.l.b16 %v574
        %v3454 = vunpack.c.l.b16 %v575
        %v3455 = vunpack.c.h.b16 %v575
        %v3456 = vunpack.c.l.b16 %v576
        %v3457 = vunpack.c.h.b16 %v576
        %v3458 = vunpack.c.l.b16 %v577
        %v3459 = vunpack.c.h.b16 %v577
        %v3460 = vunpack.c.l.b16 %v578
        %v3461 = vunpack.c.h.b16 %v578
        %v3462 = vunpack.c.l.b16 %v579
        %v3463 = vunpack.c.h.b16 %v579
        %v3464 = vunpack.c.l.b16 %v580
        %v3465 = vunpack.c.h.b16 %v580
        %v3466 = vunpack.c.l.b16 %v581
        %v3467 = vunpack.c.h.b16 %v581
        %v3468 = vunpack.c.l.b16 %v582
        %v3469 = vunpack.c.h.b16 %v582
        %v3470 = vunpack.c.l.b16 %v583
        %v3471 = vunpack.c.h.b16 %v583
        %v3472 = vunpack.c.l.b16 %v584
        %v3473 = vunpack.c.l.b16 %v585
        %v3474 = vunpack.c.h.b16 %v585
        %v3475 = vunpack.c.l.b16 %v586
        %v3476 = vunpack.c.h.b16 %v586
        %v3477 = vunpack.c.l.b16 %v587
        %v3478 = vunpack.c.h.b16 %v587
        %v3479 = vunpack.c.l.b16 %v588
        %v3480 = vunpack.c.h.b16 %v588
        %v3481 = vunpack.c.l.b16 %v589
        %v3482 = vunpack.c.h.b16 %v589
        %v3483 = vunpack.c.l.b16 %v590
        %v3484 = vunpack.c.h.b16 %v590
        %v3485 = vunpack.c.l.b16 %v591
        %v3486 = vunpack.c.h.b16 %v591
        %v3487 = vunpack.c.l.b16 %v592
        %v3488 = vunpack.c.h.b16 %v592
        %v3489 = vunpack.c.l.b16 %v593
        %v3490 = vunpack.c.h.b16 %v593
        %v3491 = vunpack.c.l.b16 %v594
        %v3492 = vunpack.c.l.b16 %v595
        %v3493 = vunpack.c.h.b16 %v595
        %v3494 = vunpack.c.l.b16 %v596
        %v3495 = vunpack.c.h.b16 %v596
        %v3496 = vunpack.c.l.b16 %v597
        %v3497 = vunpack.c.h.b16 %v597
        %v3498 = vunpack.c.l.b16 %v598
        %v3499 = vunpack.c.h.b16 %v598
        %v3500 = vunpack.c.l.b16 %v599
        %v3501 = vunpack.c.h.b16 %v599
        %v3502 = vunpack.c.l.b16 %v600
        %v3503 = vunpack.c.h.b16 %v600
        %v3504 = vunpack.c.l.b16 %v601
        %v3505 = vunpack.c.h.b16 %v601
        %v3506 = vunpack.c.l.b16 %v602
        %v3507 = vunpack.c.h.b16 %v602
        %v3508 = vunpack.c.l.b16 %v603
        %v3509 = vunpack.c.h.b16 %v603
        %v3510 = vunpack.c.l.b16 %v604
        %v3511 = vunpack.c.l.b16 %v605
        %v3512 = vunpack.c.h.b16 %v605
        %v3513 = vunpack.c.l.b16 %v606
        %v3514 = vunpack.c.h.b16 %v606
        %v3515 = vunpack.c.l.b16 %v607
        %v3516 = vunpack.c.h.b16 %v607
        %v3517 = vunpack.c.l.b16 %v608
        %v3518 = vunpack.c.h.b16 %v608
        %v3519 = vunpack.c.l.b16 %v609
        %v3520 = vunpack.c.h.b16 %v609
        %v3521 = vunpack.c.l.b16 %v610
        %v3522 = vunpack.c.h.b16 %v610
        %v3523 = vunpack.c.l.b16 %v611
        %v3524 = vunpack.c.h.b16 %v611
        %v3525 = vunpack.c.l.b16 %v612
        %v3526 = vunpack.c.h.b16 %v612
        %v3527 = vunpack.c.l.b16 %v613
        %v3528 = vunpack.c.h.b16 %v613
        %v3529 = vunpack.c.l.b16 %v614
        %v3530 = vunpack.c.l.b16 %v615
        %v3531 = vunpack.c.h.b16 %v615
        %v3532 = vunpack.c.l.b16 %v616
        %v3533 = vunpack.c.h.b16 %v616
        %v3534 = vunpack.c.l.b16 %v617
        %v3535 = vunpack.c.h.b16 %v617
        %v3536 = vunpack.c.l.b16 %v618
        %v3537 = vunpack.c.h.b16 %v618
        %v3538 = vunpack.c.l.b16 %v619
        %v3539 = vunpack.c.h.b16 %v619
        %v3540 = vunpack.c.l.b16 %v620
        %v3541 = vunpack.c.h.b16 %v620
        %v3542 = vunpack.c.l.b16 %v621
        %v3543 = vunpack.c.h.b16 %v621
        %v3544 = vunpack.c.l.b16 %v622
        %v3545 = vunpack.c.h.b16 %v622
        %v3546 = vunpack.c.l.b16 %v623
        %v3547 = vunpack.c.h.b16 %v623
        %v3548 = vunpack.c.l.b16 %v624
        %v3549 = vunpack.c.l.b16 %v625
        %v3550 = vunpack.c.h.b16 %v625
        %v3551 = vunpack.c.l.b16 %v626
        %v3552 = vunpack.c.h.b16 %v626
        %v3553 = vunpack.c.l.b16 %v627
        %v3554 = vunpack.c.h.b16 %v627
        %v3555 = vunpack.c.l.b16 %v628
        %v3556 = vunpack.c.h.b16 %v628
        %v3557 = vunpack.c.l.b16 %v629
        %v3558 = vunpack.c.h.b16 %v629
        %v3559 = vunpack.c.l.b16 %v630
        %v3560 = vunpack.c.h.b16 %v630
        %v3561 = vunpack.c.l.b16 %v631
        %v3562 = vunpack.c.h.b16 %v631
        %v3563 = vunpack.c.l.b16 %v632
        %v3564 = vunpack.c.h.b16 %v632
        %v3565 = vunpack.c.l.b16 %v633
        %v3566 = vunpack.c.h.b16 %v633
        %v3567 = vunpack.c.l.b16 %v634
        %v3568 = vunpack.c.l.b16 %v635
        %v3569 = vunpack.c.h.b16 %v635
        %v3570 = vunpack.c.l.b16 %v636
        %v3571 = vunpack.c.h.b16 %v636
        %v3572 = vunpack.c.l.b16 %v637
        %v3573 = vunpack.c.h.b16 %v637
        %v3574 = vunpack.c.l.b16 %v638
        %v3575 = vunpack.c.h.b16 %v638
        %v3576 = vunpack.c.l.b16 %v639
        %v3577 = vunpack.c.h.b16 %v639
        %v3578 = vunpack.c.l.b16 %v640
        %v3579 = vunpack.c.h.b16 %v640
        %v3580 = vunpack.c.l.b16 %v641
        %v3581 = vunpack.c.h.b16 %v641
        %v3582 = vunpack.c.l.b16 %v642
        %v3583 = vunpack.c.h.b16 %v642
        %v3584 = vunpack.c.l.b16 %v643
        %v3585 = vunpack.c.h.b16 %v643
        %v3586 = vunpack.c.l.b16 %v644
        %v3587 = vunpack.c.l.b16 %v645
        %v3588 = vunpack.c.h.b16 %v645
        %v3589 = vunpack.c.l.b16 %v646
        %v3590 = vunpack.c.h.b16 %v646
        %v3591 = vunpack.c.l.b16 %v647
        %v3592 = vunpack.c.h.b16 %v647
        %v3593 = vunpack.c.l.b16 %v648
        %v3594 = vunpack.c.h.b16 %v648
        %v3595 = vunpack.c.l.b16 %v649
        %v3596 = vunpack.c.h.b16 %v649
        %v3597 = vunpack.c.l.b16 %v650
        %v3598 = vunpack.c.h.b16 %v650
        %v3599 = vunpack.c.l.b16 %v651
        %v3600 = vunpack.c.h.b16 %v651
        %v3601 = vunpack.c.l.b16 %v652
        %v3602 = vunpack.c.h.b16 %v652
        %v3603 = vunpack.c.l.b16 %v653
        %v3604 = vunpack.c.h.b16 %v653
        %v3605 = vunpack.c.l.b16 %v654
        %v3606 = vunpack.c.l.b16 %v655
        %v3607 = vunpack.c.h.b16 %v655
        %v3608 = vunpack.c.l.b16 %v656
        %v3609 = vunpack.c.h.b16 %v656
        %v3610 = vunpack.c.l.b16 %v657
        %v3611 = vunpack.c.h.b16 %v657
        %v3612 = vunpack.c.l.b16 %v658
        %v3613 = vunpack.c.h.b16 %v658
        %v3614 = vunpack.c.l.b16 %v659
        %v3615 = vunpack.c.h.b16 %v659
        %v3616 = vunpack.c.l.b16 %v660
        %v3617 = vunpack.c.h.b16 %v660
        %v3618 = vunpack.c.l.b16 %v661
        %v3619 = vunpack.c.h.b16 %v661
        %v3620 = vunpack.c.l.b16 %v662
        %v3621 = vunpack.c.h.b16 %v662
        %v3622 = vunpack.c.l.b16 %v663
        %v3623 = vunpack.c.h.b16 %v663
        %v3624 = vunpack.c.l.b16 %v664
        %v3625 = vunpack.c.l.b16 %v665
        %v3626 = vunpack.c.h.b16 %v665
        %v3627 = vunpack.c.l.b16 %v666
        %v3628 = vunpack.c.h.b16 %v666
        %v3629 = vunpack.c.l.b16 %v667
        %v3630 = vunpack.c.h.b16 %v667
        %v3631 = vunpack.c.l.b16 %v668
        %v3632 = vunpack.c.h.b16 %v668
        %v3633 = vunpack.c.l.b16 %v669
        %v3634 = vunpack.c.h.b16 %v669
        %v3635 = vunpack.c.l.b16 %v670
        %v3636 = vunpack.c.h.b16 %v670
        %v3637 = vunpack.c.l.b16 %v671
        %v3638 = vunpack.c.h.b16 %v671
        %v3639 = vunpack.c.l.b16 %v672
        %v3640 = vunpack.c.h.b16 %v672
        %v3641 = vunpack.c.l.b16 %v673
        %v3642 = vunpack.c.h.b16 %v673
        %v3643 = vunpack.c.l.b16 %v674
        %v3644 = vunpack.c.l.b16 %v675
        %v3645 = vunpack.c.h.b16 %v675
        %v3646 = vunpack.c.l.b16 %v676
        %v3647 = vunpack.c.h.b16 %v676
        %v3648 = vunpack.c.l.b16 %v677
        %v3649 = vunpack.c.h.b16 %v677
        %v3650 = vunpack.c.l.b16 %v678
        %v3651 = vunpack.c.h.b16 %v678
        %v3652 = vunpack.c.l.b16 %v679
        %v3653 = vunpack.c.h.b16 %v679
        %v3654 = vunpack.c.l.b16 %v680
        %v3655 = vunpack.c.h.b16 %v680
        %v3656 = vunpack.c.l.b16 %v681
        %v3657 = vunpack.c.h.b16 %v681
        %v3658 = vunpack.c.l.b16 %v682
        %v3659 = vunpack.c.h.b16 %v682
        %v3660 = vunpack.c.l.b16 %v683
        %v3661 = vunpack.c.h.b16 %v683
        %v3662 = vunpack.c.l.b16 %v684
        %v3663 = vunpack.c.l.b16 %v685
        %v3664 = vunpack.c.h.b16 %v685
        %v3665 = vunpack.c.l.b16 %v686
        %v3666 = vunpack.c.h.b16 %v686
        %v3667 = vunpack.c.l.b16 %v687
        %v3668 = vunpack.c.h.b16 %v687
        %v3669 = vunpack.c.l.b16 %v688
        %v3670 = vunpack.c.h.b16 %v688
        %v3671 = vunpack.c.l.b16 %v689
        %v3672 = vunpack.c.h.b16 %v689
        %v3673 = vunpack.c.l.b16 %v690
        %v3674 = vunpack.c.h.b16 %v690
        %v3675 = vunpack.c.l.b16 %v691
        %v3676 = vunpack.c.h.b16 %v691
        %v3677 = vunpack.c.l.b16 %v692
        %v3678 = vunpack.c.h.b16 %v692
        %v3679 = vunpack.c.l.b16 %v693
        %v3680 = vunpack.c.h.b16 %v693
        %v3681 = vunpack.c.l.b16 %v694
        %v3682 = vunpack.c.l.b16 %v695
        %v3683 = vunpack.c.h.b16 %v695
        %v3684 = vunpack.c.l.b16 %v696
        %v3685 = vunpack.c.h.b16 %v696
        %v3686 = vunpack.c.l.b16 %v697
        %v3687 = vunpack.c.h.b16 %v697
        %v3688 = vunpack.c.l.b16 %v698
        %v3689 = vunpack.c.h.b16 %v698
        %v3690 = vunpack.c.l.b16 %v699
        %v3691 = vunpack.c.h.b16 %v699
        %v3692 = vunpack.c.l.b16 %v700
        %v3693 = vunpack.c.h.b16 %v700
        %v3694 = vunpack.c.l.b16 %v701
        %v3695 = vunpack.c.h.b16 %v701
        %v3696 = vunpack.c.l.b16 %v702
        %v3697 = vunpack.c.h.b16 %v702
        %v3698 = vunpack.c.l.b16 %v703
        %v3699 = vunpack.c.h.b16 %v703
        %v3700 = vunpack.c.l.b16 %v704
        %v3701 = vunpack.c.l.b16 %v705
        %v3702 = vunpack.c.h.b16 %v705
        %v3703 = vunpack.c.l.b16 %v706
        %v3704 = vunpack.c.h.b16 %v706
        %v3705 = vunpack.c.l.b16 %v707
        %v3706 = vunpack.c.h.b16 %v707
        %v3707 = vunpack.c.l.b16 %v708
        %v3708 = vunpack.c.h.b16 %v708
        %v3709 = vunpack.c.l.b16 %v709
        %v3710 = vunpack.c.h.b16 %v709
        %v3711 = vunpack.c.l.b16 %v710
        %v3712 = vunpack.c.h.b16 %v710
        %v3713 = vunpack.c.l.b16 %v711
        %v3714 = vunpack.c.h.b16 %v711
        %v3715 = vunpack.c.l.b16 %v712
        %v3716 = vunpack.c.h.b16 %v712
        %v3717 = vunpack.c.l.b16 %v713
        %v3718 = vunpack.c.h.b16 %v713
        %v3719 = vunpack.c.l.b16 %v714
        %v3720 = vunpack.c.l.b16 %v715
        %v3721 = vunpack.c.h.b16 %v715
        %v3722 = vunpack.c.l.b16 %v716
        %v3723 = vunpack.c.h.b16 %v716
        %v3724 = vunpack.c.l.b16 %v717
        %v3725 = vunpack.c.h.b16 %v717
        %v3726 = vunpack.c.l.b16 %v718
        %v3727 = vunpack.c.h.b16 %v718
        %v3728 = vunpack.c.l.b16 %v719
        %v3729 = vunpack.c.h.b16 %v719
        %v3730 = vunpack.c.l.b16 %v720
        %v3731 = vunpack.c.h.b16 %v720
        %v3732 = vunpack.c.l.b16 %v721
        %v3733 = vunpack.c.h.b16 %v721
        %v3734 = vunpack.c.l.b16 %v722
        %v3735 = vunpack.c.h.b16 %v722
        %v3736 = vunpack.c.l.b16 %v723
        %v3737 = vunpack.c.h.b16 %v723
        %v3738 = vunpack.c.l.b16 %v724
        %v3739 = vunpack.c.l.b16 %v725
        %v3740 = vunpack.c.h.b16 %v725
        %v3741 = vunpack.c.l.b16 %v726
        %v3742 = vunpack.c.h.b16 %v726
        %v3743 = vunpack.c.l.b16 %v727
        %v3744 = vunpack.c.h.b16 %v727
        %v3745 = vunpack.c.l.b16 %v728
        %v3746 = vunpack.c.h.b16 %v728
        %v3747 = vunpack.c.l.b16 %v729
        %v3748 = vunpack.c.h.b16 %v729
        %v3749 = vunpack.c.l.b16 %v730
        %v3750 = vunpack.c.h.b16 %v730
        %v3751 = vunpack.c.l.b16 %v731
        %v3752 = vunpack.c.h.b16 %v731
        %v3753 = vunpack.c.l.b16 %v732
        %v3754 = vunpack.c.h.b16 %v732
        %v3755 = vunpack.c.l.b16 %v733
        %v3756 = vunpack.c.h.b16 %v733
        %v3757 = vunpack.c.l.b16 %v734
        %v3758 = vunpack.c.l.b16 %v735
        %v3759 = vunpack.c.h.b16 %v735
        %v3760 = vunpack.c.l.b16 %v736
        %v3761 = vunpack.c.h.b16 %v736
        %v3762 = vunpack.c.l.b16 %v737
        %v3763 = vunpack.c.h.b16 %v737
        %v3764 = vunpack.c.l.b16 %v738
        %v3765 = vunpack.c.h.b16 %v738
        %v3766 = vunpack.c.l.b16 %v739
        %v3767 = vunpack.c.h.b16 %v739
        %v3768 = vunpack.c.l.b16 %v740
        %v3769 = vunpack.c.h.b16 %v740
        %v3770 = vunpack.c.l.b16 %v741
        %v3771 = vunpack.c.h.b16 %v741
        %v3772 = vunpack.c.l.b16 %v742
        %v3773 = vunpack.c.h.b16 %v742
        %v3774 = vunpack.c.l.b16 %v743
        %v3775 = vunpack.c.h.b16 %v743
        %v3776 = vunpack.c.l.b16 %v744
        %v3777 = vunpack.c.l.b16 %v745
        %v3778 = vunpack.c.h.b16 %v745
        %v3779 = vunpack.c.l.b16 %v746
        %v3780 = vunpack.c.h.b16 %v746
        %v3781 = vunpack.c.l.b16 %v747
        %v3782 = vunpack.c.h.b16 %v747
        %v3783 = vunpack.c.l.b16 %v748
        %v3784 = vunpack.c.h.b16 %v748
        %v3785 = vunpack.c.l.b16 %v749
        %v3786 = vunpack.c.h.b16 %v749
        %v3787 = vunpack.c.l.b16 %v750
        %v3788 = vunpack.c.h.b16 %v750
        %v3789 = vunpack.c.l.b16 %v751
        %v3790 = vunpack.c.h.b16 %v751
        %v3791 = vunpack.c.l.b16 %v752
        %v3792 = vunpack.c.h.b16 %v752
        %v3793 = vunpack.c.l.b16 %v753
        %v3794 = vunpack.c.h.b16 %v753
        %v3795 = vunpack.c.l.b16 %v754
        %v3796 = vunpack.c.l.b16 %v755
        %v3797 = vunpack.c.h.b16 %v755
        %v3798 = vunpack.c.l.b16 %v756
        %v3799 = vunpack.c.h.b16 %v756
        %v3800 = vunpack.c.l.b16 %v757
        %v3801 = vunpack.c.h.b16 %v757
        %v3802 = vunpack.c.l.b16 %v758
        %v3803 = vunpack.c.h.b16 %v758
        %v3804 = vunpack.c.l.b16 %v759
        %v3805 = vunpack.c.h.b16 %v759
        %v3806 = vunpack.c.l.b16 %v760
        %v3807 = vunpack.c.h.b16 %v760
        %v3808 = vunpack.c.l.b16 %v761
        %v3809 = vunpack.c.h.b16 %v761
        %v3810 = vunpack.c.l.b16 %v762
        %v3811 = vunpack.c.h.b16 %v762
        %v3812 = vunpack.c.l.b16 %v763
        %v3813 = vunpack.c.h.b16 %v763
        %v3814 = vunpack.c.l.b16 %v764
        %v3815 = vunpack.c.l.b16 %v765
        %v3816 = vunpack.c.h.b16 %v765
        %v3817 = vunpack.c.l.b16 %v766
        %v3818 = vunpack.c.h.b16 %v766
        %v3819 = vunpack.c.l.b16 %v767
        %v3820 = vunpack.c.h.b16 %v767
        %v3821 = vunpack.c.l.b16 %v768
        %v3822 = vunpack.c.h.b16 %v768
        %v3823 = vunpack.c.l.b16 %v769
        %v3824 = vunpack.c.h.b16 %v769
        %v3825 = vunpack.c.l.b16 %v770
        %v3826 = vunpack.c.h.b16 %v770
        %v3827 = vunpack.c.l.b16 %v771
        %v3828 = vunpack.c.h.b16 %v771
        %v3829 = vunpack.c.l.b16 %v772
        %v3830 = vunpack.c.h.b16 %v772
        %v3831 = vunpack.c.l.b16 %v773
        %v3832 = vunpack.c.h.b16 %v773
        %v3833 = vunpack.c.l.b16 %v774
        %v3834 = vunpack.c.l.b16 %v775
        %v3835 = vunpack.c.h.b16 %v775
        %v3836 = vunpack.c.l.b16 %v776
        %v3837 = vunpack.c.h.b16 %v776
        %v3838 = vunpack.c.l.b16 %v777
        %v3839 = vunpack.c.h.b16 %v777
        %v3840 = vunpack.c.l.b16 %v778
        %v3841 = vunpack.c.h.b16 %v778
        %v3842 = vunpack.c.l.b16 %v779
        %v3843 = vunpack.c.h.b16 %v779
        %v3844 = vunpack.c.l.b16 %v780
        %v3845 = vunpack.c.h.b16 %v780
        %v3846 = vunpack.c.l.b16 %v781
        %v3847 = vunpack.c.h.b16 %v781
        %v3848 = vunpack.c.l.b16 %v782
        %v3849 = vunpack.c.h.b16 %v782
        %v3850 = vunpack.c.l.b16 %v783
        %v3851 = vunpack.c.h.b16 %v783
        %v3852 = vunpack.c.l.b16 %v784
        %v3853 = vunpack.c.l.b16 %v785
        %v3854 = vunpack.c.h.b16 %v785
        %v3855 = vunpack.c.l.b16 %v786
        %v3856 = vunpack.c.h.b16 %v786
        %v3857 = vunpack.c.l.b16 %v787
        %v3858 = vunpack.c.h.b16 %v787
        %v3859 = vunpack.c.l.b16 %v788
        %v3860 = vunpack.c.h.b16 %v788
        %v3861 = vunpack.c.l.b16 %v789
        %v3862 = vunpack.c.h.b16 %v789
        %v3863 = vunpack.c.l.b16 %v790
        %v3864 = vunpack.c.h.b16 %v790
        %v3865 = vunpack.c.l.b16 %v791
        %v3866 = vunpack.c.h.b16 %v791
        %v3867 = vunpack.c.l.b16 %v792
        %v3868 = vunpack.c.h.b16 %v792
        %v3869 = vunpack.c.l.b16 %v793
        %v3870 = vunpack.c.h.b16 %v793
        %v3871 = vunpack.c.l.b16 %v794
        %v3872 = vunpack.c.l.b16 %v795
        %v3873 = vunpack.c.h.b16 %v795
        %v3874 = vunpack.c.l.b16 %v796
        %v3875 = vunpack.c.h.b16 %v796
        %v3876 = vunpack.c.l.b16 %v797
        %v3877 = vunpack.c.h.b16 %v797
        %v3878 = vunpack.c.l.b16 %v798
        %v3879 = vunpack.c.h.b16 %v798
        %v3880 = vunpack.c.l.b16 %v799
        %v3881 = vunpack.c.h.b16 %v799
        %v3882 = vunpack.c.l.b16 %v800
        %v3883 = vunpack.c.h.b16 %v800
        %v3884 = vunpack.c.l.b16 %v801
        %v3885 = vunpack.c.h.b16 %v801
        %v3886 = vunpack.c.l.b16 %v802
        %v3887 = vunpack.c.h.b16 %v802
        %v3888 = vunpack.c.l.b16 %v803
        %v3889 = vunpack.c.h.b16 %v803
        %v3890 = vunpack.c.l.b16 %v804
        %v3891 = vunpack.c.l.b16 %v805
        %v3892 = vunpack.c.h.b16 %v805
        %v3893 = vunpack.c.l.b16 %v806
        %v3894 = vunpack.c.h.b16 %v806
        %v3895 = vunpack.c.l.b16 %v807
        %v3896 = vunpack.c.h.b16 %v807
        %v3897 = vunpack.c.l.b16 %v808
        %v3898 = vunpack.c.h.b16 %v808
        %v3899 = vunpack.c.l.b16 %v809
        %v3900 = vunpack.c.h.b16 %v809
        %v3901 = vunpack.c.l.b16 %v810
        %v3902 = vunpack.c.h.b16 %v810
        %v3903 = vunpack.c.l.b16 %v811
        %v3904 = vunpack.c.h.b16 %v811
        %v3905 = vunpack.c.l.b16 %v812
        %v3906 = vunpack.c.h.b16 %v812
        %v3907 = vunpack.c.l.b16 %v813
        %v3908 = vunpack.c.h.b16 %v813
        %v3909 = vunpack.c.l.b16 %v814
        %v3910 = vunpack.c.l.b16 %v815
        %v3911 = vunpack.c.h.b16 %v815
        %v3912 = vunpack.c.l.b16 %v816
        %v3913 = vunpack.c.h.b16 %v816
        %v3914 = vunpack.c.l.b16 %v817
        %v3915 = vunpack.c.h.b16 %v817
        %v3916 = vunpack.c.l.b16 %v818
        %v3917 = vunpack.c.h.b16 %v818
        %v3918 = vunpack.c.l.b16 %v819
        %v3919 = vunpack.c.h.b16 %v819
        %v3920 = vunpack.c.l.b16 %v820
        %v3921 = vunpack.c.h.b16 %v820
        %v3922 = vunpack.c.l.b16 %v821
        %v3923 = vunpack.c.h.b16 %v821
        %v3924 = vunpack.c.l.b16 %v822
        %v3925 = vunpack.c.h.b16 %v822
        %v3926 = vunpack.c.l.b16 %v823
        %v3927 = vunpack.c.h.b16 %v823
        %v3928 = vunpack.c.l.b16 %v824
        %v3929 = vunpack.c.l.b16 %v825
        %v3930 = vunpack.c.h.b16 %v825
        %v3931 = vunpack.c.l.b16 %v826
        %v3932 = vunpack.c.h.b16 %v826
        %v3933 = vunpack.c.l.b16 %v827
        %v3934 = vunpack.c.h.b16 %v827
        %v3935 = vunpack.c.l.b16 %v828
        %v3936 = vunpack.c.h.b16 %v828
        %v3937 = vunpack.c.l.b16 %v829
        %v3938 = vunpack.c.h.b16 %v829
        %v3939 = vunpack.c.l.b16 %v830
        %v3940 = vunpack.c.h.b16 %v830
        %v3941 = vunpack.c.l.b16 %v831
        %v3942 = vunpack.c.h.b16 %v831
        %v3943 = vunpack.c.l.b16 %v832
        %v3944 = vunpack.c.h.b16 %v832
        %v3945 = vunpack.c.l.b16 %v833
        %v3946 = vunpack.c.h.b16 %v833
        %v3947 = vunpack.c.l.b16 %v834
        %v3948 = vunpack.c.l.b16 %v835
        %v3949 = vunpack.c.h.b16 %v835
        %v3950 = vunpack.c.l.b16 %v836
        %v3951 = vunpack.c.h.b16 %v836
        %v3952 = vunpack.c.l.b16 %v837
        %v3953 = vunpack.c.h.b16 %v837
        %v3954 = vunpack.c.l.b16 %v838
        %v3955 = vunpack.c.h.b16 %v838
        %v3956 = vunpack.c.l.b16 %v839
        %v3957 = vunpack.c.h.b16 %v839
        %v3958 = vunpack.c.l.b16 %v840
        %v3959 = vunpack.c.h.b16 %v840
        %v3960 = vunpack.c.l.b16 %v841
        %v3961 = vunpack.c.h.b16 %v841
        %v3962 = vunpack.c.l.b16 %v842
        %v3963 = vunpack.c.h.b16 %v842
        %v3964 = vunpack.c.l.b16 %v843
        %v3965 = vunpack.c.h.b16 %v843
        %v3966 = vunpack.c.l.b16 %v844
        %v3967 = vunpack.c.l.b16 %v845
        %v3968 = vunpack.c.h.b16 %v845
        %v3969 = vunpack.c.l.b16 %v846
        %v3970 = vunpack.c.h.b16 %v846
        %v3971 = vunpack.c.l.b16 %v847
        %v3972 = vunpack.c.h.b16 %v847
        %v3973 = vunpack.c.l.b16 %v848
        %v3974 = vunpack.c.h.b16 %v848
        %v3975 = vunpack.c.l.b16 %v849
        %v3976 = vunpack.c.h.b16 %v849
        %v3977 = vunpack.c.l.b16 %v850
        %v3978 = vunpack.c.h.b16 %v850
        %v3979 = vunpack.c.l.b16 %v851
        %v3980 = vunpack.c.h.b16 %v851
        %v3981 = vunpack.c.l.b16 %v852
        %v3982 = vunpack.c.h.b16 %v852
        %v3983 = vunpack.c.l.b16 %v853
        %v3984 = vunpack.c.h.b16 %v853
        %v3985 = vunpack.c.l.b16 %v854
        %v3986 = vunpack.c.l.b16 %v855
        %v3987 = vunpack.c.h.b16 %v855
        %v3988 = vunpack.c.l.b16 %v856
        %v3989 = vunpack.c.h.b16 %v856
        %v3990 = vunpack.c.l.b16 %v857
        %v3991 = vunpack.c.h.b16 %v857
        %v3992 = vunpack.c.l.b16 %v858
        %v3993 = vunpack.c.h.b16 %v858
        %v3994 = vunpack.c.l.b16 %v859
        %v3995 = vunpack.c.h.b16 %v859
        %v3996 = vunpack.c.l.b16 %v860
        %v3997 = vunpack.c.h.b16 %v860
        %v3998 = vunpack.c.l.b16 %v861
        %v3999 = vunpack.c.h.b16 %v861
        %v4000 = vunpack.c.l.b16 %v862
        %v4001 = vunpack.c.h.b16 %v862
        %v4002 = vunpack.c.l.b16 %v863
        %v4003 = vunpack.c.h.b16 %v863
        %v4004 = vunpack.c.l.b16 %v864
        %v4005 = vunpack.c.l.b16 %v865
        %v4006 = vunpack.c.h.b16 %v865
        %v4007 = vunpack.c.l.b16 %v866
        %v4008 = vunpack.c.h.b16 %v866
        %v4009 = vunpack.c.l.b16 %v867
        %v4010 = vunpack.c.h.b16 %v867
        %v4011 = vunpack.c.l.b16 %v868
        %v4012 = vunpack.c.h.b16 %v868
        %v4013 = vunpack.c.l.b16 %v869
        %v4014 = vunpack.c.h.b16 %v869
        %v4015 = vunpack.c.l.b16 %v870
        %v4016 = vunpack.c.h.b16 %v870
        %v4017 = vunpack.c.l.b16 %v871
        %v4018 = vunpack.c.h.b16 %v871
        %v4019 = vunpack.c.l.b16 %v872
        %v4020 = vunpack.c.h.b16 %v872
        %v4021 = vunpack.c.l.b16 %v873
        %v4022 = vunpack.c.h.b16 %v873
        %v4023 = vunpack.c.l.b16 %v874
        %v4024 = vunpack.c.l.b16 %v875
        %v4025 = vunpack.c.h.b16 %v875
        %v4026 = vunpack.c.l.b16 %v876
        %v4027 = vunpack.c.h.b16 %v876
        %v4028 = vunpack.c.l.b16 %v877
        %v4029 = vunpack.c.h.b16 %v877
        %v4030 = vunpack.c.l.b16 %v878
        %v4031 = vunpack.c.h.b16 %v878
        %v4032 = vunpack.c.l.b16 %v879
        %v4033 = vunpack.c.h.b16 %v879
        %v4034 = vunpack.c.l.b16 %v880
        %v4035 = vunpack.c.h.b16 %v880
        %v4036 = vunpack.c.l.b16 %v881
        %v4037 = vunpack.c.h.b16 %v881
        %v4038 = vunpack.c.l.b16 %v882
        %v4039 = vunpack.c.h.b16 %v882
        %v4040 = vunpack.c.l.b16 %v883
        %v4041 = vunpack.c.h.b16 %v883
        %v4042 = vunpack.c.l.b16 %v884
        %v4043 = vunpack.c.l.b16 %v885
        %v4044 = vunpack.c.h.b16 %v885
        %v4045 = vunpack.c.l.b16 %v886
        %v4046 = vunpack.c.h.b16 %v886
        %v4047 = vunpack.c.l.b16 %v887
        %v4048 = vunpack.c.h.b16 %v887
        %v4049 = vunpack.c.l.b16 %v888
        %v4050 = vunpack.c.h.b16 %v888
        %v4051 = vunpack.c.l.b16 %v889
        %v4052 = vunpack.c.h.b16 %v889
        %v4053 = vunpack.c.l.b16 %v890
        %v4054 = vunpack.c.h.b16 %v890
        %v4055 = vunpack.c.l.b16 %v891
        %v4056 = vunpack.c.h.b16 %v891
        %v4057 = vunpack.c.l.b16 %v892
        %v4058 = vunpack.c.h.b16 %v892
        %v4059 = vunpack.c.l.b16 %v893
        %v4060 = vunpack.c.h.b16 %v893
        %v4061 = vunpack.c.l.b16 %v894
        %v4062 = vunpack.c.l.b16 %v895
        %v4063 = vunpack.c.h.b16 %v895
        %v4064 = vunpack.c.l.b16 %v896
        %v4065 = vunpack.c.h.b16 %v896
        %v4066 = vunpack.c.l.b16 %v897
        %v4067 = vunpack.c.h.b16 %v897
        %v4068 = vunpack.c.l.b16 %v898
        %v4069 = vunpack.c.h.b16 %v898
        %v4070 = vunpack.c.l.b16 %v899
        %v4071 = vunpack.c.h.b16 %v899
        %v4072 = vunpack.c.l.b16 %v900
        %v4073 = vunpack.c.h.b16 %v900
        %v4074 = vunpack.c.l.b16 %v901
        %v4075 = vunpack.c.h.b16 %v901
        %v4076 = vunpack.c.l.b16 %v902
        %v4077 = vunpack.c.h.b16 %v902
        %v4078 = vunpack.c.l.b16 %v903
        %v4079 = vunpack.c.h.b16 %v903
        %v4080 = vunpack.c.l.b16 %v904
        %v4081 = vunpack.c.l.b16 %v905
        %v4082 = vunpack.c.h.b16 %v905
        %v4083 = vunpack.c.l.b16 %v906
        %v4084 = vunpack.c.h.b16 %v906
        %v4085 = vunpack.c.l.b16 %v907
        %v4086 = vunpack.c.h.b16 %v907
        %v4087 = vunpack.c.l.b16 %v908
        %v4088 = vunpack.c.h.b16 %v908
        %v4089 = vunpack.c.l.b16 %v909
        %v4090 = vunpack.c.h.b16 %v909
        %v4091 = vunpack.c.l.b16 %v910
        %v4092 = vunpack.c.h.b16 %v910
        %v4093 = vunpack.c.l.b16 %v911
        %v4094 = vunpack.c.h.b16 %v911
        %v4095 = vunpack.c.l.b16 %v912
        %v4096 = vunpack.c.h.b16 %v912
        %v4097 = vunpack.c.l.b16 %v913
        %v4098 = vunpack.c.h.b16 %v913
        %v4099 = vunpack.c.l.b16 %v914
        %v4100 = vunpack.c.l.b16 %v915
        %v4101 = vunpack.c.h.b16 %v915
        %v4102 = vunpack.c.l.b16 %v916
        %v4103 = vunpack.c.h.b16 %v916
        %v4104 = vunpack.c.l.b16 %v917
        %v4105 = vunpack.c.h.b16 %v917
        %v4106 = vunpack.c.l.b16 %v918
        %v4107 = vunpack.c.h.b16 %v918
        %v4108 = vunpack.c.l.b16 %v919
        %v4109 = vunpack.c.h.b16 %v919
        %v4110 = vunpack.c.l.b16 %v920
        %v4111 = vunpack.c.h.b16 %v920
        %v4112 = vunpack.c.l.b16 %v921
        %v4113 = vunpack.c.h.b16 %v921
        %v4114 = vunpack.c.l.b16 %v922
        %v4115 = vunpack.c.h.b16 %v922
        %v4116 = vunpack.c.l.b16 %v923
        %v4117 = vunpack.c.h.b16 %v923
        %v4118 = vunpack.c.l.b16 %v924
        %v4119 = vunpack.c.l.b16 %v925
        %v4120 = vunpack.c.h.b16 %v925
        %v4121 = vunpack.c.l.b16 %v926
        %v4122 = vunpack.c.h.b16 %v926
        %v4123 = vunpack.c.l.b16 %v927
        %v4124 = vunpack.c.h.b16 %v927
        %v4125 = vunpack.c.l.b16 %v928
        %v4126 = vunpack.c.h.b16 %v928
        %v4127 = vunpack.c.l.b16 %v929
        %v4128 = vunpack.c.h.b16 %v929
        %v4129 = vunpack.c.l.b16 %v930
        %v4130 = vunpack.c.h.b16 %v930
        %v4131 = vunpack.c.l.b16 %v931
        %v4132 = vunpack.c.h.b16 %v931
        %v4133 = vunpack.c.l.b16 %v932
        %v4134 = vunpack.c.h.b16 %v932
        %v4135 = vunpack.c.l.b16 %v933
        %v4136 = vunpack.c.h.b16 %v933
        %v4137 = vunpack.c.l.b16 %v934
        %v4138 = vunpack.c.l.b16 %v935
        %v4139 = vunpack.c.h.b16 %v935
        %v4140 = vunpack.c.l.b16 %v936
        %v4141 = vunpack.c.h.b16 %v936
        %v4142 = vunpack.c.l.b16 %v937
        %v4143 = vunpack.c.h.b16 %v937
        %v4144 = vunpack.c.l.b16 %v938
        %v4145 = vunpack.c.h.b16 %v938
        %v4146 = vunpack.c.l.b16 %v939
        %v4147 = vunpack.c.h.b16 %v939
        %v4148 = vunpack.c.l.b16 %v940
        %v4149 = vunpack.c.h.b16 %v940
        %v4150 = vunpack.c.l.b16 %v941
        %v4151 = vunpack.c.h.b16 %v941
        %v4152 = vunpack.c.l.b16 %v942
        %v4153 = vunpack.c.h.b16 %v942
        %v4154 = vunpack.c.l.b16 %v943
        %v4155 = vunpack.c.h.b16 %v943
        %v4156 = vunpack.c.l.b16 %v944
        %v4157 = vunpack.c.l.b16 %v945
        %v4158 = vunpack.c.h.b16 %v945
        %v4159 = vunpack.c.l.b16 %v946
        %v4160 = vunpack.c.h.b16 %v946
        %v4161 = vunpack.c.l.b16 %v947
        %v4162 = vunpack.c.h.b16 %v947
        %v4163 = vunpack.c.l.b16 %v948
        %v4164 = vunpack.c.h.b16 %v948
        %v4165 = vunpack.c.l.b16 %v949
        %v4166 = vunpack.c.h.b16 %v949
        %v4167 = vunpack.c.l.b16 %v950
        %v4168 = vunpack.c.h.b16 %v950
        %v4169 = vunpack.c.l.b16 %v951
        %v4170 = vunpack.c.h.b16 %v951
        %v4171 = vunpack.c.l.b16 %v952
        %v4172 = vunpack.c.h.b16 %v952
        %v4173 = vunpack.c.l.b16 %v953
        %v4174 = vunpack.c.h.b16 %v953
        %v4175 = vunpack.c.l.b16 %v954
        %v4176 = vunpack.c.l.b16 %v955
        %v4177 = vunpack.c.h.b16 %v955
        %v4178 = vunpack.c.l.b16 %v956
        %v4179 = vunpack.c.h.b16 %v956
        %v4180 = vunpack.c.l.b16 %v957
        %v4181 = vunpack.c.h.b16 %v957
        %v4182 = vunpack.c.l.b16 %v958
        %v4183 = vunpack.c.h.b16 %v958
        %v4184 = vunpack.c.l.b16 %v959
        %v4185 = vunpack.c.h.b16 %v959
        %v4186 = vunpack.c.l.b16 %v960
        %v4187 = vunpack.c.h.b16 %v960
        %v4188 = vunpack.c.l.b16 %v961
        %v4189 = vunpack.c.h.b16 %v961
        %v4190 = vunpack.c.l.b16 %v962
        %v4191 = vunpack.c.h.b16 %v962
        %v4192 = vunpack.c.l.b16 %v963
        %v4193 = vunpack.c.h.b16 %v963
        %v4194 = vunpack.c.l.b16 %v964
        %v4195 = vunpack.c.l.b16 %v965
        %v4196 = vunpack.c.h.b16 %v965
        %v4197 = vunpack.c.l.b16 %v966
        %v4198 = vunpack.c.h.b16 %v966
        %v4199 = vunpack.c.l.b16 %v967
        %v4200 = vunpack.c.h.b16 %v967
        %v4201 = vunpack.c.l.b16 %v968
        %v4202 = vunpack.c.h.b16 %v968
        %v4203 = vunpack.c.l.b16 %v969
        %v4204 = vunpack.c.h.b16 %v969
        %v4205 = vunpack.c.l.b16 %v970
        %v4206 = vunpack.c.h.b16 %v970
        %v4207 = vunpack.c.l.b16 %v971
        %v4208 = vunpack.c.h.b16 %v971
        %v4209 = vunpack.c.l.b16 %v972
        %v4210 = vunpack.c.h.b16 %v972
        %v4211 = vunpack.c.l.b16 %v973
        %v4212 = vunpack.c.h.b16 %v973
        %v4213 = vunpack.c.l.b16 %v974
        %v4214 = vunpack.c.l.b16 %v975
        %v4215 = vunpack.c.h.b16 %v975
        %v4216 = vunpack.c.l.b16 %v976
        %v4217 = vunpack.c.h.b16 %v976
        %v4218 = vunpack.c.l.b16 %v977
        %v4219 = vunpack.c.h.b16 %v977
        %v4220 = vunpack.c.l.b16 %v978
        %v4221 = vunpack.c.h.b16 %v978
        %v4222 = vunpack.c.l.b16 %v979
        %v4223 = vunpack.c.h.b16 %v979
        %v4224 = vunpack.c.l.b16 %v980
        %v4225 = vunpack.c.h.b16 %v980
        %v4226 = vunpack.c.l.b16 %v981
        %v4227 = vunpack.c.h.b16 %v981
        %v4228 = vunpack.c.l.b16 %v982
        %v4229 = vunpack.c.h.b16 %v982
        %v4230 = vunpack.c.l.b16 %v983
        %v4231 = vunpack.c.h.b16 %v983
        %v4232 = vunpack.c.l.b16 %v984
        %v4233 = vunpack.c.l.b16 %v985
        %v4234 = vunpack.c.h.b16 %v985
        %v4235 = vunpack.c.l.b16 %v986
        %v4236 = vunpack.c.h.b16 %v986
        %v4237 = vunpack.c.l.b16 %v987
        %v4238 = vunpack.c.h.b16 %v987
        %v4239 = vunpack.c.l.b16 %v988
        %v4240 = vunpack.c.h.b16 %v988
        %v4241 = vunpack.c.l.b16 %v989
        %v4242 = vunpack.c.h.b16 %v989
        %v4243 = vunpack.c.l.b16 %v990
        %v4244 = vunpack.c.h.b16 %v990
        %v4245 = vunpack.c.l.b16 %v991
        %v4246 = vunpack.c.h.b16 %v991
        %v4247 = vunpack.c.l.b16 %v992
        %v4248 = vunpack.c.h.b16 %v992
        %v4249 = vunpack.c.l.b16 %v993
        %v4250 = vunpack.c.h.b16 %v993
        %v4251 = vunpack.c.l.b16 %v994
        %v4252 = vunpack.c.l.b16 %v995
        %v4253 = vunpack.c.h.b16 %v995
        %v4254 = vunpack.c.l.b16 %v996
        %v4255 = vunpack.c.h.b16 %v996
        %v4256 = vunpack.c.l.b16 %v997
        %v4257 = vunpack.c.h.b16 %v997
        %v4258 = vunpack.c.l.b16 %v998
        %v4259 = vunpack.c.h.b16 %v998
        %v4260 = vunpack.c.l.b16 %v999
        %v4261 = vunpack.c.h.b16 %v999
        %v4262 = vunpack.c.l.b16 %v1000
        %v4263 = vunpack.c.h.b16 %v1000
        %v4264 = vunpack.c.l.b16 %v1001
        %v4265 = vunpack.c.h.b16 %v1001
        %v4266 = vunpack.c.l.b16 %v1002
        %v4267 = vunpack.c.h.b16 %v1002
        %v4268 = vunpack.c.l.b16 %v1003
        %v4269 = vunpack.c.h.b16 %v1003
        %v4270 = vunpack.c.l.b16 %v1004
        %v4271 = vunpack.c.l.b16 %v1005
        %v4272 = vunpack.c.h.b16 %v1005
        %v4273 = vunpack.c.l.b16 %v1006
        %v4274 = vunpack.c.h.b16 %v1006
        %v4275 = vunpack.c.l.b16 %v1007
        %v4276 = vunpack.c.h.b16 %v1007
        %v4277 = vunpack.c.l.b16 %v1008
        %v4278 = vunpack.c.h.b16 %v1008
        %v4279 = vunpack.c.l.b16 %v1009
        %v4280 = vunpack.c.h.b16 %v1009
        %v4281 = vunpack.c.l.b16 %v1010
        %v4282 = vunpack.c.h.b16 %v1010
        %v4283 = vunpack.c.l.b16 %v1011
        %v4284 = vunpack.c.h.b16 %v1011
        %v4285 = vunpack.c.l.b16 %v1012
        %v4286 = vunpack.c.h.b16 %v1012
        %v4287 = vunpack.c.l.b16 %v1013
        %v4288 = vunpack.c.h.b16 %v1013
        %v4289 = vunpack.c.l.b16 %v1014
        %v4290 = vunpack.c.l.b16 %v1015
        %v4291 = vunpack.c.h.b16 %v1015
        %v4292 = vunpack.c.l.b16 %v1016
        %v4293 = vunpack.c.h.b16 %v1016
        %v4294 = vunpack.c.l.b16 %v1017
        %v4295 = vunpack.c.h.b16 %v1017
        %v4296 = vunpack.c.l.b16 %v1018
        %v4297 = vunpack.c.h.b16 %v1018
        %v4298 = vunpack.c.l.b16 %v1019
        %v4299 = vunpack.c.h.b16 %v1019
        %v4300 = vunpack.c.l.b16 %v1020
        %v4301 = vunpack.c.h.b16 %v1020
        %v4302 = vunpack.c.l.b16 %v1021
        %v4303 = vunpack.c.h.b16 %v1021
        %v4304 = vunpack.c.l.b16 %v1022
        %v4305 = vunpack.c.h.b16 %v1022
        %v4306 = vunpack.c.l.b16 %v1023
        %v4307 = vunpack.c.h.b16 %v1023
        %v4308 = vunpack.c.l.b16 %v1024
        %v4309 = vunpack.c.l.b16 %v1025
        %v4310 = vunpack.c.h.b16 %v1025
        %v4311 = vunpack.c.l.b16 %v1026
        %v4312 = vunpack.c.h.b16 %v1026
        %v4313 = vunpack.c.l.b16 %v1027
        %v4314 = vunpack.c.h.b16 %v1027
        %v4315 = vunpack.c.l.b16 %v1028
        %v4316 = vunpack.c.h.b16 %v1028
        %v4317 = vunpack.c.l.b16 %v1029
        %v4318 = vunpack.c.h.b16 %v1029
        %v4319 = vunpack.c.l.b16 %v1030
        %v4320 = vunpack.c.h.b16 %v1030
        %v4321 = vunpack.c.l.b16 %v1031
        %v4322 = vunpack.c.h.b16 %v1031
        %v4323 = vunpack.c.l.b16 %v1032
        %v4324 = vunpack.c.h.b16 %v1032
        %v4325 = vunpack.c.l.b16 %v1033
        %v4326 = vunpack.c.h.b16 %v1033
        %v4327 = vunpack.c.l.b16 %v1034
        %v4328 = vunpack.c.l.b16 %v1035
        %v4329 = vunpack.c.h.b16 %v1035
        %v4330 = vunpack.c.l.b16 %v1036
        %v4331 = vunpack.c.h.b16 %v1036
        %v4332 = vunpack.c.l.b16 %v1037
        %v4333 = vunpack.c.h.b16 %v1037
        %v4334 = vunpack.c.l.b16 %v1038
        %v4335 = vunpack.c.h.b16 %v1038
        %v4336 = vunpack.c.l.b16 %v1039
        %v4337 = vunpack.c.h.b16 %v1039
        %v4338 = vunpack.c.l.b16 %v1040
        %v4339 = vunpack.c.h.b16 %v1040
        %v4340 = vunpack.c.l.b16 %v1041
        %v4341 = vunpack.c.h.b16 %v1041
        %v4342 = vunpack.c.l.b16 %v1042
        %v4343 = vunpack.c.h.b16 %v1042
        %v4344 = vunpack.c.l.b16 %v1043
        %v4345 = vunpack.c.h.b16 %v1043
        %v4346 = vunpack.c.l.b16 %v1044
        %v4347 = vunpack.c.l.b16 %v1045
        %v4348 = vunpack.c.h.b16 %v1045
        %v4349 = vunpack.c.l.b16 %v1046
        %v4350 = vunpack.c.h.b16 %v1046
        %v4351 = vunpack.c.l.b16 %v1047
        %v4352 = vunpack.c.h.b16 %v1047
        %v4353 = vunpack.c.l.b16 %v1048
        %v4354 = vunpack.c.h.b16 %v1048
        %v4355 = vunpack.c.l.b16 %v1049
        %v4356 = vunpack.c.h.b16 %v1049
        %v4357 = vunpack.c.l.b16 %v1050
        %v4358 = vunpack.c.h.b16 %v1050
        %v4359 = vunpack.c.l.b16 %v1051
        %v4360 = vunpack.c.h.b16 %v1051
        %v4361 = vunpack.c.l.b16 %v1052
        %v4362 = vunpack.c.h.b16 %v1052
        %v4363 = vunpack.c.l.b16 %v1053
        %v4364 = vunpack.c.h.b16 %v1053
        %v4365 = vunpack.c.l.b16 %v1054
        %v4366 = vunpack.c.l.b16 %v1055
        %v4367 = vunpack.c.h.b16 %v1055
        %v4368 = vunpack.c.l.b16 %v1056
        %v4369 = vunpack.c.h.b16 %v1056
        %v4370 = vunpack.c.l.b16 %v1057
        %v4371 = vunpack.c.h.b16 %v1057
        %v4372 = vunpack.c.l.b16 %v1058
        %v4373 = vunpack.c.h.b16 %v1058
        %v4374 = vunpack.c.l.b16 %v1059
        %v4375 = vunpack.c.h.b16 %v1059
        %v4376 = vunpack.c.l.b16 %v1060
        %v4377 = vunpack.c.h.b16 %v1060
        %v4378 = vunpack.c.l.b16 %v1061
        %v4379 = vunpack.c.h.b16 %v1061
        %v4380 = vunpack.c.l.b16 %v1062
        %v4381 = vunpack.c.h.b16 %v1062
        %v4382 = vunpack.c.l.b16 %v1063
        %v4383 = vunpack.c.h.b16 %v1063
        %v4384 = vunpack.c.l.b16 %v1064
        %v4385 = vunpack.c.l.b16 %v1065
        %v4386 = vunpack.c.h.b16 %v1065
        %v4387 = vunpack.c.l.b16 %v1066
        %v4388 = vunpack.c.h.b16 %v1066
        %v4389 = vunpack.c.l.b16 %v1067
        %v4390 = vunpack.c.h.b16 %v1067
        %v4391 = vunpack.c.l.b16 %v1068
        %v4392 = vunpack.c.h.b16 %v1068
        %v4393 = vunpack.c.l.b16 %v1069
        %v4394 = vunpack.c.h.b16 %v1069
        %v4395 = vunpack.c.l.b16 %v1070
        %v4396 = vunpack.c.h.b16 %v1070
        %v4397 = vunpack.c.l.b16 %v1071
        %v4398 = vunpack.c.h.b16 %v1071
        %v4399 = vunpack.c.l.b16 %v1072
        %v4400 = vunpack.c.h.b16 %v1072
        %v4401 = vunpack.c.l.b16 %v1073
        %v4402 = vunpack.c.h.b16 %v1073
        %v4403 = vunpack.c.l.b16 %v1074
        %v4404 = vunpack.c.l.b16 %v1075
        %v4405 = vunpack.c.h.b16 %v1075
        %v4406 = vunpack.c.l.b16 %v1076
        %v4407 = vunpack.c.h.b16 %v1076
        %v4408 = vunpack.c.l.b16 %v1077
        %v4409 = vunpack.c.h.b16 %v1077
        %v4410 = vunpack.c.l.b16 %v1078
        %v4411 = vunpack.c.h.b16 %v1078
        %v4412 = vunpack.c.l.b16 %v1079
        %v4413 = vunpack.c.h.b16 %v1079
        %v4414 = vunpack.c.l.b16 %v1080
        %v4415 = vunpack.c.h.b16 %v1080
        %v4416 = vunpack.c.l.b16 %v1081
        %v4417 = vunpack.c.h.b16 %v1081
        %v4418 = vunpack.c.l.b16 %v1082
        %v4419 = vunpack.c.h.b16 %v1082
        %v4420 = vunpack.c.l.b16 %v1083
        %v4421 = vunpack.c.h.b16 %v1083
        %v4422 = vunpack.c.l.b16 %v1084
        %v4423 = vunpack.c.l.b16 %v1085
        %v4424 = vunpack.c.h.b16 %v1085
        %v4425 = vunpack.c.l.b16 %v1086
        %v4426 = vunpack.c.h.b16 %v1086
        %v4427 = vunpack.c.l.b16 %v1087
        %v4428 = vunpack.c.h.b16 %v1087
        %v4429 = vunpack.c.l.b16 %v1088
        %v4430 = vunpack.c.h.b16 %v1088
        %v4431 = vunpack.c.l.b16 %v1089
        %v4432 = vunpack.c.h.b16 %v1089
        %v4433 = vunpack.c.l.b16 %v1090
        %v4434 = vunpack.c.h.b16 %v1090
        %v4435 = vunpack.c.l.b16 %v1091
        %v4436 = vunpack.c.h.b16 %v1091
        %v4437 = vunpack.c.l.b16 %v1092
        %v4438 = vunpack.c.h.b16 %v1092
        %v4439 = vunpack.c.l.b16 %v1093
        %v4440 = vunpack.c.h.b16 %v1093
        %v4441 = vunpack.c.l.b16 %v1094
        %v4442 = vunpack.c.l.b16 %v1095
        %v4443 = vunpack.c.h.b16 %v1095
        %v4444 = vunpack.c.l.b16 %v1096
        %v4445 = vunpack.c.h.b16 %v1096
        %v4446 = vunpack.c.l.b16 %v1097
        %v4447 = vunpack.c.h.b16 %v1097
        %v4448 = vunpack.c.l.b16 %v1098
        %v4449 = vunpack.c.h.b16 %v1098
        %v4450 = vunpack.c.l.b16 %v1099
        %v4451 = vunpack.c.h.b16 %v1099
        %v4452 = vunpack.c.l.b16 %v1100
        %v4453 = vunpack.c.h.b16 %v1100
        %v4454 = vunpack.c.l.b16 %v1101
        %v4455 = vunpack.c.h.b16 %v1101
        %v4456 = vunpack.c.l.b16 %v1102
        %v4457 = vunpack.c.h.b16 %v1102
        %v4458 = vunpack.c.l.b16 %v1103
        %v4459 = vunpack.c.h.b16 %v1103
        %v4460 = vunpack.c.l.b16 %v1104
        %v4461 = vunpack.c.l.b16 %v1105
        %v4462 = vunpack.c.h.b16 %v1105
        %v4463 = vunpack.c.l.b16 %v1106
        %v4464 = vunpack.c.h.b16 %v1106
        %v4465 = vunpack.c.l.b16 %v1107
        %v4466 = vunpack.c.h.b16 %v1107
        %v4467 = vunpack.c.l.b16 %v1108
        %v4468 = vunpack.c.h.b16 %v1108
        %v4469 = vunpack.c.l.b16 %v1109
        %v4470 = vunpack.c.h.b16 %v1109
        %v4471 = vunpack.c.l.b16 %v1110
        %v4472 = vunpack.c.h.b16 %v1110
        %v4473 = vunpack.c.l.b16 %v1111
        %v4474 = vunpack.c.h.b16 %v1111
        %v4475 = vunpack.c.l.b16 %v1112
        %v4476 = vunpack.c.h.b16 %v1112
        %v4477 = vunpack.c.l.b16 %v1113
        %v4478 = vunpack.c.h.b16 %v1113
        %v4479 = vunpack.c.l.b16 %v1114
        %v4480 = vunpack.c.l.b16 %v1115
        %v4481 = vunpack.c.h.b16 %v1115
        %v4482 = vunpack.c.l.b16 %v1116
        %v4483 = vunpack.c.h.b16 %v1116
        %v4484 = vunpack.c.l.b16 %v1117
        %v4485 = vunpack.c.h.b16 %v1117
        %v4486 = vunpack.c.l.b16 %v1118
        %v4487 = vunpack.c.h.b16 %v1118
        %v4488 = vunpack.c.l.b16 %v1119
        %v4489 = vunpack.c.h.b16 %v1119
        %v4490 = vunpack.c.l.b16 %v1120
        %v4491 = vunpack.c.h.b16 %v1120
        %v4492 = vunpack.c.l.b16 %v1121
        %v4493 = vunpack.c.h.b16 %v1121
        %v4494 = vunpack.c.l.b16 %v1122
        %v4495 = vunpack.c.h.b16 %v1122
        %v4496 = vunpack.c.l.b16 %v1123
        %v4497 = vunpack.c.h.b16 %v1123
        %v4498 = vunpack.c.l.b16 %v1124
        %v4499 = vunpack.c.l.b16 %v1125
        %v4500 = vunpack.c.h.b16 %v1125
        %v4501 = vunpack.c.l.b16 %v1126
        %v4502 = vunpack.c.h.b16 %v1126
        %v4503 = vunpack.c.l.b16 %v1127
        %v4504 = vunpack.c.h.b16 %v1127
        %v4505 = vunpack.c.l.b16 %v1128
        %v4506 = vunpack.c.h.b16 %v1128
        %v4507 = vunpack.c.l.b16 %v1129
        %v4508 = vunpack.c.h.b16 %v1129
        %v4509 = vunpack.c.l.b16 %v1130
        %v4510 = vunpack.c.h.b16 %v1130
        %v4511 = vunpack.c.l.b16 %v1131
        %v4512 = vunpack.c.h.b16 %v1131
        %v4513 = vunpack.c.l.b16 %v1132
        %v4514 = vunpack.c.h.b16 %v1132
        %v4515 = vunpack.c.l.b16 %v1133
        %v4516 = vunpack.c.h.b16 %v1133
        %v4517 = vunpack.c.l.b16 %v1134
        %v4518 = vunpack.c.l.b16 %v1135
        %v4519 = vunpack.c.h.b16 %v1135
        %v4520 = vunpack.c.l.b16 %v1136
        %v4521 = vunpack.c.h.b16 %v1136
        %v4522 = vunpack.c.l.b16 %v1137
        %v4523 = vunpack.c.h.b16 %v1137
        %v4524 = vunpack.c.l.b16 %v1138
        %v4525 = vunpack.c.h.b16 %v1138
        %v4526 = vunpack.c.l.b16 %v1139
        %v4527 = vunpack.c.h.b16 %v1139
        %v4528 = vunpack.c.l.b16 %v1140
        %v4529 = vunpack.c.h.b16 %v1140
        %v4530 = vunpack.c.l.b16 %v1141
        %v4531 = vunpack.c.h.b16 %v1141
        %v4532 = vunpack.c.l.b16 %v1142
        %v4533 = vunpack.c.h.b16 %v1142
        %v4534 = vunpack.c.l.b16 %v1143
        %v4535 = vunpack.c.h.b16 %v1143
        %v4536 = vunpack.c.l.b16 %v1144
        %v4537 = vunpack.c.l.b16 %v1145
        %v4538 = vunpack.c.h.b16 %v1145
        %v4539 = vunpack.c.l.b16 %v1146
        %v4540 = vunpack.c.h.b16 %v1146
        %v4541 = vunpack.c.l.b16 %v1147
        %v4542 = vunpack.c.h.b16 %v1147
        %v4543 = vunpack.c.l.b16 %v1148
        %v4544 = vunpack.c.h.b16 %v1148
        %v4545 = vunpack.c.l.b16 %v1149
        %v4546 = vunpack.c.h.b16 %v1149
        %v4547 = vunpack.c.l.b16 %v1150
        %v4548 = vunpack.c.h.b16 %v1150
        %v4549 = vunpack.c.l.b16 %v1151
        %v4550 = vunpack.c.h.b16 %v1151
        %v4551 = vunpack.c.l.b16 %v1152
        %v4552 = vunpack.c.h.b16 %v1152
        %v4553 = vunpack.c.l.b16 %v1153
        %v4554 = vunpack.c.h.b16 %v1153
        %v4555 = vunpack.c.l.b16 %v1154
        %v4556 = vunpack.c.l.b16 %v1155
        %v4557 = vunpack.c.h.b16 %v1155
        %v4558 = vunpack.c.l.b16 %v1156
        %v4559 = vunpack.c.h.b16 %v1156
        %v4560 = vunpack.c.l.b16 %v1157
        %v4561 = vunpack.c.h.b16 %v1157
        %v4562 = vunpack.c.l.b16 %v1158
        %v4563 = vunpack.c.h.b16 %v1158
        %v4564 = vunpack.c.l.b16 %v1159
        %v4565 = vunpack.c.h.b16 %v1159
        %v4566 = vunpack.c.l.b16 %v1160
        %v4567 = vunpack.c.h.b16 %v1160
        %v4568 = vunpack.c.l.b16 %v1161
        %v4569 = vunpack.c.h.b16 %v1161
        %v4570 = vunpack.c.l.b16 %v1162
        %v4571 = vunpack.c.h.b16 %v1162
        %v4572 = vunpack.c.l.b16 %v1163
        %v4573 = vunpack.c.h.b16 %v1163
        %v4574 = vunpack.c.l.b16 %v1164
        %v4575 = vunpack.c.l.b16 %v1165
        %v4576 = vunpack.c.h.b16 %v1165
        %v4577 = vunpack.c.l.b16 %v1166
        %v4578 = vunpack.c.h.b16 %v1166
        %v4579 = vunpack.c.l.b16 %v1167
        %v4580 = vunpack.c.h.b16 %v1167
        %v4581 = vunpack.c.l.b16 %v1168
        %v4582 = vunpack.c.h.b16 %v1168
        %v4583 = vunpack.c.l.b16 %v1169
        %v4584 = vunpack.c.h.b16 %v1169
        %v4585 = vunpack.c.l.b16 %v1170
        %v4586 = vunpack.c.h.b16 %v1170
        %v4587 = vunpack.c.l.b16 %v1171
        %v4588 = vunpack.c.h.b16 %v1171
        %v4589 = vunpack.c.l.b16 %v1172
        %v4590 = vunpack.c.h.b16 %v1172
        %v4591 = vunpack.c.l.b16 %v1173
        %v4592 = vunpack.c.h.b16 %v1173
        %v4593 = vunpack.c.l.b16 %v1174
        %v4594 = vunpack.c.l.b16 %v1175
        %v4595 = vunpack.c.h.b16 %v1175
        %v4596 = vunpack.c.l.b16 %v1176
        %v4597 = vunpack.c.h.b16 %v1176
        %v4598 = vunpack.c.l.b16 %v1177
        %v4599 = vunpack.c.h.b16 %v1177
        %v4600 = vunpack.c.l.b16 %v1178
        %v4601 = vunpack.c.h.b16 %v1178
        %v4602 = vunpack.c.l.b16 %v1179
        %v4603 = vunpack.c.h.b16 %v1179
        %v4604 = vunpack.c.l.b16 %v1180
        %v4605 = vunpack.c.h.b16 %v1180
        %v4606 = vunpack.c.l.b16 %v1181
        %v4607 = vunpack.c.h.b16 %v1181
        %v4608 = vunpack.c.l.b16 %v1182
        %v4609 = vunpack.c.h.b16 %v1182
        %v4610 = vunpack.c.l.b16 %v1183
        %v4611 = vunpack.c.h.b16 %v1183
        %v4612 = vunpack.c.l.b16 %v1184
        %v4613 = vunpack.c.l.b16 %v1185
        %v4614 = vunpack.c.h.b16 %v1185
        %v4615 = vunpack.c.l.b16 %v1186
        %v4616 = vunpack.c.h.b16 %v1186
        %v4617 = vunpack.c.l.b16 %v1187
        %v4618 = vunpack.c.h.b16 %v1187
        %v4619 = vunpack.c.l.b16 %v1188
        %v4620 = vunpack.c.h.b16 %v1188
        %v4621 = vunpack.c.l.b16 %v1189
        %v4622 = vunpack.c.h.b16 %v1189
        %v4623 = vunpack.c.l.b16 %v1190
        %v4624 = vunpack.c.h.b16 %v1190
        %v4625 = vunpack.c.l.b16 %v1191
        %v4626 = vunpack.c.h.b16 %v1191
        %v4627 = vunpack.c.l.b16 %v1192
        %v4628 = vunpack.c.h.b16 %v1192
        %v4629 = vunpack.c.l.b16 %v1193
        %v4630 = vunpack.c.h.b16 %v1193
        %v4631 = vunpack.c.l.b16 %v1194
        %v4632 = vunpack.c.l.b16 %v1195
        %v4633 = vunpack.c.h.b16 %v1195
        %v4634 = vunpack.c.l.b16 %v1196
        %v4635 = vunpack.c.h.b16 %v1196
        %v4636 = vunpack.c.l.b16 %v1197
        %v4637 = vunpack.c.h.b16 %v1197
        %v4638 = vunpack.c.l.b16 %v1198
        %v4639 = vunpack.c.h.b16 %v1198
        %v4640 = vunpack.c.l.b16 %v1199
        %v4641 = vunpack.c.h.b16 %v1199
        %v4642 = vunpack.c.l.b16 %v1200
        %v4643 = vunpack.c.h.b16 %v1200
        %v4644 = vunpack.c.l.b16 %v1201
        %v4645 = vunpack.c.h.b16 %v1201
        %v4646 = vunpack.c.l.b16 %v1202
        %v4647 = vunpack.c.h.b16 %v1202
        %v4648 = vunpack.c.l.b16 %v1203
        %v4649 = vunpack.c.h.b16 %v1203
        %v4650 = vunpack.c.l.b16 %v1204
        %v4651 = vunpack.c.l.b16 %v1205
        %v4652 = vunpack.c.h.b16 %v1205
        %v4653 = vunpack.c.l.b16 %v1206
        %v4654 = vunpack.c.h.b16 %v1206
        %v4655 = vunpack.c.l.b16 %v1207
        %v4656 = vunpack.c.h.b16 %v1207
        %v4657 = vunpack.c.l.b16 %v1208
        %v4658 = vunpack.c.h.b16 %v1208
        %v4659 = vunpack.c.l.b16 %v1209
        %v4660 = vunpack.c.h.b16 %v1209
        %v4661 = vunpack.c.l.b16 %v1210
        %v4662 = vunpack.c.h.b16 %v1210
        %v4663 = vunpack.c.l.b16 %v1211
        %v4664 = vunpack.c.h.b16 %v1211
        %v4665 = vunpack.c.l.b16 %v1212
        %v4666 = vunpack.c.h.b16 %v1212
        %v4667 = vunpack.c.l.b16 %v1213
        %v4668 = vunpack.c.h.b16 %v1213
        %v4669 = vunpack.c.l.b16 %v1214
        %v4670 = vunpack.c.l.b16 %v1215
        %v4671 = vunpack.c.h.b16 %v1215
        %v4672 = vunpack.c.l.b16 %v1216
        %v4673 = vunpack.c.h.b16 %v1216
        %v4674 = vunpack.c.l.b16 %v1217
        %v4675 = vunpack.c.h.b16 %v1217
        %v4676 = vunpack.c.l.b16 %v1218
        %v4677 = vunpack.c.h.b16 %v1218
        %v4678 = vunpack.c.l.b16 %v1219
        %v4679 = vunpack.c.h.b16 %v1219
        %v4680 = vunpack.c.l.b16 %v1220
        %v4681 = vunpack.c.h.b16 %v1220
        %v4682 = vunpack.c.l.b16 %v1221
        %v4683 = vunpack.c.h.b16 %v1221
        %v4684 = vunpack.c.l.b16 %v1222
        %v4685 = vunpack.c.h.b16 %v1222
        %v4686 = vunpack.c.l.b16 %v1223
        %v4687 = vunpack.c.h.b16 %v1223
        %v4688 = vunpack.c.l.b16 %v1224
        %v4689 = vunpack.c.l.b16 %v1225
        %v4690 = vunpack.c.h.b16 %v1225
        %v4691 = vunpack.c.l.b16 %v1226
        %v4692 = vunpack.c.h.b16 %v1226
        %v4693 = vunpack.c.l.b16 %v1227
        %v4694 = vunpack.c.h.b16 %v1227
        %v4695 = vunpack.c.l.b16 %v1228
        %v4696 = vunpack.c.h.b16 %v1228
        %v4697 = vunpack.c.l.b16 %v1229
        %v4698 = vunpack.c.h.b16 %v1229
        %v4699 = vunpack.c.l.b16 %v1230
        %v4700 = vunpack.c.h.b16 %v1230
        %v4701 = vunpack.c.l.b16 %v1231
        %v4702 = vunpack.c.h.b16 %v1231
        %v4703 = vunpack.c.l.b16 %v1232
        %v4704 = vunpack.c.h.b16 %v1232
        %v4705 = vunpack.c.l.b16 %v1233
        %v4706 = vunpack.c.h.b16 %v1233
        %v4707 = vunpack.c.l.b16 %v1234
        %v4708 = vunpack.c.l.b16 %v1235
        %v4709 = vunpack.c.h.b16 %v1235
        %v4710 = vunpack.c.l.b16 %v1236
        %v4711 = vunpack.c.h.b16 %v1236
        %v4712 = vunpack.c.l.b16 %v1237
        %v4713 = vunpack.c.h.b16 %v1237
        %v4714 = vunpack.c.l.b16 %v1238
        %v4715 = vunpack.c.h.b16 %v1238
        %v4716 = vunpack.c.l.b16 %v1239
        %v4717 = vunpack.c.h.b16 %v1239
        %v4718 = vunpack.c.l.b16 %v1240
        %v4719 = vunpack.c.h.b16 %v1240
        %v4720 = vunpack.c.l.b16 %v1241
        %v4721 = vunpack.c.h.b16 %v1241
        %v4722 = vunpack.c.l.b16 %v1242
        %v4723 = vunpack.c.h.b16 %v1242
        %v4724 = vunpack.c.l.b16 %v1243
        %v4725 = vunpack.c.h.b16 %v1243
        %v4726 = vunpack.c.l.b16 %v1244
        %v4727 = vunpack.c.l.b16 %v1245
        %v4728 = vunpack.c.h.b16 %v1245
        %v4729 = vunpack.c.l.b16 %v1246
        %v4730 = vunpack.c.h.b16 %v1246
        %v4731 = vunpack.c.l.b16 %v1247
        %v4732 = vunpack.c.h.b16 %v1247
        %v4733 = vunpack.c.l.b16 %v1248
        %v4734 = vunpack.c.h.b16 %v1248
        %v4735 = vunpack.c.l.b16 %v1249
        %v4736 = vunpack.c.h.b16 %v1249
        %v4737 = vunpack.c.l.b16 %v1250
        %v4738 = vunpack.c.h.b16 %v1250
        %v4739 = vunpack.c.l.b16 %v1251
        %v4740 = vunpack.c.h.b16 %v1251
        %v4741 = vunpack.c.l.b16 %v1252
        %v4742 = vunpack.c.h.b16 %v1252
        %v4743 = vunpack.c.l.b16 %v1253
        %v4744 = vunpack.c.h.b16 %v1253
        %v4745 = vunpack.c.l.b16 %v1254
        %v4746 = vunpack.c.l.b16 %v1255
        %v4747 = vunpack.c.h.b16 %v1255
        %v4748 = vunpack.c.l.b16 %v1256
        %v4749 = vunpack.c.h.b16 %v1256
        %v4750 = vunpack.c.l.b16 %v1257
        %v4751 = vunpack.c.h.b16 %v1257
        %v4752 = vunpack.c.l.b16 %v1258
        %v4753 = vunpack.c.h.b16 %v1258
        %v4754 = vunpack.c.l.b16 %v1259
        %v4755 = vunpack.c.h.b16 %v1259
        %v4756 = vunpack.c.l.b16 %v1260
        %v4757 = vunpack.c.h.b16 %v1260
        %v4758 = vunpack.c.l.b16 %v1261
        %v4759 = vunpack.c.h.b16 %v1261
        %v4760 = vunpack.c.l.b16 %v1262
        %v4761 = vunpack.c.h.b16 %v1262
        %v4762 = vunpack.c.l.b16 %v1263
        %v4763 = vunpack.c.h.b16 %v1263
        %v4764 = vunpack.c.l.b16 %v1264
        %v4765 = vunpack.c.l.b16 %v1265
        %v4766 = vunpack.c.h.b16 %v1265
        %v4767 = vunpack.c.l.b16 %v1266
        %v4768 = vunpack.c.h.b16 %v1266
        %v4769 = vunpack.c.l.b16 %v1267
        %v4770 = vunpack.c.h.b16 %v1267
        %v4771 = vunpack.c.l.b16 %v1268
        %v4772 = vunpack.c.h.b16 %v1268
        %v4773 = vunpack.c.l.b16 %v1269
        %v4774 = vunpack.c.h.b16 %v1269
        %v4775 = vunpack.c.l.b16 %v1270
        %v4776 = vunpack.c.h.b16 %v1270
        %v4777 = vunpack.c.l.b16 %v1271
        %v4778 = vunpack.c.h.b16 %v1271
        %v4779 = vunpack.c.l.b16 %v1272
        %v4780 = vunpack.c.h.b16 %v1272
        %v4781 = vunpack.c.l.b16 %v1273
        %v4782 = vunpack.c.h.b16 %v1273
        %v4783 = vunpack.c.l.b16 %v1274
        %v4784 = vunpack.c.l.b16 %v1275
        %v4785 = vunpack.c.h.b16 %v1275
        %v4786 = vunpack.c.l.b16 %v1276
        %v4787 = vunpack.c.h.b16 %v1276
        %v4788 = vunpack.c.l.b16 %v1277
        %v4789 = vunpack.c.h.b16 %v1277
        %v4790 = vunpack.c.l.b16 %v1278
        %v4791 = vunpack.c.h.b16 %v1278
        %v4792 = vunpack.c.l.b16 %v1279
        %v4793 = vunpack.c.h.b16 %v1279
        %v4794 = vunpack.c.l.b16 %v1280
        %v4795 = vunpack.c.h.b16 %v1280
        %v4796 = vunpack.c.l.b16 %v1281
        %v4797 = vunpack.c.h.b16 %v1281
        %v4798 = vunpack.c.l.b16 %v1282
        %v4799 = vunpack.c.h.b16 %v1282
        %v4800 = vunpack.c.l.b16 %v1283
        %v4801 = vunpack.c.h.b16 %v1283
        %v4802 = vunpack.c.l.b16 %v1284
        %v4803 = vunpack.c.l.b16 %v1285
        %v4804 = vunpack.c.h.b16 %v1285
        %v4805 = vunpack.c.l.b16 %v1286
        %v4806 = vunpack.c.h.b16 %v1286
        %v4807 = vunpack.c.l.b16 %v1287
        %v4808 = vunpack.c.h.b16 %v1287
        %v4809 = vunpack.c.l.b16 %v1288
        %v4810 = vunpack.c.h.b16 %v1288
        %v4811 = vunpack.c.l.b16 %v1289
        %v4812 = vunpack.c.h.b16 %v1289
        %v4813 = vunpack.c.l.b16 %v1290
        %v4814 = vunpack.c.h.b16 %v1290
        %v4815 = vunpack.c.l.b16 %v1291
        %v4816 = vunpack.c.h.b16 %v1291
        %v4817 = vunpack.c.l.b16 %v1292
        %v4818 = vunpack.c.h.b16 %v1292
        %v4819 = vunpack.c.l.b16 %v1293
        %v4820 = vunpack.c.h.b16 %v1293
        %v4821 = vunpack.c.l.b16 %v1294
        %v4822 = vunpack.c.l.b16 %v1295
        %v4823 = vunpack.c.h.b16 %v1295
        %v4824 = vunpack.c.l.b16 %v1296
        %v4825 = vunpack.c.h.b16 %v1296
        %v4826 = vunpack.c.l.b16 %v1297
        %v4827 = vunpack.c.h.b16 %v1297
        %v4828 = vunpack.c.l.b16 %v1298
        %v4829 = vunpack.c.h.b16 %v1298
        %v4830 = vunpack.c.l.b16 %v1299
        %v4831 = vunpack.c.h.b16 %v1299
        %v4832 = vunpack.c.l.b16 %v1300
        %v4833 = vunpack.c.h.b16 %v1300
        %v4834 = vunpack.c.l.b16 %v1301
        %v4835 = vunpack.c.h.b16 %v1301
        %v4836 = vunpack.c.l.b16 %v1302
        %v4837 = vunpack.c.h.b16 %v1302
        %v4838 = vunpack.c.l.b16 %v1303
        %v4839 = vunpack.c.h.b16 %v1303
        %v4840 = vunpack.c.l.b16 %v1304
        %v4841 = vunpack.c.l.b16 %v1305
        %v4842 = vunpack.c.h.b16 %v1305
        %v4843 = vunpack.c.l.b16 %v1306
        %v4844 = vunpack.c.h.b16 %v1306
        %v4845 = vunpack.c.l.b16 %v1307
        %v4846 = vunpack.c.h.b16 %v1307
        %v4847 = vunpack.c.l.b16 %v1308
        %v4848 = vunpack.c.h.b16 %v1308
        %v4849 = vunpack.c.l.b16 %v1309
        %v4850 = vunpack.c.h.b16 %v1309
        %v4851 = vunpack.c.l.b16 %v1310
        %v4852 = vunpack.c.h.b16 %v1310
        %v4853 = vunpack.c.l.b16 %v1311
        %v4854 = vunpack.c.h.b16 %v1311
        %v4855 = vunpack.c.l.b16 %v1312
        %v4856 = vunpack.c.h.b16 %v1312
        %v4857 = vunpack.c.l.b16 %v1313
        %v4858 = vunpack.c.h.b16 %v1313
        %v4859 = vunpack.c.l.b16 %v1314
        %v4860 = vunpack.c.l.b16 %v1315
        %v4861 = vunpack.c.h.b16 %v1315
        %v4862 = vunpack.c.l.b16 %v1316
        %v4863 = vunpack.c.h.b16 %v1316
        %v4864 = vunpack.c.l.b16 %v1317
        %v4865 = vunpack.c.h.b16 %v1317
        %v4866 = vunpack.c.l.b16 %v1318
        %v4867 = vunpack.c.h.b16 %v1318
        %v4868 = vunpack.c.l.b16 %v1319
        %v4869 = vunpack.c.h.b16 %v1319
        %v4870 = vunpack.c.l.b16 %v1320
        %v4871 = vunpack.c.h.b16 %v1320
        %v4872 = vunpack.c.l.b16 %v1321
        %v4873 = vunpack.c.h.b16 %v1321
        %v4874 = vunpack.c.l.b16 %v1322
        %v4875 = vunpack.c.h.b16 %v1322
        %v4876 = vunpack.c.l.b16 %v1323
        %v4877 = vunpack.c.h.b16 %v1323
        %v4878 = vunpack.c.l.b16 %v1324
        %v4879 = vunpack.c.l.b16 %v1325
        %v4880 = vunpack.c.h.b16 %v1325
        %v4881 = vunpack.c.l.b16 %v1326
        %v4882 = vunpack.c.h.b16 %v1326
        %v4883 = vunpack.c.l.b16 %v1327
        %v4884 = vunpack.c.h.b16 %v1327
        %v4885 = vunpack.c.l.b16 %v1328
        %v4886 = vunpack.c.h.b16 %v1328
        %v4887 = vunpack.c.l.b16 %v1329
        %v4888 = vunpack.c.h.b16 %v1329
        %v4889 = vunpack.c.l.b16 %v1330
        %v4890 = vunpack.c.h.b16 %v1330
        %v4891 = vunpack.c.l.b16 %v1331
        %v4892 = vunpack.c.h.b16 %v1331
        %v4893 = vunpack.c.l.b16 %v1332
        %v4894 = vunpack.c.h.b16 %v1332
        %v4895 = vunpack.c.l.b16 %v1333
        %v4896 = vunpack.c.h.b16 %v1333
        %v4897 = vunpack.c.l.b16 %v1334
        %v4898 = vunpack.c.l.b16 %v1335
        %v4899 = vunpack.c.h.b16 %v1335
        %v4900 = vunpack.c.l.b16 %v1336
        %v4901 = vunpack.c.h.b16 %v1336
        %v4902 = vunpack.c.l.b16 %v1337
        %v4903 = vunpack.c.h.b16 %v1337
        %v4904 = vunpack.c.l.b16 %v1338
        %v4905 = vunpack.c.h.b16 %v1338
        %v4906 = vunpack.c.l.b16 %v1339
        %v4907 = vunpack.c.h.b16 %v1339
        %v4908 = vunpack.c.l.b16 %v1340
        %v4909 = vunpack.c.h.b16 %v1340
        %v4910 = vunpack.c.l.b16 %v1341
        %v4911 = vunpack.c.h.b16 %v1341
        %v4912 = vunpack.c.l.b16 %v1342
        %v4913 = vunpack.c.h.b16 %v1342
        %v4914 = vunpack.c.l.b16 %v1343
        %v4915 = vunpack.c.h.b16 %v1343
        %v4916 = vunpack.c.l.b16 %v1344
        %v4917 = vunpack.c.l.b16 %v1345
        %v4918 = vunpack.c.h.b16 %v1345
        %v4919 = vunpack.c.l.b16 %v1346
        %v4920 = vunpack.c.h.b16 %v1346
        %v4921 = vunpack.c.l.b16 %v1347
        %v4922 = vunpack.c.h.b16 %v1347
        %v4923 = vunpack.c.l.b16 %v1348
        %v4924 = vunpack.c.h.b16 %v1348
        %v4925 = vunpack.c.l.b16 %v1349
        %v4926 = vunpack.c.h.b16 %v1349
        %v4927 = vunpack.c.l.b16 %v1350
        %v4928 = vunpack.c.h.b16 %v1350
        %v4929 = vunpack.c.l.b16 %v1351
        %v4930 = vunpack.c.h.b16 %v1351
        %v4931 = vunpack.c.l.b16 %v1352
        %v4932 = vunpack.c.h.b16 %v1352
        %v4933 = vunpack.c.l.b16 %v1353
        %v4934 = vunpack.c.h.b16 %v1353
        %v4935 = vunpack.c.l.b16 %v1354
        %v4936 = vunpack.c.l.b16 %v1355
        %v4937 = vunpack.c.h.b16 %v1355
        %v4938 = vunpack.c.l.b16 %v1356
        %v4939 = vunpack.c.h.b16 %v1356
        %v4940 = vunpack.c.l.b16 %v1357
        %v4941 = vunpack.c.h.b16 %v1357
        %v4942 = vunpack.c.l.b16 %v1358
        %v4943 = vunpack.c.h.b16 %v1358
        %v4944 = vunpack.c.l.b16 %v1359
        %v4945 = vunpack.c.h.b16 %v1359
        %v4946 = vunpack.c.l.b16 %v1360
        %v4947 = vunpack.c.h.b16 %v1360
        %v4948 = vunpack.c.l.b16 %v1361
        %v4949 = vunpack.c.h.b16 %v1361
        %v4950 = vunpack.c.l.b16 %v1362
        %v4951 = vunpack.c.h.b16 %v1362
        %v4952 = vunpack.c.l.b16 %v1363
        %v4953 = vunpack.c.h.b16 %v1363
        %v4954 = vunpack.c.l.b16 %v1364
        %v4955 = vunpack.c.l.b16 %v1365
        %v4956 = vunpack.c.h.b16 %v1365
        %v4957 = vunpack.c.l.b16 %v1366
        %v4958 = vunpack.c.h.b16 %v1366
        %v4959 = vunpack.c.l.b16 %v1367
        %v4960 = vunpack.c.h.b16 %v1367
        %v4961 = vunpack.c.l.b16 %v1368
        %v4962 = vunpack.c.h.b16 %v1368
        %v4963 = vunpack.c.l.b16 %v1369
        %v4964 = vunpack.c.h.b16 %v1369
        %v4965 = vunpack.c.l.b16 %v1370
        %v4966 = vunpack.c.h.b16 %v1370
        %v4967 = vunpack.c.l.b16 %v1371
        %v4968 = vunpack.c.h.b16 %v1371
        %v4969 = vunpack.c.l.b16 %v1372
        %v4970 = vunpack.c.h.b16 %v1372
        %v4971 = vunpack.c.l.b16 %v1373
        %v4972 = vunpack.c.h.b16 %v1373
        %v4973 = vunpack.c.l.b16 %v1374
        %v4974 = vunpack.c.l.b16 %v1375
        %v4975 = vunpack.c.h.b16 %v1375
        %v4976 = vunpack.c.l.b16 %v1376
        %v4977 = vunpack.c.h.b16 %v1376
        %v4978 = vunpack.c.l.b16 %v1377
        %v4979 = vunpack.c.h.b16 %v1377
        %v4980 = vunpack.c.l.b16 %v1378
        %v4981 = vunpack.c.h.b16 %v1378
        %v4982 = vunpack.c.l.b16 %v1379
        %v4983 = vunpack.c.h.b16 %v1379
        %v4984 = vunpack.c.l.b16 %v1380
        %v4985 = vunpack.c.h.b16 %v1380
        %v4986 = vunpack.c.l.b16 %v1381
        %v4987 = vunpack.c.h.b16 %v1381
        %v4988 = vunpack.c.l.b16 %v1382
        %v4989 = vunpack.c.h.b16 %v1382
        %v4990 = vunpack.c.l.b16 %v1383
        %v4991 = vunpack.c.h.b16 %v1383
        %v4992 = vunpack.c.l.b16 %v1384
        %v4993 = vunpack.c.l.b16 %v1385
        %v4994 = vunpack.c.h.b16 %v1385
        %v4995 = vunpack.c.l.b16 %v1386
        %v4996 = vunpack.c.h.b16 %v1386
        %v4997 = vunpack.c.l.b16 %v1387
        %v4998 = vunpack.c.h.b16 %v1387
        %v4999 = vunpack.c.l.b16 %v1388
        %v5000 = vunpack.c.h.b16 %v1388
        %v5001 = vunpack.c.l.b16 %v1389
        %v5002 = vunpack.c.h.b16 %v1389
        %v5003 = vunpack.c.l.b16 %v1390
        %v5004 = vunpack.c.h.b16 %v1390
        %v5005 = vunpack.c.l.b16 %v1391
        %v5006 = vunpack.c.h.b16 %v1391
        %v5007 = vunpack.c.l.b16 %v1392
        %v5008 = vunpack.c.h.b16 %v1392
        %v5009 = vunpack.c.l.b16 %v1393
        %v5010 = vunpack.c.h.b16 %v1393
        %v5011 = vunpack.c.l.b16 %v1394
        %v5012 = vunpack.c.l.b16 %v1395
        %v5013 = vunpack.c.h.b16 %v1395
        %v5014 = vunpack.c.l.b16 %v1396
        %v5015 = vunpack.c.h.b16 %v1396
        %v5016 = vunpack.c.l.b16 %v1397
        %v5017 = vunpack.c.h.b16 %v1397
        %v5018 = vunpack.c.l.b16 %v1398
        %v5019 = vunpack.c.h.b16 %v1398
        %v5020 = vunpack.c.l.b16 %v1399
        %v5021 = vunpack.c.h.b16 %v1399
        %v5022 = vunpack.c.l.b16 %v1400
        %v5023 = vunpack.c.h.b16 %v1400
        %v5024 = vunpack.c.l.b16 %v1401
        %v5025 = vunpack.c.h.b16 %v1401
        %v5026 = vunpack.c.l.b16 %v1402
        %v5027 = vunpack.c.h.b16 %v1402
        %v5028 = vunpack.c.l.b16 %v1403
        %v5029 = vunpack.c.h.b16 %v1403
        %v5030 = vunpack.c.l.b16 %v1404
        %v5031 = vunpack.c.l.b16 %v1405
        %v5032 = vunpack.c.h.b16 %v1405
        %v5033 = vunpack.c.l.b16 %v1406
        %v5034 = vunpack.c.h.b16 %v1406
        %v5035 = vunpack.c.l.b16 %v1407
        %v5036 = vunpack.c.h.b16 %v1407
        %v5037 = vunpack.c.l.b16 %v1408
        %v5038 = vunpack.c.h.b16 %v1408
        %v5039 = vunpack.c.l.b16 %v1409
        %v5040 = vunpack.c.h.b16 %v1409
        %v5041 = vunpack.c.l.b16 %v1410
        %v5042 = vunpack.c.h.b16 %v1410
        %v5043 = vunpack.c.l.b16 %v1411
        %v5044 = vunpack.c.h.b16 %v1411
        %v5045 = vunpack.c.l.b16 %v1412
        %v5046 = vunpack.c.h.b16 %v1412
        %v5047 = vunpack.c.l.b16 %v1413
        %v5048 = vunpack.c.h.b16 %v1413
        %v5049 = vunpack.c.l.b16 %v1414
        %v5050 = vunpack.c.l.b16 %v1415
        %v5051 = vunpack.c.h.b16 %v1415
        %v5052 = vunpack.c.l.b16 %v1416
        %v5053 = vunpack.c.h.b16 %v1416
        %v5054 = vunpack.c.l.b16 %v1417
        %v5055 = vunpack.c.h.b16 %v1417
        %v5056 = vunpack.c.l.b16 %v1418
        %v5057 = vunpack.c.h.b16 %v1418
        %v5058 = vunpack.c.l.b16 %v1419
        %v5059 = vunpack.c.h.b16 %v1419
        %v5060 = vunpack.c.l.b16 %v1420
        %v5061 = vunpack.c.h.b16 %v1420
        %v5062 = vunpack.c.l.b16 %v1421
        %v5063 = vunpack.c.h.b16 %v1421
        %v5064 = vunpack.c.l.b16 %v1422
        %v5065 = vunpack.c.h.b16 %v1422
        %v5066 = vunpack.c.l.b16 %v1423
        %v5067 = vunpack.c.h.b16 %v1423
        %v5068 = vunpack.c.l.b16 %v1424
        %v5069 = vunpack.c.l.b16 %v1425
        %v5070 = vunpack.c.h.b16 %v1425
        %v5071 = vunpack.c.l.b16 %v1426
        %v5072 = vunpack.c.h.b16 %v1426
        %v5073 = vunpack.c.l.b16 %v1427
        %v5074 = vunpack.c.h.b16 %v1427
        %v5075 = vunpack.c.l.b16 %v1428
        %v5076 = vunpack.c.h.b16 %v1428
        %v5077 = vunpack.c.l.b16 %v1429
        %v5078 = vunpack.c.h.b16 %v1429
        %v5079 = vunpack.c.l.b16 %v1430
        %v5080 = vunpack.c.h.b16 %v1430
        %v5081 = vunpack.c.l.b16 %v1431
        %v5082 = vunpack.c.h.b16 %v1431
        %v5083 = vunpack.c.l.b16 %v1432
        %v5084 = vunpack.c.h.b16 %v1432
        %v5085 = vunpack.c.l.b16 %v1433
        %v5086 = vunpack.c.h.b16 %v1433
        %v5087 = vunpack.c.l.b16 %v1434
        %v5088 = vunpack.c.l.b16 %v1435
        %v5089 = vunpack.c.h.b16 %v1435
        %v5090 = vunpack.c.l.b16 %v1436
        %v5091 = vunpack.c.h.b16 %v1436
        %v5092 = vunpack.c.l.b16 %v1437
        %v5093 = vunpack.c.h.b16 %v1437
        %v5094 = vunpack.c.l.b16 %v1438
        %v5095 = vunpack.c.h.b16 %v1438
        %v5096 = vunpack.c.l.b16 %v1439
        %v5097 = vunpack.c.h.b16 %v1439
        %v5098 = vunpack.c.l.b16 %v1440
        %v5099 = vunpack.c.h.b16 %v1440
        %v5100 = vunpack.c.l.b16 %v1441
        %v5101 = vunpack.c.h.b16 %v1441
        %v5102 = vunpack.c.l.b16 %v1442
        %v5103 = vunpack.c.h.b16 %v1442
        %v5104 = vunpack.c.l.b16 %v1443
        %v5105 = vunpack.c.h.b16 %v1443
        %v5106 = vunpack.c.l.b16 %v1444
        %v5107 = vunpack.c.l.b16 %v1445
        %v5108 = vunpack.c.h.b16 %v1445
        %v5109 = vunpack.c.l.b16 %v1446
        %v5110 = vunpack.c.h.b16 %v1446
        %v5111 = vunpack.c.l.b16 %v1447
        %v5112 = vunpack.c.h.b16 %v1447
        %v5113 = vunpack.c.l.b16 %v1448
        %v5114 = vunpack.c.h.b16 %v1448
        %v5115 = vunpack.c.l.b16 %v1449
        %v5116 = vunpack.c.h.b16 %v1449
        %v5117 = vunpack.c.l.b16 %v1450
        %v5118 = vunpack.c.h.b16 %v1450
        %v5119 = vunpack.c.l.b16 %v1451
        %v5120 = vunpack.c.h.b16 %v1451
        %v5121 = vunpack.c.l.b16 %v1452
        %v5122 = vunpack.c.h.b16 %v1452
        %v5123 = vunpack.c.l.b16 %v1453
        %v5124 = vunpack.c.h.b16 %v1453
        %v5125 = vunpack.c.l.b16 %v1454
        %v5126 = vunpack.c.l.b16 %v1455
        %v5127 = vunpack.c.h.b16 %v1455
        %v5128 = vunpack.c.l.b16 %v1456
        %v5129 = vunpack.c.h.b16 %v1456
        %v5130 = vunpack.c.l.b16 %v1457
        %v5131 = vunpack.c.h.b16 %v1457
        %v5132 = vunpack.c.l.b16 %v1458
        %v5133 = vunpack.c.h.b16 %v1458
        %v5134 = vunpack.c.l.b16 %v1459
        %v5135 = vunpack.c.h.b16 %v1459
        %v5136 = vunpack.c.l.b16 %v1460
        %v5137 = vunpack.c.h.b16 %v1460
        %v5138 = vunpack.c.l.b16 %v1461
        %v5139 = vunpack.c.h.b16 %v1461
        %v5140 = vunpack.c.l.b16 %v1462
        %v5141 = vunpack.c.h.b16 %v1462
        %v5142 = vunpack.c.l.b16 %v1463
        %v5143 = vunpack.c.h.b16 %v1463
        %v5144 = vunpack.c.l.b16 %v1464
        %v5145 = vunpack.c.l.b16 %v1465
        %v5146 = vunpack.c.h.b16 %v1465
        %v5147 = vunpack.c.l.b16 %v1466
        %v5148 = vunpack.c.h.b16 %v1466
        %v5149 = vunpack.c.l.b16 %v1467
        %v5150 = vunpack.c.h.b16 %v1467
        %v5151 = vunpack.c.l.b16 %v1468
        %v5152 = vunpack.c.h.b16 %v1468
        %v5153 = vunpack.c.l.b16 %v1469
        %v5154 = vunpack.c.h.b16 %v1469
        %v5155 = vunpack.c.l.b16 %v1470
        %v5156 = vunpack.c.h.b16 %v1470
        %v5157 = vunpack.c.l.b16 %v1471
        %v5158 = vunpack.c.h.b16 %v1471
        %v5159 = vunpack.c.l.b16 %v1472
        %v5160 = vunpack.c.h.b16 %v1472
        %v5161 = vunpack.c.l.b16 %v1473
        %v5162 = vunpack.c.h.b16 %v1473
        %v5163 = vunpack.c.l.b16 %v1474
        %v5164 = vunpack.c.l.b16 %v1475
        %v5165 = vunpack.c.h.b16 %v1475
        %v5166 = vunpack.c.l.b16 %v1476
        %v5167 = vunpack.c.h.b16 %v1476
        %v5168 = vunpack.c.l.b16 %v1477
        %v5169 = vunpack.c.h.b16 %v1477
        %v5170 = vunpack.c.l.b16 %v1478
        %v5171 = vunpack.c.h.b16 %v1478
        %v5172 = vunpack.c.l.b16 %v1479
        %v5173 = vunpack.c.h.b16 %v1479
        %v5174 = vunpack.c.l.b16 %v1480
        %v5175 = vunpack.c.h.b16 %v1480
        %v5176 = vunpack.c.l.b16 %v1481
        %v5177 = vunpack.c.h.b16 %v1481
        %v5178 = vunpack.c.l.b16 %v1482
        %v5179 = vunpack.c.h.b16 %v1482
        %v5180 = vunpack.c.l.b16 %v1483
        %v5181 = vunpack.c.h.b16 %v1483
        %v5182 = vunpack.c.l.b16 %v1484
        %v5183 = vunpack.c.l.b16 %v1485
        %v5184 = vunpack.c.h.b16 %v1485
        %v5185 = vunpack.c.l.b16 %v1486
        %v5186 = vunpack.c.h.b16 %v1486
        %v5187 = vunpack.c.l.b16 %v1487
        %v5188 = vunpack.c.h.b16 %v1487
        %v5189 = vunpack.c.l.b16 %v1488
        %v5190 = vunpack.c.h.b16 %v1488
        %v5191 = vunpack.c.l.b16 %v1489
        %v5192 = vunpack.c.h.b16 %v1489
        %v5193 = vunpack.c.l.b16 %v1490
        %v5194 = vunpack.c.h.b16 %v1490
        %v5195 = vunpack.c.l.b16 %v1491
        %v5196 = vunpack.c.h.b16 %v1491
        %v5197 = vunpack.c.l.b16 %v1492
        %v5198 = vunpack.c.h.b16 %v1492
        %v5199 = vunpack.c.l.b16 %v1493
        %v5200 = vunpack.c.h.b16 %v1493
        %v5201 = vunpack.c.l.b16 %v1494
        %v5202 = vunpack.c.l.b16 %v1495
        %v5203 = vunpack.c.h.b16 %v1495
        %v5204 = vunpack.c.l.b16 %v1496
        %v5205 = vunpack.c.h.b16 %v1496
        %v5206 = vunpack.c.l.b16 %v1497
        %v5207 = vunpack.c.h.b16 %v1497
        %v5208 = vunpack.c.l.b16 %v1498
        %v5209 = vunpack.c.h.b16 %v1498
        %v5210 = vunpack.c.l.b16 %v1499
        %v5211 = vunpack.c.h.b16 %v1499
        %v5212 = vunpack.c.l.b16 %v1500
        %v5213 = vunpack.c.h.b16 %v1500
        %v5214 = vunpack.c.l.b16 %v1501
        %v5215 = vunpack.c.h.b16 %v1501
        %v5216 = vunpack.c.l.b16 %v1502
        %v5217 = vunpack.c.h.b16 %v1502
        %v5218 = vunpack.c.l.b16 %v1503
        %v5219 = vunpack.c.h.b16 %v1503
        %v5220 = vunpack.c.l.b16 %v1504
        %v5221 = vunpack.c.l.b16 %v1505
        %v5222 = vunpack.c.h.b16 %v1505
        %v5223 = vunpack.c.l.b16 %v1506
        %v5224 = vunpack.c.h.b16 %v1506
        %v5225 = vunpack.c.l.b16 %v1507
        %v5226 = vunpack.c.h.b16 %v1507
        %v5227 = vunpack.c.l.b16 %v1508
        %v5228 = vunpack.c.h.b16 %v1508
        %v5229 = vunpack.c.l.b16 %v1509
        %v5230 = vunpack.c.h.b16 %v1509
        %v5231 = vunpack.c.l.b16 %v1510
        %v5232 = vunpack.c.h.b16 %v1510
        %v5233 = vunpack.c.l.b16 %v1511
        %v5234 = vunpack.c.h.b16 %v1511
        %v5235 = vunpack.c.l.b16 %v1512
        %v5236 = vunpack.c.h.b16 %v1512
        %v5237 = vunpack.c.l.b16 %v1513
        %v5238 = vunpack.c.h.b16 %v1513
        %v5239 = vunpack.c.l.b16 %v1514
        %v5240 = vunpack.c.l.b16 %v1515
        %v5241 = vunpack.c.h.b16 %v1515
        %v5242 = vunpack.c.l.b16 %v1516
        %v5243 = vunpack.c.h.b16 %v1516
        %v5244 = vunpack.c.l.b16 %v1517
        %v5245 = vunpack.c.h.b16 %v1517
        %v5246 = vunpack.c.l.b16 %v1518
        %v5247 = vunpack.c.h.b16 %v1518
        %v5248 = vunpack.c.l.b16 %v1519
        %v5249 = vunpack.c.h.b16 %v1519
        %v5250 = vunpack.c.l.b16 %v1520
        %v5251 = vunpack.c.h.b16 %v1520
        %v5252 = vunpack.c.l.b16 %v1521
        %v5253 = vunpack.c.h.b16 %v1521
        %v5254 = vunpack.c.l.b16 %v1522
        %v5255 = vunpack.c.h.b16 %v1522
        %v5256 = vunpack.c.l.b16 %v1523
        %v5257 = vunpack.c.h.b16 %v1523
        %v5258 = vunpack.c.l.b16 %v1524
        %v5259 = vunpack.c.l.b16 %v1525
        %v5260 = vunpack.c.h.b16 %v1525
        %v5261 = vunpack.c.l.b16 %v1526
        %v5262 = vunpack.c.h.b16 %v1526
        %v5263 = vunpack.c.l.b16 %v1527
        %v5264 = vunpack.c.h.b16 %v1527
        %v5265 = vunpack.c.l.b16 %v1528
        %v5266 = vunpack.c.h.b16 %v1528
        %v5267 = vunpack.c.l.b16 %v1529
        %v5268 = vunpack.c.h.b16 %v1529
        %v5269 = vunpack.c.l.b16 %v1530
        %v5270 = vunpack.c.h.b16 %v1530
        %v5271 = vunpack.c.l.b16 %v1531
        %v5272 = vunpack.c.h.b16 %v1531
        %v5273 = vunpack.c.l.b16 %v1532
        %v5274 = vunpack.c.h.b16 %v1532
        %v5275 = vunpack.c.l.b16 %v1533
        %v5276 = vunpack.c.h.b16 %v1533
        %v5277 = vunpack.c.l.b16 %v1534
        %v5278 = vunpack.c.l.b16 %v1535
        %v5279 = vunpack.c.h.b16 %v1535
        %v5280 = vunpack.c.l.b16 %v1536
        %v5281 = vunpack.c.h.b16 %v1536
        %v5282 = vunpack.c.l.b16 %v1537
        %v5283 = vunpack.c.h.b16 %v1537
        %v5284 = vunpack.c.l.b16 %v1538
        %v5285 = vunpack.c.h.b16 %v1538
        %v5286 = vunpack.c.l.b16 %v1539
        %v5287 = vunpack.c.h.b16 %v1539
        %v5288 = vunpack.c.l.b16 %v1540
        %v5289 = vunpack.c.h.b16 %v1540
        %v5290 = vunpack.c.l.b16 %v1541
        %v5291 = vunpack.c.h.b16 %v1541
        %v5292 = vunpack.c.l.b16 %v1542
        %v5293 = vunpack.c.h.b16 %v1542
        %v5294 = vunpack.c.l.b16 %v1543
        %v5295 = vunpack.c.h.b16 %v1543
        %v5296 = vunpack.c.l.b16 %v1544
        %v5297 = vunpack.c.l.b16 %v1545
        %v5298 = vunpack.c.h.b16 %v1545
        %v5299 = vunpack.c.l.b16 %v1546
        %v5300 = vunpack.c.h.b16 %v1546
        %v5301 = vunpack.c.l.b16 %v1547
        %v5302 = vunpack.c.h.b16 %v1547
        %v5303 = vunpack.c.l.b16 %v1548
        %v5304 = vunpack.c.h.b16 %v1548
        %v5305 = vunpack.c.l.b16 %v1549
        %v5306 = vunpack.c.h.b16 %v1549
        %v5307 = vunpack.c.l.b16 %v1550
        %v5308 = vunpack.c.h.b16 %v1550
        %v5309 = vunpack.c.l.b16 %v1551
        %v5310 = vunpack.c.h.b16 %v1551
        %v5311 = vunpack.c.l.b16 %v1552
        %v5312 = vunpack.c.h.b16 %v1552
        %v5313 = vunpack.c.l.b16 %v1553
        %v5314 = vunpack.c.h.b16 %v1553
        %v5315 = vunpack.c.l.b16 %v1554
        %v5316 = vunpack.c.l.b16 %v1555
        %v5317 = vunpack.c.h.b16 %v1555
        %v5318 = vunpack.c.l.b16 %v1556
        %v5319 = vunpack.c.h.b16 %v1556
        %v5320 = vunpack.c.l.b16 %v1557
        %v5321 = vunpack.c.h.b16 %v1557
        %v5322 = vunpack.c.l.b16 %v1558
        %v5323 = vunpack.c.h.b16 %v1558
        %v5324 = vunpack.c.l.b16 %v1559
        %v5325 = vunpack.c.h.b16 %v1559
        %v5326 = vunpack.c.l.b16 %v1560
        %v5327 = vunpack.c.h.b16 %v1560
        %v5328 = vunpack.c.l.b16 %v1561
        %v5329 = vunpack.c.h.b16 %v1561
        %v5330 = vunpack.c.l.b16 %v1562
        %v5331 = vunpack.c.h.b16 %v1562
        %v5332 = vunpack.c.l.b16 %v1563
        %v5333 = vunpack.c.h.b16 %v1563
        %v5334 = vunpack.c.l.b16 %v1564
        %v5335 = vpack.c.b16 %v2922, %v2903
        %v5336 = vpack.c.b16 %v2923, %v2904
        %v5337 = vpack.c.b16 %v2924, %v2905
        %v5338 = vpack.c.b16 %v2925, %v2906
        %v5339 = vpack.c.b16 %v2926, %v2907
        %v5340 = vpack.c.b16 %v2927, %v2908
        %v5341 = vpack.c.b16 %v2928, %v2909
        %v5342 = vpack.c.b16 %v2929, %v2910
        %v5343 = vpack.c.b16 %v2930, %v2911
        %v5344 = vpack.c.b16 %v2931, %v2912
        %v5345 = vpack.c.b16 %v2932, %v2913
        %v5346 = vpack.c.b16 %v2933, %v2914
        %v5347 = vpack.c.b16 %v2934, %v2915
        %v5348 = vpack.c.b16 %v2935, %v2916
        %v5349 = vpack.c.b16 %v2936, %v2917
        %v5350 = vpack.c.b16 %v2937, %v2918
        %v5351 = vpack.c.b16 %v2938, %v2919
        %v5352 = vpack.c.b16 %v2939, %v2920
        %v5353 = vpack.c.b16 %v2940, %v2921
        %v5354 = vpack.c.b16 %v2960, %v2941
        %v5355 = vpack.c.b16 %v2961, %v2942
        %v5356 = vpack.c.b16 %v2962, %v2943
        %v5357 = vpack.c.b16 %v2963, %v2944
        %v5358 = vpack.c.b16 %v2964, %v2945
        %v5359 = vpack.c.b16 %v2965, %v2946
        %v5360 = vpack.c.b16 %v2966, %v2947
        %v5361 = vpack.c.b16 %v2967, %v2948
        %v5362 = vpack.c.b16 %v2968, %v2949
        %v5363 = vpack.c.b16 %v2969, %v2950
        %v5364 = vpack.c.b16 %v2970, %v2951
        %v5365 = vpack.c.b16 %v2971, %v2952
        %v5366 = vpack.c.b16 %v2972, %v2953
        %v5367 = vpack.c.b16 %v2973, %v2954
        %v5368 = vpack.c.b16 %v2974, %v2955
        %v5369 = vpack.c.b16 %v2975, %v2956
        %v5370 = vpack.c.b16 %v2976, %v2957
        %v5371 = vpack.c.b16 %v2977, %v2958
        %v5372 = vpack.c.b16 %v2978, %v2959
        %v5373 = vpack.c.b16 %v2998, %v2979
        %v5374 = vpack.c.b16 %v2999, %v2980
        %v5375 = vpack.c.b16 %v3000, %v2981
        %v5376 = vpack.c.b16 %v3001, %v2982
        %v5377 = vpack.c.b16 %v3002, %v2983
        %v5378 = vpack.c.b16 %v3003, %v2984
        %v5379 = vpack.c.b16 %v3004, %v2985
        %v5380 = vpack.c.b16 %v3005, %v2986
        %v5381 = vpack.c.b16 %v3006, %v2987
        %v5382 = vpack.c.b16 %v3007, %v2988
        %v5383 = vpack.c.b16 %v3008, %v2989
        %v5384 = vpack.c.b16 %v3009, %v2990
        %v5385 = vpack.c.b16 %v3010, %v2991
        %v5386 = vpack.c.b16 %v3011, %v2992
        %v5387 = vpack.c.b16 %v3012, %v2993
        %v5388 = vpack.c.b16 %v3013, %v2994
        %v5389 = vpack.c.b16 %v3014, %v2995
        %v5390 = vpack.c.b16 %v3015, %v2996
        %v5391 = vpack.c.b16 %v3016, %v2997
        %v5392 = vpack.c.b16 %v3036, %v3017
        %v5393 = vpack.c.b16 %v3037, %v3018
        %v5394 = vpack.c.b16 %v3038, %v3019
        %v5395 = vpack.c.b16 %v3039, %v3020
        %v5396 = vpack.c.b16 %v3040, %v3021
        %v5397 = vpack.c.b16 %v3041, %v3022
        %v5398 = vpack.c.b16 %v3042, %v3023
        %v5399 = vpack.c.b16 %v3043, %v3024
        %v5400 = vpack.c.b16 %v3044, %v3025
        %v5401 = vpack.c.b16 %v3045, %v3026
        %v5402 = vpack.c.b16 %v3046, %v3027
        %v5403 = vpack.c.b16 %v3047, %v3028
        %v5404 = vpack.c.b16 %v3048, %v3029
        %v5405 = vpack.c.b16 %v3049, %v3030
        %v5406 = vpack.c.b16 %v3050, %v3031
        %v5407 = vpack.c.b16 %v3051, %v3032
        %v5408 = vpack.c.b16 %v3052, %v3033
        %v5409 = vpack.c.b16 %v3053, %v3034
        %v5410 = vpack.c.b16 %v3054, %v3035
        %v5411 = vpack.c.b16 %v3074, %v3055
        %v5412 = vpack.c.b16 %v3075, %v3056
        %v5413 = vpack.c.b16 %v3076, %v3057
        %v5414 = vpack.c.b16 %v3077, %v3058
        %v5415 = vpack.c.b16 %v3078, %v3059
        %v5416 = vpack.c.b16 %v3079, %v3060
        %v5417 = vpack.c.b16 %v3080, %v3061
        %v5418 = vpack.c.b16 %v3081, %v3062
        %v5419 = vpack.c.b16 %v3082, %v3063
        %v5420 = vpack.c.b16 %v3083, %v3064
        %v5421 = vpack.c.b16 %v3084, %v3065
        %v5422 = vpack.c.b16 %v3085, %v3066
        %v5423 = vpack.c.b16 %v3086, %v3067
        %v5424 = vpack.c.b16 %v3087, %v3068
        %v5425 = vpack.c.b16 %v3088, %v3069
        %v5426 = vpack.c.b16 %v3089, %v3070
        %v5427 = vpack.c.b16 %v3090, %v3071
        %v5428 = vpack.c.b16 %v3091, %v3072
        %v5429 = vpack.c.b16 %v3092, %v3073
        %v5430 = vpack.c.b16 %v3112, %v3093
        %v5431 = vpack.c.b16 %v3113, %v3094
        %v5432 = vpack.c.b16 %v3114, %v3095
        %v5433 = vpack.c.b16 %v3115, %v3096
        %v5434 = vpack.c.b16 %v3116, %v3097
        %v5435 = vpack.c.b16 %v3117, %v3098
        %v5436 = vpack.c.b16 %v3118, %v3099
        %v5437 = vpack.c.b16 %v3119, %v3100
        %v5438 = vpack.c.b16 %v3120, %v3101
        %v5439 = vpack.c.b16 %v3121, %v3102
        %v5440 = vpack.c.b16 %v3122, %v3103
        %v5441 = vpack.c.b16 %v3123, %v3104
        %v5442 = vpack.c.b16 %v3124, %v3105
        %v5443 = vpack.c.b16 %v3125, %v3106
        %v5444 = vpack.c.b16 %v3126, %v3107
        %v5445 = vpack.c.b16 %v3127, %v3108
        %v5446 = vpack.c.b16 %v3128, %v3109
        %v5447 = vpack.c.b16 %v3129, %v3110
        %v5448 = vpack.c.b16 %v3130, %v3111
        %v5449 = vpack.c.b16 %v3150, %v3131
        %v5450 = vpack.c.b16 %v3151, %v3132
        %v5451 = vpack.c.b16 %v3152, %v3133
        %v5452 = vpack.c.b16 %v3153, %v3134
        %v5453 = vpack.c.b16 %v3154, %v3135
        %v5454 = vpack.c.b16 %v3155, %v3136
        %v5455 = vpack.c.b16 %v3156, %v3137
        %v5456 = vpack.c.b16 %v3157, %v3138
        %v5457 = vpack.c.b16 %v3158, %v3139
        %v5458 = vpack.c.b16 %v3159, %v3140
        %v5459 = vpack.c.b16 %v3160, %v3141
        %v5460 = vpack.c.b16 %v3161, %v3142
        %v5461 = vpack.c.b16 %v3162, %v3143
        %v5462 = vpack.c.b16 %v3163, %v3144
        %v5463 = vpack.c.b16 %v3164, %v3145
        %v5464 = vpack.c.b16 %v3165, %v3146
        %v5465 = vpack.c.b16 %v3166, %v3147
        %v5466 = vpack.c.b16 %v3167, %v3148
        %v5467 = vpack.c.b16 %v3168, %v3149
        %v5468 = vpack.c.b16 %v3188, %v3169
        %v5469 = vpack.c.b16 %v3189, %v3170
        %v5470 = vpack.c.b16 %v3190, %v3171
        %v5471 = vpack.c.b16 %v3191, %v3172
        %v5472 = vpack.c.b16 %v3192, %v3173
        %v5473 = vpack.c.b16 %v3193, %v3174
        %v5474 = vpack.c.b16 %v3194, %v3175
        %v5475 = vpack.c.b16 %v3195, %v3176
        %v5476 = vpack.c.b16 %v3196, %v3177
        %v5477 = vpack.c.b16 %v3197, %v3178
        %v5478 = vpack.c.b16 %v3198, %v3179
        %v5479 = vpack.c.b16 %v3199, %v3180
        %v5480 = vpack.c.b16 %v3200, %v3181
        %v5481 = vpack.c.b16 %v3201, %v3182
        %v5482 = vpack.c.b16 %v3202, %v3183
        %v5483 = vpack.c.b16 %v3203, %v3184
        %v5484 = vpack.c.b16 %v3204, %v3185
        %v5485 = vpack.c.b16 %v3205, %v3186
        %v5486 = vpack.c.b16 %v3206, %v3187
        %v5487 = vpack.c.b16 %v3226, %v3207
        %v5488 = vpack.c.b16 %v3227, %v3208
        %v5489 = vpack.c.b16 %v3228, %v3209
        %v5490 = vpack.c.b16 %v3229, %v3210
        %v5491 = vpack.c.b16 %v3230, %v3211
        %v5492 = vpack.c.b16 %v3231, %v3212
        %v5493 = vpack.c.b16 %v3232, %v3213
        %v5494 = vpack.c.b16 %v3233, %v3214
        %v5495 = vpack.c.b16 %v3234, %v3215
        %v5496 = vpack.c.b16 %v3235, %v3216
        %v5497 = vpack.c.b16 %v3236, %v3217
        %v5498 = vpack.c.b16 %v3237, %v3218
        %v5499 = vpack.c.b16 %v3238, %v3219
        %v5500 = vpack.c.b16 %v3239, %v3220
        %v5501 = vpack.c.b16 %v3240, %v3221
        %v5502 = vpack.c.b16 %v3241, %v3222
        %v5503 = vpack.c.b16 %v3242, %v3223
        %v5504 = vpack.c.b16 %v3243, %v3224
        %v5505 = vpack.c.b16 %v3244, %v3225
        %v5506 = vpack.c.b16 %v3264, %v3245
        %v5507 = vpack.c.b16 %v3265, %v3246
        %v5508 = vpack.c.b16 %v3266, %v3247
        %v5509 = vpack.c.b16 %v3267, %v3248
        %v5510 = vpack.c.b16 %v3268, %v3249
        %v5511 = vpack.c.b16 %v3269, %v3250
        %v5512 = vpack.c.b16 %v3270, %v3251
        %v5513 = vpack.c.b16 %v3271, %v3252
        %v5514 = vpack.c.b16 %v3272, %v3253
        %v5515 = vpack.c.b16 %v3273, %v3254
        %v5516 = vpack.c.b16 %v3274, %v3255
        %v5517 = vpack.c.b16 %v3275, %v3256
        %v5518 = vpack.c.b16 %v3276, %v3257
        %v5519 = vpack.c.b16 %v3277, %v3258
        %v5520 = vpack.c.b16 %v3278, %v3259
        %v5521 = vpack.c.b16 %v3279, %v3260
        %v5522 = vpack.c.b16 %v3280, %v3261
        %v5523 = vpack.c.b16 %v3281, %v3262
        %v5524 = vpack.c.b16 %v3282, %v3263
        %v5525 = vpack.c.b16 %v3302, %v3283
        %v5526 = vpack.c.b16 %v3303, %v3284
        %v5527 = vpack.c.b16 %v3304, %v3285
        %v5528 = vpack.c.b16 %v3305, %v3286
        %v5529 = vpack.c.b16 %v3306, %v3287
        %v5530 = vpack.c.b16 %v3307, %v3288
        %v5531 = vpack.c.b16 %v3308, %v3289
        %v5532 = vpack.c.b16 %v3309, %v3290
        %v5533 = vpack.c.b16 %v3310, %v3291
        %v5534 = vpack.c.b16 %v3311, %v3292
        %v5535 = vpack.c.b16 %v3312, %v3293
        %v5536 = vpack.c.b16 %v3313, %v3294
        %v5537 = vpack.c.b16 %v3314, %v3295
        %v5538 = vpack.c.b16 %v3315, %v3296
        %v5539 = vpack.c.b16 %v3316, %v3297
        %v5540 = vpack.c.b16 %v3317, %v3298
        %v5541 = vpack.c.b16 %v3318, %v3299
        %v5542 = vpack.c.b16 %v3319, %v3300
        %v5543 = vpack.c.b16 %v3320, %v3301
        %v5544 = vpack.c.b16 %v3340, %v3321
        %v5545 = vpack.c.b16 %v3341, %v3322
        %v5546 = vpack.c.b16 %v3342, %v3323
        %v5547 = vpack.c.b16 %v3343, %v3324
        %v5548 = vpack.c.b16 %v3344, %v3325
        %v5549 = vpack.c.b16 %v3345, %v3326
        %v5550 = vpack.c.b16 %v3346, %v3327
        %v5551 = vpack.c.b16 %v3347, %v3328
        %v5552 = vpack.c.b16 %v3348, %v3329
        %v5553 = vpack.c.b16 %v3349, %v3330
        %v5554 = vpack.c.b16 %v3350, %v3331
        %v5555 = vpack.c.b16 %v3351, %v3332
        %v5556 = vpack.c.b16 %v3352, %v3333
        %v5557 = vpack.c.b16 %v3353, %v3334
        %v5558 = vpack.c.b16 %v3354, %v3335
        %v5559 = vpack.c.b16 %v3355, %v3336
        %v5560 = vpack.c.b16 %v3356, %v3337
        %v5561 = vpack.c.b16 %v3357, %v3338
        %v5562 = vpack.c.b16 %v3358, %v3339
        %v5563 = vpack.c.b16 %v3378, %v3359
        %v5564 = vpack.c.b16 %v3379, %v3360
        %v5565 = vpack.c.b16 %v3380, %v3361
        %v5566 = vpack.c.b16 %v3381, %v3362
        %v5567 = vpack.c.b16 %v3382, %v3363
        %v5568 = vpack.c.b16 %v3383, %v3364
        %v5569 = vpack.c.b16 %v3384, %v3365
        %v5570 = vpack.c.b16 %v3385, %v3366
        %v5571 = vpack.c.b16 %v3386, %v3367
        %v5572 = vpack.c.b16 %v3387, %v3368
        %v5573 = vpack.c.b16 %v3388, %v3369
        %v5574 = vpack.c.b16 %v3389, %v3370
        %v5575 = vpack.c.b16 %v3390, %v3371
        %v5576 = vpack.c.b16 %v3391, %v3372
        %v5577 = vpack.c.b16 %v3392, %v3373
        %v5578 = vpack.c.b16 %v3393, %v3374
        %v5579 = vpack.c.b16 %v3394, %v3375
        %v5580 = vpack.c.b16 %v3395, %v3376
        %v5581 = vpack.c.b16 %v3396, %v3377
        %v5582 = vpack.c.b16 %v3416, %v3397
        %v5583 = vpack.c.b16 %v3417, %v3398
        %v5584 = vpack.c.b16 %v3418, %v3399
        %v5585 = vpack.c.b16 %v3419, %v3400
        %v5586 = vpack.c.b16 %v3420, %v3401
        %v5587 = vpack.c.b16 %v3421, %v3402
        %v5588 = vpack.c.b16 %v3422, %v3403
        %v5589 = vpack.c.b16 %v3423, %v3404
        %v5590 = vpack.c.b16 %v3424, %v3405
        %v5591 = vpack.c.b16 %v3425, %v3406
        %v5592 = vpack.c.b16 %v3426, %v3407
        %v5593 = vpack.c.b16 %v3427, %v3408
        %v5594 = vpack.c.b16 %v3428, %v3409
        %v5595 = vpack.c.b16 %v3429, %v3410
        %v5596 = vpack.c.b16 %v3430, %v3411
        %v5597 = vpack.c.b16 %v3431, %v3412
        %v5598 = vpack.c.b16 %v3432, %v3413
        %v5599 = vpack.c.b16 %v3433, %v3414
        %v5600 = vpack.c.b16 %v3434, %v3415
        %v5601 = vpack.c.b16 %v3454, %v3435
        %v5602 = vpack.c.b16 %v3455, %v3436
        %v5603 = vpack.c.b16 %v3456, %v3437
        %v5604 = vpack.c.b16 %v3457, %v3438
        %v5605 = vpack.c.b16 %v3458, %v3439
        %v5606 = vpack.c.b16 %v3459, %v3440
        %v5607 = vpack.c.b16 %v3460, %v3441
        %v5608 = vpack.c.b16 %v3461, %v3442
        %v5609 = vpack.c.b16 %v3462, %v3443
        %v5610 = vpack.c.b16 %v3463, %v3444
        %v5611 = vpack.c.b16 %v3464, %v3445
        %v5612 = vpack.c.b16 %v3465, %v3446
        %v5613 = vpack.c.b16 %v3466, %v3447
        %v5614 = vpack.c.b16 %v3467, %v3448
        %v5615 = vpack.c.b16 %v3468, %v3449
        %v5616 = vpack.c.b16 %v3469, %v3450
        %v5617 = vpack.c.b16 %v3470, %v3451
        %v5618 = vpack.c.b16 %v3471, %v3452
        %v5619 = vpack.c.b16 %v3472, %v3453
        %v5620 = vpack.c.b16 %v3492, %v3473
        %v5621 = vpack.c.b16 %v3493, %v3474
        %v5622 = vpack.c.b16 %v3494, %v3475
        %v5623 = vpack.c.b16 %v3495, %v3476
        %v5624 = vpack.c.b16 %v3496, %v3477
        %v5625 = vpack.c.b16 %v3497, %v3478
        %v5626 = vpack.c.b16 %v3498, %v3479
        %v5627 = vpack.c.b16 %v3499, %v3480
        %v5628 = vpack.c.b16 %v3500, %v3481
        %v5629 = vpack.c.b16 %v3501, %v3482
        %v5630 = vpack.c.b16 %v3502, %v3483
        %v5631 = vpack.c.b16 %v3503, %v3484
        %v5632 = vpack.c.b16 %v3504, %v3485
        %v5633 = vpack.c.b16 %v3505, %v3486
        %v5634 = vpack.c.b16 %v3506, %v3487
        %v5635 = vpack.c.b16 %v3507, %v3488
        %v5636 = vpack.c.b16 %v3508, %v3489
        %v5637 = vpack.c.b16 %v3509, %v3490
        %v5638 = vpack.c.b16 %v3510, %v3491
        %v5639 = vpack.c.b16 %v3530, %v3511
        %v5640 = vpack.c.b16 %v3531, %v3512
        %v5641 = vpack.c.b16 %v3532, %v3513
        %v5642 = vpack.c.b16 %v3533, %v3514
        %v5643 = vpack.c.b16 %v3534, %v3515
        %v5644 = vpack.c.b16 %v3535, %v3516
        %v5645 = vpack.c.b16 %v3536, %v3517
        %v5646 = vpack.c.b16 %v3537, %v3518
        %v5647 = vpack.c.b16 %v3538, %v3519
        %v5648 = vpack.c.b16 %v3539, %v3520
        %v5649 = vpack.c.b16 %v3540, %v3521
        %v5650 = vpack.c.b16 %v3541, %v3522
        %v5651 = vpack.c.b16 %v3542, %v3523
        %v5652 = vpack.c.b16 %v3543, %v3524
        %v5653 = vpack.c.b16 %v3544, %v3525
        %v5654 = vpack.c.b16 %v3545, %v3526
        %v5655 = vpack.c.b16 %v3546, %v3527
        %v5656 = vpack.c.b16 %v3547, %v3528
        %v5657 = vpack.c.b16 %v3548, %v3529
        %v5658 = vpack.c.b16 %v3568, %v3549
        %v5659 = vpack.c.b16 %v3569, %v3550
        %v5660 = vpack.c.b16 %v3570, %v3551
        %v5661 = vpack.c.b16 %v3571, %v3552
        %v5662 = vpack.c.b16 %v3572, %v3553
        %v5663 = vpack.c.b16 %v3573, %v3554
        %v5664 = vpack.c.b16 %v3574, %v3555
        %v5665 = vpack.c.b16 %v3575, %v3556
        %v5666 = vpack.c.b16 %v3576, %v3557
        %v5667 = vpack.c.b16 %v3577, %v3558
        %v5668 = vpack.c.b16 %v3578, %v3559
        %v5669 = vpack.c.b16 %v3579, %v3560
        %v5670 = vpack.c.b16 %v3580, %v3561
        %v5671 = vpack.c.b16 %v3581, %v3562
        %v5672 = vpack.c.b16 %v3582, %v3563
        %v5673 = vpack.c.b16 %v3583, %v3564
        %v5674 = vpack.c.b16 %v3584, %v3565
        %v5675 = vpack.c.b16 %v3585, %v3566
        %v5676 = vpack.c.b16 %v3586, %v3567
        %v5677 = vpack.c.b16 %v3606, %v3587
        %v5678 = vpack.c.b16 %v3607, %v3588
        %v5679 = vpack.c.b16 %v3608, %v3589
        %v5680 = vpack.c.b16 %v3609, %v3590
        %v5681 = vpack.c.b16 %v3610, %v3591
        %v5682 = vpack.c.b16 %v3611, %v3592
        %v5683 = vpack.c.b16 %v3612, %v3593
        %v5684 = vpack.c.b16 %v3613, %v3594
        %v5685 = vpack.c.b16 %v3614, %v3595
        %v5686 = vpack.c.b16 %v3615, %v3596
        %v5687 = vpack.c.b16 %v3616, %v3597
        %v5688 = vpack.c.b16 %v3617, %v3598
        %v5689 = vpack.c.b16 %v3618, %v3599
        %v5690 = vpack.c.b16 %v3619, %v3600
        %v5691 = vpack.c.b16 %v3620, %v3601
        %v5692 = vpack.c.b16 %v3621, %v3602
        %v5693 = vpack.c.b16 %v3622, %v3603
        %v5694 = vpack.c.b16 %v3623, %v3604
        %v5695 = vpack.c.b16 %v3624, %v3605
        %v5696 = vpack.c.b16 %v3644, %v3625
        %v5697 = vpack.c.b16 %v3645, %v3626
        %v5698 = vpack.c.b16 %v3646, %v3627
        %v5699 = vpack.c.b16 %v3647, %v3628
        %v5700 = vpack.c.b16 %v3648, %v3629
        %v5701 = vpack.c.b16 %v3649, %v3630
        %v5702 = vpack.c.b16 %v3650, %v3631
        %v5703 = vpack.c.b16 %v3651, %v3632
        %v5704 = vpack.c.b16 %v3652, %v3633
        %v5705 = vpack.c.b16 %v3653, %v3634
        %v5706 = vpack.c.b16 %v3654, %v3635
        %v5707 = vpack.c.b16 %v3655, %v3636
        %v5708 = vpack.c.b16 %v3656, %v3637
        %v5709 = vpack.c.b16 %v3657, %v3638
        %v5710 = vpack.c.b16 %v3658, %v3639
        %v5711 = vpack.c.b16 %v3659, %v3640
        %v5712 = vpack.c.b16 %v3660, %v3641
        %v5713 = vpack.c.b16 %v3661, %v3642
        %v5714 = vpack.c.b16 %v3662, %v3643
        %v5715 = vpack.c.b16 %v3682, %v3663
        %v5716 = vpack.c.b16 %v3683, %v3664
        %v5717 = vpack.c.b16 %v3684, %v3665
        %v5718 = vpack.c.b16 %v3685, %v3666
        %v5719 = vpack.c.b16 %v3686, %v3667
        %v5720 = vpack.c.b16 %v3687, %v3668
        %v5721 = vpack.c.b16 %v3688, %v3669
        %v5722 = vpack.c.b16 %v3689, %v3670
        %v5723 = vpack.c.b16 %v3690, %v3671
        %v5724 = vpack.c.b16 %v3691, %v3672
        %v5725 = vpack.c.b16 %v3692, %v3673
        %v5726 = vpack.c.b16 %v3693, %v3674
        %v5727 = vpack.c.b16 %v3694, %v3675
        %v5728 = vpack.c.b16 %v3695, %v3676
        %v5729 = vpack.c.b16 %v3696, %v3677
        %v5730 = vpack.c.b16 %v3697, %v3678
        %v5731 = vpack.c.b16 %v3698, %v3679
        %v5732 = vpack.c.b16 %v3699, %v3680
        %v5733 = vpack.c.b16 %v3700, %v3681
        %v5734 = vpack.c.b16 %v3720, %v3701
        %v5735 = vpack.c.b16 %v3721, %v3702
        %v5736 = vpack.c.b16 %v3722, %v3703
        %v5737 = vpack.c.b16 %v3723, %v3704
        %v5738 = vpack.c.b16 %v3724, %v3705
        %v5739 = vpack.c.b16 %v3725, %v3706
        %v5740 = vpack.c.b16 %v3726, %v3707
        %v5741 = vpack.c.b16 %v3727, %v3708
        %v5742 = vpack.c.b16 %v3728, %v3709
        %v5743 = vpack.c.b16 %v3729, %v3710
        %v5744 = vpack.c.b16 %v3730, %v3711
        %v5745 = vpack.c.b16 %v3731, %v3712
        %v5746 = vpack.c.b16 %v3732, %v3713
        %v5747 = vpack.c.b16 %v3733, %v3714
        %v5748 = vpack.c.b16 %v3734, %v3715
        %v5749 = vpack.c.b16 %v3735, %v3716
        %v5750 = vpack.c.b16 %v3736, %v3717
        %v5751 = vpack.c.b16 %v3737, %v3718
        %v5752 = vpack.c.b16 %v3738, %v3719
        %v5753 = vpack.c.b16 %v3758, %v3739
        %v5754 = vpack.c.b16 %v3759, %v3740
        %v5755 = vpack.c.b16 %v3760, %v3741
        %v5756 = vpack.c.b16 %v3761, %v3742
        %v5757 = vpack.c.b16 %v3762, %v3743
        %v5758 = vpack.c.b16 %v3763, %v3744
        %v5759 = vpack.c.b16 %v3764, %v3745
        %v5760 = vpack.c.b16 %v3765, %v3746
        %v5761 = vpack.c.b16 %v3766, %v3747
        %v5762 = vpack.c.b16 %v3767, %v3748
        %v5763 = vpack.c.b16 %v3768, %v3749
        %v5764 = vpack.c.b16 %v3769, %v3750
        %v5765 = vpack.c.b16 %v3770, %v3751
        %v5766 = vpack.c.b16 %v3771, %v3752
        %v5767 = vpack.c.b16 %v3772, %v3753
        %v5768 = vpack.c.b16 %v3773, %v3754
        %v5769 = vpack.c.b16 %v3774, %v3755
        %v5770 = vpack.c.b16 %v3775, %v3756
        %v5771 = vpack.c.b16 %v3776, %v3757
        %v5772 = vpack.c.b16 %v3796, %v3777
        %v5773 = vpack.c.b16 %v3797, %v3778
        %v5774 = vpack.c.b16 %v3798, %v3779
        %v5775 = vpack.c.b16 %v3799, %v3780
        %v5776 = vpack.c.b16 %v3800, %v3781
        %v5777 = vpack.c.b16 %v3801, %v3782
        %v5778 = vpack.c.b16 %v3802, %v3783
        %v5779 = vpack.c.b16 %v3803, %v3784
        %v5780 = vpack.c.b16 %v3804, %v3785
        %v5781 = vpack.c.b16 %v3805, %v3786
        %v5782 = vpack.c.b16 %v3806, %v3787
        %v5783 = vpack.c.b16 %v3807, %v3788
        %v5784 = vpack.c.b16 %v3808, %v3789
        %v5785 = vpack.c.b16 %v3809, %v3790
        %v5786 = vpack.c.b16 %v3810, %v3791
        %v5787 = vpack.c.b16 %v3811, %v3792
        %v5788 = vpack.c.b16 %v3812, %v3793
        %v5789 = vpack.c.b16 %v3813, %v3794
        %v5790 = vpack.c.b16 %v3814, %v3795
        %v5791 = vpack.c.b16 %v3834, %v3815
        %v5792 = vpack.c.b16 %v3835, %v3816
        %v5793 = vpack.c.b16 %v3836, %v3817
        %v5794 = vpack.c.b16 %v3837, %v3818
        %v5795 = vpack.c.b16 %v3838, %v3819
        %v5796 = vpack.c.b16 %v3839, %v3820
        %v5797 = vpack.c.b16 %v3840, %v3821
        %v5798 = vpack.c.b16 %v3841, %v3822
        %v5799 = vpack.c.b16 %v3842, %v3823
        %v5800 = vpack.c.b16 %v3843, %v3824
        %v5801 = vpack.c.b16 %v3844, %v3825
        %v5802 = vpack.c.b16 %v3845, %v3826
        %v5803 = vpack.c.b16 %v3846, %v3827
        %v5804 = vpack.c.b16 %v3847, %v3828
        %v5805 = vpack.c.b16 %v3848, %v3829
        %v5806 = vpack.c.b16 %v3849, %v3830
        %v5807 = vpack.c.b16 %v3850, %v3831
        %v5808 = vpack.c.b16 %v3851, %v3832
        %v5809 = vpack.c.b16 %v3852, %v3833
        %v5810 = vpack.c.b16 %v3872, %v3853
        %v5811 = vpack.c.b16 %v3873, %v3854
        %v5812 = vpack.c.b16 %v3874, %v3855
        %v5813 = vpack.c.b16 %v3875, %v3856
        %v5814 = vpack.c.b16 %v3876, %v3857
        %v5815 = vpack.c.b16 %v3877, %v3858
        %v5816 = vpack.c.b16 %v3878, %v3859
        %v5817 = vpack.c.b16 %v3879, %v3860
        %v5818 = vpack.c.b16 %v3880, %v3861
        %v5819 = vpack.c.b16 %v3881, %v3862
        %v5820 = vpack.c.b16 %v3882, %v3863
        %v5821 = vpack.c.b16 %v3883, %v3864
        %v5822 = vpack.c.b16 %v3884, %v3865
        %v5823 = vpack.c.b16 %v3885, %v3866
        %v5824 = vpack.c.b16 %v3886, %v3867
        %v5825 = vpack.c.b16 %v3887, %v3868
        %v5826 = vpack.c.b16 %v3888, %v3869
        %v5827 = vpack.c.b16 %v3889, %v3870
        %v5828 = vpack.c.b16 %v3890, %v3871
        %v5829 = vpack.c.b16 %v3910, %v3891
        %v5830 = vpack.c.b16 %v3911, %v3892
        %v5831 = vpack.c.b16 %v3912, %v3893
        %v5832 = vpack.c.b16 %v3913, %v3894
        %v5833 = vpack.c.b16 %v3914, %v3895
        %v5834 = vpack.c.b16 %v3915, %v3896
        %v5835 = vpack.c.b16 %v3916, %v3897
        %v5836 = vpack.c.b16 %v3917, %v3898
        %v5837 = vpack.c.b16 %v3918, %v3899
        %v5838 = vpack.c.b16 %v3919, %v3900
        %v5839 = vpack.c.b16 %v3920, %v3901
        %v5840 = vpack.c.b16 %v3921, %v3902
        %v5841 = vpack.c.b16 %v3922, %v3903
        %v5842 = vpack.c.b16 %v3923, %v3904
        %v5843 = vpack.c.b16 %v3924, %v3905
        %v5844 = vpack.c.b16 %v3925, %v3906
        %v5845 = vpack.c.b16 %v3926, %v3907
        %v5846 = vpack.c.b16 %v3927, %v3908
        %v5847 = vpack.c.b16 %v3928, %v3909
        %v5848 = vpack.c.b16 %v3948, %v3929
        %v5849 = vpack.c.b16 %v3949, %v3930
        %v5850 = vpack.c.b16 %v3950, %v3931
        %v5851 = vpack.c.b16 %v3951, %v3932
        %v5852 = vpack.c.b16 %v3952, %v3933
        %v5853 = vpack.c.b16 %v3953, %v3934
        %v5854 = vpack.c.b16 %v3954, %v3935
        %v5855 = vpack.c.b16 %v3955, %v3936
        %v5856 = vpack.c.b16 %v3956, %v3937
        %v5857 = vpack.c.b16 %v3957, %v3938
        %v5858 = vpack.c.b16 %v3958, %v3939
        %v5859 = vpack.c.b16 %v3959, %v3940
        %v5860 = vpack.c.b16 %v3960, %v3941
        %v5861 = vpack.c.b16 %v3961, %v3942
        %v5862 = vpack.c.b16 %v3962, %v3943
        %v5863 = vpack.c.b16 %v3963, %v3944
        %v5864 = vpack.c.b16 %v3964, %v3945
        %v5865 = vpack.c.b16 %v3965, %v3946
        %v5866 = vpack.c.b16 %v3966, %v3947
        %v5867 = vpack.c.b16 %v3986, %v3967
        %v5868 = vpack.c.b16 %v3987, %v3968
        %v5869 = vpack.c.b16 %v3988, %v3969
        %v5870 = vpack.c.b16 %v3989, %v3970
        %v5871 = vpack.c.b16 %v3990, %v3971
        %v5872 = vpack.c.b16 %v3991, %v3972
        %v5873 = vpack.c.b16 %v3992, %v3973
        %v5874 = vpack.c.b16 %v3993, %v3974
        %v5875 = vpack.c.b16 %v3994, %v3975
        %v5876 = vpack.c.b16 %v3995, %v3976
        %v5877 = vpack.c.b16 %v3996, %v3977
        %v5878 = vpack.c.b16 %v3997, %v3978
        %v5879 = vpack.c.b16 %v3998, %v3979
        %v5880 = vpack.c.b16 %v3999, %v3980
        %v5881 = vpack.c.b16 %v4000, %v3981
        %v5882 = vpack.c.b16 %v4001, %v3982
        %v5883 = vpack.c.b16 %v4002, %v3983
        %v5884 = vpack.c.b16 %v4003, %v3984
        %v5885 = vpack.c.b16 %v4004, %v3985
        %v5886 = vpack.c.b16 %v4024, %v4005
        %v5887 = vpack.c.b16 %v4025, %v4006
        %v5888 = vpack.c.b16 %v4026, %v4007
        %v5889 = vpack.c.b16 %v4027, %v4008
        %v5890 = vpack.c.b16 %v4028, %v4009
        %v5891 = vpack.c.b16 %v4029, %v4010
        %v5892 = vpack.c.b16 %v4030, %v4011
        %v5893 = vpack.c.b16 %v4031, %v4012
        %v5894 = vpack.c.b16 %v4032, %v4013
        %v5895 = vpack.c.b16 %v4033, %v4014
        %v5896 = vpack.c.b16 %v4034, %v4015
        %v5897 = vpack.c.b16 %v4035, %v4016
        %v5898 = vpack.c.b16 %v4036, %v4017
        %v5899 = vpack.c.b16 %v4037, %v4018
        %v5900 = vpack.c.b16 %v4038, %v4019
        %v5901 = vpack.c.b16 %v4039, %v4020
        %v5902 = vpack.c.b16 %v4040, %v4021
        %v5903 = vpack.c.b16 %v4041, %v4022
        %v5904 = vpack.c.b16 %v4042, %v4023
        %v5905 = vpack.c.b16 %v4062, %v4043
        %v5906 = vpack.c.b16 %v4063, %v4044
        %v5907 = vpack.c.b16 %v4064, %v4045
        %v5908 = vpack.c.b16 %v4065, %v4046
        %v5909 = vpack.c.b16 %v4066, %v4047
        %v5910 = vpack.c.b16 %v4067, %v4048
        %v5911 = vpack.c.b16 %v4068, %v4049
        %v5912 = vpack.c.b16 %v4069, %v4050
        %v5913 = vpack.c.b16 %v4070, %v4051
        %v5914 = vpack.c.b16 %v4071, %v4052
        %v5915 = vpack.c.b16 %v4072, %v4053
        %v5916 = vpack.c.b16 %v4073, %v4054
        %v5917 = vpack.c.b16 %v4074, %v4055
        %v5918 = vpack.c.b16 %v4075, %v4056
        %v5919 = vpack.c.b16 %v4076, %v4057
        %v5920 = vpack.c.b16 %v4077, %v4058
        %v5921 = vpack.c.b16 %v4078, %v4059
        %v5922 = vpack.c.b16 %v4079, %v4060
        %v5923 = vpack.c.b16 %v4080, %v4061
        %v5924 = vpack.c.b16 %v4100, %v4081
        %v5925 = vpack.c.b16 %v4101, %v4082
        %v5926 = vpack.c.b16 %v4102, %v4083
        %v5927 = vpack.c.b16 %v4103, %v4084
        %v5928 = vpack.c.b16 %v4104, %v4085
        %v5929 = vpack.c.b16 %v4105, %v4086
        %v5930 = vpack.c.b16 %v4106, %v4087
        %v5931 = vpack.c.b16 %v4107, %v4088
        %v5932 = vpack.c.b16 %v4108, %v4089
        %v5933 = vpack.c.b16 %v4109, %v4090
        %v5934 = vpack.c.b16 %v4110, %v4091
        %v5935 = vpack.c.b16 %v4111, %v4092
        %v5936 = vpack.c.b16 %v4112, %v4093
        %v5937 = vpack.c.b16 %v4113, %v4094
        %v5938 = vpack.c.b16 %v4114, %v4095
        %v5939 = vpack.c.b16 %v4115, %v4096
        %v5940 = vpack.c.b16 %v4116, %v4097
        %v5941 = vpack.c.b16 %v4117, %v4098
        %v5942 = vpack.c.b16 %v4118, %v4099
        %v5943 = vpack.c.b16 %v4138, %v4119
        %v5944 = vpack.c.b16 %v4139, %v4120
        %v5945 = vpack.c.b16 %v4140, %v4121
        %v5946 = vpack.c.b16 %v4141, %v4122
        %v5947 = vpack.c.b16 %v4142, %v4123
        %v5948 = vpack.c.b16 %v4143, %v4124
        %v5949 = vpack.c.b16 %v4144, %v4125
        %v5950 = vpack.c.b16 %v4145, %v4126
        %v5951 = vpack.c.b16 %v4146, %v4127
        %v5952 = vpack.c.b16 %v4147, %v4128
        %v5953 = vpack.c.b16 %v4148, %v4129
        %v5954 = vpack.c.b16 %v4149, %v4130
        %v5955 = vpack.c.b16 %v4150, %v4131
        %v5956 = vpack.c.b16 %v4151, %v4132
        %v5957 = vpack.c.b16 %v4152, %v4133
        %v5958 = vpack.c.b16 %v4153, %v4134
        %v5959 = vpack.c.b16 %v4154, %v4135
        %v5960 = vpack.c.b16 %v4155, %v4136
        %v5961 = vpack.c.b16 %v4156, %v4137
        %v5962 = vpack.c.b16 %v4176, %v4157
        %v5963 = vpack.c.b16 %v4177, %v4158
        %v5964 = vpack.c.b16 %v4178, %v4159
        %v5965 = vpack.c.b16 %v4179, %v4160
        %v5966 = vpack.c.b16 %v4180, %v4161
        %v5967 = vpack.c.b16 %v4181, %v4162
        %v5968 = vpack.c.b16 %v4182, %v4163
        %v5969 = vpack.c.b16 %v4183, %v4164
        %v5970 = vpack.c.b16 %v4184, %v4165
        %v5971 = vpack.c.b16 %v4185, %v4166
        %v5972 = vpack.c.b16 %v4186, %v4167
        %v5973 = vpack.c.b16 %v4187, %v4168
        %v5974 = vpack.c.b16 %v4188, %v4169
        %v5975 = vpack.c.b16 %v4189, %v4170
        %v5976 = vpack.c.b16 %v4190, %v4171
        %v5977 = vpack.c.b16 %v4191, %v4172
        %v5978 = vpack.c.b16 %v4192, %v4173
        %v5979 = vpack.c.b16 %v4193, %v4174
        %v5980 = vpack.c.b16 %v4194, %v4175
        %v5981 = vpack.c.b16 %v4214, %v4195
        %v5982 = vpack.c.b16 %v4215, %v4196
        %v5983 = vpack.c.b16 %v4216, %v4197
        %v5984 = vpack.c.b16 %v4217, %v4198
        %v5985 = vpack.c.b16 %v4218, %v4199
        %v5986 = vpack.c.b16 %v4219, %v4200
        %v5987 = vpack.c.b16 %v4220, %v4201
        %v5988 = vpack.c.b16 %v4221, %v4202
        %v5989 = vpack.c.b16 %v4222, %v4203
        %v5990 = vpack.c.b16 %v4223, %v4204
        %v5991 = vpack.c.b16 %v4224, %v4205
        %v5992 = vpack.c.b16 %v4225, %v4206
        %v5993 = vpack.c.b16 %v4226, %v4207
        %v5994 = vpack.c.b16 %v4227, %v4208
        %v5995 = vpack.c.b16 %v4228, %v4209
        %v5996 = vpack.c.b16 %v4229, %v4210
        %v5997 = vpack.c.b16 %v4230, %v4211
        %v5998 = vpack.c.b16 %v4231, %v4212
        %v5999 = vpack.c.b16 %v4232, %v4213
        %v6000 = vpack.c.b16 %v4252, %v4233
        %v6001 = vpack.c.b16 %v4253, %v4234
        %v6002 = vpack.c.b16 %v4254, %v4235
        %v6003 = vpack.c.b16 %v4255, %v4236
        %v6004 = vpack.c.b16 %v4256, %v4237
        %v6005 = vpack.c.b16 %v4257, %v4238
        %v6006 = vpack.c.b16 %v4258, %v4239
        %v6007 = vpack.c.b16 %v4259, %v4240
        %v6008 = vpack.c.b16 %v4260, %v4241
        %v6009 = vpack.c.b16 %v4261, %v4242
        %v6010 = vpack.c.b16 %v4262, %v4243
        %v6011 = vpack.c.b16 %v4263, %v4244
        %v6012 = vpack.c.b16 %v4264, %v4245
        %v6013 = vpack.c.b16 %v4265, %v4246
        %v6014 = vpack.c.b16 %v4266, %v4247
        %v6015 = vpack.c.b16 %v4267, %v4248
        %v6016 = vpack.c.b16 %v4268, %v4249
        %v6017 = vpack.c.b16 %v4269, %v4250
        %v6018 = vpack.c.b16 %v4270, %v4251
        %v6019 = vpack.c.b16 %v4290, %v4271
        %v6020 = vpack.c.b16 %v4291, %v4272
        %v6021 = vpack.c.b16 %v4292, %v4273
        %v6022 = vpack.c.b16 %v4293, %v4274
        %v6023 = vpack.c.b16 %v4294, %v4275
        %v6024 = vpack.c.b16 %v4295, %v4276
        %v6025 = vpack.c.b16 %v4296, %v4277
        %v6026 = vpack.c.b16 %v4297, %v4278
        %v6027 = vpack.c.b16 %v4298, %v4279
        %v6028 = vpack.c.b16 %v4299, %v4280
        %v6029 = vpack.c.b16 %v4300, %v4281
        %v6030 = vpack.c.b16 %v4301, %v4282
        %v6031 = vpack.c.b16 %v4302, %v4283
        %v6032 = vpack.c.b16 %v4303, %v4284
        %v6033 = vpack.c.b16 %v4304, %v4285
        %v6034 = vpack.c.b16 %v4305, %v4286
        %v6035 = vpack.c.b16 %v4306, %v4287
        %v6036 = vpack.c.b16 %v4307, %v4288
        %v6037 = vpack.c.b16 %v4308, %v4289
        %v6038 = vpack.c.b16 %v4328, %v4309
        %v6039 = vpack.c.b16 %v4329, %v4310
        %v6040 = vpack.c.b16 %v4330, %v4311
        %v6041 = vpack.c.b16 %v4331, %v4312
        %v6042 = vpack.c.b16 %v4332, %v4313
        %v6043 = vpack.c.b16 %v4333, %v4314
        %v6044 = vpack.c.b16 %v4334, %v4315
        %v6045 = vpack.c.b16 %v4335, %v4316
        %v6046 = vpack.c.b16 %v4336, %v4317
        %v6047 = vpack.c.b16 %v4337, %v4318
        %v6048 = vpack.c.b16 %v4338, %v4319
        %v6049 = vpack.c.b16 %v4339, %v4320
        %v6050 = vpack.c.b16 %v4340, %v4321
        %v6051 = vpack.c.b16 %v4341, %v4322
        %v6052 = vpack.c.b16 %v4342, %v4323
        %v6053 = vpack.c.b16 %v4343, %v4324
        %v6054 = vpack.c.b16 %v4344, %v4325
        %v6055 = vpack.c.b16 %v4345, %v4326
        %v6056 = vpack.c.b16 %v4346, %v4327
        %v6057 = vpack.c.b16 %v4366, %v4347
        %v6058 = vpack.c.b16 %v4367, %v4348
        %v6059 = vpack.c.b16 %v4368, %v4349
        %v6060 = vpack.c.b16 %v4369, %v4350
        %v6061 = vpack.c.b16 %v4370, %v4351
        %v6062 = vpack.c.b16 %v4371, %v4352
        %v6063 = vpack.c.b16 %v4372, %v4353
        %v6064 = vpack.c.b16 %v4373, %v4354
        %v6065 = vpack.c.b16 %v4374, %v4355
        %v6066 = vpack.c.b16 %v4375, %v4356
        %v6067 = vpack.c.b16 %v4376, %v4357
        %v6068 = vpack.c.b16 %v4377, %v4358
        %v6069 = vpack.c.b16 %v4378, %v4359
        %v6070 = vpack.c.b16 %v4379, %v4360
        %v6071 = vpack.c.b16 %v4380, %v4361
        %v6072 = vpack.c.b16 %v4381, %v4362
        %v6073 = vpack.c.b16 %v4382, %v4363
        %v6074 = vpack.c.b16 %v4383, %v4364
        %v6075 = vpack.c.b16 %v4384, %v4365
        %v6076 = vpack.c.b16 %v4404, %v4385
        %v6077 = vpack.c.b16 %v4405, %v4386
        %v6078 = vpack.c.b16 %v4406, %v4387
        %v6079 = vpack.c.b16 %v4407, %v4388
        %v6080 = vpack.c.b16 %v4408, %v4389
        %v6081 = vpack.c.b16 %v4409, %v4390
        %v6082 = vpack.c.b16 %v4410, %v4391
        %v6083 = vpack.c.b16 %v4411, %v4392
        %v6084 = vpack.c.b16 %v4412, %v4393
        %v6085 = vpack.c.b16 %v4413, %v4394
        %v6086 = vpack.c.b16 %v4414, %v4395
        %v6087 = vpack.c.b16 %v4415, %v4396
        %v6088 = vpack.c.b16 %v4416, %v4397
        %v6089 = vpack.c.b16 %v4417, %v4398
        %v6090 = vpack.c.b16 %v4418, %v4399
        %v6091 = vpack.c.b16 %v4419, %v4400
        %v6092 = vpack.c.b16 %v4420, %v4401
        %v6093 = vpack.c.b16 %v4421, %v4402
        %v6094 = vpack.c.b16 %v4422, %v4403
        %v6095 = vpack.c.b16 %v4442, %v4423
        %v6096 = vpack.c.b16 %v4443, %v4424
        %v6097 = vpack.c.b16 %v4444, %v4425
        %v6098 = vpack.c.b16 %v4445, %v4426
        %v6099 = vpack.c.b16 %v4446, %v4427
        %v6100 = vpack.c.b16 %v4447, %v4428
        %v6101 = vpack.c.b16 %v4448, %v4429
        %v6102 = vpack.c.b16 %v4449, %v4430
        %v6103 = vpack.c.b16 %v4450, %v4431
        %v6104 = vpack.c.b16 %v4451, %v4432
        %v6105 = vpack.c.b16 %v4452, %v4433
        %v6106 = vpack.c.b16 %v4453, %v4434
        %v6107 = vpack.c.b16 %v4454, %v4435
        %v6108 = vpack.c.b16 %v4455, %v4436
        %v6109 = vpack.c.b16 %v4456, %v4437
        %v6110 = vpack.c.b16 %v4457, %v4438
        %v6111 = vpack.c.b16 %v4458, %v4439
        %v6112 = vpack.c.b16 %v4459, %v4440
        %v6113 = vpack.c.b16 %v4460, %v4441
        %v6114 = vpack.c.b16 %v4480, %v4461
        %v6115 = vpack.c.b16 %v4481, %v4462
        %v6116 = vpack.c.b16 %v4482, %v4463
        %v6117 = vpack.c.b16 %v4483, %v4464
        %v6118 = vpack.c.b16 %v4484, %v4465
        %v6119 = vpack.c.b16 %v4485, %v4466
        %v6120 = vpack.c.b16 %v4486, %v4467
        %v6121 = vpack.c.b16 %v4487, %v4468
        %v6122 = vpack.c.b16 %v4488, %v4469
        %v6123 = vpack.c.b16 %v4489, %v4470
        %v6124 = vpack.c.b16 %v4490, %v4471
        %v6125 = vpack.c.b16 %v4491, %v4472
        %v6126 = vpack.c.b16 %v4492, %v4473
        %v6127 = vpack.c.b16 %v4493, %v4474
        %v6128 = vpack.c.b16 %v4494, %v4475
        %v6129 = vpack.c.b16 %v4495, %v4476
        %v6130 = vpack.c.b16 %v4496, %v4477
        %v6131 = vpack.c.b16 %v4497, %v4478
        %v6132 = vpack.c.b16 %v4498, %v4479
        %v6133 = vpack.c.b16 %v4518, %v4499
        %v6134 = vpack.c.b16 %v4519, %v4500
        %v6135 = vpack.c.b16 %v4520, %v4501
        %v6136 = vpack.c.b16 %v4521, %v4502
        %v6137 = vpack.c.b16 %v4522, %v4503
        %v6138 = vpack.c.b16 %v4523, %v4504
        %v6139 = vpack.c.b16 %v4524, %v4505
        %v6140 = vpack.c.b16 %v4525, %v4506
        %v6141 = vpack.c.b16 %v4526, %v4507
        %v6142 = vpack.c.b16 %v4527, %v4508
        %v6143 = vpack.c.b16 %v4528, %v4509
        %v6144 = vpack.c.b16 %v4529, %v4510
        %v6145 = vpack.c.b16 %v4530, %v4511
        %v6146 = vpack.c.b16 %v4531, %v4512
        %v6147 = vpack.c.b16 %v4532, %v4513
        %v6148 = vpack.c.b16 %v4533, %v4514
        %v6149 = vpack.c.b16 %v4534, %v4515
        %v6150 = vpack.c.b16 %v4535, %v4516
        %v6151 = vpack.c.b16 %v4536, %v4517
        %v6152 = vpack.c.b16 %v4556, %v4537
        %v6153 = vpack.c.b16 %v4557, %v4538
        %v6154 = vpack.c.b16 %v4558, %v4539
        %v6155 = vpack.c.b16 %v4559, %v4540
        %v6156 = vpack.c.b16 %v4560, %v4541
        %v6157 = vpack.c.b16 %v4561, %v4542
        %v6158 = vpack.c.b16 %v4562, %v4543
        %v6159 = vpack.c.b16 %v4563, %v4544
        %v6160 = vpack.c.b16 %v4564, %v4545
        %v6161 = vpack.c.b16 %v4565, %v4546
        %v6162 = vpack.c.b16 %v4566, %v4547
        %v6163 = vpack.c.b16 %v4567, %v4548
        %v6164 = vpack.c.b16 %v4568, %v4549
        %v6165 = vpack.c.b16 %v4569, %v4550
        %v6166 = vpack.c.b16 %v4570, %v4551
        %v6167 = vpack.c.b16 %v4571, %v4552
        %v6168 = vpack.c.b16 %v4572, %v4553
        %v6169 = vpack.c.b16 %v4573, %v4554
        %v6170 = vpack.c.b16 %v4574, %v4555
        %v6171 = vpack.c.b16 %v4594, %v4575
        %v6172 = vpack.c.b16 %v4595, %v4576
        %v6173 = vpack.c.b16 %v4596, %v4577
        %v6174 = vpack.c.b16 %v4597, %v4578
        %v6175 = vpack.c.b16 %v4598, %v4579
        %v6176 = vpack.c.b16 %v4599, %v4580
        %v6177 = vpack.c.b16 %v4600, %v4581
        %v6178 = vpack.c.b16 %v4601, %v4582
        %v6179 = vpack.c.b16 %v4602, %v4583
        %v6180 = vpack.c.b16 %v4603, %v4584
        %v6181 = vpack.c.b16 %v4604, %v4585
        %v6182 = vpack.c.b16 %v4605, %v4586
        %v6183 = vpack.c.b16 %v4606, %v4587
        %v6184 = vpack.c.b16 %v4607, %v4588
        %v6185 = vpack.c.b16 %v4608, %v4589
        %v6186 = vpack.c.b16 %v4609, %v4590
        %v6187 = vpack.c.b16 %v4610, %v4591
        %v6188 = vpack.c.b16 %v4611, %v4592
        %v6189 = vpack.c.b16 %v4612, %v4593
        %v6190 = vpack.c.b16 %v4632, %v4613
        %v6191 = vpack.c.b16 %v4633, %v4614
        %v6192 = vpack.c.b16 %v4634, %v4615
        %v6193 = vpack.c.b16 %v4635, %v4616
        %v6194 = vpack.c.b16 %v4636, %v4617
        %v6195 = vpack.c.b16 %v4637, %v4618
        %v6196 = vpack.c.b16 %v4638, %v4619
        %v6197 = vpack.c.b16 %v4639, %v4620
        %v6198 = vpack.c.b16 %v4640, %v4621
        %v6199 = vpack.c.b16 %v4641, %v4622
        %v6200 = vpack.c.b16 %v4642, %v4623
        %v6201 = vpack.c.b16 %v4643, %v4624
        %v6202 = vpack.c.b16 %v4644, %v4625
        %v6203 = vpack.c.b16 %v4645, %v4626
        %v6204 = vpack.c.b16 %v4646, %v4627
        %v6205 = vpack.c.b16 %v4647, %v4628
        %v6206 = vpack.c.b16 %v4648, %v4629
        %v6207 = vpack.c.b16 %v4649, %v4630
        %v6208 = vpack.c.b16 %v4650, %v4631
        %v6209 = vpack.c.b16 %v4670, %v4651
        %v6210 = vpack.c.b16 %v4671, %v4652
        %v6211 = vpack.c.b16 %v4672, %v4653
        %v6212 = vpack.c.b16 %v4673, %v4654
        %v6213 = vpack.c.b16 %v4674, %v4655
        %v6214 = vpack.c.b16 %v4675, %v4656
        %v6215 = vpack.c.b16 %v4676, %v4657
        %v6216 = vpack.c.b16 %v4677, %v4658
        %v6217 = vpack.c.b16 %v4678, %v4659
        %v6218 = vpack.c.b16 %v4679, %v4660
        %v6219 = vpack.c.b16 %v4680, %v4661
        %v6220 = vpack.c.b16 %v4681, %v4662
        %v6221 = vpack.c.b16 %v4682, %v4663
        %v6222 = vpack.c.b16 %v4683, %v4664
        %v6223 = vpack.c.b16 %v4684, %v4665
        %v6224 = vpack.c.b16 %v4685, %v4666
        %v6225 = vpack.c.b16 %v4686, %v4667
        %v6226 = vpack.c.b16 %v4687, %v4668
        %v6227 = vpack.c.b16 %v4688, %v4669
        %v6228 = vpack.c.b16 %v4708, %v4689
        %v6229 = vpack.c.b16 %v4709, %v4690
        %v6230 = vpack.c.b16 %v4710, %v4691
        %v6231 = vpack.c.b16 %v4711, %v4692
        %v6232 = vpack.c.b16 %v4712, %v4693
        %v6233 = vpack.c.b16 %v4713, %v4694
        %v6234 = vpack.c.b16 %v4714, %v4695
        %v6235 = vpack.c.b16 %v4715, %v4696
        %v6236 = vpack.c.b16 %v4716, %v4697
        %v6237 = vpack.c.b16 %v4717, %v4698
        %v6238 = vpack.c.b16 %v4718, %v4699
        %v6239 = vpack.c.b16 %v4719, %v4700
        %v6240 = vpack.c.b16 %v4720, %v4701
        %v6241 = vpack.c.b16 %v4721, %v4702
        %v6242 = vpack.c.b16 %v4722, %v4703
        %v6243 = vpack.c.b16 %v4723, %v4704
        %v6244 = vpack.c.b16 %v4724, %v4705
        %v6245 = vpack.c.b16 %v4725, %v4706
        %v6246 = vpack.c.b16 %v4726, %v4707
        %v6247 = vpack.c.b16 %v4746, %v4727
        %v6248 = vpack.c.b16 %v4747, %v4728
        %v6249 = vpack.c.b16 %v4748, %v4729
        %v6250 = vpack.c.b16 %v4749, %v4730
        %v6251 = vpack.c.b16 %v4750, %v4731
        %v6252 = vpack.c.b16 %v4751, %v4732
        %v6253 = vpack.c.b16 %v4752, %v4733
        %v6254 = vpack.c.b16 %v4753, %v4734
        %v6255 = vpack.c.b16 %v4754, %v4735
        %v6256 = vpack.c.b16 %v4755, %v4736
        %v6257 = vpack.c.b16 %v4756, %v4737
        %v6258 = vpack.c.b16 %v4757, %v4738
        %v6259 = vpack.c.b16 %v4758, %v4739
        %v6260 = vpack.c.b16 %v4759, %v4740
        %v6261 = vpack.c.b16 %v4760, %v4741
        %v6262 = vpack.c.b16 %v4761, %v4742
        %v6263 = vpack.c.b16 %v4762, %v4743
        %v6264 = vpack.c.b16 %v4763, %v4744
        %v6265 = vpack.c.b16 %v4764, %v4745
        %v6266 = vpack.c.b16 %v4784, %v4765
        %v6267 = vpack.c.b16 %v4785, %v4766
        %v6268 = vpack.c.b16 %v4786, %v4767
        %v6269 = vpack.c.b16 %v4787, %v4768
        %v6270 = vpack.c.b16 %v4788, %v4769
        %v6271 = vpack.c.b16 %v4789, %v4770
        %v6272 = vpack.c.b16 %v4790, %v4771
        %v6273 = vpack.c.b16 %v4791, %v4772
        %v6274 = vpack.c.b16 %v4792, %v4773
        %v6275 = vpack.c.b16 %v4793, %v4774
        %v6276 = vpack.c.b16 %v4794, %v4775
        %v6277 = vpack.c.b16 %v4795, %v4776
        %v6278 = vpack.c.b16 %v4796, %v4777
        %v6279 = vpack.c.b16 %v4797, %v4778
        %v6280 = vpack.c.b16 %v4798, %v4779
        %v6281 = vpack.c.b16 %v4799, %v4780
        %v6282 = vpack.c.b16 %v4800, %v4781
        %v6283 = vpack.c.b16 %v4801, %v4782
        %v6284 = vpack.c.b16 %v4802, %v4783
        %v6285 = vpack.c.b16 %v4822, %v4803
        %v6286 = vpack.c.b16 %v4823, %v4804
        %v6287 = vpack.c.b16 %v4824, %v4805
        %v6288 = vpack.c.b16 %v4825, %v4806
        %v6289 = vpack.c.b16 %v4826, %v4807
        %v6290 = vpack.c.b16 %v4827, %v4808
        %v6291 = vpack.c.b16 %v4828, %v4809
        %v6292 = vpack.c.b16 %v4829, %v4810
        %v6293 = vpack.c.b16 %v4830, %v4811
        %v6294 = vpack.c.b16 %v4831, %v4812
        %v6295 = vpack.c.b16 %v4832, %v4813
        %v6296 = vpack.c.b16 %v4833, %v4814
        %v6297 = vpack.c.b16 %v4834, %v4815
        %v6298 = vpack.c.b16 %v4835, %v4816
        %v6299 = vpack.c.b16 %v4836, %v4817
        %v6300 = vpack.c.b16 %v4837, %v4818
        %v6301 = vpack.c.b16 %v4838, %v4819
        %v6302 = vpack.c.b16 %v4839, %v4820
        %v6303 = vpack.c.b16 %v4840, %v4821
        %v6304 = vpack.c.b16 %v4860, %v4841
        %v6305 = vpack.c.b16 %v4861, %v4842
        %v6306 = vpack.c.b16 %v4862, %v4843
        %v6307 = vpack.c.b16 %v4863, %v4844
        %v6308 = vpack.c.b16 %v4864, %v4845
        %v6309 = vpack.c.b16 %v4865, %v4846
        %v6310 = vpack.c.b16 %v4866, %v4847
        %v6311 = vpack.c.b16 %v4867, %v4848
        %v6312 = vpack.c.b16 %v4868, %v4849
        %v6313 = vpack.c.b16 %v4869, %v4850
        %v6314 = vpack.c.b16 %v4870, %v4851
        %v6315 = vpack.c.b16 %v4871, %v4852
        %v6316 = vpack.c.b16 %v4872, %v4853
        %v6317 = vpack.c.b16 %v4873, %v4854
        %v6318 = vpack.c.b16 %v4874, %v4855
        %v6319 = vpack.c.b16 %v4875, %v4856
        %v6320 = vpack.c.b16 %v4876, %v4857
        %v6321 = vpack.c.b16 %v4877, %v4858
        %v6322 = vpack.c.b16 %v4878, %v4859
        %v6323 = vpack.c.b16 %v4898, %v4879
        %v6324 = vpack.c.b16 %v4899, %v4880
        %v6325 = vpack.c.b16 %v4900, %v4881
        %v6326 = vpack.c.b16 %v4901, %v4882
        %v6327 = vpack.c.b16 %v4902, %v4883
        %v6328 = vpack.c.b16 %v4903, %v4884
        %v6329 = vpack.c.b16 %v4904, %v4885
        %v6330 = vpack.c.b16 %v4905, %v4886
        %v6331 = vpack.c.b16 %v4906, %v4887
        %v6332 = vpack.c.b16 %v4907, %v4888
        %v6333 = vpack.c.b16 %v4908, %v4889
        %v6334 = vpack.c.b16 %v4909, %v4890
        %v6335 = vpack.c.b16 %v4910, %v4891
        %v6336 = vpack.c.b16 %v4911, %v4892
        %v6337 = vpack.c.b16 %v4912, %v4893
        %v6338 = vpack.c.b16 %v4913, %v4894
        %v6339 = vpack.c.b16 %v4914, %v4895
        %v6340 = vpack.c.b16 %v4915, %v4896
        %v6341 = vpack.c.b16 %v4916, %v4897
        %v6342 = vpack.c.b16 %v4936, %v4917
        %v6343 = vpack.c.b16 %v4937, %v4918
        %v6344 = vpack.c.b16 %v4938, %v4919
        %v6345 = vpack.c.b16 %v4939, %v4920
        %v6346 = vpack.c.b16 %v4940, %v4921
        %v6347 = vpack.c.b16 %v4941, %v4922
        %v6348 = vpack.c.b16 %v4942, %v4923
        %v6349 = vpack.c.b16 %v4943, %v4924
        %v6350 = vpack.c.b16 %v4944, %v4925
        %v6351 = vpack.c.b16 %v4945, %v4926
        %v6352 = vpack.c.b16 %v4946, %v4927
        %v6353 = vpack.c.b16 %v4947, %v4928
        %v6354 = vpack.c.b16 %v4948, %v4929
        %v6355 = vpack.c.b16 %v4949, %v4930
        %v6356 = vpack.c.b16 %v4950, %v4931
        %v6357 = vpack.c.b16 %v4951, %v4932
        %v6358 = vpack.c.b16 %v4952, %v4933
        %v6359 = vpack.c.b16 %v4953, %v4934
        %v6360 = vpack.c.b16 %v4954, %v4935
        %v6361 = vpack.c.b16 %v4974, %v4955
        %v6362 = vpack.c.b16 %v4975, %v4956
        %v6363 = vpack.c.b16 %v4976, %v4957
        %v6364 = vpack.c.b16 %v4977, %v4958
        %v6365 = vpack.c.b16 %v4978, %v4959
        %v6366 = vpack.c.b16 %v4979, %v4960
        %v6367 = vpack.c.b16 %v4980, %v4961
        %v6368 = vpack.c.b16 %v4981, %v4962
        %v6369 = vpack.c.b16 %v4982, %v4963
        %v6370 = vpack.c.b16 %v4983, %v4964
        %v6371 = vpack.c.b16 %v4984, %v4965
        %v6372 = vpack.c.b16 %v4985, %v4966
        %v6373 = vpack.c.b16 %v4986, %v4967
        %v6374 = vpack.c.b16 %v4987, %v4968
        %v6375 = vpack.c.b16 %v4988, %v4969
        %v6376 = vpack.c.b16 %v4989, %v4970
        %v6377 = vpack.c.b16 %v4990, %v4971
        %v6378 = vpack.c.b16 %v4991, %v4972
        %v6379 = vpack.c.b16 %v4992, %v4973
        %v6380 = vpack.c.b16 %v5012, %v4993
        %v6381 = vpack.c.b16 %v5013, %v4994
        %v6382 = vpack.c.b16 %v5014, %v4995
        %v6383 = vpack.c.b16 %v5015, %v4996
        %v6384 = vpack.c.b16 %v5016, %v4997
        %v6385 = vpack.c.b16 %v5017, %v4998
        %v6386 = vpack.c.b16 %v5018, %v4999
        %v6387 = vpack.c.b16 %v5019, %v5000
        %v6388 = vpack.c.b16 %v5020, %v5001
        %v6389 = vpack.c.b16 %v5021, %v5002
        %v6390 = vpack.c.b16 %v5022, %v5003
        %v6391 = vpack.c.b16 %v5023, %v5004
        %v6392 = vpack.c.b16 %v5024, %v5005
        %v6393 = vpack.c.b16 %v5025, %v5006
        %v6394 = vpack.c.b16 %v5026, %v5007
        %v6395 = vpack.c.b16 %v5027, %v5008
        %v6396 = vpack.c.b16 %v5028, %v5009
        %v6397 = vpack.c.b16 %v5029, %v5010
        %v6398 = vpack.c.b16 %v5030, %v5011
        %v6399 = vpack.c.b16 %v5050, %v5031
        %v6400 = vpack.c.b16 %v5051, %v5032
        %v6401 = vpack.c.b16 %v5052, %v5033
        %v6402 = vpack.c.b16 %v5053, %v5034
        %v6403 = vpack.c.b16 %v5054, %v5035
        %v6404 = vpack.c.b16 %v5055, %v5036
        %v6405 = vpack.c.b16 %v5056, %v5037
        %v6406 = vpack.c.b16 %v5057, %v5038
        %v6407 = vpack.c.b16 %v5058, %v5039
        %v6408 = vpack.c.b16 %v5059, %v5040
        %v6409 = vpack.c.b16 %v5060, %v5041
        %v6410 = vpack.c.b16 %v5061, %v5042
        %v6411 = vpack.c.b16 %v5062, %v5043
        %v6412 = vpack.c.b16 %v5063, %v5044
        %v6413 = vpack.c.b16 %v5064, %v5045
        %v6414 = vpack.c.b16 %v5065, %v5046
        %v6415 = vpack.c.b16 %v5066, %v5047
        %v6416 = vpack.c.b16 %v5067, %v5048
        %v6417 = vpack.c.b16 %v5068, %v5049
        %v6418 = vpack.c.b16 %v5088, %v5069
        %v6419 = vpack.c.b16 %v5089, %v5070
        %v6420 = vpack.c.b16 %v5090, %v5071
        %v6421 = vpack.c.b16 %v5091, %v5072
        %v6422 = vpack.c.b16 %v5092, %v5073
        %v6423 = vpack.c.b16 %v5093, %v5074
        %v6424 = vpack.c.b16 %v5094, %v5075
        %v6425 = vpack.c.b16 %v5095, %v5076
        %v6426 = vpack.c.b16 %v5096, %v5077
        %v6427 = vpack.c.b16 %v5097, %v5078
        %v6428 = vpack.c.b16 %v5098, %v5079
        %v6429 = vpack.c.b16 %v5099, %v5080
        %v6430 = vpack.c.b16 %v5100, %v5081
        %v6431 = vpack.c.b16 %v5101, %v5082
        %v6432 = vpack.c.b16 %v5102, %v5083
        %v6433 = vpack.c.b16 %v5103, %v5084
        %v6434 = vpack.c.b16 %v5104, %v5085
        %v6435 = vpack.c.b16 %v5105, %v5086
        %v6436 = vpack.c.b16 %v5106, %v5087
        %v6437 = vpack.c.b16 %v5126, %v5107
        %v6438 = vpack.c.b16 %v5127, %v5108
        %v6439 = vpack.c.b16 %v5128, %v5109
        %v6440 = vpack.c.b16 %v5129, %v5110
        %v6441 = vpack.c.b16 %v5130, %v5111
        %v6442 = vpack.c.b16 %v5131, %v5112
        %v6443 = vpack.c.b16 %v5132, %v5113
        %v6444 = vpack.c.b16 %v5133, %v5114
        %v6445 = vpack.c.b16 %v5134, %v5115
        %v6446 = vpack.c.b16 %v5135, %v5116
        %v6447 = vpack.c.b16 %v5136, %v5117
        %v6448 = vpack.c.b16 %v5137, %v5118
        %v6449 = vpack.c.b16 %v5138, %v5119
        %v6450 = vpack.c.b16 %v5139, %v5120
        %v6451 = vpack.c.b16 %v5140, %v5121
        %v6452 = vpack.c.b16 %v5141, %v5122
        %v6453 = vpack.c.b16 %v5142, %v5123
        %v6454 = vpack.c.b16 %v5143, %v5124
        %v6455 = vpack.c.b16 %v5144, %v5125
        %v6456 = vpack.c.b16 %v5164, %v5145
        %v6457 = vpack.c.b16 %v5165, %v5146
        %v6458 = vpack.c.b16 %v5166, %v5147
        %v6459 = vpack.c.b16 %v5167, %v5148
        %v6460 = vpack.c.b16 %v5168, %v5149
        %v6461 = vpack.c.b16 %v5169, %v5150
        %v6462 = vpack.c.b16 %v5170, %v5151
        %v6463 = vpack.c.b16 %v5171, %v5152
        %v6464 = vpack.c.b16 %v5172, %v5153
        %v6465 = vpack.c.b16 %v5173, %v5154
        %v6466 = vpack.c.b16 %v5174, %v5155
        %v6467 = vpack.c.b16 %v5175, %v5156
        %v6468 = vpack.c.b16 %v5176, %v5157
        %v6469 = vpack.c.b16 %v5177, %v5158
        %v6470 = vpack.c.b16 %v5178, %v5159
        %v6471 = vpack.c.b16 %v5179, %v5160
        %v6472 = vpack.c.b16 %v5180, %v5161
        %v6473 = vpack.c.b16 %v5181, %v5162
        %v6474 = vpack.c.b16 %v5182, %v5163
        %v6475 = vpack.c.b16 %v5202, %v5183
        %v6476 = vpack.c.b16 %v5203, %v5184
        %v6477 = vpack.c.b16 %v5204, %v5185
        %v6478 = vpack.c.b16 %v5205, %v5186
        %v6479 = vpack.c.b16 %v5206, %v5187
        %v6480 = vpack.c.b16 %v5207, %v5188
        %v6481 = vpack.c.b16 %v5208, %v5189
        %v6482 = vpack.c.b16 %v5209, %v5190
        %v6483 = vpack.c.b16 %v5210, %v5191
        %v6484 = vpack.c.b16 %v5211, %v5192
        %v6485 = vpack.c.b16 %v5212, %v5193
        %v6486 = vpack.c.b16 %v5213, %v5194
        %v6487 = vpack.c.b16 %v5214, %v5195
        %v6488 = vpack.c.b16 %v5215, %v5196
        %v6489 = vpack.c.b16 %v5216, %v5197
        %v6490 = vpack.c.b16 %v5217, %v5198
        %v6491 = vpack.c.b16 %v5218, %v5199
        %v6492 = vpack.c.b16 %v5219, %v5200
        %v6493 = vpack.c.b16 %v5220, %v5201
        %v6494 = vpack.c.b16 %v5240, %v5221
        %v6495 = vpack.c.b16 %v5241, %v5222
        %v6496 = vpack.c.b16 %v5242, %v5223
        %v6497 = vpack.c.b16 %v5243, %v5224
        %v6498 = vpack.c.b16 %v5244, %v5225
        %v6499 = vpack.c.b16 %v5245, %v5226
        %v6500 = vpack.c.b16 %v5246, %v5227
        %v6501 = vpack.c.b16 %v5247, %v5228
        %v6502 = vpack.c.b16 %v5248, %v5229
        %v6503 = vpack.c.b16 %v5249, %v5230
        %v6504 = vpack.c.b16 %v5250, %v5231
        %v6505 = vpack.c.b16 %v5251, %v5232
        %v6506 = vpack.c.b16 %v5252, %v5233
        %v6507 = vpack.c.b16 %v5253, %v5234
        %v6508 = vpack.c.b16 %v5254, %v5235
        %v6509 = vpack.c.b16 %v5255, %v5236
        %v6510 = vpack.c.b16 %v5256, %v5237
        %v6511 = vpack.c.b16 %v5257, %v5238
        %v6512 = vpack.c.b16 %v5258, %v5239
        %v6513 = vpack.c.b16 %v5278, %v5259
        %v6514 = vpack.c.b16 %v5279, %v5260
        %v6515 = vpack.c.b16 %v5280, %v5261
        %v6516 = vpack.c.b16 %v5281, %v5262
        %v6517 = vpack.c.b16 %v5282, %v5263
        %v6518 = vpack.c.b16 %v5283, %v5264
        %v6519 = vpack.c.b16 %v5284, %v5265
        %v6520 = vpack.c.b16 %v5285, %v5266
        %v6521 = vpack.c.b16 %v5286, %v5267
        %v6522 = vpack.c.b16 %v5287, %v5268
        %v6523 = vpack.c.b16 %v5288, %v5269
        %v6524 = vpack.c.b16 %v5289, %v5270
        %v6525 = vpack.c.b16 %v5290, %v5271
        %v6526 = vpack.c.b16 %v5291, %v5272
        %v6527 = vpack.c.b16 %v5292, %v5273
        %v6528 = vpack.c.b16 %v5293, %v5274
        %v6529 = vpack.c.b16 %v5294, %v5275
        %v6530 = vpack.c.b16 %v5295, %v5276
        %v6531 = vpack.c.b16 %v5296, %v5277
        %v6532 = vpack.c.b16 %v5316, %v5297
        %v6533 = vpack.c.b16 %v5317, %v5298
        %v6534 = vpack.c.b16 %v5318, %v5299
        %v6535 = vpack.c.b16 %v5319, %v5300
        %v6536 = vpack.c.b16 %v5320, %v5301
        %v6537 = vpack.c.b16 %v5321, %v5302
        %v6538 = vpack.c.b16 %v5322, %v5303
        %v6539 = vpack.c.b16 %v5323, %v5304
        %v6540 = vpack.c.b16 %v5324, %v5305
        %v6541 = vpack.c.b16 %v5325, %v5306
        %v6542 = vpack.c.b16 %v5326, %v5307
        %v6543 = vpack.c.b16 %v5327, %v5308
        %v6544 = vpack.c.b16 %v5328, %v5309
        %v6545 = vpack.c.b16 %v5329, %v5310
        %v6546 = vpack.c.b16 %v5330, %v5311
        %v6547 = vpack.c.b16 %v5331, %v5312
        %v6548 = vpack.c.b16 %v5332, %v5313
        %v6549 = vpack.c.b16 %v5333, %v5314
        %v6550 = vpack.c.b16 %v5334, %v5315
        %7767 = vmatprep.subr.bf16.mxu0 %v5469
        %7768 = vmatpush1.bf16.msra.mxu0 %v5468
        %7769 = vmatprep.subr.bf16.mxu0 %v5450
        %7770 = vmatpush1.bf16.msra.mxu0 %v5449
        %7771 = vmatprep.subr.bf16.mxu0 %v5431
        %7772 = vmatpush1.bf16.msra.mxu0 %v5430
        %7773 = vmatprep.subr.bf16.mxu0 %v5412
        %7774 = vmatpush1.bf16.msra.mxu0 %v5411
        %7775 = vmatprep.subr.bf16.mxu0 %v5393
        %7776 = vmatpush1.bf16.msra.mxu0 %v5392
        %7777 = vmatprep.subr.bf16.mxu0 %v5374
        %7778 = vmatpush1.bf16.msra.mxu0 %v5373
        %7779 = vmatprep.subr.bf16.mxu0 %v5355
        %7780 = vmatpush1.bf16.msra.mxu0 %v5354
        %7781 = vmatprep.subr.bf16.mxu0 %v5336
        %7782 = vmatpush1.bf16.msra.mxu0 %v5335
        %7783 = vmatprep.subr.bf16.mxu0 %v5621
        %7784 = vmatpush2.bf16.msra.mxu0 %v5620
        %7785 = vmatprep.subr.bf16.mxu0 %v5602
        %7786 = vmatpush2.bf16.msra.mxu0 %v5601
        %7787 = vmatprep.subr.bf16.mxu0 %v5583
        %7788 = vmatpush2.bf16.msra.mxu0 %v5582
        %7789 = vmatprep.subr.bf16.mxu0 %v5564
        %7790 = vmatpush2.bf16.msra.mxu0 %v5563
        %7791 = vmatprep.subr.bf16.mxu0 %v5545
        %7792 = vmatpush2.bf16.msra.mxu0 %v5544
        %7793 = vmatprep.subr.bf16.mxu0 %v5526
        %7794 = vmatpush2.bf16.msra.mxu0 %v5525
        %7795 = vmatprep.subr.bf16.mxu0 %v5507
        %7796 = vmatpush2.bf16.msra.mxu0 %v5506
        %7797 = vmatprep.subr.bf16.mxu0 %v5488
        %7798 = vmatpush2.bf16.msra.mxu0 %v5487
        %7799 = vmatprep.mubr.bf16.mxu0 %v1603
        %7800 = vmatmul.mubr.bf16.gmra.mxu0 %v1589
        %v7801 = vpop.f32.mrf.mxu0
        %v7802 = vadd.f32 0.0, %v7801
        %v7803 = vpop.f32.mrf.mxu0
        %v7804 = vadd.f32 0.0, %v7803
        %v7805 = vpop.f32.mrf.mxu0
        %v7806 = vpop.f32.mrf.mxu0
        %7807 = vdwg.mxu0
        %7808 = vmatprep.subr.bf16.mxu0 %v5773
        %7809 = vmatpush1.bf16.msra.mxu0 %v5772
        %7810 = vmatprep.subr.bf16.mxu0 %v5754
        %7811 = vmatpush1.bf16.msra.mxu0 %v5753
        %7812 = vmatprep.subr.bf16.mxu0 %v5735
        %7813 = vmatpush1.bf16.msra.mxu0 %v5734
        %7814 = vmatprep.subr.bf16.mxu0 %v5716
        %7815 = vmatpush1.bf16.msra.mxu0 %v5715
        %7816 = vmatprep.subr.bf16.mxu0 %v5697
        %7817 = vmatpush1.bf16.msra.mxu0 %v5696
        %7818 = vmatprep.subr.bf16.mxu0 %v5678
        %7819 = vmatpush1.bf16.msra.mxu0 %v5677
        %7820 = vmatprep.subr.bf16.mxu0 %v5659
        %7821 = vmatpush1.bf16.msra.mxu0 %v5658
        %7822 = vmatprep.subr.bf16.mxu0 %v5640
        %7823 = vmatpush1.bf16.msra.mxu0 %v5639
        %7824 = vmatprep.subr.bf16.mxu0 %v5925
        %7825 = vmatpush2.bf16.msra.mxu0 %v5924
        %7826 = vmatprep.subr.bf16.mxu0 %v5906
        %7827 = vmatpush2.bf16.msra.mxu0 %v5905
        %7828 = vmatprep.subr.bf16.mxu0 %v5887
        %7829 = vmatpush2.bf16.msra.mxu0 %v5886
        %7830 = vmatprep.subr.bf16.mxu0 %v5868
        %7831 = vmatpush2.bf16.msra.mxu0 %v5867
        %7832 = vmatprep.subr.bf16.mxu0 %v5849
        %7833 = vmatpush2.bf16.msra.mxu0 %v5848
        %7834 = vmatprep.subr.bf16.mxu0 %v5830
        %7835 = vmatpush2.bf16.msra.mxu0 %v5829
        %7836 = vmatprep.subr.bf16.mxu0 %v5811
        %7837 = vmatpush2.bf16.msra.mxu0 %v5810
        %7838 = vmatprep.subr.bf16.mxu0 %v5792
        %7839 = vmatpush2.bf16.msra.mxu0 %v5791
        %7840 = vmatprep.mubr.bf16.mxu0 %v1613
        %7841 = vmatmul.mubr.bf16.gmra.mxu0 %v1611
        %v7842 = vpop.f32.mrf.mxu0
        %v7843 = vadd.f32 %v7802, %v7842
        %v7844 = vpop.f32.mrf.mxu0
        %v7845 = vadd.f32 %v7804, %v7844
        %v7846 = vpop.f32.mrf.mxu0
        %v7847 = vpop.f32.mrf.mxu0
        %7848 = vdwg.mxu0
        %7849 = vmatprep.subr.bf16.mxu0 %v6077
        %7850 = vmatpush1.bf16.msra.mxu0 %v6076
        %7851 = vmatprep.subr.bf16.mxu0 %v6058
        %7852 = vmatpush1.bf16.msra.mxu0 %v6057
        %7853 = vmatprep.subr.bf16.mxu0 %v6039
        %7854 = vmatpush1.bf16.msra.mxu0 %v6038
        %7855 = vmatprep.subr.bf16.mxu0 %v6020
        %7856 = vmatpush1.bf16.msra.mxu0 %v6019
        %7857 = vmatprep.subr.bf16.mxu0 %v6001
        %7858 = vmatpush1.bf16.msra.mxu0 %v6000
        %7859 = vmatprep.subr.bf16.mxu0 %v5982
        %7860 = vmatpush1.bf16.msra.mxu0 %v5981
        %7861 = vmatprep.subr.bf16.mxu0 %v5963
        %7862 = vmatpush1.bf16.msra.mxu0 %v5962
        %7863 = vmatprep.subr.bf16.mxu0 %v5944
        %7864 = vmatpush1.bf16.msra.mxu0 %v5943
        %7865 = vmatprep.subr.bf16.mxu0 %v6229
        %7866 = vmatpush2.bf16.msra.mxu0 %v6228
        %7867 = vmatprep.subr.bf16.mxu0 %v6210
        %7868 = vmatpush2.bf16.msra.mxu0 %v6209
        %7869 = vmatprep.subr.bf16.mxu0 %v6191
        %7870 = vmatpush2.bf16.msra.mxu0 %v6190
        %7871 = vmatprep.subr.bf16.mxu0 %v6172
        %7872 = vmatpush2.bf16.msra.mxu0 %v6171
        %7873 = vmatprep.subr.bf16.mxu0 %v6153
        %7874 = vmatpush2.bf16.msra.mxu0 %v6152
        %7875 = vmatprep.subr.bf16.mxu0 %v6134
        %7876 = vmatpush2.bf16.msra.mxu0 %v6133
        %7877 = vmatprep.subr.bf16.mxu0 %v6115
        %7878 = vmatpush2.bf16.msra.mxu0 %v6114
        %7879 = vmatprep.subr.bf16.mxu0 %v6096
        %7880 = vmatpush2.bf16.msra.mxu0 %v6095
        %7881 = vmatprep.mubr.bf16.mxu0 %v1610
        %7882 = vmatmul.mubr.bf16.gmra.mxu0 %v1596
        %v7883 = vpop.f32.mrf.mxu0
        %v7884 = vadd.f32 %v7843, %v7883
        %v7885 = vpop.f32.mrf.mxu0
        %v7886 = vadd.f32 %v7845, %v7885
        %v7887 = vpop.f32.mrf.mxu0
        %v7888 = vpop.f32.mrf.mxu0
        %7889 = vdwg.mxu0
        %7890 = vmatprep.subr.bf16.mxu0 %v6381
        %7891 = vmatpush1.bf16.msra.mxu0 %v6380
        %7892 = vmatprep.subr.bf16.mxu0 %v6362
        %7893 = vmatpush1.bf16.msra.mxu0 %v6361
        %7894 = vmatprep.subr.bf16.mxu0 %v6343
        %7895 = vmatpush1.bf16.msra.mxu0 %v6342
        %7896 = vmatprep.subr.bf16.mxu0 %v6324
        %7897 = vmatpush1.bf16.msra.mxu0 %v6323
        %7898 = vmatprep.subr.bf16.mxu0 %v6305
        %7899 = vmatpush1.bf16.msra.mxu0 %v6304
        %7900 = vmatprep.subr.bf16.mxu0 %v6286
        %7901 = vmatpush1.bf16.msra.mxu0 %v6285
        %7902 = vmatprep.subr.bf16.mxu0 %v6267
        %7903 = vmatpush1.bf16.msra.mxu0 %v6266
        %7904 = vmatprep.subr.bf16.mxu0 %v6248
        %7905 = vmatpush1.bf16.msra.mxu0 %v6247
        %7906 = vmatprep.subr.bf16.mxu0 %v6533
        %7907 = vmatpush2.bf16.msra.mxu0 %v6532
        %7908 = vmatprep.subr.bf16.mxu0 %v6514
        %7909 = vmatpush2.bf16.msra.mxu0 %v6513
        %7910 = vmatprep.subr.bf16.mxu0 %v6495
        %7911 = vmatpush2.bf16.msra.mxu0 %v6494
        %7912 = vmatprep.subr.bf16.mxu0 %v6476
        %7913 = vmatpush2.bf16.msra.mxu0 %v6475
        %7914 = vmatprep.subr.bf16.mxu0 %v6457
        %7915 = vmatpush2.bf16.msra.mxu0 %v6456
        %7916 = vmatprep.subr.bf16.mxu0 %v6438
        %7917 = vmatpush2.bf16.msra.mxu0 %v6437
        %7918 = vmatprep.subr.bf16.mxu0 %v6419
        %7919 = vmatpush2.bf16.msra.mxu0 %v6418
        %7920 = vmatprep.subr.bf16.mxu0 %v6400
        %7921 = vmatpush2.bf16.msra.mxu0 %v6399
        %7922 = vmatprep.mubr.bf16.mxu0 %v1614
        %7923 = vmatmul.mubr.bf16.gmra.mxu0 %v1612
        %v7924 = vpop.f32.mrf.mxu0
        %v7925 = vadd.f32 %v7884, %v7924
        %v7926 = vpop.f32.mrf.mxu0
        %v7927 = vadd.f32 %v7886, %v7926
        %v7928 = vpop.f32.mrf.mxu0
        %v7929 = vpop.f32.mrf.mxu0
        %7930 = vdwg.mxu0
        %7931 = vmatprep.subr.bf16.mxu0 %v5471
        %7932 = vmatpush1.bf16.msra.mxu0 %v5470
        %7933 = vmatprep.subr.bf16.mxu0 %v5452
        %7934 = vmatpush1.bf16.msra.mxu0 %v5451
        %7935 = vmatprep.subr.bf16.mxu0 %v5433
        %7936 = vmatpush1.bf16.msra.mxu0 %v5432
        %7937 = vmatprep.subr.bf16.mxu0 %v5414
        %7938 = vmatpush1.bf16.msra.mxu0 %v5413
        %7939 = vmatprep.subr.bf16.mxu0 %v5395
        %7940 = vmatpush1.bf16.msra.mxu0 %v5394
        %7941 = vmatprep.subr.bf16.mxu0 %v5376
        %7942 = vmatpush1.bf16.msra.mxu0 %v5375
        %7943 = vmatprep.subr.bf16.mxu0 %v5357
        %7944 = vmatpush1.bf16.msra.mxu0 %v5356
        %7945 = vmatprep.subr.bf16.mxu0 %v5338
        %7946 = vmatpush1.bf16.msra.mxu0 %v5337
        %7947 = vmatprep.subr.bf16.mxu0 %v5623
        %7948 = vmatpush2.bf16.msra.mxu0 %v5622
        %7949 = vmatprep.subr.bf16.mxu0 %v5604
        %7950 = vmatpush2.bf16.msra.mxu0 %v5603
        %7951 = vmatprep.subr.bf16.mxu0 %v5585
        %7952 = vmatpush2.bf16.msra.mxu0 %v5584
        %7953 = vmatprep.subr.bf16.mxu0 %v5566
        %7954 = vmatpush2.bf16.msra.mxu0 %v5565
        %7955 = vmatprep.subr.bf16.mxu0 %v5547
        %7956 = vmatpush2.bf16.msra.mxu0 %v5546
        %7957 = vmatprep.subr.bf16.mxu0 %v5528
        %7958 = vmatpush2.bf16.msra.mxu0 %v5527
        %7959 = vmatprep.subr.bf16.mxu0 %v5509
        %7960 = vmatpush2.bf16.msra.mxu0 %v5508
        %7961 = vmatprep.subr.bf16.mxu0 %v5490
        %7962 = vmatpush2.bf16.msra.mxu0 %v5489
        %7963 = vmatprep.mubr.bf16.mxu0 %v1603
        %7964 = vmatmul.mubr.bf16.gmra.mxu0 %v1589
        %v7965 = vpop.f32.mrf.mxu0
        %v7966 = vadd.f32 0.0, %v7965
        %v7967 = vpop.f32.mrf.mxu0
        %v7968 = vadd.f32 0.0, %v7967
        %v7969 = vpop.f32.mrf.mxu0
        %v7970 = vpop.f32.mrf.mxu0
        %7971 = vdwg.mxu0
        %7972 = vmatprep.subr.bf16.mxu0 %v5775
        %7973 = vmatpush1.bf16.msra.mxu0 %v5774
        %7974 = vmatprep.subr.bf16.mxu0 %v5756
        %7975 = vmatpush1.bf16.msra.mxu0 %v5755
        %7976 = vmatprep.subr.bf16.mxu0 %v5737
        %7977 = vmatpush1.bf16.msra.mxu0 %v5736
        %7978 = vmatprep.subr.bf16.mxu0 %v5718
        %7979 = vmatpush1.bf16.msra.mxu0 %v5717
        %7980 = vmatprep.subr.bf16.mxu0 %v5699
        %7981 = vmatpush1.bf16.msra.mxu0 %v5698
        %7982 = vmatprep.subr.bf16.mxu0 %v5680
        %7983 = vmatpush1.bf16.msra.mxu0 %v5679
        %7984 = vmatprep.subr.bf16.mxu0 %v5661
        %7985 = vmatpush1.bf16.msra.mxu0 %v5660
        %7986 = vmatprep.subr.bf16.mxu0 %v5642
        %7987 = vmatpush1.bf16.msra.mxu0 %v5641
        %7988 = vmatprep.subr.bf16.mxu0 %v5927
        %7989 = vmatpush2.bf16.msra.mxu0 %v5926
        %7990 = vmatprep.subr.bf16.mxu0 %v5908
        %7991 = vmatpush2.bf16.msra.mxu0 %v5907
        %7992 = vmatprep.subr.bf16.mxu0 %v5889
        %7993 = vmatpush2.bf16.msra.mxu0 %v5888
        %7994 = vmatprep.subr.bf16.mxu0 %v5870
        %7995 = vmatpush2.bf16.msra.mxu0 %v5869
        %7996 = vmatprep.subr.bf16.mxu0 %v5851
        %7997 = vmatpush2.bf16.msra.mxu0 %v5850
        %7998 = vmatprep.subr.bf16.mxu0 %v5832
        %7999 = vmatpush2.bf16.msra.mxu0 %v5831
        %8000 = vmatprep.subr.bf16.mxu0 %v5813
        %8001 = vmatpush2.bf16.msra.mxu0 %v5812
        %8002 = vmatprep.subr.bf16.mxu0 %v5794
        %8003 = vmatpush2.bf16.msra.mxu0 %v5793
        %8004 = vmatprep.mubr.bf16.mxu0 %v1613
        %8005 = vmatmul.mubr.bf16.gmra.mxu0 %v1611
        %v8006 = vpop.f32.mrf.mxu0
        %v8007 = vadd.f32 %v7966, %v8006
        %v8008 = vpop.f32.mrf.mxu0
        %v8009 = vadd.f32 %v7968, %v8008
        %v8010 = vpop.f32.mrf.mxu0
        %v8011 = vpop.f32.mrf.mxu0
        %8012 = vdwg.mxu0
        %8013 = vmatprep.subr.bf16.mxu0 %v6079
        %8014 = vmatpush1.bf16.msra.mxu0 %v6078
        %8015 = vmatprep.subr.bf16.mxu0 %v6060
        %8016 = vmatpush1.bf16.msra.mxu0 %v6059
        %8017 = vmatprep.subr.bf16.mxu0 %v6041
        %8018 = vmatpush1.bf16.msra.mxu0 %v6040
        %8019 = vmatprep.subr.bf16.mxu0 %v6022
        %8020 = vmatpush1.bf16.msra.mxu0 %v6021
        %8021 = vmatprep.subr.bf16.mxu0 %v6003
        %8022 = vmatpush1.bf16.msra.mxu0 %v6002
        %8023 = vmatprep.subr.bf16.mxu0 %v5984
        %8024 = vmatpush1.bf16.msra.mxu0 %v5983
        %8025 = vmatprep.subr.bf16.mxu0 %v5965
        %8026 = vmatpush1.bf16.msra.mxu0 %v5964
        %8027 = vmatprep.subr.bf16.mxu0 %v5946
        %8028 = vmatpush1.bf16.msra.mxu0 %v5945
        %8029 = vmatprep.subr.bf16.mxu0 %v6231
        %8030 = vmatpush2.bf16.msra.mxu0 %v6230
        %8031 = vmatprep.subr.bf16.mxu0 %v6212
        %8032 = vmatpush2.bf16.msra.mxu0 %v6211
        %8033 = vmatprep.subr.bf16.mxu0 %v6193
        %8034 = vmatpush2.bf16.msra.mxu0 %v6192
        %8035 = vmatprep.subr.bf16.mxu0 %v6174
        %8036 = vmatpush2.bf16.msra.mxu0 %v6173
        %8037 = vmatprep.subr.bf16.mxu0 %v6155
        %8038 = vmatpush2.bf16.msra.mxu0 %v6154
        %8039 = vmatprep.subr.bf16.mxu0 %v6136
        %8040 = vmatpush2.bf16.msra.mxu0 %v6135
        %8041 = vmatprep.subr.bf16.mxu0 %v6117
        %8042 = vmatpush2.bf16.msra.mxu0 %v6116
        %8043 = vmatprep.subr.bf16.mxu0 %v6098
        %8044 = vmatpush2.bf16.msra.mxu0 %v6097
        %8045 = vmatprep.mubr.bf16.mxu0 %v1610
        %8046 = vmatmul.mubr.bf16.gmra.mxu0 %v1596
        %v8047 = vpop.f32.mrf.mxu0
        %v8048 = vadd.f32 %v8007, %v8047
        %v8049 = vpop.f32.mrf.mxu0
        %v8050 = vadd.f32 %v8009, %v8049
        %v8051 = vpop.f32.mrf.mxu0
        %v8052 = vpop.f32.mrf.mxu0
        %8053 = vdwg.mxu0
        %8054 = vmatprep.subr.bf16.mxu0 %v6383
        %8055 = vmatpush1.bf16.msra.mxu0 %v6382
        %8056 = vmatprep.subr.bf16.mxu0 %v6364
        %8057 = vmatpush1.bf16.msra.mxu0 %v6363
        %8058 = vmatprep.subr.bf16.mxu0 %v6345
        %8059 = vmatpush1.bf16.msra.mxu0 %v6344
        %8060 = vmatprep.subr.bf16.mxu0 %v6326
        %8061 = vmatpush1.bf16.msra.mxu0 %v6325
        %8062 = vmatprep.subr.bf16.mxu0 %v6307
        %8063 = vmatpush1.bf16.msra.mxu0 %v6306
        %8064 = vmatprep.subr.bf16.mxu0 %v6288
        %8065 = vmatpush1.bf16.msra.mxu0 %v6287
        %8066 = vmatprep.subr.bf16.mxu0 %v6269
        %8067 = vmatpush1.bf16.msra.mxu0 %v6268
        %8068 = vmatprep.subr.bf16.mxu0 %v6250
        %8069 = vmatpush1.bf16.msra.mxu0 %v6249
        %8070 = vmatprep.subr.bf16.mxu0 %v6535
        %8071 = vmatpush2.bf16.msra.mxu0 %v6534
        %8072 = vmatprep.subr.bf16.mxu0 %v6516
        %8073 = vmatpush2.bf16.msra.mxu0 %v6515
        %8074 = vmatprep.subr.bf16.mxu0 %v6497
        %8075 = vmatpush2.bf16.msra.mxu0 %v6496
        %8076 = vmatprep.subr.bf16.mxu0 %v6478
        %8077 = vmatpush2.bf16.msra.mxu0 %v6477
        %8078 = vmatprep.subr.bf16.mxu0 %v6459
        %8079 = vmatpush2.bf16.msra.mxu0 %v6458
        %8080 = vmatprep.subr.bf16.mxu0 %v6440
        %8081 = vmatpush2.bf16.msra.mxu0 %v6439
        %8082 = vmatprep.subr.bf16.mxu0 %v6421
        %8083 = vmatpush2.bf16.msra.mxu0 %v6420
        %8084 = vmatprep.subr.bf16.mxu0 %v6402
        %8085 = vmatpush2.bf16.msra.mxu0 %v6401
        %8086 = vmatprep.mubr.bf16.mxu0 %v1614
        %8087 = vmatmul.mubr.bf16.gmra.mxu0 %v1612
        %v8088 = vpop.f32.mrf.mxu0
        %v8089 = vadd.f32 %v8048, %v8088
        %v8090 = vpop.f32.mrf.mxu0
        %v8091 = vadd.f32 %v8050, %v8090
        %v8092 = vpop.f32.mrf.mxu0
        %v8093 = vpop.f32.mrf.mxu0
        %8094 = vdwg.mxu0
        %8095 = vmatprep.subr.bf16.mxu0 %v5473
        %8096 = vmatpush1.bf16.msra.mxu0 %v5472
        %8097 = vmatprep.subr.bf16.mxu0 %v5454
        %8098 = vmatpush1.bf16.msra.mxu0 %v5453
        %8099 = vmatprep.subr.bf16.mxu0 %v5435
        %8100 = vmatpush1.bf16.msra.mxu0 %v5434
        %8101 = vmatprep.subr.bf16.mxu0 %v5416
        %8102 = vmatpush1.bf16.msra.mxu0 %v5415
        %8103 = vmatprep.subr.bf16.mxu0 %v5397
        %8104 = vmatpush1.bf16.msra.mxu0 %v5396
        %8105 = vmatprep.subr.bf16.mxu0 %v5378
        %8106 = vmatpush1.bf16.msra.mxu0 %v5377
        %8107 = vmatprep.subr.bf16.mxu0 %v5359
        %8108 = vmatpush1.bf16.msra.mxu0 %v5358
        %8109 = vmatprep.subr.bf16.mxu0 %v5340
        %8110 = vmatpush1.bf16.msra.mxu0 %v5339
        %8111 = vmatprep.subr.bf16.mxu0 %v5625
        %8112 = vmatpush2.bf16.msra.mxu0 %v5624
        %8113 = vmatprep.subr.bf16.mxu0 %v5606
        %8114 = vmatpush2.bf16.msra.mxu0 %v5605
        %8115 = vmatprep.subr.bf16.mxu0 %v5587
        %8116 = vmatpush2.bf16.msra.mxu0 %v5586
        %8117 = vmatprep.subr.bf16.mxu0 %v5568
        %8118 = vmatpush2.bf16.msra.mxu0 %v5567
        %8119 = vmatprep.subr.bf16.mxu0 %v5549
        %8120 = vmatpush2.bf16.msra.mxu0 %v5548
        %8121 = vmatprep.subr.bf16.mxu0 %v5530
        %8122 = vmatpush2.bf16.msra.mxu0 %v5529
        %8123 = vmatprep.subr.bf16.mxu0 %v5511
        %8124 = vmatpush2.bf16.msra.mxu0 %v5510
        %8125 = vmatprep.subr.bf16.mxu0 %v5492
        %8126 = vmatpush2.bf16.msra.mxu0 %v5491
        %8127 = vmatprep.mubr.bf16.mxu0 %v1603
        %8128 = vmatmul.mubr.bf16.gmra.mxu0 %v1589
        %v8129 = vpop.f32.mrf.mxu0
        %v8130 = vadd.f32 0.0, %v8129
        %v8131 = vpop.f32.mrf.mxu0
        %v8132 = vadd.f32 0.0, %v8131
        %v8133 = vpop.f32.mrf.mxu0
        %v8134 = vpop.f32.mrf.mxu0
        %8135 = vdwg.mxu0
        %8136 = vmatprep.subr.bf16.mxu0 %v5777
        %8137 = vmatpush1.bf16.msra.mxu0 %v5776
        %8138 = vmatprep.subr.bf16.mxu0 %v5758
        %8139 = vmatpush1.bf16.msra.mxu0 %v5757
        %8140 = vmatprep.subr.bf16.mxu0 %v5739
        %8141 = vmatpush1.bf16.msra.mxu0 %v5738
        %8142 = vmatprep.subr.bf16.mxu0 %v5720
        %8143 = vmatpush1.bf16.msra.mxu0 %v5719
        %8144 = vmatprep.subr.bf16.mxu0 %v5701
        %8145 = vmatpush1.bf16.msra.mxu0 %v5700
        %8146 = vmatprep.subr.bf16.mxu0 %v5682
        %8147 = vmatpush1.bf16.msra.mxu0 %v5681
        %8148 = vmatprep.subr.bf16.mxu0 %v5663
        %8149 = vmatpush1.bf16.msra.mxu0 %v5662
        %8150 = vmatprep.subr.bf16.mxu0 %v5644
        %8151 = vmatpush1.bf16.msra.mxu0 %v5643
        %8152 = vmatprep.subr.bf16.mxu0 %v5929
        %8153 = vmatpush2.bf16.msra.mxu0 %v5928
        %8154 = vmatprep.subr.bf16.mxu0 %v5910
        %8155 = vmatpush2.bf16.msra.mxu0 %v5909
        %8156 = vmatprep.subr.bf16.mxu0 %v5891
        %8157 = vmatpush2.bf16.msra.mxu0 %v5890
        %8158 = vmatprep.subr.bf16.mxu0 %v5872
        %8159 = vmatpush2.bf16.msra.mxu0 %v5871
        %8160 = vmatprep.subr.bf16.mxu0 %v5853
        %8161 = vmatpush2.bf16.msra.mxu0 %v5852
        %8162 = vmatprep.subr.bf16.mxu0 %v5834
        %8163 = vmatpush2.bf16.msra.mxu0 %v5833
        %8164 = vmatprep.subr.bf16.mxu0 %v5815
        %8165 = vmatpush2.bf16.msra.mxu0 %v5814
        %8166 = vmatprep.subr.bf16.mxu0 %v5796
        %8167 = vmatpush2.bf16.msra.mxu0 %v5795
        %8168 = vmatprep.mubr.bf16.mxu0 %v1613
        %8169 = vmatmul.mubr.bf16.gmra.mxu0 %v1611
        %v8170 = vpop.f32.mrf.mxu0
        %v8171 = vadd.f32 %v8130, %v8170
        %v8172 = vpop.f32.mrf.mxu0
        %v8173 = vadd.f32 %v8132, %v8172
        %v8174 = vpop.f32.mrf.mxu0
        %v8175 = vpop.f32.mrf.mxu0
        %8176 = vdwg.mxu0
        %8177 = vmatprep.subr.bf16.mxu0 %v6081
        %8178 = vmatpush1.bf16.msra.mxu0 %v6080
        %8179 = vmatprep.subr.bf16.mxu0 %v6062
        %8180 = vmatpush1.bf16.msra.mxu0 %v6061
        %8181 = vmatprep.subr.bf16.mxu0 %v6043
        %8182 = vmatpush1.bf16.msra.mxu0 %v6042
        %8183 = vmatprep.subr.bf16.mxu0 %v6024
        %8184 = vmatpush1.bf16.msra.mxu0 %v6023
        %8185 = vmatprep.subr.bf16.mxu0 %v6005
        %8186 = vmatpush1.bf16.msra.mxu0 %v6004
        %8187 = vmatprep.subr.bf16.mxu0 %v5986
        %8188 = vmatpush1.bf16.msra.mxu0 %v5985
        %8189 = vmatprep.subr.bf16.mxu0 %v5967
        %8190 = vmatpush1.bf16.msra.mxu0 %v5966
        %8191 = vmatprep.subr.bf16.mxu0 %v5948
        %8192 = vmatpush1.bf16.msra.mxu0 %v5947
        %8193 = vmatprep.subr.bf16.mxu0 %v6233
        %8194 = vmatpush2.bf16.msra.mxu0 %v6232
        %8195 = vmatprep.subr.bf16.mxu0 %v6214
        %8196 = vmatpush2.bf16.msra.mxu0 %v6213
        %8197 = vmatprep.subr.bf16.mxu0 %v6195
        %8198 = vmatpush2.bf16.msra.mxu0 %v6194
        %8199 = vmatprep.subr.bf16.mxu0 %v6176
        %8200 = vmatpush2.bf16.msra.mxu0 %v6175
        %8201 = vmatprep.subr.bf16.mxu0 %v6157
        %8202 = vmatpush2.bf16.msra.mxu0 %v6156
        %8203 = vmatprep.subr.bf16.mxu0 %v6138
        %8204 = vmatpush2.bf16.msra.mxu0 %v6137
        %8205 = vmatprep.subr.bf16.mxu0 %v6119
        %8206 = vmatpush2.bf16.msra.mxu0 %v6118
        %8207 = vmatprep.subr.bf16.mxu0 %v6100
        %8208 = vmatpush2.bf16.msra.mxu0 %v6099
        %8209 = vmatprep.mubr.bf16.mxu0 %v1610
        %8210 = vmatmul.mubr.bf16.gmra.mxu0 %v1596
        %v8211 = vpop.f32.mrf.mxu0
        %v8212 = vadd.f32 %v8171, %v8211
        %v8213 = vpop.f32.mrf.mxu0
        %v8214 = vadd.f32 %v8173, %v8213
        %v8215 = vpop.f32.mrf.mxu0
        %v8216 = vpop.f32.mrf.mxu0
        %8217 = vdwg.mxu0
        %8218 = vmatprep.subr.bf16.mxu0 %v6385
        %8219 = vmatpush1.bf16.msra.mxu0 %v6384
        %8220 = vmatprep.subr.bf16.mxu0 %v6366
        %8221 = vmatpush1.bf16.msra.mxu0 %v6365
        %8222 = vmatprep.subr.bf16.mxu0 %v6347
        %8223 = vmatpush1.bf16.msra.mxu0 %v6346
        %8224 = vmatprep.subr.bf16.mxu0 %v6328
        %8225 = vmatpush1.bf16.msra.mxu0 %v6327
        %8226 = vmatprep.subr.bf16.mxu0 %v6309
        %8227 = vmatpush1.bf16.msra.mxu0 %v6308
        %8228 = vmatprep.subr.bf16.mxu0 %v6290
        %8229 = vmatpush1.bf16.msra.mxu0 %v6289
        %8230 = vmatprep.subr.bf16.mxu0 %v6271
        %8231 = vmatpush1.bf16.msra.mxu0 %v6270
        %8232 = vmatprep.subr.bf16.mxu0 %v6252
        %8233 = vmatpush1.bf16.msra.mxu0 %v6251
        %8234 = vmatprep.subr.bf16.mxu0 %v6537
        %8235 = vmatpush2.bf16.msra.mxu0 %v6536
        %8236 = vmatprep.subr.bf16.mxu0 %v6518
        %8237 = vmatpush2.bf16.msra.mxu0 %v6517
        %8238 = vmatprep.subr.bf16.mxu0 %v6499
        %8239 = vmatpush2.bf16.msra.mxu0 %v6498
        %8240 = vmatprep.subr.bf16.mxu0 %v6480
        %8241 = vmatpush2.bf16.msra.mxu0 %v6479
        %8242 = vmatprep.subr.bf16.mxu0 %v6461
        %8243 = vmatpush2.bf16.msra.mxu0 %v6460
        %8244 = vmatprep.subr.bf16.mxu0 %v6442
        %8245 = vmatpush2.bf16.msra.mxu0 %v6441
        %8246 = vmatprep.subr.bf16.mxu0 %v6423
        %8247 = vmatpush2.bf16.msra.mxu0 %v6422
        %8248 = vmatprep.subr.bf16.mxu0 %v6404
        %8249 = vmatpush2.bf16.msra.mxu0 %v6403
        %8250 = vmatprep.mubr.bf16.mxu0 %v1614
        %8251 = vmatmul.mubr.bf16.gmra.mxu0 %v1612
        %v8252 = vpop.f32.mrf.mxu0
        %v8253 = vadd.f32 %v8212, %v8252
        %v8254 = vpop.f32.mrf.mxu0
        %v8255 = vadd.f32 %v8214, %v8254
        %v8256 = vpop.f32.mrf.mxu0
        %v8257 = vpop.f32.mrf.mxu0
        %8258 = vdwg.mxu0
        %8259 = vmatprep.subr.bf16.mxu0 %v5475
        %8260 = vmatpush1.bf16.msra.mxu0 %v5474
        %8261 = vmatprep.subr.bf16.mxu0 %v5456
        %8262 = vmatpush1.bf16.msra.mxu0 %v5455
        %8263 = vmatprep.subr.bf16.mxu0 %v5437
        %8264 = vmatpush1.bf16.msra.mxu0 %v5436
        %8265 = vmatprep.subr.bf16.mxu0 %v5418
        %8266 = vmatpush1.bf16.msra.mxu0 %v5417
        %8267 = vmatprep.subr.bf16.mxu0 %v5399
        %8268 = vmatpush1.bf16.msra.mxu0 %v5398
        %8269 = vmatprep.subr.bf16.mxu0 %v5380
        %8270 = vmatpush1.bf16.msra.mxu0 %v5379
        %8271 = vmatprep.subr.bf16.mxu0 %v5361
        %8272 = vmatpush1.bf16.msra.mxu0 %v5360
        %8273 = vmatprep.subr.bf16.mxu0 %v5342
        %8274 = vmatpush1.bf16.msra.mxu0 %v5341
        %8275 = vmatprep.subr.bf16.mxu0 %v5627
        %8276 = vmatpush2.bf16.msra.mxu0 %v5626
        %8277 = vmatprep.subr.bf16.mxu0 %v5608
        %8278 = vmatpush2.bf16.msra.mxu0 %v5607
        %8279 = vmatprep.subr.bf16.mxu0 %v5589
        %8280 = vmatpush2.bf16.msra.mxu0 %v5588
        %8281 = vmatprep.subr.bf16.mxu0 %v5570
        %8282 = vmatpush2.bf16.msra.mxu0 %v5569
        %8283 = vmatprep.subr.bf16.mxu0 %v5551
        %8284 = vmatpush2.bf16.msra.mxu0 %v5550
        %8285 = vmatprep.subr.bf16.mxu0 %v5532
        %8286 = vmatpush2.bf16.msra.mxu0 %v5531
        %8287 = vmatprep.subr.bf16.mxu0 %v5513
        %8288 = vmatpush2.bf16.msra.mxu0 %v5512
        %8289 = vmatprep.subr.bf16.mxu0 %v5494
        %8290 = vmatpush2.bf16.msra.mxu0 %v5493
        %8291 = vmatprep.mubr.bf16.mxu0 %v1603
        %8292 = vmatmul.mubr.bf16.gmra.mxu0 %v1589
        %v8293 = vpop.f32.mrf.mxu0
        %v8294 = vadd.f32 0.0, %v8293
        %v8295 = vpop.f32.mrf.mxu0
        %v8296 = vadd.f32 0.0, %v8295
        %v8297 = vpop.f32.mrf.mxu0
        %v8298 = vpop.f32.mrf.mxu0
        %8299 = vdwg.mxu0
        %8300 = vmatprep.subr.bf16.mxu0 %v5779
        %8301 = vmatpush1.bf16.msra.mxu0 %v5778
        %8302 = vmatprep.subr.bf16.mxu0 %v5760
        %8303 = vmatpush1.bf16.msra.mxu0 %v5759
        %8304 = vmatprep.subr.bf16.mxu0 %v5741
        %8305 = vmatpush1.bf16.msra.mxu0 %v5740
        %8306 = vmatprep.subr.bf16.mxu0 %v5722
        %8307 = vmatpush1.bf16.msra.mxu0 %v5721
        %8308 = vmatprep.subr.bf16.mxu0 %v5703
        %8309 = vmatpush1.bf16.msra.mxu0 %v5702
        %8310 = vmatprep.subr.bf16.mxu0 %v5684
        %8311 = vmatpush1.bf16.msra.mxu0 %v5683
        %8312 = vmatprep.subr.bf16.mxu0 %v5665
        %8313 = vmatpush1.bf16.msra.mxu0 %v5664
        %8314 = vmatprep.subr.bf16.mxu0 %v5646
        %8315 = vmatpush1.bf16.msra.mxu0 %v5645
        %8316 = vmatprep.subr.bf16.mxu0 %v5931
        %8317 = vmatpush2.bf16.msra.mxu0 %v5930
        %8318 = vmatprep.subr.bf16.mxu0 %v5912
        %8319 = vmatpush2.bf16.msra.mxu0 %v5911
        %8320 = vmatprep.subr.bf16.mxu0 %v5893
        %8321 = vmatpush2.bf16.msra.mxu0 %v5892
        %8322 = vmatprep.subr.bf16.mxu0 %v5874
        %8323 = vmatpush2.bf16.msra.mxu0 %v5873
        %8324 = vmatprep.subr.bf16.mxu0 %v5855
        %8325 = vmatpush2.bf16.msra.mxu0 %v5854
        %8326 = vmatprep.subr.bf16.mxu0 %v5836
        %8327 = vmatpush2.bf16.msra.mxu0 %v5835
        %8328 = vmatprep.subr.bf16.mxu0 %v5817
        %8329 = vmatpush2.bf16.msra.mxu0 %v5816
        %8330 = vmatprep.subr.bf16.mxu0 %v5798
        %8331 = vmatpush2.bf16.msra.mxu0 %v5797
        %8332 = vmatprep.mubr.bf16.mxu0 %v1613
        %8333 = vmatmul.mubr.bf16.gmra.mxu0 %v1611
        %v8334 = vpop.f32.mrf.mxu0
        %v8335 = vadd.f32 %v8294, %v8334
        %v8336 = vpop.f32.mrf.mxu0
        %v8337 = vadd.f32 %v8296, %v8336
        %v8338 = vpop.f32.mrf.mxu0
        %v8339 = vpop.f32.mrf.mxu0
        %8340 = vdwg.mxu0
        %8341 = vmatprep.subr.bf16.mxu0 %v6083
        %8342 = vmatpush1.bf16.msra.mxu0 %v6082
        %8343 = vmatprep.subr.bf16.mxu0 %v6064
        %8344 = vmatpush1.bf16.msra.mxu0 %v6063
        %8345 = vmatprep.subr.bf16.mxu0 %v6045
        %8346 = vmatpush1.bf16.msra.mxu0 %v6044
        %8347 = vmatprep.subr.bf16.mxu0 %v6026
        %8348 = vmatpush1.bf16.msra.mxu0 %v6025
        %8349 = vmatprep.subr.bf16.mxu0 %v6007
        %8350 = vmatpush1.bf16.msra.mxu0 %v6006
        %8351 = vmatprep.subr.bf16.mxu0 %v5988
        %8352 = vmatpush1.bf16.msra.mxu0 %v5987
        %8353 = vmatprep.subr.bf16.mxu0 %v5969
        %8354 = vmatpush1.bf16.msra.mxu0 %v5968
        %8355 = vmatprep.subr.bf16.mxu0 %v5950
        %8356 = vmatpush1.bf16.msra.mxu0 %v5949
        %8357 = vmatprep.subr.bf16.mxu0 %v6235
        %8358 = vmatpush2.bf16.msra.mxu0 %v6234
        %8359 = vmatprep.subr.bf16.mxu0 %v6216
        %8360 = vmatpush2.bf16.msra.mxu0 %v6215
        %8361 = vmatprep.subr.bf16.mxu0 %v6197
        %8362 = vmatpush2.bf16.msra.mxu0 %v6196
        %8363 = vmatprep.subr.bf16.mxu0 %v6178
        %8364 = vmatpush2.bf16.msra.mxu0 %v6177
        %8365 = vmatprep.subr.bf16.mxu0 %v6159
        %8366 = vmatpush2.bf16.msra.mxu0 %v6158
        %8367 = vmatprep.subr.bf16.mxu0 %v6140
        %8368 = vmatpush2.bf16.msra.mxu0 %v6139
        %8369 = vmatprep.subr.bf16.mxu0 %v6121
        %8370 = vmatpush2.bf16.msra.mxu0 %v6120
        %8371 = vmatprep.subr.bf16.mxu0 %v6102
        %8372 = vmatpush2.bf16.msra.mxu0 %v6101
        %8373 = vmatprep.mubr.bf16.mxu0 %v1610
        %8374 = vmatmul.mubr.bf16.gmra.mxu0 %v1596
        %v8375 = vpop.f32.mrf.mxu0
        %v8376 = vadd.f32 %v8335, %v8375
        %v8377 = vpop.f32.mrf.mxu0
        %v8378 = vadd.f32 %v8337, %v8377
        %v8379 = vpop.f32.mrf.mxu0
        %v8380 = vpop.f32.mrf.mxu0
        %8381 = vdwg.mxu0
        %8382 = vmatprep.subr.bf16.mxu0 %v6387
        %8383 = vmatpush1.bf16.msra.mxu0 %v6386
        %8384 = vmatprep.subr.bf16.mxu0 %v6368
        %8385 = vmatpush1.bf16.msra.mxu0 %v6367
        %8386 = vmatprep.subr.bf16.mxu0 %v6349
        %8387 = vmatpush1.bf16.msra.mxu0 %v6348
        %8388 = vmatprep.subr.bf16.mxu0 %v6330
        %8389 = vmatpush1.bf16.msra.mxu0 %v6329
        %8390 = vmatprep.subr.bf16.mxu0 %v6311
        %8391 = vmatpush1.bf16.msra.mxu0 %v6310
        %8392 = vmatprep.subr.bf16.mxu0 %v6292
        %8393 = vmatpush1.bf16.msra.mxu0 %v6291
        %8394 = vmatprep.subr.bf16.mxu0 %v6273
        %8395 = vmatpush1.bf16.msra.mxu0 %v6272
        %8396 = vmatprep.subr.bf16.mxu0 %v6254
        %8397 = vmatpush1.bf16.msra.mxu0 %v6253
        %8398 = vmatprep.subr.bf16.mxu0 %v6539
        %8399 = vmatpush2.bf16.msra.mxu0 %v6538
        %8400 = vmatprep.subr.bf16.mxu0 %v6520
        %8401 = vmatpush2.bf16.msra.mxu0 %v6519
        %8402 = vmatprep.subr.bf16.mxu0 %v6501
        %8403 = vmatpush2.bf16.msra.mxu0 %v6500
        %8404 = vmatprep.subr.bf16.mxu0 %v6482
        %8405 = vmatpush2.bf16.msra.mxu0 %v6481
        %8406 = vmatprep.subr.bf16.mxu0 %v6463
        %8407 = vmatpush2.bf16.msra.mxu0 %v6462
        %8408 = vmatprep.subr.bf16.mxu0 %v6444
        %8409 = vmatpush2.bf16.msra.mxu0 %v6443
        %8410 = vmatprep.subr.bf16.mxu0 %v6425
        %8411 = vmatpush2.bf16.msra.mxu0 %v6424
        %8412 = vmatprep.subr.bf16.mxu0 %v6406
        %8413 = vmatpush2.bf16.msra.mxu0 %v6405
        %8414 = vmatprep.mubr.bf16.mxu0 %v1614
        %8415 = vmatmul.mubr.bf16.gmra.mxu0 %v1612
        %v8416 = vpop.f32.mrf.mxu0
        %v8417 = vadd.f32 %v8376, %v8416
        %v8418 = vpop.f32.mrf.mxu0
        %v8419 = vadd.f32 %v8378, %v8418
        %v8420 = vpop.f32.mrf.mxu0
        %v8421 = vpop.f32.mrf.mxu0
        %8422 = vdwg.mxu0
        %8423 = vmatprep.subr.bf16.mxu0 %v5477
        %8424 = vmatpush1.bf16.msra.mxu0 %v5476
        %8425 = vmatprep.subr.bf16.mxu0 %v5458
        %8426 = vmatpush1.bf16.msra.mxu0 %v5457
        %8427 = vmatprep.subr.bf16.mxu0 %v5439
        %8428 = vmatpush1.bf16.msra.mxu0 %v5438
        %8429 = vmatprep.subr.bf16.mxu0 %v5420
        %8430 = vmatpush1.bf16.msra.mxu0 %v5419
        %8431 = vmatprep.subr.bf16.mxu0 %v5401
        %8432 = vmatpush1.bf16.msra.mxu0 %v5400
        %8433 = vmatprep.subr.bf16.mxu0 %v5382
        %8434 = vmatpush1.bf16.msra.mxu0 %v5381
        %8435 = vmatprep.subr.bf16.mxu0 %v5363
        %8436 = vmatpush1.bf16.msra.mxu0 %v5362
        %8437 = vmatprep.subr.bf16.mxu0 %v5344
        %8438 = vmatpush1.bf16.msra.mxu0 %v5343
        %8439 = vmatprep.subr.bf16.mxu0 %v5629
        %8440 = vmatpush2.bf16.msra.mxu0 %v5628
        %8441 = vmatprep.subr.bf16.mxu0 %v5610
        %8442 = vmatpush2.bf16.msra.mxu0 %v5609
        %8443 = vmatprep.subr.bf16.mxu0 %v5591
        %8444 = vmatpush2.bf16.msra.mxu0 %v5590
        %8445 = vmatprep.subr.bf16.mxu0 %v5572
        %8446 = vmatpush2.bf16.msra.mxu0 %v5571
        %8447 = vmatprep.subr.bf16.mxu0 %v5553
        %8448 = vmatpush2.bf16.msra.mxu0 %v5552
        %8449 = vmatprep.subr.bf16.mxu0 %v5534
        %8450 = vmatpush2.bf16.msra.mxu0 %v5533
        %8451 = vmatprep.subr.bf16.mxu0 %v5515
        %8452 = vmatpush2.bf16.msra.mxu0 %v5514
        %8453 = vmatprep.subr.bf16.mxu0 %v5496
        %8454 = vmatpush2.bf16.msra.mxu0 %v5495
        %8455 = vmatprep.mubr.bf16.mxu0 %v1603
        %8456 = vmatmul.mubr.bf16.gmra.mxu0 %v1589
        %v8457 = vpop.f32.mrf.mxu0
        %v8458 = vadd.f32 0.0, %v8457
        %v8459 = vpop.f32.mrf.mxu0
        %v8460 = vadd.f32 0.0, %v8459
        %v8461 = vpop.f32.mrf.mxu0
        %v8462 = vpop.f32.mrf.mxu0
        %8463 = vdwg.mxu0
        %8464 = vmatprep.subr.bf16.mxu0 %v5781
        %8465 = vmatpush1.bf16.msra.mxu0 %v5780
        %8466 = vmatprep.subr.bf16.mxu0 %v5762
        %8467 = vmatpush1.bf16.msra.mxu0 %v5761
        %8468 = vmatprep.subr.bf16.mxu0 %v5743
        %8469 = vmatpush1.bf16.msra.mxu0 %v5742
        %8470 = vmatprep.subr.bf16.mxu0 %v5724
        %8471 = vmatpush1.bf16.msra.mxu0 %v5723
        %8472 = vmatprep.subr.bf16.mxu0 %v5705
        %8473 = vmatpush1.bf16.msra.mxu0 %v5704
        %8474 = vmatprep.subr.bf16.mxu0 %v5686
        %8475 = vmatpush1.bf16.msra.mxu0 %v5685
        %8476 = vmatprep.subr.bf16.mxu0 %v5667
        %8477 = vmatpush1.bf16.msra.mxu0 %v5666
        %8478 = vmatprep.subr.bf16.mxu0 %v5648
        %8479 = vmatpush1.bf16.msra.mxu0 %v5647
        %8480 = vmatprep.subr.bf16.mxu0 %v5933
        %8481 = vmatpush2.bf16.msra.mxu0 %v5932
        %8482 = vmatprep.subr.bf16.mxu0 %v5914
        %8483 = vmatpush2.bf16.msra.mxu0 %v5913
        %8484 = vmatprep.subr.bf16.mxu0 %v5895
        %8485 = vmatpush2.bf16.msra.mxu0 %v5894
        %8486 = vmatprep.subr.bf16.mxu0 %v5876
        %8487 = vmatpush2.bf16.msra.mxu0 %v5875
        %8488 = vmatprep.subr.bf16.mxu0 %v5857
        %8489 = vmatpush2.bf16.msra.mxu0 %v5856
        %8490 = vmatprep.subr.bf16.mxu0 %v5838
        %8491 = vmatpush2.bf16.msra.mxu0 %v5837
        %8492 = vmatprep.subr.bf16.mxu0 %v5819
        %8493 = vmatpush2.bf16.msra.mxu0 %v5818
        %8494 = vmatprep.subr.bf16.mxu0 %v5800
        %8495 = vmatpush2.bf16.msra.mxu0 %v5799
        %8496 = vmatprep.mubr.bf16.mxu0 %v1613
        %8497 = vmatmul.mubr.bf16.gmra.mxu0 %v1611
        %v8498 = vpop.f32.mrf.mxu0
        %v8499 = vadd.f32 %v8458, %v8498
        %v8500 = vpop.f32.mrf.mxu0
        %v8501 = vadd.f32 %v8460, %v8500
        %v8502 = vpop.f32.mrf.mxu0
        %v8503 = vpop.f32.mrf.mxu0
        %8504 = vdwg.mxu0
        %8505 = vmatprep.subr.bf16.mxu0 %v6085
        %8506 = vmatpush1.bf16.msra.mxu0 %v6084
        %8507 = vmatprep.subr.bf16.mxu0 %v6066
        %8508 = vmatpush1.bf16.msra.mxu0 %v6065
        %8509 = vmatprep.subr.bf16.mxu0 %v6047
        %8510 = vmatpush1.bf16.msra.mxu0 %v6046
        %8511 = vmatprep.subr.bf16.mxu0 %v6028
        %8512 = vmatpush1.bf16.msra.mxu0 %v6027
        %8513 = vmatprep.subr.bf16.mxu0 %v6009
        %8514 = vmatpush1.bf16.msra.mxu0 %v6008
        %8515 = vmatprep.subr.bf16.mxu0 %v5990
        %8516 = vmatpush1.bf16.msra.mxu0 %v5989
        %8517 = vmatprep.subr.bf16.mxu0 %v5971
        %8518 = vmatpush1.bf16.msra.mxu0 %v5970
        %8519 = vmatprep.subr.bf16.mxu0 %v5952
        %8520 = vmatpush1.bf16.msra.mxu0 %v5951
        %8521 = vmatprep.subr.bf16.mxu0 %v6237
        %8522 = vmatpush2.bf16.msra.mxu0 %v6236
        %8523 = vmatprep.subr.bf16.mxu0 %v6218
        %8524 = vmatpush2.bf16.msra.mxu0 %v6217
        %8525 = vmatprep.subr.bf16.mxu0 %v6199
        %8526 = vmatpush2.bf16.msra.mxu0 %v6198
        %8527 = vmatprep.subr.bf16.mxu0 %v6180
        %8528 = vmatpush2.bf16.msra.mxu0 %v6179
        %8529 = vmatprep.subr.bf16.mxu0 %v6161
        %8530 = vmatpush2.bf16.msra.mxu0 %v6160
        %8531 = vmatprep.subr.bf16.mxu0 %v6142
        %8532 = vmatpush2.bf16.msra.mxu0 %v6141
        %8533 = vmatprep.subr.bf16.mxu0 %v6123
        %8534 = vmatpush2.bf16.msra.mxu0 %v6122
        %8535 = vmatprep.subr.bf16.mxu0 %v6104
        %8536 = vmatpush2.bf16.msra.mxu0 %v6103
        %8537 = vmatprep.mubr.bf16.mxu0 %v1610
        %8538 = vmatmul.mubr.bf16.gmra.mxu0 %v1596
        %v8539 = vpop.f32.mrf.mxu0
        %v8540 = vadd.f32 %v8499, %v8539
        %v8541 = vpop.f32.mrf.mxu0
        %v8542 = vadd.f32 %v8501, %v8541
        %v8543 = vpop.f32.mrf.mxu0
        %v8544 = vpop.f32.mrf.mxu0
        %8545 = vdwg.mxu0
        %8546 = vmatprep.subr.bf16.mxu0 %v6389
        %8547 = vmatpush1.bf16.msra.mxu0 %v6388
        %8548 = vmatprep.subr.bf16.mxu0 %v6370
        %8549 = vmatpush1.bf16.msra.mxu0 %v6369
        %8550 = vmatprep.subr.bf16.mxu0 %v6351
        %8551 = vmatpush1.bf16.msra.mxu0 %v6350
        %8552 = vmatprep.subr.bf16.mxu0 %v6332
        %8553 = vmatpush1.bf16.msra.mxu0 %v6331
        %8554 = vmatprep.subr.bf16.mxu0 %v6313
        %8555 = vmatpush1.bf16.msra.mxu0 %v6312
        %8556 = vmatprep.subr.bf16.mxu0 %v6294
        %8557 = vmatpush1.bf16.msra.mxu0 %v6293
        %8558 = vmatprep.subr.bf16.mxu0 %v6275
        %8559 = vmatpush1.bf16.msra.mxu0 %v6274
        %8560 = vmatprep.subr.bf16.mxu0 %v6256
        %8561 = vmatpush1.bf16.msra.mxu0 %v6255
        %8562 = vmatprep.subr.bf16.mxu0 %v6541
        %8563 = vmatpush2.bf16.msra.mxu0 %v6540
        %8564 = vmatprep.subr.bf16.mxu0 %v6522
        %8565 = vmatpush2.bf16.msra.mxu0 %v6521
        %8566 = vmatprep.subr.bf16.mxu0 %v6503
        %8567 = vmatpush2.bf16.msra.mxu0 %v6502
        %8568 = vmatprep.subr.bf16.mxu0 %v6484
        %8569 = vmatpush2.bf16.msra.mxu0 %v6483
        %8570 = vmatprep.subr.bf16.mxu0 %v6465
        %8571 = vmatpush2.bf16.msra.mxu0 %v6464
        %8572 = vmatprep.subr.bf16.mxu0 %v6446
        %8573 = vmatpush2.bf16.msra.mxu0 %v6445
        %8574 = vmatprep.subr.bf16.mxu0 %v6427
        %8575 = vmatpush2.bf16.msra.mxu0 %v6426
        %8576 = vmatprep.subr.bf16.mxu0 %v6408
        %8577 = vmatpush2.bf16.msra.mxu0 %v6407
        %8578 = vmatprep.mubr.bf16.mxu0 %v1614
        %8579 = vmatmul.mubr.bf16.gmra.mxu0 %v1612
        %v8580 = vpop.f32.mrf.mxu0
        %v8581 = vadd.f32 %v8540, %v8580
        %v8582 = vpop.f32.mrf.mxu0
        %v8583 = vadd.f32 %v8542, %v8582
        %v8584 = vpop.f32.mrf.mxu0
        %v8585 = vpop.f32.mrf.mxu0
        %8586 = vdwg.mxu0
        %8587 = vmatprep.subr.bf16.mxu0 %v5479
        %8588 = vmatpush1.bf16.msra.mxu0 %v5478
        %8589 = vmatprep.subr.bf16.mxu0 %v5460
        %8590 = vmatpush1.bf16.msra.mxu0 %v5459
        %8591 = vmatprep.subr.bf16.mxu0 %v5441
        %8592 = vmatpush1.bf16.msra.mxu0 %v5440
        %8593 = vmatprep.subr.bf16.mxu0 %v5422
        %8594 = vmatpush1.bf16.msra.mxu0 %v5421
        %8595 = vmatprep.subr.bf16.mxu0 %v5403
        %8596 = vmatpush1.bf16.msra.mxu0 %v5402
        %8597 = vmatprep.subr.bf16.mxu0 %v5384
        %8598 = vmatpush1.bf16.msra.mxu0 %v5383
        %8599 = vmatprep.subr.bf16.mxu0 %v5365
        %8600 = vmatpush1.bf16.msra.mxu0 %v5364
        %8601 = vmatprep.subr.bf16.mxu0 %v5346
        %8602 = vmatpush1.bf16.msra.mxu0 %v5345
        %8603 = vmatprep.subr.bf16.mxu0 %v5631
        %8604 = vmatpush2.bf16.msra.mxu0 %v5630
        %8605 = vmatprep.subr.bf16.mxu0 %v5612
        %8606 = vmatpush2.bf16.msra.mxu0 %v5611
        %8607 = vmatprep.subr.bf16.mxu0 %v5593
        %8608 = vmatpush2.bf16.msra.mxu0 %v5592
        %8609 = vmatprep.subr.bf16.mxu0 %v5574
        %8610 = vmatpush2.bf16.msra.mxu0 %v5573
        %8611 = vmatprep.subr.bf16.mxu0 %v5555
        %8612 = vmatpush2.bf16.msra.mxu0 %v5554
        %8613 = vmatprep.subr.bf16.mxu0 %v5536
        %8614 = vmatpush2.bf16.msra.mxu0 %v5535
        %8615 = vmatprep.subr.bf16.mxu0 %v5517
        %8616 = vmatpush2.bf16.msra.mxu0 %v5516
        %8617 = vmatprep.subr.bf16.mxu0 %v5498
        %8618 = vmatpush2.bf16.msra.mxu0 %v5497
        %8619 = vmatprep.mubr.bf16.mxu0 %v1603
        %8620 = vmatmul.mubr.bf16.gmra.mxu0 %v1589
        %v8621 = vpop.f32.mrf.mxu0
        %v8622 = vadd.f32 0.0, %v8621
        %v8623 = vpop.f32.mrf.mxu0
        %v8624 = vadd.f32 0.0, %v8623
        %v8625 = vpop.f32.mrf.mxu0
        %v8626 = vpop.f32.mrf.mxu0
        %8627 = vdwg.mxu0
        %8628 = vmatprep.subr.bf16.mxu0 %v5783
        %8629 = vmatpush1.bf16.msra.mxu0 %v5782
        %8630 = vmatprep.subr.bf16.mxu0 %v5764
        %8631 = vmatpush1.bf16.msra.mxu0 %v5763
        %8632 = vmatprep.subr.bf16.mxu0 %v5745
        %8633 = vmatpush1.bf16.msra.mxu0 %v5744
        %8634 = vmatprep.subr.bf16.mxu0 %v5726
        %8635 = vmatpush1.bf16.msra.mxu0 %v5725
        %8636 = vmatprep.subr.bf16.mxu0 %v5707
        %8637 = vmatpush1.bf16.msra.mxu0 %v5706
        %8638 = vmatprep.subr.bf16.mxu0 %v5688
        %8639 = vmatpush1.bf16.msra.mxu0 %v5687
        %8640 = vmatprep.subr.bf16.mxu0 %v5669
        %8641 = vmatpush1.bf16.msra.mxu0 %v5668
        %8642 = vmatprep.subr.bf16.mxu0 %v5650
        %8643 = vmatpush1.bf16.msra.mxu0 %v5649
        %8644 = vmatprep.subr.bf16.mxu0 %v5935
        %8645 = vmatpush2.bf16.msra.mxu0 %v5934
        %8646 = vmatprep.subr.bf16.mxu0 %v5916
        %8647 = vmatpush2.bf16.msra.mxu0 %v5915
        %8648 = vmatprep.subr.bf16.mxu0 %v5897
        %8649 = vmatpush2.bf16.msra.mxu0 %v5896
        %8650 = vmatprep.subr.bf16.mxu0 %v5878
        %8651 = vmatpush2.bf16.msra.mxu0 %v5877
        %8652 = vmatprep.subr.bf16.mxu0 %v5859
        %8653 = vmatpush2.bf16.msra.mxu0 %v5858
        %8654 = vmatprep.subr.bf16.mxu0 %v5840
        %8655 = vmatpush2.bf16.msra.mxu0 %v5839
        %8656 = vmatprep.subr.bf16.mxu0 %v5821
        %8657 = vmatpush2.bf16.msra.mxu0 %v5820
        %8658 = vmatprep.subr.bf16.mxu0 %v5802
        %8659 = vmatpush2.bf16.msra.mxu0 %v5801
        %8660 = vmatprep.mubr.bf16.mxu0 %v1613
        %8661 = vmatmul.mubr.bf16.gmra.mxu0 %v1611
        %v8662 = vpop.f32.mrf.mxu0
        %v8663 = vadd.f32 %v8622, %v8662
        %v8664 = vpop.f32.mrf.mxu0
        %v8665 = vadd.f32 %v8624, %v8664
        %v8666 = vpop.f32.mrf.mxu0
        %v8667 = vpop.f32.mrf.mxu0
        %8668 = vdwg.mxu0
        %8669 = vmatprep.subr.bf16.mxu0 %v6087
        %8670 = vmatpush1.bf16.msra.mxu0 %v6086
        %8671 = vmatprep.subr.bf16.mxu0 %v6068
        %8672 = vmatpush1.bf16.msra.mxu0 %v6067
        %8673 = vmatprep.subr.bf16.mxu0 %v6049
        %8674 = vmatpush1.bf16.msra.mxu0 %v6048
        %8675 = vmatprep.subr.bf16.mxu0 %v6030
        %8676 = vmatpush1.bf16.msra.mxu0 %v6029
        %8677 = vmatprep.subr.bf16.mxu0 %v6011
        %8678 = vmatpush1.bf16.msra.mxu0 %v6010
        %8679 = vmatprep.subr.bf16.mxu0 %v5992
        %8680 = vmatpush1.bf16.msra.mxu0 %v5991
        %8681 = vmatprep.subr.bf16.mxu0 %v5973
        %8682 = vmatpush1.bf16.msra.mxu0 %v5972
        %8683 = vmatprep.subr.bf16.mxu0 %v5954
        %8684 = vmatpush1.bf16.msra.mxu0 %v5953
        %8685 = vmatprep.subr.bf16.mxu0 %v6239
        %8686 = vmatpush2.bf16.msra.mxu0 %v6238
        %8687 = vmatprep.subr.bf16.mxu0 %v6220
        %8688 = vmatpush2.bf16.msra.mxu0 %v6219
        %8689 = vmatprep.subr.bf16.mxu0 %v6201
        %8690 = vmatpush2.bf16.msra.mxu0 %v6200
        %8691 = vmatprep.subr.bf16.mxu0 %v6182
        %8692 = vmatpush2.bf16.msra.mxu0 %v6181
        %8693 = vmatprep.subr.bf16.mxu0 %v6163
        %8694 = vmatpush2.bf16.msra.mxu0 %v6162
        %8695 = vmatprep.subr.bf16.mxu0 %v6144
        %8696 = vmatpush2.bf16.msra.mxu0 %v6143
        %8697 = vmatprep.subr.bf16.mxu0 %v6125
        %8698 = vmatpush2.bf16.msra.mxu0 %v6124
        %8699 = vmatprep.subr.bf16.mxu0 %v6106
        %8700 = vmatpush2.bf16.msra.mxu0 %v6105
        %8701 = vmatprep.mubr.bf16.mxu0 %v1610
        %8702 = vmatmul.mubr.bf16.gmra.mxu0 %v1596
        %v8703 = vpop.f32.mrf.mxu0
        %v8704 = vadd.f32 %v8663, %v8703
        %v8705 = vpop.f32.mrf.mxu0
        %v8706 = vadd.f32 %v8665, %v8705
        %v8707 = vpop.f32.mrf.mxu0
        %v8708 = vpop.f32.mrf.mxu0
        %8709 = vdwg.mxu0
        %8710 = vmatprep.subr.bf16.mxu0 %v6391
        %8711 = vmatpush1.bf16.msra.mxu0 %v6390
        %8712 = vmatprep.subr.bf16.mxu0 %v6372
        %8713 = vmatpush1.bf16.msra.mxu0 %v6371
        %8714 = vmatprep.subr.bf16.mxu0 %v6353
        %8715 = vmatpush1.bf16.msra.mxu0 %v6352
        %8716 = vmatprep.subr.bf16.mxu0 %v6334
        %8717 = vmatpush1.bf16.msra.mxu0 %v6333
        %8718 = vmatprep.subr.bf16.mxu0 %v6315
        %8719 = vmatpush1.bf16.msra.mxu0 %v6314
        %8720 = vmatprep.subr.bf16.mxu0 %v6296
        %8721 = vmatpush1.bf16.msra.mxu0 %v6295
        %8722 = vmatprep.subr.bf16.mxu0 %v6277
        %8723 = vmatpush1.bf16.msra.mxu0 %v6276
        %8724 = vmatprep.subr.bf16.mxu0 %v6258
        %8725 = vmatpush1.bf16.msra.mxu0 %v6257
        %8726 = vmatprep.subr.bf16.mxu0 %v6543
        %8727 = vmatpush2.bf16.msra.mxu0 %v6542
        %8728 = vmatprep.subr.bf16.mxu0 %v6524
        %8729 = vmatpush2.bf16.msra.mxu0 %v6523
        %8730 = vmatprep.subr.bf16.mxu0 %v6505
        %8731 = vmatpush2.bf16.msra.mxu0 %v6504
        %8732 = vmatprep.subr.bf16.mxu0 %v6486
        %8733 = vmatpush2.bf16.msra.mxu0 %v6485
        %8734 = vmatprep.subr.bf16.mxu0 %v6467
        %8735 = vmatpush2.bf16.msra.mxu0 %v6466
        %8736 = vmatprep.subr.bf16.mxu0 %v6448
        %8737 = vmatpush2.bf16.msra.mxu0 %v6447
        %8738 = vmatprep.subr.bf16.mxu0 %v6429
        %8739 = vmatpush2.bf16.msra.mxu0 %v6428
        %8740 = vmatprep.subr.bf16.mxu0 %v6410
        %8741 = vmatpush2.bf16.msra.mxu0 %v6409
        %8742 = vmatprep.mubr.bf16.mxu0 %v1614
        %8743 = vmatmul.mubr.bf16.gmra.mxu0 %v1612
        %v8744 = vpop.f32.mrf.mxu0
        %v8745 = vadd.f32 %v8704, %v8744
        %v8746 = vpop.f32.mrf.mxu0
        %v8747 = vadd.f32 %v8706, %v8746
        %v8748 = vpop.f32.mrf.mxu0
        %v8749 = vpop.f32.mrf.mxu0
        %8750 = vdwg.mxu0
        %8751 = vmatprep.subr.bf16.mxu0 %v5481
        %8752 = vmatpush1.bf16.msra.mxu0 %v5480
        %8753 = vmatprep.subr.bf16.mxu0 %v5462
        %8754 = vmatpush1.bf16.msra.mxu0 %v5461
        %8755 = vmatprep.subr.bf16.mxu0 %v5443
        %8756 = vmatpush1.bf16.msra.mxu0 %v5442
        %8757 = vmatprep.subr.bf16.mxu0 %v5424
        %8758 = vmatpush1.bf16.msra.mxu0 %v5423
        %8759 = vmatprep.subr.bf16.mxu0 %v5405
        %8760 = vmatpush1.bf16.msra.mxu0 %v5404
        %8761 = vmatprep.subr.bf16.mxu0 %v5386
        %8762 = vmatpush1.bf16.msra.mxu0 %v5385
        %8763 = vmatprep.subr.bf16.mxu0 %v5367
        %8764 = vmatpush1.bf16.msra.mxu0 %v5366
        %8765 = vmatprep.subr.bf16.mxu0 %v5348
        %8766 = vmatpush1.bf16.msra.mxu0 %v5347
        %8767 = vmatprep.subr.bf16.mxu0 %v5633
        %8768 = vmatpush2.bf16.msra.mxu0 %v5632
        %8769 = vmatprep.subr.bf16.mxu0 %v5614
        %8770 = vmatpush2.bf16.msra.mxu0 %v5613
        %8771 = vmatprep.subr.bf16.mxu0 %v5595
        %8772 = vmatpush2.bf16.msra.mxu0 %v5594
        %8773 = vmatprep.subr.bf16.mxu0 %v5576
        %8774 = vmatpush2.bf16.msra.mxu0 %v5575
        %8775 = vmatprep.subr.bf16.mxu0 %v5557
        %8776 = vmatpush2.bf16.msra.mxu0 %v5556
        %8777 = vmatprep.subr.bf16.mxu0 %v5538
        %8778 = vmatpush2.bf16.msra.mxu0 %v5537
        %8779 = vmatprep.subr.bf16.mxu0 %v5519
        %8780 = vmatpush2.bf16.msra.mxu0 %v5518
        %8781 = vmatprep.subr.bf16.mxu0 %v5500
        %8782 = vmatpush2.bf16.msra.mxu0 %v5499
        %8783 = vmatprep.mubr.bf16.mxu0 %v1603
        %8784 = vmatmul.mubr.bf16.gmra.mxu0 %v1589
        %v8785 = vpop.f32.mrf.mxu0
        %v8786 = vadd.f32 0.0, %v8785
        %v8787 = vpop.f32.mrf.mxu0
        %v8788 = vadd.f32 0.0, %v8787
        %v8789 = vpop.f32.mrf.mxu0
        %v8790 = vpop.f32.mrf.mxu0
        %8791 = vdwg.mxu0
        %8792 = vmatprep.subr.bf16.mxu0 %v5785
        %8793 = vmatpush1.bf16.msra.mxu0 %v5784
        %8794 = vmatprep.subr.bf16.mxu0 %v5766
        %8795 = vmatpush1.bf16.msra.mxu0 %v5765
        %8796 = vmatprep.subr.bf16.mxu0 %v5747
        %8797 = vmatpush1.bf16.msra.mxu0 %v5746
        %8798 = vmatprep.subr.bf16.mxu0 %v5728
        %8799 = vmatpush1.bf16.msra.mxu0 %v5727
        %8800 = vmatprep.subr.bf16.mxu0 %v5709
        %8801 = vmatpush1.bf16.msra.mxu0 %v5708
        %8802 = vmatprep.subr.bf16.mxu0 %v5690
        %8803 = vmatpush1.bf16.msra.mxu0 %v5689
        %8804 = vmatprep.subr.bf16.mxu0 %v5671
        %8805 = vmatpush1.bf16.msra.mxu0 %v5670
        %8806 = vmatprep.subr.bf16.mxu0 %v5652
        %8807 = vmatpush1.bf16.msra.mxu0 %v5651
        %8808 = vmatprep.subr.bf16.mxu0 %v5937
        %8809 = vmatpush2.bf16.msra.mxu0 %v5936
        %8810 = vmatprep.subr.bf16.mxu0 %v5918
        %8811 = vmatpush2.bf16.msra.mxu0 %v5917
        %8812 = vmatprep.subr.bf16.mxu0 %v5899
        %8813 = vmatpush2.bf16.msra.mxu0 %v5898
        %8814 = vmatprep.subr.bf16.mxu0 %v5880
        %8815 = vmatpush2.bf16.msra.mxu0 %v5879
        %8816 = vmatprep.subr.bf16.mxu0 %v5861
        %8817 = vmatpush2.bf16.msra.mxu0 %v5860
        %8818 = vmatprep.subr.bf16.mxu0 %v5842
        %8819 = vmatpush2.bf16.msra.mxu0 %v5841
        %8820 = vmatprep.subr.bf16.mxu0 %v5823
        %8821 = vmatpush2.bf16.msra.mxu0 %v5822
        %8822 = vmatprep.subr.bf16.mxu0 %v5804
        %8823 = vmatpush2.bf16.msra.mxu0 %v5803
        %8824 = vmatprep.mubr.bf16.mxu0 %v1613
        %8825 = vmatmul.mubr.bf16.gmra.mxu0 %v1611
        %v8826 = vpop.f32.mrf.mxu0
        %v8827 = vadd.f32 %v8786, %v8826
        %v8828 = vpop.f32.mrf.mxu0
        %v8829 = vadd.f32 %v8788, %v8828
        %v8830 = vpop.f32.mrf.mxu0
        %v8831 = vpop.f32.mrf.mxu0
        %8832 = vdwg.mxu0
        %8833 = vmatprep.subr.bf16.mxu0 %v6089
        %8834 = vmatpush1.bf16.msra.mxu0 %v6088
        %8835 = vmatprep.subr.bf16.mxu0 %v6070
        %8836 = vmatpush1.bf16.msra.mxu0 %v6069
        %8837 = vmatprep.subr.bf16.mxu0 %v6051
        %8838 = vmatpush1.bf16.msra.mxu0 %v6050
        %8839 = vmatprep.subr.bf16.mxu0 %v6032
        %8840 = vmatpush1.bf16.msra.mxu0 %v6031
        %8841 = vmatprep.subr.bf16.mxu0 %v6013
        %8842 = vmatpush1.bf16.msra.mxu0 %v6012
        %8843 = vmatprep.subr.bf16.mxu0 %v5994
        %8844 = vmatpush1.bf16.msra.mxu0 %v5993
        %8845 = vmatprep.subr.bf16.mxu0 %v5975
        %8846 = vmatpush1.bf16.msra.mxu0 %v5974
        %8847 = vmatprep.subr.bf16.mxu0 %v5956
        %8848 = vmatpush1.bf16.msra.mxu0 %v5955
        %8849 = vmatprep.subr.bf16.mxu0 %v6241
        %8850 = vmatpush2.bf16.msra.mxu0 %v6240
        %8851 = vmatprep.subr.bf16.mxu0 %v6222
        %8852 = vmatpush2.bf16.msra.mxu0 %v6221
        %8853 = vmatprep.subr.bf16.mxu0 %v6203
        %8854 = vmatpush2.bf16.msra.mxu0 %v6202
        %8855 = vmatprep.subr.bf16.mxu0 %v6184
        %8856 = vmatpush2.bf16.msra.mxu0 %v6183
        %8857 = vmatprep.subr.bf16.mxu0 %v6165
        %8858 = vmatpush2.bf16.msra.mxu0 %v6164
        %8859 = vmatprep.subr.bf16.mxu0 %v6146
        %8860 = vmatpush2.bf16.msra.mxu0 %v6145
        %8861 = vmatprep.subr.bf16.mxu0 %v6127
        %8862 = vmatpush2.bf16.msra.mxu0 %v6126
        %8863 = vmatprep.subr.bf16.mxu0 %v6108
        %8864 = vmatpush2.bf16.msra.mxu0 %v6107
        %8865 = vmatprep.mubr.bf16.mxu0 %v1610
        %8866 = vmatmul.mubr.bf16.gmra.mxu0 %v1596
        %v8867 = vpop.f32.mrf.mxu0
        %v8868 = vadd.f32 %v8827, %v8867
        %v8869 = vpop.f32.mrf.mxu0
        %v8870 = vadd.f32 %v8829, %v8869
        %v8871 = vpop.f32.mrf.mxu0
        %v8872 = vpop.f32.mrf.mxu0
        %8873 = vdwg.mxu0
        %8874 = vmatprep.subr.bf16.mxu0 %v6393
        %8875 = vmatpush1.bf16.msra.mxu0 %v6392
        %8876 = vmatprep.subr.bf16.mxu0 %v6374
        %8877 = vmatpush1.bf16.msra.mxu0 %v6373
        %8878 = vmatprep.subr.bf16.mxu0 %v6355
        %8879 = vmatpush1.bf16.msra.mxu0 %v6354
        %8880 = vmatprep.subr.bf16.mxu0 %v6336
        %8881 = vmatpush1.bf16.msra.mxu0 %v6335
        %8882 = vmatprep.subr.bf16.mxu0 %v6317
        %8883 = vmatpush1.bf16.msra.mxu0 %v6316
        %8884 = vmatprep.subr.bf16.mxu0 %v6298
        %8885 = vmatpush1.bf16.msra.mxu0 %v6297
        %8886 = vmatprep.subr.bf16.mxu0 %v6279
        %8887 = vmatpush1.bf16.msra.mxu0 %v6278
        %8888 = vmatprep.subr.bf16.mxu0 %v6260
        %8889 = vmatpush1.bf16.msra.mxu0 %v6259
        %8890 = vmatprep.subr.bf16.mxu0 %v6545
        %8891 = vmatpush2.bf16.msra.mxu0 %v6544
        %8892 = vmatprep.subr.bf16.mxu0 %v6526
        %8893 = vmatpush2.bf16.msra.mxu0 %v6525
        %8894 = vmatprep.subr.bf16.mxu0 %v6507
        %8895 = vmatpush2.bf16.msra.mxu0 %v6506
        %8896 = vmatprep.subr.bf16.mxu0 %v6488
        %8897 = vmatpush2.bf16.msra.mxu0 %v6487
        %8898 = vmatprep.subr.bf16.mxu0 %v6469
        %8899 = vmatpush2.bf16.msra.mxu0 %v6468
        %8900 = vmatprep.subr.bf16.mxu0 %v6450
        %8901 = vmatpush2.bf16.msra.mxu0 %v6449
        %8902 = vmatprep.subr.bf16.mxu0 %v6431
        %8903 = vmatpush2.bf16.msra.mxu0 %v6430
        %8904 = vmatprep.subr.bf16.mxu0 %v6412
        %8905 = vmatpush2.bf16.msra.mxu0 %v6411
        %8906 = vmatprep.mubr.bf16.mxu0 %v1614
        %8907 = vmatmul.mubr.bf16.gmra.mxu0 %v1612
        %v8908 = vpop.f32.mrf.mxu0
        %v8909 = vadd.f32 %v8868, %v8908
        %v8910 = vpop.f32.mrf.mxu0
        %v8911 = vadd.f32 %v8870, %v8910
        %v8912 = vpop.f32.mrf.mxu0
        %v8913 = vpop.f32.mrf.mxu0
        %8914 = vdwg.mxu0
        %8915 = vmatprep.subr.bf16.mxu0 %v5483
        %8916 = vmatpush1.bf16.msra.mxu0 %v5482
        %8917 = vmatprep.subr.bf16.mxu0 %v5464
        %8918 = vmatpush1.bf16.msra.mxu0 %v5463
        %8919 = vmatprep.subr.bf16.mxu0 %v5445
        %8920 = vmatpush1.bf16.msra.mxu0 %v5444
        %8921 = vmatprep.subr.bf16.mxu0 %v5426
        %8922 = vmatpush1.bf16.msra.mxu0 %v5425
        %8923 = vmatprep.subr.bf16.mxu0 %v5407
        %8924 = vmatpush1.bf16.msra.mxu0 %v5406
        %8925 = vmatprep.subr.bf16.mxu0 %v5388
        %8926 = vmatpush1.bf16.msra.mxu0 %v5387
        %8927 = vmatprep.subr.bf16.mxu0 %v5369
        %8928 = vmatpush1.bf16.msra.mxu0 %v5368
        %8929 = vmatprep.subr.bf16.mxu0 %v5350
        %8930 = vmatpush1.bf16.msra.mxu0 %v5349
        %8931 = vmatprep.subr.bf16.mxu0 %v5635
        %8932 = vmatpush2.bf16.msra.mxu0 %v5634
        %8933 = vmatprep.subr.bf16.mxu0 %v5616
        %8934 = vmatpush2.bf16.msra.mxu0 %v5615
        %8935 = vmatprep.subr.bf16.mxu0 %v5597
        %8936 = vmatpush2.bf16.msra.mxu0 %v5596
        %8937 = vmatprep.subr.bf16.mxu0 %v5578
        %8938 = vmatpush2.bf16.msra.mxu0 %v5577
        %8939 = vmatprep.subr.bf16.mxu0 %v5559
        %8940 = vmatpush2.bf16.msra.mxu0 %v5558
        %8941 = vmatprep.subr.bf16.mxu0 %v5540
        %8942 = vmatpush2.bf16.msra.mxu0 %v5539
        %8943 = vmatprep.subr.bf16.mxu0 %v5521
        %8944 = vmatpush2.bf16.msra.mxu0 %v5520
        %8945 = vmatprep.subr.bf16.mxu0 %v5502
        %8946 = vmatpush2.bf16.msra.mxu0 %v5501
        %8947 = vmatprep.mubr.bf16.mxu0 %v1603
        %8948 = vmatmul.mubr.bf16.gmra.mxu0 %v1589
        %v8949 = vpop.f32.mrf.mxu0
        %v8950 = vadd.f32 0.0, %v8949
        %v8951 = vpop.f32.mrf.mxu0
        %v8952 = vadd.f32 0.0, %v8951
        %v8953 = vpop.f32.mrf.mxu0
        %v8954 = vpop.f32.mrf.mxu0
        %8955 = vdwg.mxu0
        %8956 = vmatprep.subr.bf16.mxu0 %v5787
        %8957 = vmatpush1.bf16.msra.mxu0 %v5786
        %8958 = vmatprep.subr.bf16.mxu0 %v5768
        %8959 = vmatpush1.bf16.msra.mxu0 %v5767
        %8960 = vmatprep.subr.bf16.mxu0 %v5749
        %8961 = vmatpush1.bf16.msra.mxu0 %v5748
        %8962 = vmatprep.subr.bf16.mxu0 %v5730
        %8963 = vmatpush1.bf16.msra.mxu0 %v5729
        %8964 = vmatprep.subr.bf16.mxu0 %v5711
        %8965 = vmatpush1.bf16.msra.mxu0 %v5710
        %8966 = vmatprep.subr.bf16.mxu0 %v5692
        %8967 = vmatpush1.bf16.msra.mxu0 %v5691
        %8968 = vmatprep.subr.bf16.mxu0 %v5673
        %8969 = vmatpush1.bf16.msra.mxu0 %v5672
        %8970 = vmatprep.subr.bf16.mxu0 %v5654
        %8971 = vmatpush1.bf16.msra.mxu0 %v5653
        %8972 = vmatprep.subr.bf16.mxu0 %v5939
        %8973 = vmatpush2.bf16.msra.mxu0 %v5938
        %8974 = vmatprep.subr.bf16.mxu0 %v5920
        %8975 = vmatpush2.bf16.msra.mxu0 %v5919
        %8976 = vmatprep.subr.bf16.mxu0 %v5901
        %8977 = vmatpush2.bf16.msra.mxu0 %v5900
        %8978 = vmatprep.subr.bf16.mxu0 %v5882
        %8979 = vmatpush2.bf16.msra.mxu0 %v5881
        %8980 = vmatprep.subr.bf16.mxu0 %v5863
        %8981 = vmatpush2.bf16.msra.mxu0 %v5862
        %8982 = vmatprep.subr.bf16.mxu0 %v5844
        %8983 = vmatpush2.bf16.msra.mxu0 %v5843
        %8984 = vmatprep.subr.bf16.mxu0 %v5825
        %8985 = vmatpush2.bf16.msra.mxu0 %v5824
        %8986 = vmatprep.subr.bf16.mxu0 %v5806
        %8987 = vmatpush2.bf16.msra.mxu0 %v5805
        %8988 = vmatprep.mubr.bf16.mxu0 %v1613
        %8989 = vmatmul.mubr.bf16.gmra.mxu0 %v1611
        %v8990 = vpop.f32.mrf.mxu0
        %v8991 = vadd.f32 %v8950, %v8990
        %v8992 = vpop.f32.mrf.mxu0
        %v8993 = vadd.f32 %v8952, %v8992
        %v8994 = vpop.f32.mrf.mxu0
        %v8995 = vpop.f32.mrf.mxu0
        %8996 = vdwg.mxu0
        %8997 = vmatprep.subr.bf16.mxu0 %v6091
        %8998 = vmatpush1.bf16.msra.mxu0 %v6090
        %8999 = vmatprep.subr.bf16.mxu0 %v6072
        %9000 = vmatpush1.bf16.msra.mxu0 %v6071
        %9001 = vmatprep.subr.bf16.mxu0 %v6053
        %9002 = vmatpush1.bf16.msra.mxu0 %v6052
        %9003 = vmatprep.subr.bf16.mxu0 %v6034
        %9004 = vmatpush1.bf16.msra.mxu0 %v6033
        %9005 = vmatprep.subr.bf16.mxu0 %v6015
        %9006 = vmatpush1.bf16.msra.mxu0 %v6014
        %9007 = vmatprep.subr.bf16.mxu0 %v5996
        %9008 = vmatpush1.bf16.msra.mxu0 %v5995
        %9009 = vmatprep.subr.bf16.mxu0 %v5977
        %9010 = vmatpush1.bf16.msra.mxu0 %v5976
        %9011 = vmatprep.subr.bf16.mxu0 %v5958
        %9012 = vmatpush1.bf16.msra.mxu0 %v5957
        %9013 = vmatprep.subr.bf16.mxu0 %v6243
        %9014 = vmatpush2.bf16.msra.mxu0 %v6242
        %9015 = vmatprep.subr.bf16.mxu0 %v6224
        %9016 = vmatpush2.bf16.msra.mxu0 %v6223
        %9017 = vmatprep.subr.bf16.mxu0 %v6205
        %9018 = vmatpush2.bf16.msra.mxu0 %v6204
        %9019 = vmatprep.subr.bf16.mxu0 %v6186
        %9020 = vmatpush2.bf16.msra.mxu0 %v6185
        %9021 = vmatprep.subr.bf16.mxu0 %v6167
        %9022 = vmatpush2.bf16.msra.mxu0 %v6166
        %9023 = vmatprep.subr.bf16.mxu0 %v6148
        %9024 = vmatpush2.bf16.msra.mxu0 %v6147
        %9025 = vmatprep.subr.bf16.mxu0 %v6129
        %9026 = vmatpush2.bf16.msra.mxu0 %v6128
        %9027 = vmatprep.subr.bf16.mxu0 %v6110
        %9028 = vmatpush2.bf16.msra.mxu0 %v6109
        %9029 = vmatprep.mubr.bf16.mxu0 %v1610
        %9030 = vmatmul.mubr.bf16.gmra.mxu0 %v1596
        %v9031 = vpop.f32.mrf.mxu0
        %v9032 = vadd.f32 %v8991, %v9031
        %v9033 = vpop.f32.mrf.mxu0
        %v9034 = vadd.f32 %v8993, %v9033
        %v9035 = vpop.f32.mrf.mxu0
        %v9036 = vpop.f32.mrf.mxu0
        %9037 = vdwg.mxu0
        %9038 = vmatprep.subr.bf16.mxu0 %v6395
        %9039 = vmatpush1.bf16.msra.mxu0 %v6394
        %9040 = vmatprep.subr.bf16.mxu0 %v6376
        %9041 = vmatpush1.bf16.msra.mxu0 %v6375
        %9042 = vmatprep.subr.bf16.mxu0 %v6357
        %9043 = vmatpush1.bf16.msra.mxu0 %v6356
        %9044 = vmatprep.subr.bf16.mxu0 %v6338
        %9045 = vmatpush1.bf16.msra.mxu0 %v6337
        %9046 = vmatprep.subr.bf16.mxu0 %v6319
        %9047 = vmatpush1.bf16.msra.mxu0 %v6318
        %9048 = vmatprep.subr.bf16.mxu0 %v6300
        %9049 = vmatpush1.bf16.msra.mxu0 %v6299
        %9050 = vmatprep.subr.bf16.mxu0 %v6281
        %9051 = vmatpush1.bf16.msra.mxu0 %v6280
        %9052 = vmatprep.subr.bf16.mxu0 %v6262
        %9053 = vmatpush1.bf16.msra.mxu0 %v6261
        %9054 = vmatprep.subr.bf16.mxu0 %v6547
        %9055 = vmatpush2.bf16.msra.mxu0 %v6546
        %9056 = vmatprep.subr.bf16.mxu0 %v6528
        %9057 = vmatpush2.bf16.msra.mxu0 %v6527
        %9058 = vmatprep.subr.bf16.mxu0 %v6509
        %9059 = vmatpush2.bf16.msra.mxu0 %v6508
        %9060 = vmatprep.subr.bf16.mxu0 %v6490
        %9061 = vmatpush2.bf16.msra.mxu0 %v6489
        %9062 = vmatprep.subr.bf16.mxu0 %v6471
        %9063 = vmatpush2.bf16.msra.mxu0 %v6470
        %9064 = vmatprep.subr.bf16.mxu0 %v6452
        %9065 = vmatpush2.bf16.msra.mxu0 %v6451
        %9066 = vmatprep.subr.bf16.mxu0 %v6433
        %9067 = vmatpush2.bf16.msra.mxu0 %v6432
        %9068 = vmatprep.subr.bf16.mxu0 %v6414
        %9069 = vmatpush2.bf16.msra.mxu0 %v6413
        %9070 = vmatprep.mubr.bf16.mxu0 %v1614
        %9071 = vmatmul.mubr.bf16.gmra.mxu0 %v1612
        %v9072 = vpop.f32.mrf.mxu0
        %v9073 = vadd.f32 %v9032, %v9072
        %v9074 = vpop.f32.mrf.mxu0
        %v9075 = vadd.f32 %v9034, %v9074
        %v9076 = vpop.f32.mrf.mxu0
        %v9077 = vpop.f32.mrf.mxu0
        %9078 = vdwg.mxu0
        %9079 = vmatprep.subr.bf16.mxu0 %v5485
        %9080 = vmatpush1.bf16.msra.mxu0 %v5484
        %9081 = vmatprep.subr.bf16.mxu0 %v5466
        %9082 = vmatpush1.bf16.msra.mxu0 %v5465
        %9083 = vmatprep.subr.bf16.mxu0 %v5447
        %9084 = vmatpush1.bf16.msra.mxu0 %v5446
        %9085 = vmatprep.subr.bf16.mxu0 %v5428
        %9086 = vmatpush1.bf16.msra.mxu0 %v5427
        %9087 = vmatprep.subr.bf16.mxu0 %v5409
        %9088 = vmatpush1.bf16.msra.mxu0 %v5408
        %9089 = vmatprep.subr.bf16.mxu0 %v5390
        %9090 = vmatpush1.bf16.msra.mxu0 %v5389
        %9091 = vmatprep.subr.bf16.mxu0 %v5371
        %9092 = vmatpush1.bf16.msra.mxu0 %v5370
        %9093 = vmatprep.subr.bf16.mxu0 %v5352
        %9094 = vmatpush1.bf16.msra.mxu0 %v5351
        %9095 = vmatprep.subr.bf16.mxu0 %v5637
        %9096 = vmatpush2.bf16.msra.mxu0 %v5636
        %9097 = vmatprep.subr.bf16.mxu0 %v5618
        %9098 = vmatpush2.bf16.msra.mxu0 %v5617
        %9099 = vmatprep.subr.bf16.mxu0 %v5599
        %9100 = vmatpush2.bf16.msra.mxu0 %v5598
        %9101 = vmatprep.subr.bf16.mxu0 %v5580
        %9102 = vmatpush2.bf16.msra.mxu0 %v5579
        %9103 = vmatprep.subr.bf16.mxu0 %v5561
        %9104 = vmatpush2.bf16.msra.mxu0 %v5560
        %9105 = vmatprep.subr.bf16.mxu0 %v5542
        %9106 = vmatpush2.bf16.msra.mxu0 %v5541
        %9107 = vmatprep.subr.bf16.mxu0 %v5523
        %9108 = vmatpush2.bf16.msra.mxu0 %v5522
        %9109 = vmatprep.subr.bf16.mxu0 %v5504
        %9110 = vmatpush2.bf16.msra.mxu0 %v5503
        %9111 = vmatprep.mubr.bf16.mxu0 %v1603
        %9112 = vmatmul.mubr.bf16.gmra.mxu0 %v1589
        %v9113 = vpop.f32.mrf.mxu0
        %v9114 = vadd.f32 0.0, %v9113
        %v9115 = vpop.f32.mrf.mxu0
        %v9116 = vadd.f32 0.0, %v9115
        %v9117 = vpop.f32.mrf.mxu0
        %v9118 = vpop.f32.mrf.mxu0
        %9119 = vdwg.mxu0
        %9120 = vmatprep.subr.bf16.mxu0 %v5789
        %9121 = vmatpush1.bf16.msra.mxu0 %v5788
        %9122 = vmatprep.subr.bf16.mxu0 %v5770
        %9123 = vmatpush1.bf16.msra.mxu0 %v5769
        %9124 = vmatprep.subr.bf16.mxu0 %v5751
        %9125 = vmatpush1.bf16.msra.mxu0 %v5750
        %9126 = vmatprep.subr.bf16.mxu0 %v5732
        %9127 = vmatpush1.bf16.msra.mxu0 %v5731
        %9128 = vmatprep.subr.bf16.mxu0 %v5713
        %9129 = vmatpush1.bf16.msra.mxu0 %v5712
        %9130 = vmatprep.subr.bf16.mxu0 %v5694
        %9131 = vmatpush1.bf16.msra.mxu0 %v5693
        %9132 = vmatprep.subr.bf16.mxu0 %v5675
        %9133 = vmatpush1.bf16.msra.mxu0 %v5674
        %9134 = vmatprep.subr.bf16.mxu0 %v5656
        %9135 = vmatpush1.bf16.msra.mxu0 %v5655
        %9136 = vmatprep.subr.bf16.mxu0 %v5941
        %9137 = vmatpush2.bf16.msra.mxu0 %v5940
        %9138 = vmatprep.subr.bf16.mxu0 %v5922
        %9139 = vmatpush2.bf16.msra.mxu0 %v5921
        %9140 = vmatprep.subr.bf16.mxu0 %v5903
        %9141 = vmatpush2.bf16.msra.mxu0 %v5902
        %9142 = vmatprep.subr.bf16.mxu0 %v5884
        %9143 = vmatpush2.bf16.msra.mxu0 %v5883
        %9144 = vmatprep.subr.bf16.mxu0 %v5865
        %9145 = vmatpush2.bf16.msra.mxu0 %v5864
        %9146 = vmatprep.subr.bf16.mxu0 %v5846
        %9147 = vmatpush2.bf16.msra.mxu0 %v5845
        %9148 = vmatprep.subr.bf16.mxu0 %v5827
        %9149 = vmatpush2.bf16.msra.mxu0 %v5826
        %9150 = vmatprep.subr.bf16.mxu0 %v5808
        %9151 = vmatpush2.bf16.msra.mxu0 %v5807
        %9152 = vmatprep.mubr.bf16.mxu0 %v1613
        %9153 = vmatmul.mubr.bf16.gmra.mxu0 %v1611
        %v9154 = vpop.f32.mrf.mxu0
        %v9155 = vadd.f32 %v9114, %v9154
        %v9156 = vpop.f32.mrf.mxu0
        %v9157 = vadd.f32 %v9116, %v9156
        %v9158 = vpop.f32.mrf.mxu0
        %v9159 = vpop.f32.mrf.mxu0
        %9160 = vdwg.mxu0
        %9161 = vmatprep.subr.bf16.mxu0 %v6093
        %9162 = vmatpush1.bf16.msra.mxu0 %v6092
        %9163 = vmatprep.subr.bf16.mxu0 %v6074
        %9164 = vmatpush1.bf16.msra.mxu0 %v6073
        %9165 = vmatprep.subr.bf16.mxu0 %v6055
        %9166 = vmatpush1.bf16.msra.mxu0 %v6054
        %9167 = vmatprep.subr.bf16.mxu0 %v6036
        %9168 = vmatpush1.bf16.msra.mxu0 %v6035
        %9169 = vmatprep.subr.bf16.mxu0 %v6017
        %9170 = vmatpush1.bf16.msra.mxu0 %v6016
        %9171 = vmatprep.subr.bf16.mxu0 %v5998
        %9172 = vmatpush1.bf16.msra.mxu0 %v5997
        %9173 = vmatprep.subr.bf16.mxu0 %v5979
        %9174 = vmatpush1.bf16.msra.mxu0 %v5978
        %9175 = vmatprep.subr.bf16.mxu0 %v5960
        %9176 = vmatpush1.bf16.msra.mxu0 %v5959
        %9177 = vmatprep.subr.bf16.mxu0 %v6245
        %9178 = vmatpush2.bf16.msra.mxu0 %v6244
        %9179 = vmatprep.subr.bf16.mxu0 %v6226
        %9180 = vmatpush2.bf16.msra.mxu0 %v6225
        %9181 = vmatprep.subr.bf16.mxu0 %v6207
        %9182 = vmatpush2.bf16.msra.mxu0 %v6206
        %9183 = vmatprep.subr.bf16.mxu0 %v6188
        %9184 = vmatpush2.bf16.msra.mxu0 %v6187
        %9185 = vmatprep.subr.bf16.mxu0 %v6169
        %9186 = vmatpush2.bf16.msra.mxu0 %v6168
        %9187 = vmatprep.subr.bf16.mxu0 %v6150
        %9188 = vmatpush2.bf16.msra.mxu0 %v6149
        %9189 = vmatprep.subr.bf16.mxu0 %v6131
        %9190 = vmatpush2.bf16.msra.mxu0 %v6130
        %9191 = vmatprep.subr.bf16.mxu0 %v6112
        %9192 = vmatpush2.bf16.msra.mxu0 %v6111
        %9193 = vmatprep.mubr.bf16.mxu0 %v1610
        %9194 = vmatmul.mubr.bf16.gmra.mxu0 %v1596
        %v9195 = vpop.f32.mrf.mxu0
        %v9196 = vadd.f32 %v9155, %v9195
        %v9197 = vpop.f32.mrf.mxu0
        %v9198 = vadd.f32 %v9157, %v9197
        %v9199 = vpop.f32.mrf.mxu0
        %v9200 = vpop.f32.mrf.mxu0
        %9201 = vdwg.mxu0
        %9202 = vmatprep.subr.bf16.mxu0 %v6397
        %9203 = vmatpush1.bf16.msra.mxu0 %v6396
        %9204 = vmatprep.subr.bf16.mxu0 %v6378
        %9205 = vmatpush1.bf16.msra.mxu0 %v6377
        %9206 = vmatprep.subr.bf16.mxu0 %v6359
        %9207 = vmatpush1.bf16.msra.mxu0 %v6358
        %9208 = vmatprep.subr.bf16.mxu0 %v6340
        %9209 = vmatpush1.bf16.msra.mxu0 %v6339
        %9210 = vmatprep.subr.bf16.mxu0 %v6321
        %9211 = vmatpush1.bf16.msra.mxu0 %v6320
        %9212 = vmatprep.subr.bf16.mxu0 %v6302
        %9213 = vmatpush1.bf16.msra.mxu0 %v6301
        %9214 = vmatprep.subr.bf16.mxu0 %v6283
        %9215 = vmatpush1.bf16.msra.mxu0 %v6282
        %9216 = vmatprep.subr.bf16.mxu0 %v6264
        %9217 = vmatpush1.bf16.msra.mxu0 %v6263
        %9218 = vmatprep.subr.bf16.mxu0 %v6549
        %9219 = vmatpush2.bf16.msra.mxu0 %v6548
        %9220 = vmatprep.subr.bf16.mxu0 %v6530
        %9221 = vmatpush2.bf16.msra.mxu0 %v6529
        %9222 = vmatprep.subr.bf16.mxu0 %v6511
        %9223 = vmatpush2.bf16.msra.mxu0 %v6510
        %9224 = vmatprep.subr.bf16.mxu0 %v6492
        %9225 = vmatpush2.bf16.msra.mxu0 %v6491
        %9226 = vmatprep.subr.bf16.mxu0 %v6473
        %9227 = vmatpush2.bf16.msra.mxu0 %v6472
        %9228 = vmatprep.subr.bf16.mxu0 %v6454
        %9229 = vmatpush2.bf16.msra.mxu0 %v6453
        %9230 = vmatprep.subr.bf16.mxu0 %v6435
        %9231 = vmatpush2.bf16.msra.mxu0 %v6434
        %9232 = vmatprep.subr.bf16.mxu0 %v6416
        %9233 = vmatpush2.bf16.msra.mxu0 %v6415
        %9234 = vmatprep.mubr.bf16.mxu0 %v1614
        %9235 = vmatmul.mubr.bf16.gmra.mxu0 %v1612
        %v9236 = vpop.f32.mrf.mxu0
        %v9237 = vadd.f32 %v9196, %v9236
        %v9238 = vpop.f32.mrf.mxu0
        %v9239 = vadd.f32 %v9198, %v9238
        %v9240 = vpop.f32.mrf.mxu0
        %v9241 = vpop.f32.mrf.mxu0
        %9242 = vdwg.mxu0
        %9243 = vmatprep.subr.bf16.mxu0 0
        %9244 = vmatpush1.bf16.msra.mxu0 %v5486
        %9245 = vmatprep.subr.bf16.mxu0 0
        %9246 = vmatpush1.bf16.msra.mxu0 %v5467
        %9247 = vmatprep.subr.bf16.mxu0 0
        %9248 = vmatpush1.bf16.msra.mxu0 %v5448
        %9249 = vmatprep.subr.bf16.mxu0 0
        %9250 = vmatpush1.bf16.msra.mxu0 %v5429
        %9251 = vmatprep.subr.bf16.mxu0 0
        %9252 = vmatpush1.bf16.msra.mxu0 %v5410
        %9253 = vmatprep.subr.bf16.mxu0 0
        %9254 = vmatpush1.bf16.msra.mxu0 %v5391
        %9255 = vmatprep.subr.bf16.mxu0 0
        %9256 = vmatpush1.bf16.msra.mxu0 %v5372
        %9257 = vmatprep.subr.bf16.mxu0 0
        %9258 = vmatpush1.bf16.msra.mxu0 %v5353
        %9259 = vmatprep.subr.bf16.mxu0 0
        %9260 = vmatpush2.bf16.msra.mxu0 %v5638
        %9261 = vmatprep.subr.bf16.mxu0 0
        %9262 = vmatpush2.bf16.msra.mxu0 %v5619
        %9263 = vmatprep.subr.bf16.mxu0 0
        %9264 = vmatpush2.bf16.msra.mxu0 %v5600
        %9265 = vmatprep.subr.bf16.mxu0 0
        %9266 = vmatpush2.bf16.msra.mxu0 %v5581
        %9267 = vmatprep.subr.bf16.mxu0 0
        %9268 = vmatpush2.bf16.msra.mxu0 %v5562
        %9269 = vmatprep.subr.bf16.mxu0 0
        %9270 = vmatpush2.bf16.msra.mxu0 %v5543
        %9271 = vmatprep.subr.bf16.mxu0 0
        %9272 = vmatpush2.bf16.msra.mxu0 %v5524
        %9273 = vmatprep.subr.bf16.mxu0 0
        %9274 = vmatpush2.bf16.msra.mxu0 %v5505
        %9275 = vmatprep.mubr.bf16.mxu0 %v1603
        %9276 = vmatmul.mubr.bf16.gmra.mxu0 %v1589
        %v9277 = vpop.f32.mrf.mxu0
        %v9278 = vadd.f32 0.0, %v9277
        %v9279 = vpop.f32.mrf.mxu0
        %v9280 = vpop.f32.mrf.mxu0
        %v9281 = vpop.f32.mrf.mxu0
        %9282 = vdwg.mxu0
        %9283 = vmatprep.subr.bf16.mxu0 0
        %9284 = vmatpush1.bf16.msra.mxu0 %v5790
        %9285 = vmatprep.subr.bf16.mxu0 0
        %9286 = vmatpush1.bf16.msra.mxu0 %v5771
        %9287 = vmatprep.subr.bf16.mxu0 0
        %9288 = vmatpush1.bf16.msra.mxu0 %v5752
        %9289 = vmatprep.subr.bf16.mxu0 0
        %9290 = vmatpush1.bf16.msra.mxu0 %v5733
        %9291 = vmatprep.subr.bf16.mxu0 0
        %9292 = vmatpush1.bf16.msra.mxu0 %v5714
        %9293 = vmatprep.subr.bf16.mxu0 0
        %9294 = vmatpush1.bf16.msra.mxu0 %v5695
        %9295 = vmatprep.subr.bf16.mxu0 0
        %9296 = vmatpush1.bf16.msra.mxu0 %v5676
        %9297 = vmatprep.subr.bf16.mxu0 0
        %9298 = vmatpush1.bf16.msra.mxu0 %v5657
        %9299 = vmatprep.subr.bf16.mxu0 0
        %9300 = vmatpush2.bf16.msra.mxu0 %v5942
        %9301 = vmatprep.subr.bf16.mxu0 0
        %9302 = vmatpush2.bf16.msra.mxu0 %v5923
        %9303 = vmatprep.subr.bf16.mxu0 0
        %9304 = vmatpush2.bf16.msra.mxu0 %v5904
        %9305 = vmatprep.subr.bf16.mxu0 0
        %9306 = vmatpush2.bf16.msra.mxu0 %v5885
        %9307 = vmatprep.subr.bf16.mxu0 0
        %9308 = vmatpush2.bf16.msra.mxu0 %v5866
        %9309 = vmatprep.subr.bf16.mxu0 0
        %9310 = vmatpush2.bf16.msra.mxu0 %v5847
        %9311 = vmatprep.subr.bf16.mxu0 0
        %9312 = vmatpush2.bf16.msra.mxu0 %v5828
        %9313 = vmatprep.subr.bf16.mxu0 0
        %9314 = vmatpush2.bf16.msra.mxu0 %v5809
        %9315 = vmatprep.mubr.bf16.mxu0 %v1613
        %9316 = vmatmul.mubr.bf16.gmra.mxu0 %v1611
        %v9317 = vpop.f32.mrf.mxu0
        %v9318 = vadd.f32 %v9278, %v9317
        %v9319 = vpop.f32.mrf.mxu0
        %v9320 = vpop.f32.mrf.mxu0
        %v9321 = vpop.f32.mrf.mxu0
        %9322 = vdwg.mxu0
        %9323 = vmatprep.subr.bf16.mxu0 0
        %9324 = vmatpush1.bf16.msra.mxu0 %v6094
        %9325 = vmatprep.subr.bf16.mxu0 0
        %9326 = vmatpush1.bf16.msra.mxu0 %v6075
        %9327 = vmatprep.subr.bf16.mxu0 0
        %9328 = vmatpush1.bf16.msra.mxu0 %v6056
        %9329 = vmatprep.subr.bf16.mxu0 0
        %9330 = vmatpush1.bf16.msra.mxu0 %v6037
        %9331 = vmatprep.subr.bf16.mxu0 0
        %9332 = vmatpush1.bf16.msra.mxu0 %v6018
        %9333 = vmatprep.subr.bf16.mxu0 0
        %9334 = vmatpush1.bf16.msra.mxu0 %v5999
        %9335 = vmatprep.subr.bf16.mxu0 0
        %9336 = vmatpush1.bf16.msra.mxu0 %v5980
        %9337 = vmatprep.subr.bf16.mxu0 0
        %9338 = vmatpush1.bf16.msra.mxu0 %v5961
        %9339 = vmatprep.subr.bf16.mxu0 0
        %9340 = vmatpush2.bf16.msra.mxu0 %v6246
        %9341 = vmatprep.subr.bf16.mxu0 0
        %9342 = vmatpush2.bf16.msra.mxu0 %v6227
        %9343 = vmatprep.subr.bf16.mxu0 0
        %9344 = vmatpush2.bf16.msra.mxu0 %v6208
        %9345 = vmatprep.subr.bf16.mxu0 0
        %9346 = vmatpush2.bf16.msra.mxu0 %v6189
        %9347 = vmatprep.subr.bf16.mxu0 0
        %9348 = vmatpush2.bf16.msra.mxu0 %v6170
        %9349 = vmatprep.subr.bf16.mxu0 0
        %9350 = vmatpush2.bf16.msra.mxu0 %v6151
        %9351 = vmatprep.subr.bf16.mxu0 0
        %9352 = vmatpush2.bf16.msra.mxu0 %v6132
        %9353 = vmatprep.subr.bf16.mxu0 0
        %9354 = vmatpush2.bf16.msra.mxu0 %v6113
        %9355 = vmatprep.mubr.bf16.mxu0 %v1610
        %9356 = vmatmul.mubr.bf16.gmra.mxu0 %v1596
        %v9357 = vpop.f32.mrf.mxu0
        %v9358 = vadd.f32 %v9318, %v9357
        %v9359 = vpop.f32.mrf.mxu0
        %v9360 = vpop.f32.mrf.mxu0
        %v9361 = vpop.f32.mrf.mxu0
        %9362 = vdwg.mxu0
        %9363 = vmatprep.subr.bf16.mxu0 0
        %9364 = vmatpush1.bf16.msra.mxu0 %v6398
        %9365 = vmatprep.subr.bf16.mxu0 0
        %9366 = vmatpush1.bf16.msra.mxu0 %v6379
        %9367 = vmatprep.subr.bf16.mxu0 0
        %9368 = vmatpush1.bf16.msra.mxu0 %v6360
        %9369 = vmatprep.subr.bf16.mxu0 0
        %9370 = vmatpush1.bf16.msra.mxu0 %v6341
        %9371 = vmatprep.subr.bf16.mxu0 0
        %9372 = vmatpush1.bf16.msra.mxu0 %v6322
        %9373 = vmatprep.subr.bf16.mxu0 0
        %9374 = vmatpush1.bf16.msra.mxu0 %v6303
        %9375 = vmatprep.subr.bf16.mxu0 0
        %9376 = vmatpush1.bf16.msra.mxu0 %v6284
        %9377 = vmatprep.subr.bf16.mxu0 0
        %9378 = vmatpush1.bf16.msra.mxu0 %v6265
        %9379 = vmatprep.subr.bf16.mxu0 0
        %9380 = vmatpush2.bf16.msra.mxu0 %v6550
        %9381 = vmatprep.subr.bf16.mxu0 0
        %9382 = vmatpush2.bf16.msra.mxu0 %v6531
        %9383 = vmatprep.subr.bf16.mxu0 0
        %9384 = vmatpush2.bf16.msra.mxu0 %v6512
        %9385 = vmatprep.subr.bf16.mxu0 0
        %9386 = vmatpush2.bf16.msra.mxu0 %v6493
        %9387 = vmatprep.subr.bf16.mxu0 0
        %9388 = vmatpush2.bf16.msra.mxu0 %v6474
        %9389 = vmatprep.subr.bf16.mxu0 0
        %9390 = vmatpush2.bf16.msra.mxu0 %v6455
        %9391 = vmatprep.subr.bf16.mxu0 0
        %9392 = vmatpush2.bf16.msra.mxu0 %v6436
        %9393 = vmatprep.subr.bf16.mxu0 0
        %9394 = vmatpush2.bf16.msra.mxu0 %v6417
        %9395 = vmatprep.mubr.bf16.mxu0 %v1614
        %9396 = vmatmul.mubr.bf16.gmra.mxu0 %v1612
        %v9397 = vpop.f32.mrf.mxu0
        %v9398 = vadd.f32 %v9358, %v9397
        %v9399 = vpop.f32.mrf.mxu0
        %v9400 = vpop.f32.mrf.mxu0
        %v9401 = vpop.f32.mrf.mxu0
        %9402 = vdwg.mxu0
        %v9422 = vcombine.low %v7925, %v7927
        %v9423 = vcombine.low %v8089, %v8091
        %v9425 = vunpack.c.l.s4 1983009808
        %v9426 = vunpack.c.0.s8 %v9425
        %v9427 = vlaneseq
        %v9428 = vshrl.u32 %v9427, 7
        %v9429 = vsub.s32 %v9426, %v9428
        %v9430 = vrot.slane %v9422, %v9429
        %v9432 = vunpack.c.l.s4 1983009808
        %v9433 = vunpack.c.0.s8 %v9432
        %v9434 = vlaneseq
        %v9435 = vshrl.u32 %v9434, 7
        %v9436 = vsub.s32 %v9433, %v9435
        %v9437 = vrot.slane %v9423, %v9436
        %v9438 = vcombine.low %v9430, %v9437
        %v9439 = vcombine.low %v8253, %v8255
        %v9440 = vcombine.low %v8417, %v8419
        %v9442 = vunpack.c.l.s4 1983009808
        %v9443 = vunpack.c.0.s8 %v9442
        %v9444 = vlaneseq
        %v9445 = vshrl.u32 %v9444, 7
        %v9446 = vsub.s32 %v9443, %v9445
        %v9447 = vrot.slane %v9439, %v9446
        %v9449 = vunpack.c.l.s4 1983009808
        %v9450 = vunpack.c.0.s8 %v9449
        %v9451 = vlaneseq
        %v9452 = vshrl.u32 %v9451, 7
        %v9453 = vsub.s32 %v9450, %v9452
        %v9454 = vrot.slane %v9440, %v9453
        %v9455 = vcombine.low %v9447, %v9454
        %v9456 = vcombine.low %v8581, %v8583
        %v9457 = vcombine.low %v8745, %v8747
        %v9459 = vunpack.c.l.s4 1983009808
        %v9460 = vunpack.c.0.s8 %v9459
        %v9461 = vlaneseq
        %v9462 = vshrl.u32 %v9461, 7
        %v9463 = vsub.s32 %v9460, %v9462
        %v9464 = vrot.slane %v9456, %v9463
        %v9466 = vunpack.c.l.s4 1983009808
        %v9467 = vunpack.c.0.s8 %v9466
        %v9468 = vlaneseq
        %v9469 = vshrl.u32 %v9468, 7
        %v9470 = vsub.s32 %v9467, %v9469
        %v9471 = vrot.slane %v9457, %v9470
        %v9472 = vcombine.low %v9464, %v9471
        %v9473 = vcombine.low %v8909, %v8911
        %v9474 = vcombine.low %v9073, %v9075
        %v9476 = vunpack.c.l.s4 1983009808
        %v9477 = vunpack.c.0.s8 %v9476
        %v9478 = vlaneseq
        %v9479 = vshrl.u32 %v9478, 7
        %v9480 = vsub.s32 %v9477, %v9479
        %v9481 = vrot.slane %v9473, %v9480
        %v9483 = vunpack.c.l.s4 1983009808
        %v9484 = vunpack.c.0.s8 %v9483
        %v9485 = vlaneseq
        %v9486 = vshrl.u32 %v9485, 7
        %v9487 = vsub.s32 %v9484, %v9486
        %v9488 = vrot.slane %v9474, %v9487
        %v9489 = vcombine.low %v9481, %v9488
        %v9490 = vcombine.low %v9237, %v9239
        %v9492 = vunpack.c.l.s4 1983009808
        %v9493 = vunpack.c.0.s8 %v9492
        %v9494 = vlaneseq
        %v9495 = vshrl.u32 %v9494, 7
        %v9496 = vsub.s32 %v9493, %v9495
        %v9497 = vrot.slane %v9490, %v9496
        %v9499 = vunpack.c.l.s4 1983009808
        %v9500 = vunpack.c.0.s8 %v9499
        %v9501 = vlaneseq
        %v9502 = vshrl.u32 %v9501, 7
        %v9503 = vsub.s32 %v9500, %v9502
        %v9504 = vrot.slane %v9398, %v9503
        %v9505 = vcombine.low %v9497, %v9504
        %v9511 = vadd.f32 %v279, %v9438
        %v9512 = vadd.f32 %v280, %v9455
        %v9513 = vadd.f32 %v281, %v9472
        %v9514 = vadd.f32 %v282, %v9489
        %v9515 = vadd.f32 %v283, %v9505
        %9516 = vst [vmem:[#allocation2] sm:$0xff] %v9511
        %9517 = vst [vmem:[#allocation2 + $0x8] sm:$0xff] %v9512
        %9518 = vst [vmem:[#allocation2 + $0x10] sm:$0xff] %v9513
        %9519 = vst [vmem:[#allocation2 + $0x18] sm:$0xff] %v9514
        %9520 = vst [vmem:[#allocation2 + $0x20] sm:$0x3f] %v9515
        %p9521 = scmp.eq.s32.totalorder %s25, 7
        // Predicated region
        $region45: #{outblock_forward.4} parent=31 // pred_check
          %p9522 = pneg %p9521
        $region46: #{outblock_forward.4} parent=31 // pred_check_branch
          %9524 = sbr.rel (%p9522) target = $region48
        $region47: #{outblock_forward.4} parent=31 // pred_region
          %v9525 = vld [vmem:[#allocation2] sm:$0xff]
          %v9526 = vld [vmem:[#allocation2 + $0x8] sm:$0xff]
          %v9527 = vld [vmem:[#allocation2 + $0x10] sm:$0xff]
          %v9528 = vld [vmem:[#allocation2 + $0x18] sm:$0xff]
          %v9529 = vld [vmem:[#allocation2 + $0x20] sm:$0x3f]
          %v9530 = vld [vmem:[%s223] sm:$0xff]
          %v9531 = vld [vmem:[%s223 + $0x8] sm:$0xff]
          %v9532 = vld [vmem:[%s223 + $0x10] sm:$0x7]
          %v9536 = vlaneseq
          %v9537 = vshrl.u32 %v9536, 7
          %v9538 = vsub.s32 0, %v9537
          %v9539 = vrot.slane %v9530, %v9538
          %v9540 = vlaneseq
          %v9541 = vshrl.u32 %v9540, 7
          %v9542 = vsub.s32 1, %v9541
          %v9543 = vrot.slane %v9530, %v9542
          %v9544 = vlaneseq
          %v9545 = vshrl.u32 %v9544, 7
          %v9546 = vsub.s32 2, %v9545
          %v9547 = vrot.slane %v9530, %v9546
          %v9548 = vlaneseq
          %v9549 = vshrl.u32 %v9548, 7
          %v9550 = vsub.s32 3, %v9549
          %v9551 = vrot.slane %v9530, %v9550
          %v9552 = vlaneseq
          %v9553 = vshrl.u32 %v9552, 7
          %v9554 = vsub.s32 4, %v9553
          %v9555 = vrot.slane %v9530, %v9554
          %v9556 = vlaneseq
          %v9557 = vshrl.u32 %v9556, 7
          %v9558 = vsub.s32 5, %v9557
          %v9559 = vrot.slane %v9530, %v9558
          %v9560 = vlaneseq
          %v9561 = vshrl.u32 %v9560, 7
          %v9562 = vsub.s32 6, %v9561
          %v9563 = vrot.slane %v9530, %v9562
          %v9564 = vlaneseq
          %v9565 = vshrl.u32 %v9564, 7
          %v9566 = vsub.s32 7, %v9565
          %v9567 = vrot.slane %v9530, %v9566
          %v9568 = vlaneseq
          %v9569 = vshrl.u32 %v9568, 7
          %v9570 = vsub.s32 0, %v9569
          %v9571 = vrot.slane %v9531, %v9570
          %v9572 = vlaneseq
          %v9573 = vshrl.u32 %v9572, 7
          %v9574 = vsub.s32 1, %v9573
          %v9575 = vrot.slane %v9531, %v9574
          %v9576 = vlaneseq
          %v9577 = vshrl.u32 %v9576, 7
          %v9578 = vsub.s32 2, %v9577
          %v9579 = vrot.slane %v9531, %v9578
          %v9580 = vlaneseq
          %v9581 = vshrl.u32 %v9580, 7
          %v9582 = vsub.s32 3, %v9581
          %v9583 = vrot.slane %v9531, %v9582
          %v9584 = vlaneseq
          %v9585 = vshrl.u32 %v9584, 7
          %v9586 = vsub.s32 4, %v9585
          %v9587 = vrot.slane %v9531, %v9586
          %v9588 = vlaneseq
          %v9589 = vshrl.u32 %v9588, 7
          %v9590 = vsub.s32 5, %v9589
          %v9591 = vrot.slane %v9531, %v9590
          %v9592 = vlaneseq
          %v9593 = vshrl.u32 %v9592, 7
          %v9594 = vsub.s32 6, %v9593
          %v9595 = vrot.slane %v9531, %v9594
          %v9596 = vlaneseq
          %v9597 = vshrl.u32 %v9596, 7
          %v9598 = vsub.s32 7, %v9597
          %v9599 = vrot.slane %v9531, %v9598
          %v9600 = vlaneseq
          %v9601 = vshrl.u32 %v9600, 7
          %v9602 = vsub.s32 0, %v9601
          %v9603 = vrot.slane %v9532, %v9602
          %v9604 = vlaneseq
          %v9605 = vshrl.u32 %v9604, 7
          %v9606 = vsub.s32 1, %v9605
          %v9607 = vrot.slane %v9532, %v9606
          %v9608 = vlaneseq
          %v9609 = vshrl.u32 %v9608, 7
          %v9610 = vsub.s32 2, %v9609
          %v9611 = vrot.slane %v9532, %v9610
          %v9612 = vcombine.low %v9539, %v9543
          %v9613 = vcombine.low %v9547, %v9551
          %v9615 = vunpack.c.l.s4 1983009808
          %v9616 = vunpack.c.0.s8 %v9615
          %v9617 = vlaneseq
          %v9618 = vshrl.u32 %v9617, 7
          %v9619 = vsub.s32 %v9616, %v9618
          %v9620 = vrot.slane %v9612, %v9619
          %v9622 = vunpack.c.l.s4 1983009808
          %v9623 = vunpack.c.0.s8 %v9622
          %v9624 = vlaneseq
          %v9625 = vshrl.u32 %v9624, 7
          %v9626 = vsub.s32 %v9623, %v9625
          %v9627 = vrot.slane %v9613, %v9626
          %v9628 = vcombine.low %v9620, %v9627
          %v9629 = vcombine.low %v9555, %v9559
          %v9630 = vcombine.low %v9563, %v9567
          %v9632 = vunpack.c.l.s4 1983009808
          %v9633 = vunpack.c.0.s8 %v9632
          %v9634 = vlaneseq
          %v9635 = vshrl.u32 %v9634, 7
          %v9636 = vsub.s32 %v9633, %v9635
          %v9637 = vrot.slane %v9629, %v9636
          %v9639 = vunpack.c.l.s4 1983009808
          %v9640 = vunpack.c.0.s8 %v9639
          %v9641 = vlaneseq
          %v9642 = vshrl.u32 %v9641, 7
          %v9643 = vsub.s32 %v9640, %v9642
          %v9644 = vrot.slane %v9630, %v9643
          %v9645 = vcombine.low %v9637, %v9644
          %v9646 = vcombine.low %v9571, %v9575
          %v9647 = vcombine.low %v9579, %v9583
          %v9649 = vunpack.c.l.s4 1983009808
          %v9650 = vunpack.c.0.s8 %v9649
          %v9651 = vlaneseq
          %v9652 = vshrl.u32 %v9651, 7
          %v9653 = vsub.s32 %v9650, %v9652
          %v9654 = vrot.slane %v9646, %v9653
          %v9656 = vunpack.c.l.s4 1983009808
          %v9657 = vunpack.c.0.s8 %v9656
          %v9658 = vlaneseq
          %v9659 = vshrl.u32 %v9658, 7
          %v9660 = vsub.s32 %v9657, %v9659
          %v9661 = vrot.slane %v9647, %v9660
          %v9662 = vcombine.low %v9654, %v9661
          %v9663 = vcombine.low %v9587, %v9591
          %v9664 = vcombine.low %v9595, %v9599
          %v9666 = vunpack.c.l.s4 1983009808
          %v9667 = vunpack.c.0.s8 %v9666
          %v9668 = vlaneseq
          %v9669 = vshrl.u32 %v9668, 7
          %v9670 = vsub.s32 %v9667, %v9669
          %v9671 = vrot.slane %v9663, %v9670
          %v9673 = vunpack.c.l.s4 1983009808
          %v9674 = vunpack.c.0.s8 %v9673
          %v9675 = vlaneseq
          %v9676 = vshrl.u32 %v9675, 7
          %v9677 = vsub.s32 %v9674, %v9676
          %v9678 = vrot.slane %v9664, %v9677
          %v9679 = vcombine.low %v9671, %v9678
          %v9680 = vcombine.low %v9603, %v9607
          %v9682 = vunpack.c.l.s4 1983009808
          %v9683 = vunpack.c.0.s8 %v9682
          %v9684 = vlaneseq
          %v9685 = vshrl.u32 %v9684, 7
          %v9686 = vsub.s32 %v9683, %v9685
          %v9687 = vrot.slane %v9680, %v9686
          %v9689 = vunpack.c.l.s4 1983009808
          %v9690 = vunpack.c.0.s8 %v9689
          %v9691 = vlaneseq
          %v9692 = vshrl.u32 %v9691, 7
          %v9693 = vsub.s32 %v9690, %v9692
          %v9694 = vrot.slane %v9611, %v9693
          %v9695 = vcombine.low %v9687, %v9694
          %v9701 = vadd.f32 %v9525, %v9628
          %v9702 = vadd.f32 %v9526, %v9645
          %v9703 = vadd.f32 %v9527, %v9662
          %v9704 = vadd.f32 %v9528, %v9679
          %v9705 = vadd.f32 %v9529, %v9695
          %9706 = vst [vmem:[%s267] sm:$0xff] %v9701
          %9707 = vst [vmem:[%s267 + $0x8] sm:$0xff] %v9702
          %9708 = vst [vmem:[%s267 + $0x10] sm:$0xff] %v9703
          %9709 = vst [vmem:[%s267 + $0x18] sm:$0xff] %v9704
          %9710 = vst [vmem:[%s267 + $0x20] sm:$0x3f] %v9705
        $region48: #{outblock_forward.4} parent=31 // pred_fallthru
          _
        %s9711 = smul.u32 19, %s24
        %p9712 = scmp.lt.s32.totalorder %s9711, 37
        %s9713 = scalar_select %p9712, %s9711, 37
        %s9714 = smul.addr %s9713, 2
        %s9715 = scalar_lea.vmem %s3, %s9714
        // Predicated region
        $region49: #{outblock_forward.4} parent=31 // pred_check
          %p9716 = pneg %p130
        $region50: #{outblock_forward.4} parent=31 // pred_check_branch
          %9718 = sbr.rel (%p9716) target = $region52
        $region51: #{outblock_forward.4} parent=31 // pred_region
          %s9719 = smul.u32 19, %s24
        $region52: #{outblock_forward.4} parent=31 // pred_fallthru
          _
      $region32: #{outblock_forward.4} parent=5 // pred_fallthru
        _
      %p9720 = scmp.le.s32.totalorder 2, %s15
      // Predicated region
      $region53: #{outblock_forward.4} parent=5 // pred_check
        %p9721 = pneg %p9720
      $region54: #{outblock_forward.4} parent=5 // pred_check_branch
        %9723 = sbr.rel (%p9721) target = $region56
      $region55: #{outblock_forward.4} parent=5 // pred_region
        %s9724 = ssub.s32 %s15, 2
        // Predicated region
        $region57: #{outblock_forward.4} parent=55 // pred_check
          %p9725 = pneg %p136
        $region58: #{outblock_forward.4} parent=55 // pred_check_branch
          %9727 = sbr.rel (%p9725) target = $region60
        $region59: #{outblock_forward.4} parent=55 // pred_region
          %s9728 = smul.u32 19, %s26
          %p9729 = scmp.lt.s32.totalorder %s9728, 37
          %s9730 = scalar_select %p9729, %s9728, 37
          %s9731 = smul.addr %s9730, 2
          %s9732 = scalar_lea.vmem %s3, %s9731
        $region60: #{outblock_forward.4} parent=55 // pred_fallthru
          _
      $region56: #{outblock_forward.4} parent=5 // pred_fallthru
        _
    $region6: #{outblock_forward.4} parent=1 // loop_footer
      %s19 = sadd.s32 1, %s15
    $region7: #{outblock_forward.4} parent=1 // loop_footer_branch
      %14 = sbr.rel target = $region3
    $region8: #{outblock_forward.4} parent=1 // loop_exit
      _
    %9733 = vsyncpa [#allocation4], 1
    %s9734 = scalar_lea.sflag [#allocation4], 1
    %9735 = vsyncpa %s9734, 1
    %9736 = vsyncpa [#allocation6], 1
    %s9737 = scalar_lea.sflag [#allocation6], 1
    %9738 = vsyncpa %s9737, 1

</llo_original>
